<compile_context>
chip_gen: v5e
topology: v5e:2x2
jax: 0.10.0
libtpu: 0.0.40
codegen_flags: <defaults>
</compile_context>

<pallas_src>
import functools

import jax
import jax.numpy as jnp
import numpy as np
from jax import lax
from jax.experimental import pallas as pl
from jax.experimental.pallas import tpu as pltpu

KSIZE = 5
PAD = 2
GW1 = 16          # pre-pool output columns per group for conv1 -> (16/2)*16 = 128 lanes
GW2 = 8           # pre-pool output columns per group for conv2 -> (8/2)*32  = 128 lanes
NB_MAX = 8        # max images per grid step
VMEM_LIMIT = 32 * 1024 * 1024


# ----------------------------------------------------------------------------
# Pallas kernels
# ----------------------------------------------------------------------------
def _conv_relu_pool_kernel(x_ref, w_ref, b_ref, se_ref, so_ref, o_ref, *, hh, nb):
    """Fused 5x5 'same' conv + bias + ReLU + 2x2 max-pool for nb images / 1 group.

    x_ref : (nb, 1, hh+4, gw*5*cin) bf16   kw-expanded, halo'd column group
    w_ref : (5, gw*5*cin, 2*lanes)  bf16   per-kh block-diag weights, parities in N
    b_ref : (1, lanes) f32                 bias tiled over the gw//2 pooled columns
    se_ref/so_ref : (hh//2, hh) bf16       even/odd row selectors (vertical pool)
    o_ref : (nb, hh//2, lanes) bf16        lane-dense pooled NHWC output
    """
    lanes = b_ref.shape[-1]
    bias = b_ref[...]
    se = se_ref[...]
    so = so_ref[...]
    for i in range(nb):
        acc = jnp.zeros((hh, 2 * lanes), jnp.float32)
        for kh in range(KSIZE):
            xs = x_ref[i, 0, kh:kh + hh, :]                    # (hh, K) bf16
            acc = acc + jnp.dot(xs, w_ref[kh],
                                preferred_element_type=jnp.float32)
        # Horizontal 2-max: parities were produced side by side in N; the split
        # at lane `lanes` (=128) is vreg-aligned.  Bias/ReLU commute with max.
        y = jnp.maximum(acc[:, :lanes], acc[:, lanes:])
        y = jnp.maximum(y + bias, 0.0).astype(jnp.bfloat16)
        # Vertical 2-max via two tiny bf16 0/1 row-selection matmuls (MXU has
        # plenty of slack; avoids strided sublane slicing / relayouts).
        pooled = jnp.maximum(
            jnp.dot(se, y, preferred_element_type=jnp.float32),
            jnp.dot(so, y, preferred_element_type=jnp.float32))
        o_ref[i] = pooled.astype(o_ref.dtype)


def _linear_kernel(x_ref, w_ref, b_ref, o_ref):
    """Single collapsed Linear: (B,4608)@(4608,128) + bias (cols 7..127 are zero)."""
    o_ref[...] = jnp.dot(x_ref[...], w_ref[...],
                         preferred_element_type=jnp.float32) + b_ref[...]


# ----------------------------------------------------------------------------
# Parameter / activation preparation (host side)
# ----------------------------------------------------------------------------
def _build_tap_weights(w_hwio, gw):
    """(5,5,Cin,Cout) HWIO -> (5, gw*5*Cin, 2*(gw//2)*Cout) bf16.

    Row index:    u*5*Cin + kw*Cin + ci   (u = pre-pool column within group)
    Column index: par*lanes + j*Cout + co (u = 2*j + par, parities side by side)
    """
    kh_, kw_, cin, cout = w_hwio.shape
    half = gw // 2
    lanes = half * cout
    K = gw * kw_ * cin
    w_np = np.asarray(w_hwio, np.float32)
    bd = np.zeros((kh_, K, 2 * lanes), np.float32)
    for kh in range(kh_):
        for kw in range(kw_):
            for j in range(half):
                for par in (0, 1):
                    u = 2 * j + par
                    r0 = u * kw_ * cin + kw * cin
                    c0 = par * lanes + j * cout
                    bd[kh, r0:r0 + cin, c0:c0 + cout] = w_np[kh, kw]
    return jnp.asarray(bd, jnp.bfloat16)


def _pool_selectors(hh):
    """Even/odd row selectors for vertical 2-max, (hh//2, hh) bf16 each."""
    half = hh // 2
    idx = np.arange(half)
    se = np.zeros((half, hh), np.float32)
    so = np.zeros((half, hh), np.float32)
    se[idx, 2 * idx] = 1.0
    so[idx, 2 * idx + 1] = 1.0
    return jnp.asarray(se, jnp.bfloat16), jnp.asarray(so, jnp.bfloat16)


def _expand_kw_groups(xp, gw, cin):
    """(B, Hp, Wp, cin) padded NHWC -> (B, ng, Hp, gw*5*cin).

    For output column u of group g, the last-dim slice [u*5*cin + kw*cin + ci]
    holds xp[:, :, g*gw + u + kw, ci]  (kw folded into the contraction dim).
    """
    B, Hp, Wp, _ = xp.shape
    W = Wp - 2 * PAD
    ng = W // gw
    slices = [xp[:, :, kw:kw + W, :] for kw in range(KSIZE)]   # (B,Hp,W,cin) x5
    xe = jnp.stack(slices, axis=3)                              # (B,Hp,W,5,cin)
    xe = xe.reshape(B, Hp, ng, gw, KSIZE * cin)
    xe = jnp.transpose(xe, (0, 2, 1, 3, 4))                     # (B,ng,Hp,gw,5cin)
    return xe.reshape(B, ng, Hp, gw * KSIZE * cin)


# ----------------------------------------------------------------------------
# Pallas wrappers
# ----------------------------------------------------------------------------
def conv_relu_pool(x_nhwc, bd_w, bias_tiled, *, gw, cout):
    """NHWC -> fused conv5x5(same)+ReLU+maxpool2 -> (B, H//2, (W//2)*cout) bf16."""
    B, H, W, cin = x_nhwc.shape
    assert W % gw == 0 and H % 2 == 0
    ng = W // gw
    ho = H // 2
    lanes = (gw // 2) * cout
    assert lanes == 128

    nb = min(NB_MAX, B)
    nbb = -(-B // nb)
    Bp = nbb * nb
    if Bp != B:
        x_nhwc = jnp.pad(x_nhwc, ((0, Bp - B), (0, 0), (0, 0), (0, 0)))

    Hp = H + 2 * PAD
    K = gw * KSIZE * cin
    xp = jnp.pad(x_nhwc, ((0, 0), (PAD, PAD), (PAD, PAD), (0, 0))).astype(jnp.bfloat16)
    xe = _expand_kw_groups(xp, gw, cin)                 # (Bp, ng, Hp, K)
    se, so = _pool_selectors(H)                         # (ho, H) bf16

    kernel = functools.partial(_conv_relu_pool_kernel, hh=H, nb=nb)
    out = pl.pallas_call(
        kernel,
        out_shape=jax.ShapeDtypeStruct((Bp, ho, ng * lanes), jnp.bfloat16),
        grid=(ng, nbb),                                 # ng first: sharded axis on v7x
        in_specs=[
            pl.BlockSpec((nb, 1, Hp, K), lambda g, bb: (bb, g, 0, 0)),
            pl.BlockSpec(bd_w.shape, lambda g, bb: (0, 0, 0)),
            pl.BlockSpec((1, lanes), lambda g, bb: (0, 0)),
            pl.BlockSpec((ho, H), lambda g, bb: (0, 0)),
            pl.BlockSpec((ho, H), lambda g, bb: (0, 0)),
        ],
        out_specs=pl.BlockSpec((nb, ho, lanes), lambda g, bb: (bb, 0, g)),
        compiler_params=pltpu.CompilerParams(
            dimension_semantics=("parallel", "parallel"),
            vmem_limit_bytes=VMEM_LIMIT),
    )(xe, bd_w, bias_tiled, se, so)
    if Bp != B:
        out = out[:B]
    return out                                          # (B, ho, (W//2)*cout)


def linear_collapsed(x, w, b):
    """out[:, :7] of (x @ w + b); w is the collapsed (4608,128) bf16 weight."""
    B, K = x.shape
    N = w.shape[1]
    tb = min(B, 256)
    nbb = -(-B // tb)
    Bp = nbb * tb
    xp = x if Bp == B else jnp.pad(x, ((0, Bp - B), (0, 0)))
    out = pl.pallas_call(
        _linear_kernel,
        out_shape=jax.ShapeDtypeStruct((Bp, N), jnp.float32),
        grid=(nbb,),
        in_specs=[
            pl.BlockSpec((tb, K), lambda i: (i, 0)),
            pl.BlockSpec((K, N), lambda i: (0, 0)),
            pl.BlockSpec((1, N), lambda i: (0, 0)),
        ],
        out_specs=pl.BlockSpec((tb, N), lambda i: (i, 0)),
        compiler_params=pltpu.CompilerParams(
            dimension_semantics=("parallel",),
            vmem_limit_bytes=VMEM_LIMIT),
    )(xp.astype(jnp.bfloat16), w, b)
    return out[:B, :7]


# ----------------------------------------------------------------------------
# Model
# ----------------------------------------------------------------------------
def init_params(key):
    ks = jax.random.split(key, 8)
    s = 0.05
    w1 = s * jax.random.normal(ks[0], (5, 5, 1, 16), jnp.float32)    # HWIO
    b1 = s * jax.random.normal(ks[1], (16,), jnp.float32)
    w2 = s * jax.random.normal(ks[2], (5, 5, 16, 32), jnp.float32)
    b2 = s * jax.random.normal(ks[3], (32,), jnp.float32)
    wo1 = s * jax.random.normal(ks[4], (32 * 12 * 12, 144), jnp.float32)  # torch NCHW-flat rows
    bo1 = s * jax.random.normal(ks[5], (144,), jnp.float32)
    wo2 = s * jax.random.normal(ks[6], (144, 7), jnp.float32)
    bo2 = s * jax.random.normal(ks[7], (7,), jnp.float32)
    return (w1, b1, w2, b2, wo1, bo1, wo2, bo2)


def prepare_kernel_params(params):
    """One-time conversion of torch-style weights into kernel-friendly layouts."""
    w1, b1, w2, b2, wo1, bo1, wo2, bo2 = params
    bd1 = _build_tap_weights(w1, GW1)                         # (5, 80, 256)  bf16
    bias1 = jnp.tile(b1, GW1 // 2).reshape(1, -1).astype(jnp.float32)   # (1,128)
    bd2 = _build_tap_weights(w2, GW2)                         # (5, 640, 256) bf16
    bias2 = jnp.tile(b2, GW2 // 2).reshape(1, -1).astype(jnp.float32)   # (1,128)
    # Fold torch's NCHW flatten into Linear1 rows: (c,h,w) -> (h,w,c).
    wo1_nhwc = (wo1.reshape(32, 12, 12, 144)
                .transpose(1, 2, 0, 3)
                .reshape(32 * 12 * 12, 144))
    # Collapse the two Linears (the torch forward has NO nonlinearity between
    # out1 and out2), then pad N 7 -> 128 for unmasked lane-dense stores.
    w_fc = wo1_nhwc @ wo2                                     # (4608, 7) f32
    b_fc = bo1 @ wo2 + bo2                                    # (7,)
    w_fc = jnp.pad(w_fc, ((0, 0), (0, 128 - 7))).astype(jnp.bfloat16)
    b_fc = jnp.pad(b_fc, (0, 128 - 7)).reshape(1, -1).astype(jnp.float32)
    return (bd1, bias1, bd2, bias2, w_fc, b_fc)


def cnn_forward(x_nchw, kparams):
    bd1, bias1, bd2, bias2, w_fc, b_fc = kparams
    B = x_nchw.shape[0]
    x = jnp.transpose(x_nchw, (0, 2, 3, 1))                    # NCHW -> NHWC (C==1: free)
    y1 = conv_relu_pool(x, bd1, bias1, gw=GW1, cout=16)        # (B, 24, 24*16) bf16
    y1 = y1.reshape(B, 24, 24, 16)
    y2 = conv_relu_pool(y1, bd2, bias2, gw=GW2, cout=32)       # (B, 12, 12*32) bf16
    flat = y2.reshape(B, 12 * 12 * 32)                         # NHWC flatten (matches w_fc rows)
    return linear_collapsed(flat, w_fc, b_fc)                  # (B, 7) f32


def reference_forward(x_nchw, params):
    """Pure-JAX f32 reference matching the PyTorch forward."""
    w1, b1, w2, b2, wo1, bo1, wo2, bo2 = params
    dn = ("NCHW", "HWIO", "NCHW")
    y = lax.conv_general_dilated(x_nchw, w1, (1, 1), ((2, 2), (2, 2)),
                                 dimension_numbers=dn)
    y = jax.nn.relu(y + b1.reshape(1, -1, 1, 1))
    y = lax.reduce_window(y, -jnp.inf, lax.max, (1, 1, 2, 2), (1, 1, 2, 2), "VALID")
    y = lax.conv_general_dilated(y, w2, (1, 1), ((2, 2), (2, 2)),
                                 dimension_numbers=dn)
    y = jax.nn.relu(y + b2.reshape(1, -1, 1, 1))
    y = lax.reduce_window(y, -jnp.inf, lax.max, (1, 1, 2, 2), (1, 1, 2, 2), "VALID")
    y = y.reshape(y.shape[0], -1)
    y = y @ wo1 + bo1
    return y @ wo2 + bo2


if __name__ == "__main__":
    key = jax.random.PRNGKey(0)
    k_param, k_x = jax.random.split(key)
    params = init_params(k_param)
    kparams = prepare_kernel_params(params)
    # Input spatial size 48x48 is implied by Linear(32*12*12, 144).
    x = jax.random.normal(k_x, (2, 1, 48, 48), jnp.float32)

    fwd = jax.jit(cnn_forward)
    out = jax.block_until_ready(fwd(x, kparams))
    assert out.shape == (2, 7) and out.dtype == jnp.float32

    ref = jax.block_until_ready(reference_forward(x, params))
    err = float(jnp.max(jnp.abs(out - ref)))
    # bf16 MXU operands (conv taps, pooling selectors, collapsed FC) with f32
    # accumulation vs. an all-f32 reference -> loose tolerance.
    assert jnp.allclose(out, ref, rtol=2e-2, atol=5e-2), f"max abs err {err}"
    print("KERNEL_OK")
</pallas_src>

<mosaic_0001>
module attributes {stable_mosaic.version = 11 : i64} {
  func.func @_conv_relu_pool_kernel(%arg0: i32, %arg1: i32, %arg2: memref<2x1x52x80xbf16, #tpu.memory_space<vmem>>, %arg3: memref<5x80x256xbf16, #tpu.memory_space<vmem>>, %arg4: memref<1x128xf32, #tpu.memory_space<vmem>>, %arg5: memref<24x48xbf16, #tpu.memory_space<vmem>>, %arg6: memref<24x48xbf16, #tpu.memory_space<vmem>>, %arg7: memref<2x24x128xbf16, #tpu.memory_space<vmem>>) attributes {dimension_semantics = [#tpu.dimension_semantics<parallel>, #tpu.dimension_semantics<parallel>], iteration_bounds = array<i64: 3, 1>, scalar_prefetch = 0 : i64, scratch_operands = 0 : i64, tpu.core_type = #tpu.core_type<tc>, window_params = [{transform_indices = @transform_0, window_bounds = array<i64: 2, 1, 52, 80>}, {pipeline_mode = #tpu.pipeline_mode<synchronous>, transform_indices = @transform_1, window_bounds = array<i64: 5, 80, 256>}, {pipeline_mode = #tpu.pipeline_mode<synchronous>, transform_indices = @transform_2, window_bounds = array<i64: 1, 128>}, {pipeline_mode = #tpu.pipeline_mode<synchronous>, transform_indices = @transform_3, window_bounds = array<i64: 24, 48>}, {pipeline_mode = #tpu.pipeline_mode<synchronous>, transform_indices = @transform_4, window_bounds = array<i64: 24, 48>}, {transform_indices = @transform_5, window_bounds = array<i64: 2, 24, 128>}]} {
    %c0 = arith.constant 0 : index
    %c0_0 = arith.constant 0 : index
    %0 = vector.load %arg4[%c0, %c0_0] : memref<1x128xf32, #tpu.memory_space<vmem>>, vector<1x128xf32>
    %c0_1 = arith.constant 0 : index
    %c0_2 = arith.constant 0 : index
    %1 = vector.load %arg5[%c0_1, %c0_2] : memref<24x48xbf16, #tpu.memory_space<vmem>>, vector<24x48xbf16>
    %c0_3 = arith.constant 0 : index
    %c0_4 = arith.constant 0 : index
    %2 = vector.load %arg6[%c0_3, %c0_4] : memref<24x48xbf16, #tpu.memory_space<vmem>>, vector<24x48xbf16>
    %cst = arith.constant 0.000000e+00 : f32
    %3 = vector.broadcast %cst : f32 to vector<48x256xf32>
    %c0_5 = arith.constant 0 : index
    %c0_6 = arith.constant 0 : index
    %c0_7 = arith.constant 0 : index
    %c0_8 = arith.constant 0 : index
    %4 = vector.load %arg2[%c0_5, %c0_6, %c0_7, %c0_8] : memref<2x1x52x80xbf16, #tpu.memory_space<vmem>>, vector<1x1x48x80xbf16>
    %5 = vector.shape_cast %4 : vector<1x1x48x80xbf16> to vector<48x80xbf16>
    %c0_9 = arith.constant 0 : index
    %c0_10 = arith.constant 0 : index
    %c0_11 = arith.constant 0 : index
    %6 = vector.load %arg3[%c0_9, %c0_10, %c0_11] : memref<5x80x256xbf16, #tpu.memory_space<vmem>>, vector<1x80x256xbf16>
    %7 = vector.shape_cast %6 : vector<1x80x256xbf16> to vector<80x256xbf16>
    %cst_12 = arith.constant dense<0.000000e+00> : vector<48x256xf32>
    %8 = tpu.matmul %5, %7, %cst_12 {dimension_numbers = #tpu.dot_dimension_numbers<[1], [0], [0], [1], [0, 0, 1, 1], [], []>} : vector<48x80xbf16>, vector<80x256xbf16>, vector<48x256xf32> -> vector<48x256xf32>
    %9 = arith.addf %3, %8 : vector<48x256xf32>
    %c0_13 = arith.constant 0 : index
    %c0_14 = arith.constant 0 : index
    %c1 = arith.constant 1 : index
    %c0_15 = arith.constant 0 : index
    %10 = vector.load %arg2[%c0_13, %c0_14, %c1, %c0_15] : memref<2x1x52x80xbf16, #tpu.memory_space<vmem>>, vector<1x1x48x80xbf16>
    %11 = vector.shape_cast %10 : vector<1x1x48x80xbf16> to vector<48x80xbf16>
    %c1_16 = arith.constant 1 : index
    %c0_17 = arith.constant 0 : index
    %c0_18 = arith.constant 0 : index
    %12 = vector.load %arg3[%c1_16, %c0_17, %c0_18] : memref<5x80x256xbf16, #tpu.memory_space<vmem>>, vector<1x80x256xbf16>
    %13 = vector.shape_cast %12 : vector<1x80x256xbf16> to vector<80x256xbf16>
    %cst_19 = arith.constant dense<0.000000e+00> : vector<48x256xf32>
    %14 = tpu.matmul %11, %13, %cst_19 {dimension_numbers = #tpu.dot_dimension_numbers<[1], [0], [0], [1], [0, 0, 1, 1], [], []>} : vector<48x80xbf16>, vector<80x256xbf16>, vector<48x256xf32> -> vector<48x256xf32>
    %15 = arith.addf %9, %14 : vector<48x256xf32>
    %c0_20 = arith.constant 0 : index
    %c0_21 = arith.constant 0 : index
    %c2 = arith.constant 2 : index
    %c0_22 = arith.constant 0 : index
    %16 = vector.load %arg2[%c0_20, %c0_21, %c2, %c0_22] : memref<2x1x52x80xbf16, #tpu.memory_space<vmem>>, vector<1x1x48x80xbf16>
    %17 = vector.shape_cast %16 : vector<1x1x48x80xbf16> to vector<48x80xbf16>
    %c2_23 = arith.constant 2 : index
    %c0_24 = arith.constant 0 : index
    %c0_25 = arith.constant 0 : index
    %18 = vector.load %arg3[%c2_23, %c0_24, %c0_25] : memref<5x80x256xbf16, #tpu.memory_space<vmem>>, vector<1x80x256xbf16>
    %19 = vector.shape_cast %18 : vector<1x80x256xbf16> to vector<80x256xbf16>
    %cst_26 = arith.constant dense<0.000000e+00> : vector<48x256xf32>
    %20 = tpu.matmul %17, %19, %cst_26 {dimension_numbers = #tpu.dot_dimension_numbers<[1], [0], [0], [1], [0, 0, 1, 1], [], []>} : vector<48x80xbf16>, vector<80x256xbf16>, vector<48x256xf32> -> vector<48x256xf32>
    %21 = arith.addf %15, %20 : vector<48x256xf32>
    %c0_27 = arith.constant 0 : index
    %c0_28 = arith.constant 0 : index
    %c3 = arith.constant 3 : index
    %c0_29 = arith.constant 0 : index
    %22 = vector.load %arg2[%c0_27, %c0_28, %c3, %c0_29] : memref<2x1x52x80xbf16, #tpu.memory_space<vmem>>, vector<1x1x48x80xbf16>
    %23 = vector.shape_cast %22 : vector<1x1x48x80xbf16> to vector<48x80xbf16>
    %c3_30 = arith.constant 3 : index
    %c0_31 = arith.constant 0 : index
    %c0_32 = arith.constant 0 : index
    %24 = vector.load %arg3[%c3_30, %c0_31, %c0_32] : memref<5x80x256xbf16, #tpu.memory_space<vmem>>, vector<1x80x256xbf16>
    %25 = vector.shape_cast %24 : vector<1x80x256xbf16> to vector<80x256xbf16>
    %cst_33 = arith.constant dense<0.000000e+00> : vector<48x256xf32>
    %26 = tpu.matmul %23, %25, %cst_33 {dimension_numbers = #tpu.dot_dimension_numbers<[1], [0], [0], [1], [0, 0, 1, 1], [], []>} : vector<48x80xbf16>, vector<80x256xbf16>, vector<48x256xf32> -> vector<48x256xf32>
    %27 = arith.addf %21, %26 : vector<48x256xf32>
    %c0_34 = arith.constant 0 : index
    %c0_35 = arith.constant 0 : index
    %c4 = arith.constant 4 : index
    %c0_36 = arith.constant 0 : index
    %28 = vector.load %arg2[%c0_34, %c0_35, %c4, %c0_36] : memref<2x1x52x80xbf16, #tpu.memory_space<vmem>>, vector<1x1x48x80xbf16>
    %29 = vector.shape_cast %28 : vector<1x1x48x80xbf16> to vector<48x80xbf16>
    %c4_37 = arith.constant 4 : index
    %c0_38 = arith.constant 0 : index
    %c0_39 = arith.constant 0 : index
    %30 = vector.load %arg3[%c4_37, %c0_38, %c0_39] : memref<5x80x256xbf16, #tpu.memory_space<vmem>>, vector<1x80x256xbf16>
    %31 = vector.shape_cast %30 : vector<1x80x256xbf16> to vector<80x256xbf16>
    %cst_40 = arith.constant dense<0.000000e+00> : vector<48x256xf32>
    %32 = tpu.matmul %29, %31, %cst_40 {dimension_numbers = #tpu.dot_dimension_numbers<[1], [0], [0], [1], [0, 0, 1, 1], [], []>} : vector<48x80xbf16>, vector<80x256xbf16>, vector<48x256xf32> -> vector<48x256xf32>
    %33 = arith.addf %27, %32 : vector<48x256xf32>
    %34 = vector.extract_strided_slice %33 {offsets = [0, 0], sizes = [48, 128], strides = [1, 1]} : vector<48x256xf32> to vector<48x128xf32>
    %35 = vector.extract_strided_slice %33 {offsets = [0, 128], sizes = [48, 128], strides = [1, 1]} : vector<48x256xf32> to vector<48x128xf32>
    %36 = arith.maximumf %34, %35 : vector<48x128xf32>
    %37 = vector.broadcast %0 : vector<1x128xf32> to vector<48x128xf32>
    %38 = arith.addf %36, %37 : vector<48x128xf32>
    %cst_41 = arith.constant 0.000000e+00 : f32
    %39 = vector.broadcast %cst_41 : f32 to vector<48x128xf32>
    %40 = arith.maximumf %38, %39 : vector<48x128xf32>
    %41 = arith.truncf %40 : vector<48x128xf32> to vector<48x128xbf16>
    %cst_42 = arith.constant dense<0.000000e+00> : vector<24x128xf32>
    %42 = tpu.matmul %1, %41, %cst_42 {dimension_numbers = #tpu.dot_dimension_numbers<[1], [0], [0], [1], [0, 0, 1, 1], [], []>} : vector<24x48xbf16>, vector<48x128xbf16>, vector<24x128xf32> -> vector<24x128xf32>
    %cst_43 = arith.constant dense<0.000000e+00> : vector<24x128xf32>
    %43 = tpu.matmul %2, %41, %cst_43 {dimension_numbers = #tpu.dot_dimension_numbers<[1], [0], [0], [1], [0, 0, 1, 1], [], []>} : vector<24x48xbf16>, vector<48x128xbf16>, vector<24x128xf32> -> vector<24x128xf32>
    %44 = arith.maximumf %42, %43 : vector<24x128xf32>
    %45 = arith.truncf %44 : vector<24x128xf32> to vector<24x128xbf16>
    %c0_44 = arith.constant 0 : index
    %c0_45 = arith.constant 0 : index
    %c0_46 = arith.constant 0 : index
    %46 = vector.load %arg7[%c0_44, %c0_45, %c0_46] : memref<2x24x128xbf16, #tpu.memory_space<vmem>>, vector<1x24x128xbf16>
    %47 = vector.shape_cast %46 : vector<1x24x128xbf16> to vector<24x128xbf16>
    %48 = vector.shape_cast %45 : vector<24x128xbf16> to vector<1x24x128xbf16>
    tpu.vector_store %arg7[%c0_44, %c0_45, %c0_46], %48 {strides = array<i32>} : memref<2x24x128xbf16, #tpu.memory_space<vmem>>, vector<1x24x128xbf16>,
    %cst_47 = arith.constant 0.000000e+00 : f32
    %49 = vector.broadcast %cst_47 : f32 to vector<48x256xf32>
    %c1_48 = arith.constant 1 : index
    %c0_49 = arith.constant 0 : index
    %c0_50 = arith.constant 0 : index
    %c0_51 = arith.constant 0 : index
    %50 = vector.load %arg2[%c1_48, %c0_49, %c0_50, %c0_51] : memref<2x1x52x80xbf16, #tpu.memory_space<vmem>>, vector<1x1x48x80xbf16>
    %51 = vector.shape_cast %50 : vector<1x1x48x80xbf16> to vector<48x80xbf16>
    %c0_52 = arith.constant 0 : index
    %c0_53 = arith.constant 0 : index
    %c0_54 = arith.constant 0 : index
    %52 = vector.load %arg3[%c0_52, %c0_53, %c0_54] : memref<5x80x256xbf16, #tpu.memory_space<vmem>>, vector<1x80x256xbf16>
    %53 = vector.shape_cast %52 : vector<1x80x256xbf16> to vector<80x256xbf16>
    %cst_55 = arith.constant dense<0.000000e+00> : vector<48x256xf32>
    %54 = tpu.matmul %51, %53, %cst_55 {dimension_numbers = #tpu.dot_dimension_numbers<[1], [0], [0], [1], [0, 0, 1, 1], [], []>} : vector<48x80xbf16>, vector<80x256xbf16>, vector<48x256xf32> -> vector<48x256xf32>
    %55 = arith.addf %49, %54 : vector<48x256xf32>
    %c1_56 = arith.constant 1 : index
    %c0_57 = arith.constant 0 : index
    %c1_58 = arith.constant 1 : index
    %c0_59 = arith.constant 0 : index
    %56 = vector.load %arg2[%c1_56, %c0_57, %c1_58, %c0_59] : memref<2x1x52x80xbf16, #tpu.memory_space<vmem>>, vector<1x1x48x80xbf16>
    %57 = vector.shape_cast %56 : vector<1x1x48x80xbf16> to vector<48x80xbf16>
    %c1_60 = arith.constant 1 : index
    %c0_61 = arith.constant 0 : index
    %c0_62 = arith.constant 0 : index
    %58 = vector.load %arg3[%c1_60, %c0_61, %c0_62] : memref<5x80x256xbf16, #tpu.memory_space<vmem>>, vector<1x80x256xbf16>
    %59 = vector.shape_cast %58 : vector<1x80x256xbf16> to vector<80x256xbf16>
    %cst_63 = arith.constant dense<0.000000e+00> : vector<48x256xf32>
    %60 = tpu.matmul %57, %59, %cst_63 {dimension_numbers = #tpu.dot_dimension_numbers<[1], [0], [0], [1], [0, 0, 1, 1], [], []>} : vector<48x80xbf16>, vector<80x256xbf16>, vector<48x256xf32> -> vector<48x256xf32>
    %61 = arith.addf %55, %60 : vector<48x256xf32>
    %c1_64 = arith.constant 1 : index
    %c0_65 = arith.constant 0 : index
    %c2_66 = arith.constant 2 : index
    %c0_67 = arith.constant 0 : index
    %62 = vector.load %arg2[%c1_64, %c0_65, %c2_66, %c0_67] : memref<2x1x52x80xbf16, #tpu.memory_space<vmem>>, vector<1x1x48x80xbf16>
    %63 = vector.shape_cast %62 : vector<1x1x48x80xbf16> to vector<48x80xbf16>
    %c2_68 = arith.constant 2 : index
    %c0_69 = arith.constant 0 : index
    %c0_70 = arith.constant 0 : index
    %64 = vector.load %arg3[%c2_68, %c0_69, %c0_70] : memref<5x80x256xbf16, #tpu.memory_space<vmem>>, vector<1x80x256xbf16>
    %65 = vector.shape_cast %64 : vector<1x80x256xbf16> to vector<80x256xbf16>
    %cst_71 = arith.constant dense<0.000000e+00> : vector<48x256xf32>
    %66 = tpu.matmul %63, %65, %cst_71 {dimension_numbers = #tpu.dot_dimension_numbers<[1], [0], [0], [1], [0, 0, 1, 1], [], []>} : vector<48x80xbf16>, vector<80x256xbf16>, vector<48x256xf32> -> vector<48x256xf32>
    %67 = arith.addf %61, %66 : vector<48x256xf32>
    %c1_72 = arith.constant 1 : index
    %c0_73 = arith.constant 0 : index
    %c3_74 = arith.constant 3 : index
    %c0_75 = arith.constant 0 : index
    %68 = vector.load %arg2[%c1_72, %c0_73, %c3_74, %c0_75] : memref<2x1x52x80xbf16, #tpu.memory_space<vmem>>, vector<1x1x48x80xbf16>
    %69 = vector.shape_cast %68 : vector<1x1x48x80xbf16> to vector<48x80xbf16>
    %c3_76 = arith.constant 3 : index
    %c0_77 = arith.constant 0 : index
    %c0_78 = arith.constant 0 : index
    %70 = vector.load %arg3[%c3_76, %c0_77, %c0_78] : memref<5x80x256xbf16, #tpu.memory_space<vmem>>, vector<1x80x256xbf16>
    %71 = vector.shape_cast %70 : vector<1x80x256xbf16> to vector<80x256xbf16>
    %cst_79 = arith.constant dense<0.000000e+00> : vector<48x256xf32>
    %72 = tpu.matmul %69, %71, %cst_79 {dimension_numbers = #tpu.dot_dimension_numbers<[1], [0], [0], [1], [0, 0, 1, 1], [], []>} : vector<48x80xbf16>, vector<80x256xbf16>, vector<48x256xf32> -> vector<48x256xf32>
    %73 = arith.addf %67, %72 : vector<48x256xf32>
    %c1_80 = arith.constant 1 : index
    %c0_81 = arith.constant 0 : index
    %c4_82 = arith.constant 4 : index
    %c0_83 = arith.constant 0 : index
    %74 = vector.load %arg2[%c1_80, %c0_81, %c4_82, %c0_83] : memref<2x1x52x80xbf16, #tpu.memory_space<vmem>>, vector<1x1x48x80xbf16>
    %75 = vector.shape_cast %74 : vector<1x1x48x80xbf16> to vector<48x80xbf16>
    %c4_84 = arith.constant 4 : index
    %c0_85 = arith.constant 0 : index
    %c0_86 = arith.constant 0 : index
    %76 = vector.load %arg3[%c4_84, %c0_85, %c0_86] : memref<5x80x256xbf16, #tpu.memory_space<vmem>>, vector<1x80x256xbf16>
    %77 = vector.shape_cast %76 : vector<1x80x256xbf16> to vector<80x256xbf16>
    %cst_87 = arith.constant dense<0.000000e+00> : vector<48x256xf32>
    %78 = tpu.matmul %75, %77, %cst_87 {dimension_numbers = #tpu.dot_dimension_numbers<[1], [0], [0], [1], [0, 0, 1, 1], [], []>} : vector<48x80xbf16>, vector<80x256xbf16>, vector<48x256xf32> -> vector<48x256xf32>
    %79 = arith.addf %73, %78 : vector<48x256xf32>
    %80 = vector.extract_strided_slice %79 {offsets = [0, 0], sizes = [48, 128], strides = [1, 1]} : vector<48x256xf32> to vector<48x128xf32>
    %81 = vector.extract_strided_slice %79 {offsets = [0, 128], sizes = [48, 128], strides = [1, 1]} : vector<48x256xf32> to vector<48x128xf32>
    %82 = arith.maximumf %80, %81 : vector<48x128xf32>
    %83 = vector.broadcast %0 : vector<1x128xf32> to vector<48x128xf32>
    %84 = arith.addf %82, %83 : vector<48x128xf32>
    %cst_88 = arith.constant 0.000000e+00 : f32
    %85 = vector.broadcast %cst_88 : f32 to vector<48x128xf32>
    %86 = arith.maximumf %84, %85 : vector<48x128xf32>
    %87 = arith.truncf %86 : vector<48x128xf32> to vector<48x128xbf16>
    %cst_89 = arith.constant dense<0.000000e+00> : vector<24x128xf32>
    %88 = tpu.matmul %1, %87, %cst_89 {dimension_numbers = #tpu.dot_dimension_numbers<[1], [0], [0], [1], [0, 0, 1, 1], [], []>} : vector<24x48xbf16>, vector<48x128xbf16>, vector<24x128xf32> -> vector<24x128xf32>
    %cst_90 = arith.constant dense<0.000000e+00> : vector<24x128xf32>
    %89 = tpu.matmul %2, %87, %cst_90 {dimension_numbers = #tpu.dot_dimension_numbers<[1], [0], [0], [1], [0, 0, 1, 1], [], []>} : vector<24x48xbf16>, vector<48x128xbf16>, vector<24x128xf32> -> vector<24x128xf32>
    %90 = arith.maximumf %88, %89 : vector<24x128xf32>
    %91 = arith.truncf %90 : vector<24x128xf32> to vector<24x128xbf16>
    %c1_91 = arith.constant 1 : index
    %c0_92 = arith.constant 0 : index
    %c0_93 = arith.constant 0 : index
    %92 = vector.load %arg7[%c1_91, %c0_92, %c0_93] : memref<2x24x128xbf16, #tpu.memory_space<vmem>>, vector<1x24x128xbf16>
    %93 = vector.shape_cast %92 : vector<1x24x128xbf16> to vector<24x128xbf16>
    %94 = vector.shape_cast %91 : vector<24x128xbf16> to vector<1x24x128xbf16>
    tpu.vector_store %arg7[%c1_91, %c0_92, %c0_93], %94 {strides = array<i32>} : memref<2x24x128xbf16, #tpu.memory_space<vmem>>, vector<1x24x128xbf16>,
    return
  }
  func.func @transform_0(%arg0: i32, %arg1: i32) -> (i32, i32, i32, i32) {
    %c0_i32 = arith.constant 0 : i32
    %c0_i32_0 = arith.constant 0 : i32
    %c0_i32_1 = arith.constant 0 : i32
    return %arg1, %arg0, %c0_i32, %c0_i32_0 : i32, i32, i32, i32
  }
  func.func @transform_1(%arg0: i32, %arg1: i32) -> (i32, i32, i32) {
    %c0_i32 = arith.constant 0 : i32
    %c0_i32_0 = arith.constant 0 : i32
    %c0_i32_1 = arith.constant 0 : i32
    %c0_i32_2 = arith.constant 0 : i32
    return %c0_i32, %c0_i32_0, %c0_i32_1 : i32, i32, i32
  }
  func.func @transform_2(%arg0: i32, %arg1: i32) -> (i32, i32) {
    %c0_i32 = arith.constant 0 : i32
    %c0_i32_0 = arith.constant 0 : i32
    %c0_i32_1 = arith.constant 0 : i32
    return %c0_i32, %c0_i32_0 : i32, i32
  }
  func.func @transform_3(%arg0: i32, %arg1: i32) -> (i32, i32) {
    %c0_i32 = arith.constant 0 : i32
    %c0_i32_0 = arith.constant 0 : i32
    %c0_i32_1 = arith.constant 0 : i32
    return %c0_i32, %c0_i32_0 : i32, i32
  }
  func.func @transform_4(%arg0: i32, %arg1: i32) -> (i32, i32) {
    %c0_i32 = arith.constant 0 : i32
    %c0_i32_0 = arith.constant 0 : i32
    %c0_i32_1 = arith.constant 0 : i32
    return %c0_i32, %c0_i32_0 : i32, i32
  }
  func.func @transform_5(%arg0: i32, %arg1: i32) -> (i32, i32, i32) {
    %c0_i32 = arith.constant 0 : i32
    %c0_i32_0 = arith.constant 0 : i32
    return %arg1, %c0_i32, %arg0 : i32, i32, i32
  }
}

module attributes {stable_mosaic.version = 11 : i64} {
  func.func @_linear_kernel(%arg0: i32, %arg1: memref<2x4608xbf16, #tpu.memory_space<vmem>>, %arg2: memref<4608x128xbf16, #tpu.memory_space<vmem>>, %arg3: memref<1x128xf32, #tpu.memory_space<vmem>>, %arg4: memref<2x128xf32, #tpu.memory_space<vmem>>) attributes {dimension_semantics = [#tpu.dimension_semantics<parallel>], iteration_bounds = array<i64: 1>, scalar_prefetch = 0 : i64, scratch_operands = 0 : i64, tpu.core_type = #tpu.core_type<tc>, window_params = [{transform_indices = @transform_0, window_bounds = array<i64: 2, 4608>}, {pipeline_mode = #tpu.pipeline_mode<synchronous>, transform_indices = @transform_1, window_bounds = array<i64: 4608, 128>}, {pipeline_mode = #tpu.pipeline_mode<synchronous>, transform_indices = @transform_2, window_bounds = array<i64: 1, 128>}, {transform_indices = @transform_3, window_bounds = array<i64: 2, 128>}]} {
    %c0 = arith.constant 0 : index
    %c0_0 = arith.constant 0 : index
    %0 = vector.load %arg1[%c0, %c0_0] : memref<2x4608xbf16, #tpu.memory_space<vmem>>, vector<2x4608xbf16>
    %c0_1 = arith.constant 0 : index
    %c0_2 = arith.constant 0 : index
    %1 = vector.load %arg2[%c0_1, %c0_2] : memref<4608x128xbf16, #tpu.memory_space<vmem>>, vector<4608x128xbf16>
    %cst = arith.constant dense<0.000000e+00> : vector<2x128xf32>
    %2 = tpu.matmul %0, %1, %cst {dimension_numbers = #tpu.dot_dimension_numbers<[1], [0], [0], [1], [0, 0, 1, 1], [], []>} : vector<2x4608xbf16>, vector<4608x128xbf16>, vector<2x128xf32> -> vector<2x128xf32>
    %c0_3 = arith.constant 0 : index
    %c0_4 = arith.constant 0 : index
    %3 = vector.load %arg3[%c0_3, %c0_4] : memref<1x128xf32, #tpu.memory_space<vmem>>, vector<1x128xf32>
    %4 = vector.broadcast %3 : vector<1x128xf32> to vector<2x128xf32>
    %5 = arith.addf %2, %4 : vector<2x128xf32>
    %c0_5 = arith.constant 0 : index
    %c0_6 = arith.constant 0 : index
    %6 = vector.load %arg4[%c0_5, %c0_6] : memref<2x128xf32, #tpu.memory_space<vmem>>, vector<2x128xf32>
    tpu.vector_store %arg4[%c0_5, %c0_6], %5 {strides = array<i32>} : memref<2x128xf32, #tpu.memory_space<vmem>>, vector<2x128xf32>,
    return
  }
  func.func @transform_0(%arg0: i32) -> (i32, i32) {
    %c0_i32 = arith.constant 0 : i32
    %c0_i32_0 = arith.constant 0 : i32
    return %arg0, %c0_i32 : i32, i32
  }
  func.func @transform_1(%arg0: i32) -> (i32, i32) {
    %c0_i32 = arith.constant 0 : i32
    %c0_i32_0 = arith.constant 0 : i32
    %c0_i32_1 = arith.constant 0 : i32
    return %c0_i32, %c0_i32_0 : i32, i32
  }
  func.func @transform_2(%arg0: i32) -> (i32, i32) {
    %c0_i32 = arith.constant 0 : i32
    %c0_i32_0 = arith.constant 0 : i32
    %c0_i32_1 = arith.constant 0 : i32
    return %c0_i32, %c0_i32_0 : i32, i32
  }
  func.func @transform_3(%arg0: i32) -> (i32, i32) {
    %c0_i32 = arith.constant 0 : i32
    %c0_i32_0 = arith.constant 0 : i32
    return %arg0, %c0_i32 : i32, i32
  }
}

module attributes {stable_mosaic.version = 11 : i64} {
  func.func @_conv_relu_pool_kernel(%arg0: i32, %arg1: i32, %arg2: memref<2x1x28x640xbf16, #tpu.memory_space<vmem>>, %arg3: memref<5x640x256xbf16, #tpu.memory_space<vmem>>, %arg4: memref<1x128xf32, #tpu.memory_space<vmem>>, %arg5: memref<12x24xbf16, #tpu.memory_space<vmem>>, %arg6: memref<12x24xbf16, #tpu.memory_space<vmem>>, %arg7: memref<2x12x128xbf16, #tpu.memory_space<vmem>>) attributes {dimension_semantics = [#tpu.dimension_semantics<parallel>, #tpu.dimension_semantics<parallel>], iteration_bounds = array<i64: 3, 1>, scalar_prefetch = 0 : i64, scratch_operands = 0 : i64, tpu.core_type = #tpu.core_type<tc>, window_params = [{transform_indices = @transform_0, window_bounds = array<i64: 2, 1, 28, 640>}, {pipeline_mode = #tpu.pipeline_mode<synchronous>, transform_indices = @transform_1, window_bounds = array<i64: 5, 640, 256>}, {pipeline_mode = #tpu.pipeline_mode<synchronous>, transform_indices = @transform_2, window_bounds = array<i64: 1, 128>}, {pipeline_mode = #tpu.pipeline_mode<synchronous>, transform_indices = @transform_3, window_bounds = array<i64: 12, 24>}, {pipeline_mode = #tpu.pipeline_mode<synchronous>, transform_indices = @transform_4, window_bounds = array<i64: 12, 24>}, {transform_indices = @transform_5, window_bounds = array<i64: 2, 12, 128>}]} {
    %c0 = arith.constant 0 : index
    %c0_0 = arith.constant 0 : index
    %0 = vector.load %arg4[%c0, %c0_0] : memref<1x128xf32, #tpu.memory_space<vmem>>, vector<1x128xf32>
    %c0_1 = arith.constant 0 : index
    %c0_2 = arith.constant 0 : index
    %1 = vector.load %arg5[%c0_1, %c0_2] : memref<12x24xbf16, #tpu.memory_space<vmem>>, vector<12x24xbf16>
    %c0_3 = arith.constant 0 : index
    %c0_4 = arith.constant 0 : index
    %2 = vector.load %arg6[%c0_3, %c0_4] : memref<12x24xbf16, #tpu.memory_space<vmem>>, vector<12x24xbf16>
    %cst = arith.constant 0.000000e+00 : f32
    %3 = vector.broadcast %cst : f32 to vector<24x256xf32>
    %c0_5 = arith.constant 0 : index
    %c0_6 = arith.constant 0 : index
    %c0_7 = arith.constant 0 : index
    %c0_8 = arith.constant 0 : index
    %4 = vector.load %arg2[%c0_5, %c0_6, %c0_7, %c0_8] : memref<2x1x28x640xbf16, #tpu.memory_space<vmem>>, vector<1x1x24x640xbf16>
    %5 = vector.shape_cast %4 : vector<1x1x24x640xbf16> to vector<24x640xbf16>
    %c0_9 = arith.constant 0 : index
    %c0_10 = arith.constant 0 : index
    %c0_11 = arith.constant 0 : index
    %6 = vector.load %arg3[%c0_9, %c0_10, %c0_11] : memref<5x640x256xbf16, #tpu.memory_space<vmem>>, vector<1x640x256xbf16>
    %7 = vector.shape_cast %6 : vector<1x640x256xbf16> to vector<640x256xbf16>
    %cst_12 = arith.constant dense<0.000000e+00> : vector<24x256xf32>
    %8 = tpu.matmul %5, %7, %cst_12 {dimension_numbers = #tpu.dot_dimension_numbers<[1], [0], [0], [1], [0, 0, 1, 1], [], []>} : vector<24x640xbf16>, vector<640x256xbf16>, vector<24x256xf32> -> vector<24x256xf32>
    %9 = arith.addf %3, %8 : vector<24x256xf32>
    %c0_13 = arith.constant 0 : index
    %c0_14 = arith.constant 0 : index
    %c1 = arith.constant 1 : index
    %c0_15 = arith.constant 0 : index
    %10 = vector.load %arg2[%c0_13, %c0_14, %c1, %c0_15] : memref<2x1x28x640xbf16, #tpu.memory_space<vmem>>, vector<1x1x24x640xbf16>
    %11 = vector.shape_cast %10 : vector<1x1x24x640xbf16> to vector<24x640xbf16>
    %c1_16 = arith.constant 1 : index
    %c0_17 = arith.constant 0 : index
    %c0_18 = arith.constant 0 : index
    %12 = vector.load %arg3[%c1_16, %c0_17, %c0_18] : memref<5x640x256xbf16, #tpu.memory_space<vmem>>, vector<1x640x256xbf16>
    %13 = vector.shape_cast %12 : vector<1x640x256xbf16> to vector<640x256xbf16>
    %cst_19 = arith.constant dense<0.000000e+00> : vector<24x256xf32>
    %14 = tpu.matmul %11, %13, %cst_19 {dimension_numbers = #tpu.dot_dimension_numbers<[1], [0], [0], [1], [0, 0, 1, 1], [], []>} : vector<24x640xbf16>, vector<640x256xbf16>, vector<24x256xf32> -> vector<24x256xf32>
    %15 = arith.addf %9, %14 : vector<24x256xf32>
    %c0_20 = arith.constant 0 : index
    %c0_21 = arith.constant 0 : index
    %c2 = arith.constant 2 : index
    %c0_22 = arith.constant 0 : index
    %16 = vector.load %arg2[%c0_20, %c0_21, %c2, %c0_22] : memref<2x1x28x640xbf16, #tpu.memory_space<vmem>>, vector<1x1x24x640xbf16>
    %17 = vector.shape_cast %16 : vector<1x1x24x640xbf16> to vector<24x640xbf16>
    %c2_23 = arith.constant 2 : index
    %c0_24 = arith.constant 0 : index
    %c0_25 = arith.constant 0 : index
    %18 = vector.load %arg3[%c2_23, %c0_24, %c0_25] : memref<5x640x256xbf16, #tpu.memory_space<vmem>>, vector<1x640x256xbf16>
    %19 = vector.shape_cast %18 : vector<1x640x256xbf16> to vector<640x256xbf16>
    %cst_26 = arith.constant dense<0.000000e+00> : vector<24x256xf32>
    %20 = tpu.matmul %17, %19, %cst_26 {dimension_numbers = #tpu.dot_dimension_numbers<[1], [0], [0], [1], [0, 0, 1, 1], [], []>} : vector<24x640xbf16>, vector<640x256xbf16>, vector<24x256xf32> -> vector<24x256xf32>
    %21 = arith.addf %15, %20 : vector<24x256xf32>
    %c0_27 = arith.constant 0 : index
    %c0_28 = arith.constant 0 : index
    %c3 = arith.constant 3 : index
    %c0_29 = arith.constant 0 : index
    %22 = vector.load %arg2[%c0_27, %c0_28, %c3, %c0_29] : memref<2x1x28x640xbf16, #tpu.memory_space<vmem>>, vector<1x1x24x640xbf16>
    %23 = vector.shape_cast %22 : vector<1x1x24x640xbf16> to vector<24x640xbf16>
    %c3_30 = arith.constant 3 : index
    %c0_31 = arith.constant 0 : index
    %c0_32 = arith.constant 0 : index
    %24 = vector.load %arg3[%c3_30, %c0_31, %c0_32] : memref<5x640x256xbf16, #tpu.memory_space<vmem>>, vector<1x640x256xbf16>
    %25 = vector.shape_cast %24 : vector<1x640x256xbf16> to vector<640x256xbf16>
    %cst_33 = arith.constant dense<0.000000e+00> : vector<24x256xf32>
    %26 = tpu.matmul %23, %25, %cst_33 {dimension_numbers = #tpu.dot_dimension_numbers<[1], [0], [0], [1], [0, 0, 1, 1], [], []>} : vector<24x640xbf16>, vector<640x256xbf16>, vector<24x256xf32> -> vector<24x256xf32>
    %27 = arith.addf %21, %26 : vector<24x256xf32>
    %c0_34 = arith.constant 0 : index
    %c0_35 = arith.constant 0 : index
    %c4 = arith.constant 4 : index
    %c0_36 = arith.constant 0 : index
    %28 = vector.load %arg2[%c0_34, %c0_35, %c4, %c0_36] : memref<2x1x28x640xbf16, #tpu.memory_space<vmem>>, vector<1x1x24x640xbf16>
    %29 = vector.shape_cast %28 : vector<1x1x24x640xbf16> to vector<24x640xbf16>
    %c4_37 = arith.constant 4 : index
    %c0_38 = arith.constant 0 : index
    %c0_39 = arith.constant 0 : index
    %30 = vector.load %arg3[%c4_37, %c0_38, %c0_39] : memref<5x640x256xbf16, #tpu.memory_space<vmem>>, vector<1x640x256xbf16>
    %31 = vector.shape_cast %30 : vector<1x640x256xbf16> to vector<640x256xbf16>
    %cst_40 = arith.constant dense<0.000000e+00> : vector<24x256xf32>
    %32 = tpu.matmul %29, %31, %cst_40 {dimension_numbers = #tpu.dot_dimension_numbers<[1], [0], [0], [1], [0, 0, 1, 1], [], []>} : vector<24x640xbf16>, vector<640x256xbf16>, vector<24x256xf32> -> vector<24x256xf32>
    %33 = arith.addf %27, %32 : vector<24x256xf32>
    %34 = vector.extract_strided_slice %33 {offsets = [0, 0], sizes = [24, 128], strides = [1, 1]} : vector<24x256xf32> to vector<24x128xf32>
    %35 = vector.extract_strided_slice %33 {offsets = [0, 128], sizes = [24, 128], strides = [1, 1]} : vector<24x256xf32> to vector<24x128xf32>
    %36 = arith.maximumf %34, %35 : vector<24x128xf32>
    %37 = vector.broadcast %0 : vector<1x128xf32> to vector<24x128xf32>
    %38 = arith.addf %36, %37 : vector<24x128xf32>
    %cst_41 = arith.constant 0.000000e+00 : f32
    %39 = vector.broadcast %cst_41 : f32 to vector<24x128xf32>
    %40 = arith.maximumf %38, %39 : vector<24x128xf32>
    %41 = arith.truncf %40 : vector<24x128xf32> to vector<24x128xbf16>
    %cst_42 = arith.constant dense<0.000000e+00> : vector<12x128xf32>
    %42 = tpu.matmul %1, %41, %cst_42 {dimension_numbers = #tpu.dot_dimension_numbers<[1], [0], [0], [1], [0, 0, 1, 1], [], []>} : vector<12x24xbf16>, vector<24x128xbf16>, vector<12x128xf32> -> vector<12x128xf32>
    %cst_43 = arith.constant dense<0.000000e+00> : vector<12x128xf32>
    %43 = tpu.matmul %2, %41, %cst_43 {dimension_numbers = #tpu.dot_dimension_numbers<[1], [0], [0], [1], [0, 0, 1, 1], [], []>} : vector<12x24xbf16>, vector<24x128xbf16>, vector<12x128xf32> -> vector<12x128xf32>
    %44 = arith.maximumf %42, %43 : vector<12x128xf32>
    %45 = arith.truncf %44 : vector<12x128xf32> to vector<12x128xbf16>
    %c0_44 = arith.constant 0 : index
    %c0_45 = arith.constant 0 : index
    %c0_46 = arith.constant 0 : index
    %46 = vector.load %arg7[%c0_44, %c0_45, %c0_46] : memref<2x12x128xbf16, #tpu.memory_space<vmem>>, vector<1x12x128xbf16>
    %47 = vector.shape_cast %46 : vector<1x12x128xbf16> to vector<12x128xbf16>
    %48 = vector.shape_cast %45 : vector<12x128xbf16> to vector<1x12x128xbf16>
    tpu.vector_store %arg7[%c0_44, %c0_45, %c0_46], %48 {strides = array<i32>} : memref<2x12x128xbf16, #tpu.memory_space<vmem>>, vector<1x12x128xbf16>,
    %cst_47 = arith.constant 0.000000e+00 : f32
    %49 = vector.broadcast %cst_47 : f32 to vector<24x256xf32>
    %c1_48 = arith.constant 1 : index
    %c0_49 = arith.constant 0 : index
    %c0_50 = arith.constant 0 : index
    %c0_51 = arith.constant 0 : index
    %50 = vector.load %arg2[%c1_48, %c0_49, %c0_50, %c0_51] : memref<2x1x28x640xbf16, #tpu.memory_space<vmem>>, vector<1x1x24x640xbf16>
    %51 = vector.shape_cast %50 : vector<1x1x24x640xbf16> to vector<24x640xbf16>
    %c0_52 = arith.constant 0 : index
    %c0_53 = arith.constant 0 : index
    %c0_54 = arith.constant 0 : index
    %52 = vector.load %arg3[%c0_52, %c0_53, %c0_54] : memref<5x640x256xbf16, #tpu.memory_space<vmem>>, vector<1x640x256xbf16>
    %53 = vector.shape_cast %52 : vector<1x640x256xbf16> to vector<640x256xbf16>
    %cst_55 = arith.constant dense<0.000000e+00> : vector<24x256xf32>
    %54 = tpu.matmul %51, %53, %cst_55 {dimension_numbers = #tpu.dot_dimension_numbers<[1], [0], [0], [1], [0, 0, 1, 1], [], []>} : vector<24x640xbf16>, vector<640x256xbf16>, vector<24x256xf32> -> vector<24x256xf32>
    %55 = arith.addf %49, %54 : vector<24x256xf32>
    %c1_56 = arith.constant 1 : index
    %c0_57 = arith.constant 0 : index
    %c1_58 = arith.constant 1 : index
    %c0_59 = arith.constant 0 : index
    %56 = vector.load %arg2[%c1_56, %c0_57, %c1_58, %c0_59] : memref<2x1x28x640xbf16, #tpu.memory_space<vmem>>, vector<1x1x24x640xbf16>
    %57 = vector.shape_cast %56 : vector<1x1x24x640xbf16> to vector<24x640xbf16>
    %c1_60 = arith.constant 1 : index
    %c0_61 = arith.constant 0 : index
    %c0_62 = arith.constant 0 : index
    %58 = vector.load %arg3[%c1_60, %c0_61, %c0_62] : memref<5x640x256xbf16, #tpu.memory_space<vmem>>, vector<1x640x256xbf16>
    %59 = vector.shape_cast %58 : vector<1x640x256xbf16> to vector<640x256xbf16>
    %cst_63 = arith.constant dense<0.000000e+00> : vector<24x256xf32>
    %60 = tpu.matmul %57, %59, %cst_63 {dimension_numbers = #tpu.dot_dimension_numbers<[1], [0], [0], [1], [0, 0, 1, 1], [], []>} : vector<24x640xbf16>, vector<640x256xbf16>, vector<24x256xf32> -> vector<24x256xf32>
    %61 = arith.addf %55, %60 : vector<24x256xf32>
    %c1_64 = arith.constant 1 : index
    %c0_65 = arith.constant 0 : index
    %c2_66 = arith.constant 2 : index
    %c0_67 = arith.constant 0 : index
    %62 = vector.load %arg2[%c1_64, %c0_65, %c2_66, %c0_67] : memref<2x1x28x640xbf16, #tpu.memory_space<vmem>>, vector<1x1x24x640xbf16>
    %63 = vector.shape_cast %62 : vector<1x1x24x640xbf16> to vector<24x640xbf16>
    %c2_68 = arith.constant 2 : index
    %c0_69 = arith.constant 0 : index
    %c0_70 = arith.constant 0 : index
    %64 = vector.load %arg3[%c2_68, %c0_69, %c0_70] : memref<5x640x256xbf16, #tpu.memory_space<vmem>>, vector<1x640x256xbf16>
    %65 = vector.shape_cast %64 : vector<1x640x256xbf16> to vector<640x256xbf16>
    %cst_71 = arith.constant dense<0.000000e+00> : vector<24x256xf32>
    %66 = tpu.matmul %63, %65, %cst_71 {dimension_numbers = #tpu.dot_dimension_numbers<[1], [0], [0], [1], [0, 0, 1, 1], [], []>} : vector<24x640xbf16>, vector<640x256xbf16>, vector<24x256xf32> -> vector<24x256xf32>
    %67 = arith.addf %61, %66 : vector<24x256xf32>
    %c1_72 = arith.constant 1 : index
    %c0_73 = arith.constant 0 : index
    %c3_74 = arith.constant 3 : index
    %c0_75 = arith.constant 0 : index
    %68 = vector.load %arg2[%c1_72, %c0_73, %c3_74, %c0_75] : memref<2x1x28x640xbf16, #tpu.memory_space<vmem>>, vector<1x1x24x640xbf16>
    %69 = vector.shape_cast %68 : vector<1x1x24x640xbf16> to vector<24x640xbf16>
    %c3_76 = arith.constant 3 : index
    %c0_77 = arith.constant 0 : index
    %c0_78 = arith.constant 0 : index
    %70 = vector.load %arg3[%c3_76, %c0_77, %c0_78] : memref<5x640x256xbf16, #tpu.memory_space<vmem>>, vector<1x640x256xbf16>
    %71 = vector.shape_cast %70 : vector<1x640x256xbf16> to vector<640x256xbf16>
    %cst_79 = arith.constant dense<0.000000e+00> : vector<24x256xf32>
    %72 = tpu.matmul %69, %71, %cst_79 {dimension_numbers = #tpu.dot_dimension_numbers<[1], [0], [0], [1], [0, 0, 1, 1], [], []>} : vector<24x640xbf16>, vector<640x256xbf16>, vector<24x256xf32> -> vector<24x256xf32>
    %73 = arith.addf %67, %72 : vector<24x256xf32>
    %c1_80 = arith.constant 1 : index
    %c0_81 = arith.constant 0 : index
    %c4_82 = arith.constant 4 : index
    %c0_83 = arith.constant 0 : index
    %74 = vector.load %arg2[%c1_80, %c0_81, %c4_82, %c0_83] : memref<2x1x28x640xbf16, #tpu.memory_space<vmem>>, vector<1x1x24x640xbf16>
    %75 = vector.shape_cast %74 : vector<1x1x24x640xbf16> to vector<24x640xbf16>
    %c4_84 = arith.constant 4 : index
    %c0_85 = arith.constant 0 : index
    %c0_86 = arith.constant 0 : index
    %76 = vector.load %arg3[%c4_84, %c0_85, %c0_86] : memref<5x640x256xbf16, #tpu.memory_space<vmem>>, vector<1x640x256xbf16>
    %77 = vector.shape_cast %76 : vector<1x640x256xbf16> to vector<640x256xbf16>
    %cst_87 = arith.constant dense<0.000000e+00> : vector<24x256xf32>
    %78 = tpu.matmul %75, %77, %cst_87 {dimension_numbers = #tpu.dot_dimension_numbers<[1], [0], [0], [1], [0, 0, 1, 1], [], []>} : vector<24x640xbf16>, vector<640x256xbf16>, vector<24x256xf32> -> vector<24x256xf32>
    %79 = arith.addf %73, %78 : vector<24x256xf32>
    %80 = vector.extract_strided_slice %79 {offsets = [0, 0], sizes = [24, 128], strides = [1, 1]} : vector<24x256xf32> to vector<24x128xf32>
    %81 = vector.extract_strided_slice %79 {offsets = [0, 128], sizes = [24, 128], strides = [1, 1]} : vector<24x256xf32> to vector<24x128xf32>
    %82 = arith.maximumf %80, %81 : vector<24x128xf32>
    %83 = vector.broadcast %0 : vector<1x128xf32> to vector<24x128xf32>
    %84 = arith.addf %82, %83 : vector<24x128xf32>
    %cst_88 = arith.constant 0.000000e+00 : f32
    %85 = vector.broadcast %cst_88 : f32 to vector<24x128xf32>
    %86 = arith.maximumf %84, %85 : vector<24x128xf32>
    %87 = arith.truncf %86 : vector<24x128xf32> to vector<24x128xbf16>
    %cst_89 = arith.constant dense<0.000000e+00> : vector<12x128xf32>
    %88 = tpu.matmul %1, %87, %cst_89 {dimension_numbers = #tpu.dot_dimension_numbers<[1], [0], [0], [1], [0, 0, 1, 1], [], []>} : vector<12x24xbf16>, vector<24x128xbf16>, vector<12x128xf32> -> vector<12x128xf32>
    %cst_90 = arith.constant dense<0.000000e+00> : vector<12x128xf32>
    %89 = tpu.matmul %2, %87, %cst_90 {dimension_numbers = #tpu.dot_dimension_numbers<[1], [0], [0], [1], [0, 0, 1, 1], [], []>} : vector<12x24xbf16>, vector<24x128xbf16>, vector<12x128xf32> -> vector<12x128xf32>
    %90 = arith.maximumf %88, %89 : vector<12x128xf32>
    %91 = arith.truncf %90 : vector<12x128xf32> to vector<12x128xbf16>
    %c1_91 = arith.constant 1 : index
    %c0_92 = arith.constant 0 : index
    %c0_93 = arith.constant 0 : index
    %92 = vector.load %arg7[%c1_91, %c0_92, %c0_93] : memref<2x12x128xbf16, #tpu.memory_space<vmem>>, vector<1x12x128xbf16>
    %93 = vector.shape_cast %92 : vector<1x12x128xbf16> to vector<12x128xbf16>
    %94 = vector.shape_cast %91 : vector<12x128xbf16> to vector<1x12x128xbf16>
    tpu.vector_store %arg7[%c1_91, %c0_92, %c0_93], %94 {strides = array<i32>} : memref<2x12x128xbf16, #tpu.memory_space<vmem>>, vector<1x12x128xbf16>,
    return
  }
  func.func @transform_0(%arg0: i32, %arg1: i32) -> (i32, i32, i32, i32) {
    %c0_i32 = arith.constant 0 : i32
    %c0_i32_0 = arith.constant 0 : i32
    %c0_i32_1 = arith.constant 0 : i32
    return %arg1, %arg0, %c0_i32, %c0_i32_0 : i32, i32, i32, i32
  }
  func.func @transform_1(%arg0: i32, %arg1: i32) -> (i32, i32, i32) {
    %c0_i32 = arith.constant 0 : i32
    %c0_i32_0 = arith.constant 0 : i32
    %c0_i32_1 = arith.constant 0 : i32
    %c0_i32_2 = arith.constant 0 : i32
    return %c0_i32, %c0_i32_0, %c0_i32_1 : i32, i32, i32
  }
  func.func @transform_2(%arg0: i32, %arg1: i32) -> (i32, i32) {
    %c0_i32 = arith.constant 0 : i32
    %c0_i32_0 = arith.constant 0 : i32
    %c0_i32_1 = arith.constant 0 : i32
    return %c0_i32, %c0_i32_0 : i32, i32
  }
  func.func @transform_3(%arg0: i32, %arg1: i32) -> (i32, i32) {
    %c0_i32 = arith.constant 0 : i32
    %c0_i32_0 = arith.constant 0 : i32
    %c0_i32_1 = arith.constant 0 : i32
    return %c0_i32, %c0_i32_0 : i32, i32
  }
  func.func @transform_4(%arg0: i32, %arg1: i32) -> (i32, i32) {
    %c0_i32 = arith.constant 0 : i32
    %c0_i32_0 = arith.constant 0 : i32
    %c0_i32_1 = arith.constant 0 : i32
    return %c0_i32, %c0_i32_0 : i32, i32
  }
  func.func @transform_5(%arg0: i32, %arg1: i32) -> (i32, i32, i32) {
    %c0_i32 = arith.constant 0 : i32
    %c0_i32_0 = arith.constant 0 : i32
    return %arg1, %c0_i32, %arg0 : i32, i32, i32
  }
}

</mosaic_0001>

<llo_original>
// kernel: cnn_forward.3
$region0: #{cnn_forward.3}
  #allocation0 [shape = 'u32[]', space=smem, size = 0x4, offset = 0x4, fixed_abs, tag = 'smem constant byte address 0x4 - core index']
  #allocation1 [shape = 'u32[72,128]{1,0:T(1,128)}', space=vmem, size = 0x9000, scoped, tag = 'internal scratch']
  %s0 = inlined_call_operand.vmem [shape: bf16[2,3,52,80], index: 0, kind: input, shape index: {}]
  %s1 = inlined_call_operand.hbm [shape: bf16[5,80,256], index: 1, kind: input, shape index: {}]
  %s2 = inlined_call_operand.hbm [shape: f32[1,128], index: 2, kind: input, shape index: {}]
  %s3 = inlined_call_operand.hbm [shape: bf16[24,48], index: 3, kind: input, shape index: {}]
  %s4 = inlined_call_operand.hbm [shape: bf16[24,48], index: 4, kind: input, shape index: {}]
  %s5 = inlined_call_operand.vmem [shape: bf16[2,24,384], index: 5, kind: output, shape index: {}]
  %s6 = sld [smem:[#allocation0]]
  $region147: #{cnn_forward.3} parent=0
    _
  %s8 = ssub.s32 1, %s6
  %s9 = scalar_select 0, %s8, %s6
  $region1: #{cnn_forward.3} parent=0
    #allocation2 [shape = 'u8[57344]{0}', space=vmem, size = 0xe000, scoped, tag = 'input window, operand 0']
    #allocation3 [shape = 'u8[204800]{0}', space=vmem, size = 0x32000, scoped, tag = 'input window, operand 1, single buffered']
    #allocation4 [shape = 's32[2]{0}', space=sflag, size = 0x8, scoped, tag = 'scoped memory for cnn_forward.3']
    #allocation5 [shape = 'u8[512]{0}', space=vmem, size = 0x400, scoped, tag = 'input window, operand 2, single buffered']
    #allocation6 [shape = 's32[1]{0}', space=sflag, size = 0x4, scoped, tag = 'scoped memory for cnn_forward.3']
    #allocation7 [shape = 'u8[6144]{0}', space=vmem, size = 0x1800, scoped, tag = 'input window, operand 3, single buffered']
    #allocation8 [shape = 'u8[6144]{0}', space=vmem, size = 0x1800, scoped, tag = 'input window, operand 4, single buffered']
    #allocation9 [shape = 's32[1]{0}', space=sflag, size = 0x4, scoped, tag = 'scoped memory for cnn_forward.3']
    #allocation10 [shape = 'u8[24576]{0}', space=vmem, size = 0x6000, scoped, tag = 'output window, operand 0']
    %10 = vsyncpa [#allocation4], 0
    %11 = vsyncpa [#allocation6], 0
    %12 = vsyncpa [#allocation9], 0
    loop: start=0, step=1, limit=5
    $region2: #{cnn_forward.3} parent=1 // loop_pre_header
      _
    $region3: #{cnn_forward.3} parent=1 // loop_header
      %s14 = sphi 0, %s18
      %p15 = scmp.ge.s32.totalorder %s14, 5
      %s21 = sphi 0, %s33
      %s22 = sphi 0, %s29
      %s23 = sphi 0, %s21
      %s24 = sphi 0, %s22
      %s25 = sphi 0, %s23
      %s26 = sphi 0, %s24
      %s38 = sphi 0, %s40
      %s41 = sphi 0, %s38
      %s42 = sphi 0, %s41
      %s58 = sphi 0, %s42
      %s62 = sphi 0, %s62
      %s64 = sphi 0, %s62
      %s65 = sphi 0, %s64
      %s79 = sphi 0, %s65
      %s83 = sphi 0, %s83
      %s85 = sphi 0, %s83
      %s86 = sphi 0, %s85
      %s100 = sphi 0, %s86
      %s104 = sphi 0, %s104
      %s106 = sphi 0, %s104
      %s107 = sphi 0, %s106
      %s121 = sphi 0, %s107
      %s125 = sphi 0, %s125
      %s127 = sphi 0, %s125
      %s128 = sphi 0, %s127
      %s142 = sphi 0, %s128
      %s150 = sphi 0, %s152
      %s153 = sphi 0, %s150
      %s154 = sphi 0, %s153
      %s170 = sphi 0, %s154
    $region4: #{cnn_forward.3} parent=1 // loop_header_branch
      %17 = sbr.rel (%p15) target = $region8
    $region5: #{cnn_forward.3} parent=1 // loop_body
      %s19 = ssub.s32 %s14, 1
      %s20 = ssub.s32 %s14, 2
      %s27 = sadd.s32 1, %s22
      %p28 = scmp.ge.s32.totalorder %s27, 1
      %s29 = scalar_select %p28, 0, %s27
      %s30 = sadd.s32 1, %s21
      %s31 = scalar_select %p28, %s30, %s21
      %p32 = scmp.ge.s32.totalorder %s31, 3
      %s33 = scalar_select %p32, 0, %s31
      %s34 = ssub.s32 %s22, %s29
      %s35 = ssub.s32 %s21, %s33
      %s36 = sor.u32 %s34, %s35
      %p37 = scmp.eq.s32.totalorder %s36, 0
      %s39 = sadd.s32 %s38, 1
      %s40 = scalar_select %p37, %s38, %s39
      %p43 = pneg %p37
      %p44 = scmp.eq.s32.totalorder %s14, 2
      %p45 = por %p43, %p44
      %p46 = scmp.ne.s32.totalorder %s38, %s41
      %p47 = scmp.eq.s32.totalorder %s14, 0
      %p48 = por %p46, %p47
      %p49 = scmp.ne.s32.totalorder %s38, %s41
      %p50 = scmp.eq.s32.totalorder %s19, 2
      %p51 = por %p49, %p50
      %p52 = scmp.ne.s32.totalorder %s41, %s42
      %p53 = scmp.eq.s32.totalorder %s19, 0
      %p54 = por %p52, %p53
      %p55 = scmp.ne.s32.totalorder %s41, %s42
      %p56 = scmp.eq.s32.totalorder %s20, 2
      %p57 = por %p55, %p56
      %p59 = scmp.ne.s32.totalorder %s42, %s58
      %p60 = scmp.eq.s32.totalorder %s20, 0
      %p61 = por %p59, %p60
      %s63 = sadd.s32 %s62, 1
      %p66 = scmp.eq.s32.totalorder %s14, 2
      %p67 = scmp.ne.s32.totalorder %s62, %s64
      %p68 = scmp.eq.s32.totalorder %s14, 0
      %p69 = por %p67, %p68
      %p70 = scmp.ne.s32.totalorder %s62, %s64
      %p71 = scmp.eq.s32.totalorder %s19, 2
      %p72 = por %p70, %p71
      %p73 = scmp.ne.s32.totalorder %s64, %s65
      %p74 = scmp.eq.s32.totalorder %s19, 0
      %p75 = por %p73, %p74
      %p76 = scmp.ne.s32.totalorder %s64, %s65
      %p77 = scmp.eq.s32.totalorder %s20, 2
      %p78 = por %p76, %p77
      %p80 = scmp.ne.s32.totalorder %s65, %s79
      %p81 = scmp.eq.s32.totalorder %s20, 0
      %p82 = por %p80, %p81
      %s84 = sadd.s32 %s83, 1
      %p87 = scmp.eq.s32.totalorder %s14, 2
      %p88 = scmp.ne.s32.totalorder %s83, %s85
      %p89 = scmp.eq.s32.totalorder %s14, 0
      %p90 = por %p88, %p89
      %p91 = scmp.ne.s32.totalorder %s83, %s85
      %p92 = scmp.eq.s32.totalorder %s19, 2
      %p93 = por %p91, %p92
      %p94 = scmp.ne.s32.totalorder %s85, %s86
      %p95 = scmp.eq.s32.totalorder %s19, 0
      %p96 = por %p94, %p95
      %p97 = scmp.ne.s32.totalorder %s85, %s86
      %p98 = scmp.eq.s32.totalorder %s20, 2
      %p99 = por %p97, %p98
      %p101 = scmp.ne.s32.totalorder %s86, %s100
      %p102 = scmp.eq.s32.totalorder %s20, 0
      %p103 = por %p101, %p102
      %s105 = sadd.s32 %s104, 1
      %p108 = scmp.eq.s32.totalorder %s14, 2
      %p109 = scmp.ne.s32.totalorder %s104, %s106
      %p110 = scmp.eq.s32.totalorder %s14, 0
      %p111 = por %p109, %p110
      %p112 = scmp.ne.s32.totalorder %s104, %s106
      %p113 = scmp.eq.s32.totalorder %s19, 2
      %p114 = por %p112, %p113
      %p115 = scmp.ne.s32.totalorder %s106, %s107
      %p116 = scmp.eq.s32.totalorder %s19, 0
      %p117 = por %p115, %p116
      %p118 = scmp.ne.s32.totalorder %s106, %s107
      %p119 = scmp.eq.s32.totalorder %s20, 2
      %p120 = por %p118, %p119
      %p122 = scmp.ne.s32.totalorder %s107, %s121
      %p123 = scmp.eq.s32.totalorder %s20, 0
      %p124 = por %p122, %p123
      %s126 = sadd.s32 %s125, 1
      %p129 = scmp.eq.s32.totalorder %s14, 2
      %p130 = scmp.ne.s32.totalorder %s125, %s127
      %p131 = scmp.eq.s32.totalorder %s14, 0
      %p132 = por %p130, %p131
      %p133 = scmp.ne.s32.totalorder %s125, %s127
      %p134 = scmp.eq.s32.totalorder %s19, 2
      %p135 = por %p133, %p134
      %p136 = scmp.ne.s32.totalorder %s127, %s128
      %p137 = scmp.eq.s32.totalorder %s19, 0
      %p138 = por %p136, %p137
      %p139 = scmp.ne.s32.totalorder %s127, %s128
      %p140 = scmp.eq.s32.totalorder %s20, 2
      %p141 = por %p139, %p140
      %p143 = scmp.ne.s32.totalorder %s128, %s142
      %p144 = scmp.eq.s32.totalorder %s20, 0
      %p145 = por %p143, %p144
      %s146 = ssub.s32 %s22, %s29
      %s147 = ssub.s32 %s21, %s33
      %s148 = sor.u32 %s146, %s147
      %p149 = scmp.eq.s32.totalorder %s148, 0
      %s151 = sadd.s32 %s150, 1
      %s152 = scalar_select %p149, %s150, %s151
      %p155 = pneg %p149
      %p156 = scmp.eq.s32.totalorder %s14, 2
      %p157 = por %p155, %p156
      %p158 = scmp.ne.s32.totalorder %s150, %s153
      %p159 = scmp.eq.s32.totalorder %s14, 0
      %p160 = por %p158, %p159
      %p161 = scmp.ne.s32.totalorder %s150, %s153
      %p162 = scmp.eq.s32.totalorder %s19, 2
      %p163 = por %p161, %p162
      %p164 = scmp.ne.s32.totalorder %s153, %s154
      %p165 = scmp.eq.s32.totalorder %s19, 0
      %p166 = por %p164, %p165
      %p167 = scmp.ne.s32.totalorder %s153, %s154
      %p168 = scmp.eq.s32.totalorder %s20, 2
      %p169 = por %p167, %p168
      %p171 = scmp.ne.s32.totalorder %s154, %s170
      %p172 = scmp.eq.s32.totalorder %s20, 0
      %p173 = por %p171, %p172
      %p174 = scmp.le.s32.totalorder 1, %s14
      %p175 = scmp.lt.s32.totalorder %s14, 4
      %p176 = pnand %p174, %p175
      %p177 = pneg %p176
      // Predicated region
      $region9: #{cnn_forward.3} parent=5 // pred_check
        _
      $region10: #{cnn_forward.3} parent=5 // pred_check_branch
        %179 = sbr.rel (%p176) target = $region12
      $region11: #{cnn_forward.3} parent=5 // pred_region
        %s180 = ssub.s32 %s14, 1
        // Predicated region
        $region13: #{cnn_forward.3} parent=11 // pred_check
          %p181 = pneg %p75
        $region14: #{cnn_forward.3} parent=11 // pred_check_branch
          %183 = sbr.rel (%p181) target = $region16
        $region15: #{cnn_forward.3} parent=11 // pred_region
          %185 = vsyncadd [#allocation4], 0
          %s186 = sshll.u32 %s1, 4
          %s187 = int_to_ptr.hbm [resolvable:$true] %s186
          %s188 = sshll.u32 [#allocation3], 4
          %s189 = int_to_ptr.vmem [resolvable:$true] %s188
          %194 = dma.hbm_to_vmem [thread:$0]  %s187, 6400, %s189, [#allocation4], 128, 128, 8
        $region16: #{cnn_forward.3} parent=11 // pred_fallthru
          _
        // Predicated region
        $region17: #{cnn_forward.3} parent=11 // pred_check
          %p195 = pneg %p96
        $region18: #{cnn_forward.3} parent=11 // pred_check_branch
          %197 = sbr.rel (%p195) target = $region20
        $region19: #{cnn_forward.3} parent=11 // pred_region
          %199 = vsyncadd [#allocation6], 0
          %s201 = sshll.u32 %s2, 4
          %s202 = int_to_ptr.hbm [resolvable:$true] %s201
          %s203 = sshll.u32 [#allocation5], 4
          %s204 = int_to_ptr.vmem [resolvable:$true] %s203
          %206 = dma.hbm_to_vmem [thread:$0]  %s202, 16, %s204, [#allocation6]
        $region20: #{cnn_forward.3} parent=11 // pred_fallthru
          _
        // Predicated region
        $region21: #{cnn_forward.3} parent=11 // pred_check
          %p207 = pneg %p117
        $region22: #{cnn_forward.3} parent=11 // pred_check_branch
          %209 = sbr.rel (%p207) target = $region24
        $region23: #{cnn_forward.3} parent=11 // pred_region
          %211 = vsyncadd [#allocation6], 0
          %s212 = sshll.u32 %s3, 4
          %s213 = int_to_ptr.hbm [resolvable:$true] %s212
          %s214 = sshll.u32 [#allocation7], 4
          %s215 = int_to_ptr.vmem [resolvable:$true] %s214
          %220 = dma.hbm_to_vmem [thread:$0]  %s213, 192, %s215, [#allocation6], 64, 64, 4
        $region24: #{cnn_forward.3} parent=11 // pred_fallthru
          _
        // Predicated region
        $region25: #{cnn_forward.3} parent=11 // pred_check
          %p221 = pneg %p138
        $region26: #{cnn_forward.3} parent=11 // pred_check_branch
          %223 = sbr.rel (%p221) target = $region28
        $region27: #{cnn_forward.3} parent=11 // pred_region
          %225 = vsyncadd [#allocation9], 0
          %s226 = sshll.u32 %s4, 4
          %s227 = int_to_ptr.hbm [resolvable:$true] %s226
          %s228 = sshll.u32 [#allocation8], 4
          %s229 = int_to_ptr.vmem [resolvable:$true] %s228
          %234 = dma.hbm_to_vmem [thread:$0]  %s227, 192, %s229, [#allocation9], 64, 64, 4
        $region28: #{cnn_forward.3} parent=11 // pred_fallthru
          _
      $region12: #{cnn_forward.3} parent=5 // pred_fallthru
        _
      %p235 = scmp.lt.s32.totalorder %s14, 3
      // Predicated region
      $region29: #{cnn_forward.3} parent=5 // pred_check
        %p236 = pneg %p235
      $region30: #{cnn_forward.3} parent=5 // pred_check_branch
        %238 = sbr.rel (%p236) target = $region32
      $region31: #{cnn_forward.3} parent=5 // pred_region
        // Predicated region
        $region33: #{cnn_forward.3} parent=31 // pred_check
          %p239 = pneg %p48
        $region34: #{cnn_forward.3} parent=31 // pred_check_branch
          %241 = sbr.rel (%p239) target = $region36
        $region35: #{cnn_forward.3} parent=31 // pred_region
          %s242 = sand.u32 %s38, 1
          %s243 = sand.u32 %s38, 1
          %s244 = smul.addr %s243, 56
          %s245 = scalar_lea.vmem [#allocation2], %s244
          %s246 = smul.u32 2, %s22
          %s247 = smul.addr %s21, 7
          %s248 = smul.addr %s246, 21
          %s249 = sadd.s32 %s247, %s248
          %s250 = smul.addr %s249, 4
          %s251 = scalar_lea.vmem %s0, %s250
          // Predicated region
          $region37: #{cnn_forward.3} parent=35 // pred_check
            _
          $region38: #{cnn_forward.3} parent=35 // pred_check_branch
            %253 = sbr.rel (0) target = $region40
          $region39: #{cnn_forward.3} parent=35 // pred_region
            // Predicated region
            $region41: #{cnn_forward.3} parent=39 // pred_check
              _
            $region42: #{cnn_forward.3} parent=39 // pred_check_branch
              %255 = sbr.rel target = $region44
            $region43: #{cnn_forward.3} parent=39 // pred_region
              // Predicated region
              $region56: #{cnn_forward.3} parent=43 // pred_check
                _
              $region57: #{cnn_forward.3} parent=43 // pred_check_branch
                %297 = sbr.rel (0) target = $region59
              $region58: #{cnn_forward.3} parent=43 // pred_region
                loop: start=0, step=1, limit=1
                $region60: #{cnn_forward.3} parent=58 // loop_pre_header
                  _
                $region61: #{cnn_forward.3} parent=58 // loop_header
                  %s299 = sphi 0, %s303
                  %p300 = scmp.ge.s32.totalorder %s299, 1
                  %s304 = sphi %s251, %s251
                  %s305 = sphi %s245, %s245
                $region62: #{cnn_forward.3} parent=58 // loop_header_branch
                  %302 = sbr.rel (%p300) target = $region66
                $region63: #{cnn_forward.3} parent=58 // loop_body
                  _
                $region64: #{cnn_forward.3} parent=58 // loop_footer
                  %s303 = sadd.s32 1, %s299
                $region65: #{cnn_forward.3} parent=58 // loop_footer_branch
                  %298 = sbr.rel target = $region61
                $region66: #{cnn_forward.3} parent=58 // loop_exit
                  _
                %s307 = ssub.s32 16, 1
                loop: start=0, step=1, limit=1
                $region67: #{cnn_forward.3} parent=58 // loop_pre_header
                  _
                $region68: #{cnn_forward.3} parent=58 // loop_header
                  %s309 = sphi 0, %s313
                  %p310 = scmp.ge.s32.totalorder %s309, 1
                  %s314 = sphi %s251, %s251
                  %s315 = sphi %s245, %s245
                $region69: #{cnn_forward.3} parent=58 // loop_header_branch
                  %312 = sbr.rel (%p310) target = $region73
                $region70: #{cnn_forward.3} parent=58 // loop_body
                  %v316 = vld [vmem:[%s314] sm:%s307]
                  %317 = vst [vmem:[%s315] sm:%s307] %v316
                  %v318 = vld [vmem:[%s314 + $0x4] sm:%s307]
                  %319 = vst [vmem:[%s315 + $0x4] sm:%s307] %v318
                  %v320 = vld [vmem:[%s314 + $0x8] sm:%s307]
                  %321 = vst [vmem:[%s315 + $0x8] sm:%s307] %v320
                  %v322 = vld [vmem:[%s314 + $0xc] sm:%s307]
                  %323 = vst [vmem:[%s315 + $0xc] sm:%s307] %v322
                  %v324 = vld [vmem:[%s314 + $0x10] sm:%s307]
                  %325 = vst [vmem:[%s315 + $0x10] sm:%s307] %v324
                  %v326 = vld [vmem:[%s314 + $0x14] sm:%s307]
                  %327 = vst [vmem:[%s315 + $0x14] sm:%s307] %v326
                  %v328 = vld [vmem:[%s314 + $0x18] sm:%s307]
                  %329 = vst [vmem:[%s315 + $0x18] sm:%s307] %v328
                  %v330 = vld [vmem:[%s314 + $0x54] sm:%s307]
                  %331 = vst [vmem:[%s315 + $0x1c] sm:%s307] %v330
                  %v332 = vld [vmem:[%s314 + $0x58] sm:%s307]
                  %333 = vst [vmem:[%s315 + $0x20] sm:%s307] %v332
                  %v334 = vld [vmem:[%s314 + $0x5c] sm:%s307]
                  %335 = vst [vmem:[%s315 + $0x24] sm:%s307] %v334
                  %v336 = vld [vmem:[%s314 + $0x60] sm:%s307]
                  %337 = vst [vmem:[%s315 + $0x28] sm:%s307] %v336
                  %v338 = vld [vmem:[%s314 + $0x64] sm:%s307]
                  %339 = vst [vmem:[%s315 + $0x2c] sm:%s307] %v338
                  %v340 = vld [vmem:[%s314 + $0x68] sm:%s307]
                  %341 = vst [vmem:[%s315 + $0x30] sm:%s307] %v340
                  %v342 = vld [vmem:[%s314 + $0x6c] sm:%s307]
                  %343 = vst [vmem:[%s315 + $0x34] sm:%s307] %v342
                $region71: #{cnn_forward.3} parent=58 // loop_footer
                  %s313 = sadd.s32 1, %s309
                $region72: #{cnn_forward.3} parent=58 // loop_footer_branch
                  %308 = sbr.rel target = $region68
                $region73: #{cnn_forward.3} parent=58 // loop_exit
                  _
              $region59: #{cnn_forward.3} parent=43 // pred_fallthru
                _
            $region44: #{cnn_forward.3} parent=39 // pred_fallthru
              _
            // Predicated region
            $region45: #{cnn_forward.3} parent=39 // pred_check
              _
            $region46: #{cnn_forward.3} parent=39 // pred_check_branch
              %257 = sbr.rel (0) target = $region48
            $region47: #{cnn_forward.3} parent=39 // pred_region
              %s259 = ssub.s32 16, 1
              loop: start=0, step=1, limit=1
              $region49: #{cnn_forward.3} parent=47 // loop_pre_header
                _
              $region50: #{cnn_forward.3} parent=47 // loop_header
                %s261 = sphi 0, %s265
                %p262 = scmp.ge.s32.totalorder %s261, 1
                %s266 = sphi %s251, %s251
                %s267 = sphi %s245, %s245
              $region51: #{cnn_forward.3} parent=47 // loop_header_branch
                %264 = sbr.rel (%p262) target = $region55
              $region52: #{cnn_forward.3} parent=47 // loop_body
                %v268 = vld [vmem:[%s266] sm:%s259]
                %269 = vst [vmem:[%s267] sm:%s259] %v268
                %v270 = vld [vmem:[%s266 + $0x4] sm:%s259]
                %271 = vst [vmem:[%s267 + $0x4] sm:%s259] %v270
                %v272 = vld [vmem:[%s266 + $0x8] sm:%s259]
                %273 = vst [vmem:[%s267 + $0x8] sm:%s259] %v272
                %v274 = vld [vmem:[%s266 + $0xc] sm:%s259]
                %275 = vst [vmem:[%s267 + $0xc] sm:%s259] %v274
                %v276 = vld [vmem:[%s266 + $0x10] sm:%s259]
                %277 = vst [vmem:[%s267 + $0x10] sm:%s259] %v276
                %v278 = vld [vmem:[%s266 + $0x14] sm:%s259]
                %279 = vst [vmem:[%s267 + $0x14] sm:%s259] %v278
                %v280 = vld [vmem:[%s266 + $0x18] sm:%s259]
                %281 = vst [vmem:[%s267 + $0x18] sm:%s259] %v280
                %v282 = vld [vmem:[%s266 + $0x54] sm:%s259]
                %283 = vst [vmem:[%s267 + $0x1c] sm:%s259] %v282
                %v284 = vld [vmem:[%s266 + $0x58] sm:%s259]
                %285 = vst [vmem:[%s267 + $0x20] sm:%s259] %v284
                %v286 = vld [vmem:[%s266 + $0x5c] sm:%s259]
                %287 = vst [vmem:[%s267 + $0x24] sm:%s259] %v286
                %v288 = vld [vmem:[%s266 + $0x60] sm:%s259]
                %289 = vst [vmem:[%s267 + $0x28] sm:%s259] %v288
                %v290 = vld [vmem:[%s266 + $0x64] sm:%s259]
                %291 = vst [vmem:[%s267 + $0x2c] sm:%s259] %v290
                %v292 = vld [vmem:[%s266 + $0x68] sm:%s259]
                %293 = vst [vmem:[%s267 + $0x30] sm:%s259] %v292
                %v294 = vld [vmem:[%s266 + $0x6c] sm:%s259]
                %295 = vst [vmem:[%s267 + $0x34] sm:%s259] %v294
              $region53: #{cnn_forward.3} parent=47 // loop_footer
                %s265 = sadd.s32 1, %s261
              $region54: #{cnn_forward.3} parent=47 // loop_footer_branch
                %260 = sbr.rel target = $region50
              $region55: #{cnn_forward.3} parent=47 // loop_exit
                _
            $region48: #{cnn_forward.3} parent=39 // pred_fallthru
              _
          $region40: #{cnn_forward.3} parent=35 // pred_fallthru
            _
          %344 = vnop
        $region36: #{cnn_forward.3} parent=31 // pred_fallthru
          _
      $region32: #{cnn_forward.3} parent=5 // pred_fallthru
        _
      %p345 = scmp.le.s32.totalorder 1, %s14
      %p346 = scmp.lt.s32.totalorder %s14, 4
      %p347 = pnand %p345, %p346
      %p348 = pneg %p347
      // Predicated region
      $region74: #{cnn_forward.3} parent=5 // pred_check
        _
      $region75: #{cnn_forward.3} parent=5 // pred_check_branch
        %350 = sbr.rel (%p347) target = $region77
      $region76: #{cnn_forward.3} parent=5 // pred_region
        %s351 = ssub.s32 %s14, 1
        %s352 = sand.u32 %s41, 1
        %s353 = sand.u32 %s41, 1
        %s354 = smul.addr %s353, 56
        %s355 = scalar_lea.vmem [#allocation2], %s354
        // Predicated region
        $region78: #{cnn_forward.3} parent=76 // pred_check
          %p356 = pneg %p54
        $region79: #{cnn_forward.3} parent=76 // pred_check_branch
          %358 = sbr.rel (%p356) target = $region81
        $region80: #{cnn_forward.3} parent=76 // pred_region
          _
        $region81: #{cnn_forward.3} parent=76 // pred_fallthru
          _
        // Predicated region
        $region82: #{cnn_forward.3} parent=76 // pred_check
          %p359 = pneg %p75
        $region83: #{cnn_forward.3} parent=76 // pred_check_branch
          %361 = sbr.rel (%p359) target = $region85
        $region84: #{cnn_forward.3} parent=76 // pred_region
          %363 = dma.done [#allocation4], 6400
        $region85: #{cnn_forward.3} parent=76 // pred_fallthru
          _
        // Predicated region
        $region86: #{cnn_forward.3} parent=76 // pred_check
          %p364 = pneg %p96
        $region87: #{cnn_forward.3} parent=76 // pred_check_branch
          %366 = sbr.rel (%p364) target = $region89
        $region88: #{cnn_forward.3} parent=76 // pred_region
          %368 = dma.done [#allocation6], 16
        $region89: #{cnn_forward.3} parent=76 // pred_fallthru
          _
        // Predicated region
        $region90: #{cnn_forward.3} parent=76 // pred_check
          %p369 = pneg %p117
        $region91: #{cnn_forward.3} parent=76 // pred_check_branch
          %371 = sbr.rel (%p369) target = $region93
        $region92: #{cnn_forward.3} parent=76 // pred_region
          %373 = dma.done [#allocation6], 192
        $region93: #{cnn_forward.3} parent=76 // pred_fallthru
          _
        // Predicated region
        $region94: #{cnn_forward.3} parent=76 // pred_check
          %p374 = pneg %p138
        $region95: #{cnn_forward.3} parent=76 // pred_check_branch
          %376 = sbr.rel (%p374) target = $region97
        $region96: #{cnn_forward.3} parent=76 // pred_region
          %378 = dma.done [#allocation9], 192
        $region97: #{cnn_forward.3} parent=76 // pred_fallthru
          _
        %s379 = sand.u32 %s41, 1
        %s380 = sand.u32 %s41, 1
        %s381 = smul.addr %s380, 56
        %s382 = scalar_lea.vmem [#allocation2], %s381
        %p383 = pneg %p54
        %p384 = pneg %p51
        %p385 = pneg %p75
        %p386 = pneg %p72
        %p387 = pneg %p96
        %p388 = pneg %p93
        %p389 = pneg %p117
        %p390 = pneg %p114
        %p391 = pneg %p138
        %p392 = pneg %p135
        %p393 = pneg %p166
        %p394 = pneg %p163
        %s395 = sand.u32 %s153, 1
        %s396 = sand.u32 %s153, 1
        %s397 = smul.addr %s396, 24
        %s398 = scalar_lea.vmem [#allocation10], %s397
        %s399 = smul.u32 2, %s24
        %s400 = smul.u32 2, %s24
        %v402 = vld [vmem:[#allocation5] sm:$0x1]
        %v403 = vld [vmem:[#allocation7] sm:$0xf]
        %v404 = vld [vmem:[#allocation7 + $0x4] sm:$0xf]
        %v405 = vld [vmem:[#allocation7 + $0x8] sm:$0xf]
        %v406 = vld [vmem:[#allocation8] sm:$0xf]
        %v407 = vld [vmem:[#allocation8 + $0x4] sm:$0xf]
        %v408 = vld [vmem:[#allocation8 + $0x8] sm:$0xf]
        %v409 = vld [vmem:[%s355] sm:$0xf]
        %v410 = vld [vmem:[%s355 + $0x4] sm:$0xf]
        %v411 = vld [vmem:[%s355 + $0x8] sm:$0xf]
        %v412 = vld [vmem:[%s355 + $0xc] sm:$0xf]
        %v413 = vld [vmem:[%s355 + $0x10] sm:$0xf]
        %v414 = vld [vmem:[%s355 + $0x14] sm:$0xf]
        %v415 = vld [vmem:[#allocation3] sm:$0xff]
        %v416 = vld [vmem:[#allocation3 + $0x8] sm:$0xff]
        %v417 = vld [vmem:[#allocation3 + $0x10] sm:$0xff]
        %v418 = vld [vmem:[#allocation3 + $0x18] sm:$0xff]
        %v419 = vld [vmem:[#allocation3 + $0x20] sm:$0xff]
        %v420 = vld [vmem:[#allocation3 + $0x28] sm:$0xff]
        %v421 = vld [vmem:[#allocation3 + $0x30] sm:$0xff]
        %v422 = vld [vmem:[#allocation3 + $0x38] sm:$0xff]
        %v423 = vld [vmem:[#allocation3 + $0x40] sm:$0xff]
        %v424 = vld [vmem:[#allocation3 + $0x48] sm:$0xff]
        %v425 = vld [vmem:[%s355 + $0x18] sm:$0x1]
        %s426 = scalar_lea.vmem [#allocation3], 80
        %v427 = vld [vmem:[%s426] sm:$0xff]
        %v428 = vld [vmem:[%s426 + $0x8] sm:$0xff]
        %v429 = vld [vmem:[%s426 + $0x10] sm:$0xff]
        %v430 = vld [vmem:[%s426 + $0x18] sm:$0xff]
        %v431 = vld [vmem:[%s426 + $0x20] sm:$0xff]
        %v432 = vld [vmem:[%s426 + $0x28] sm:$0xff]
        %v433 = vld [vmem:[%s426 + $0x30] sm:$0xff]
        %v434 = vld [vmem:[%s426 + $0x38] sm:$0xff]
        %v435 = vld [vmem:[%s426 + $0x40] sm:$0xff]
        %v436 = vld [vmem:[%s426 + $0x48] sm:$0xff]
        %v444 = vunpack.c.l.b16 %v409
        %v445 = vunpack.c.l.b16 %v410
        %v446 = vunpack.c.l.b16 %v411
        %v447 = vunpack.c.l.b16 %v412
        %v448 = vunpack.c.l.b16 %v413
        %v449 = vunpack.c.l.b16 %v414
        %v450 = vunpack.c.l.b16 %v425
        %v451 = vpack.c.b16 %v445, %v444
        %v452 = vpack.c.b16 %v447, %v446
        %v453 = vpack.c.b16 %v449, %v448
        %v454 = vpack.c.b16 %v450, %v450
        %vm455 = vsmask.f32 7424
        %v457 = vshrl.u32 %v451, 16
        %v459 = vshll.u32 %v451, 16
        %v461 = vrot.slane %v459, 1
        %v462 = vor.u32 %v457, %v461
        %v464 = vshll.u32 %v452, 16
        %v466 = vrot.slane %v464, 1
        %v467 = vsel %vm455, %v462, %v466
        %v468 = vshrl.u32 %v452, 16
        %v470 = vor.u32 %v468, %v466
        %v472 = vshll.u32 %v453, 16
        %v474 = vrot.slane %v472, 1
        %v475 = vsel %vm455, %v470, %v474
        %v476 = vshrl.u32 %v453, 16
        %v478 = vor.u32 %v476, %v474
        %v480 = vshll.u32 %v454, 16
        %v482 = vrot.slane %v480, 1
        %v483 = vsel %vm455, %v478, %v482
        %v494 = vunpack.c.l.b16 %v427
        %v495 = vunpack.c.h.b16 %v427
        %v496 = vunpack.c.l.b16 %v428
        %v497 = vunpack.c.h.b16 %v428
        %v498 = vunpack.c.l.b16 %v429
        %v499 = vunpack.c.h.b16 %v429
        %v500 = vunpack.c.l.b16 %v430
        %v501 = vunpack.c.h.b16 %v430
        %v502 = vunpack.c.l.b16 %v431
        %v503 = vunpack.c.h.b16 %v431
        %v504 = vunpack.c.l.b16 %v432
        %v505 = vunpack.c.h.b16 %v432
        %v506 = vunpack.c.l.b16 %v433
        %v507 = vunpack.c.h.b16 %v433
        %v508 = vunpack.c.l.b16 %v434
        %v509 = vunpack.c.h.b16 %v434
        %v510 = vunpack.c.l.b16 %v435
        %v511 = vunpack.c.h.b16 %v435
        %v512 = vunpack.c.l.b16 %v436
        %v513 = vunpack.c.h.b16 %v436
        %v514 = vpack.c.b16 %v496, %v494
        %v515 = vpack.c.b16 %v497, %v495
        %v516 = vpack.c.b16 %v500, %v498
        %v517 = vpack.c.b16 %v501, %v499
        %v518 = vpack.c.b16 %v504, %v502
        %v519 = vpack.c.b16 %v505, %v503
        %v520 = vpack.c.b16 %v508, %v506
        %v521 = vpack.c.b16 %v509, %v507
        %v522 = vpack.c.b16 %v512, %v510
        %v523 = vpack.c.b16 %v513, %v511
        %vm534 = vcmask 654336
        %v536 = vsel %vm534, %v467, 0
        %v539 = vsel %vm534, %v475, 0
        %v542 = vsel %vm534, %v483, 0
        %544 = vmatpush.bf16.msra.mxu0 0
        %545 = vmatpush.bf16.msra.mxu0 0
        %546 = vmatpush.bf16.msra.mxu0 0
        %547 = vmatpush.bf16.msra.mxu0 %v522
        %548 = vmatpush.bf16.msra.mxu0 %v520
        %549 = vmatpush.bf16.msra.mxu0 %v518
        %550 = vmatpush.bf16.msra.mxu0 %v516
        %551 = vmatpush.bf16.msra.mxu0 %v514
        %552 = vmatmul.bf16.gmra.mxu0 %v536
        %v553 = vpop.f32.mrf.mxu0
        %v554 = vadd.f32 0.0, %v553
        %v555 = vpop.f32.mrf.mxu0
        %v556 = vadd.f32 0.0, %v555
        %557 = vmatmul.bf16.gmra.mxu0 %v539
        %v558 = vpop.f32.mrf.mxu0
        %v559 = vadd.f32 0.0, %v558
        %v560 = vpop.f32.mrf.mxu0
        %v561 = vadd.f32 0.0, %v560
        %562 = vmatmul.bf16.gmra.mxu0 %v542
        %v563 = vpop.f32.mrf.mxu0
        %v564 = vadd.f32 0.0, %v563
        %v565 = vpop.f32.mrf.mxu0
        %v566 = vadd.f32 0.0, %v565
        %567 = vdwg.mxu0
        %568 = vmatpush.bf16.msra.mxu0 0
        %569 = vmatpush.bf16.msra.mxu0 0
        %570 = vmatpush.bf16.msra.mxu0 0
        %571 = vmatpush.bf16.msra.mxu0 %v523
        %572 = vmatpush.bf16.msra.mxu0 %v521
        %573 = vmatpush.bf16.msra.mxu0 %v519
        %574 = vmatpush.bf16.msra.mxu0 %v517
        %575 = vmatpush.bf16.msra.mxu0 %v515
        %576 = vmatmul.bf16.gmra.mxu0 %v536
        %v577 = vpop.f32.mrf.mxu0
        %v578 = vadd.f32 0.0, %v577
        %v579 = vpop.f32.mrf.mxu0
        %v580 = vadd.f32 0.0, %v579
        %581 = vmatmul.bf16.gmra.mxu0 %v539
        %v582 = vpop.f32.mrf.mxu0
        %v583 = vadd.f32 0.0, %v582
        %v584 = vpop.f32.mrf.mxu0
        %v585 = vadd.f32 0.0, %v584
        %586 = vmatmul.bf16.gmra.mxu0 %v542
        %v587 = vpop.f32.mrf.mxu0
        %v588 = vadd.f32 0.0, %v587
        %v589 = vpop.f32.mrf.mxu0
        %v590 = vadd.f32 0.0, %v589
        %591 = vdwg.mxu0
        %v602 = vunpack.c.l.b16 %v415
        %v603 = vunpack.c.h.b16 %v415
        %v604 = vunpack.c.l.b16 %v416
        %v605 = vunpack.c.h.b16 %v416
        %v606 = vunpack.c.l.b16 %v417
        %v607 = vunpack.c.h.b16 %v417
        %v608 = vunpack.c.l.b16 %v418
        %v609 = vunpack.c.h.b16 %v418
        %v610 = vunpack.c.l.b16 %v419
        %v611 = vunpack.c.h.b16 %v419
        %v612 = vunpack.c.l.b16 %v420
        %v613 = vunpack.c.h.b16 %v420
        %v614 = vunpack.c.l.b16 %v421
        %v615 = vunpack.c.h.b16 %v421
        %v616 = vunpack.c.l.b16 %v422
        %v617 = vunpack.c.h.b16 %v422
        %v618 = vunpack.c.l.b16 %v423
        %v619 = vunpack.c.h.b16 %v423
        %v620 = vunpack.c.l.b16 %v424
        %v621 = vunpack.c.h.b16 %v424
        %v622 = vpack.c.b16 %v604, %v602
        %v623 = vpack.c.b16 %v605, %v603
        %v624 = vpack.c.b16 %v608, %v606
        %v625 = vpack.c.b16 %v609, %v607
        %v626 = vpack.c.b16 %v612, %v610
        %v627 = vpack.c.b16 %v613, %v611
        %v628 = vpack.c.b16 %v616, %v614
        %v629 = vpack.c.b16 %v617, %v615
        %v630 = vpack.c.b16 %v620, %v618
        %v631 = vpack.c.b16 %v621, %v619
        %v642 = vsel %vm534, %v451, 0
        %v644 = vsel %vm534, %v452, 0
        %v646 = vsel %vm534, %v453, 0
        %648 = vmatpush.bf16.msra.mxu0 0
        %649 = vmatpush.bf16.msra.mxu0 0
        %650 = vmatpush.bf16.msra.mxu0 0
        %651 = vmatpush.bf16.msra.mxu0 %v630
        %652 = vmatpush.bf16.msra.mxu0 %v628
        %653 = vmatpush.bf16.msra.mxu0 %v626
        %654 = vmatpush.bf16.msra.mxu0 %v624
        %655 = vmatpush.bf16.msra.mxu0 %v622
        %656 = vmatmul.bf16.gmra.mxu0 %v642
        %v657 = vpop.f32.mrf.mxu0
        %v658 = vadd.f32 %v554, %v657
        %v659 = vpop.f32.mrf.mxu0
        %v660 = vadd.f32 %v556, %v659
        %661 = vmatmul.bf16.gmra.mxu0 %v644
        %v662 = vpop.f32.mrf.mxu0
        %v663 = vadd.f32 %v559, %v662
        %v664 = vpop.f32.mrf.mxu0
        %v665 = vadd.f32 %v561, %v664
        %666 = vmatmul.bf16.gmra.mxu0 %v646
        %v667 = vpop.f32.mrf.mxu0
        %v668 = vadd.f32 %v564, %v667
        %v669 = vpop.f32.mrf.mxu0
        %v670 = vadd.f32 %v566, %v669
        %671 = vdwg.mxu0
        %672 = vmatpush.bf16.msra.mxu0 0
        %673 = vmatpush.bf16.msra.mxu0 0
        %674 = vmatpush.bf16.msra.mxu0 0
        %675 = vmatpush.bf16.msra.mxu0 %v631
        %676 = vmatpush.bf16.msra.mxu0 %v629
        %677 = vmatpush.bf16.msra.mxu0 %v627
        %678 = vmatpush.bf16.msra.mxu0 %v625
        %679 = vmatpush.bf16.msra.mxu0 %v623
        %680 = vmatmul.bf16.gmra.mxu0 %v642
        %v681 = vpop.f32.mrf.mxu0
        %v682 = vadd.f32 %v578, %v681
        %v683 = vpop.f32.mrf.mxu0
        %v684 = vadd.f32 %v580, %v683
        %685 = vmatmul.bf16.gmra.mxu0 %v644
        %v686 = vpop.f32.mrf.mxu0
        %v687 = vadd.f32 %v583, %v686
        %v688 = vpop.f32.mrf.mxu0
        %v689 = vadd.f32 %v585, %v688
        %690 = vmatmul.bf16.gmra.mxu0 %v646
        %v691 = vpop.f32.mrf.mxu0
        %v692 = vadd.f32 %v588, %v691
        %v693 = vpop.f32.mrf.mxu0
        %v694 = vadd.f32 %v590, %v693
        %695 = vdwg.mxu0
        %v696 = vld [vmem:[%s355] sm:$0xe]
        %s697 = scalar_lea.vmem [#allocation3], 160
        %v698 = vld [vmem:[%s697] sm:$0xff]
        %v699 = vld [vmem:[%s697 + $0x8] sm:$0xff]
        %v700 = vld [vmem:[%s697 + $0x10] sm:$0xff]
        %v701 = vld [vmem:[%s697 + $0x18] sm:$0xff]
        %v702 = vld [vmem:[%s697 + $0x20] sm:$0xff]
        %v703 = vld [vmem:[%s697 + $0x28] sm:$0xff]
        %v704 = vld [vmem:[%s697 + $0x30] sm:$0xff]
        %v705 = vld [vmem:[%s697 + $0x38] sm:$0xff]
        %v706 = vld [vmem:[%s697 + $0x40] sm:$0xff]
        %v707 = vld [vmem:[%s697 + $0x48] sm:$0xff]
        %v709 = vunpack.c.l.b16 %v696
        %v710 = vpack.c.b16 %v445, %v709
        %vm711 = vcmask 1046528
        %v712 = vrot.slane %v710, 1
        %v713 = vrot.slane %v452, 1
        %v714 = vsel %vm711, %v712, %v713
        %v715 = vrot.slane %v453, 1
        %v716 = vsel %vm711, %v713, %v715
        %v717 = vrot.slane %v454, 1
        %v718 = vsel %vm711, %v715, %v717
        %v729 = vunpack.c.l.b16 %v698
        %v730 = vunpack.c.h.b16 %v698
        %v731 = vunpack.c.l.b16 %v699
        %v732 = vunpack.c.h.b16 %v699
        %v733 = vunpack.c.l.b16 %v700
        %v734 = vunpack.c.h.b16 %v700
        %v735 = vunpack.c.l.b16 %v701
        %v736 = vunpack.c.h.b16 %v701
        %v737 = vunpack.c.l.b16 %v702
        %v738 = vunpack.c.h.b16 %v702
        %v739 = vunpack.c.l.b16 %v703
        %v740 = vunpack.c.h.b16 %v703
        %v741 = vunpack.c.l.b16 %v704
        %v742 = vunpack.c.h.b16 %v704
        %v743 = vunpack.c.l.b16 %v705
        %v744 = vunpack.c.h.b16 %v705
        %v745 = vunpack.c.l.b16 %v706
        %v746 = vunpack.c.h.b16 %v706
        %v747 = vunpack.c.l.b16 %v707
        %v748 = vunpack.c.h.b16 %v707
        %v749 = vpack.c.b16 %v731, %v729
        %v750 = vpack.c.b16 %v732, %v730
        %v751 = vpack.c.b16 %v735, %v733
        %v752 = vpack.c.b16 %v736, %v734
        %v753 = vpack.c.b16 %v739, %v737
        %v754 = vpack.c.b16 %v740, %v738
        %v755 = vpack.c.b16 %v743, %v741
        %v756 = vpack.c.b16 %v744, %v742
        %v757 = vpack.c.b16 %v747, %v745
        %v758 = vpack.c.b16 %v748, %v746
        %v770 = vsel %vm534, %v714, 0
        %v773 = vsel %vm534, %v716, 0
        %v776 = vsel %vm534, %v718, 0
        %778 = vmatpush.bf16.msra.mxu0 0
        %779 = vmatpush.bf16.msra.mxu0 0
        %780 = vmatpush.bf16.msra.mxu0 0
        %781 = vmatpush.bf16.msra.mxu0 %v757
        %782 = vmatpush.bf16.msra.mxu0 %v755
        %783 = vmatpush.bf16.msra.mxu0 %v753
        %784 = vmatpush.bf16.msra.mxu0 %v751
        %785 = vmatpush.bf16.msra.mxu0 %v749
        %786 = vmatmul.bf16.gmra.mxu0 %v770
        %v787 = vpop.f32.mrf.mxu0
        %v788 = vadd.f32 0.0, %v787
        %v789 = vpop.f32.mrf.mxu0
        %v790 = vadd.f32 0.0, %v789
        %791 = vmatmul.bf16.gmra.mxu0 %v773
        %v792 = vpop.f32.mrf.mxu0
        %v793 = vadd.f32 0.0, %v792
        %v794 = vpop.f32.mrf.mxu0
        %v795 = vadd.f32 0.0, %v794
        %796 = vmatmul.bf16.gmra.mxu0 %v776
        %v797 = vpop.f32.mrf.mxu0
        %v798 = vadd.f32 0.0, %v797
        %v799 = vpop.f32.mrf.mxu0
        %v800 = vadd.f32 0.0, %v799
        %801 = vdwg.mxu0
        %802 = vmatpush.bf16.msra.mxu0 0
        %803 = vmatpush.bf16.msra.mxu0 0
        %804 = vmatpush.bf16.msra.mxu0 0
        %805 = vmatpush.bf16.msra.mxu0 %v758
        %806 = vmatpush.bf16.msra.mxu0 %v756
        %807 = vmatpush.bf16.msra.mxu0 %v754
        %808 = vmatpush.bf16.msra.mxu0 %v752
        %809 = vmatpush.bf16.msra.mxu0 %v750
        %810 = vmatmul.bf16.gmra.mxu0 %v770
        %v811 = vpop.f32.mrf.mxu0
        %v812 = vadd.f32 0.0, %v811
        %v813 = vpop.f32.mrf.mxu0
        %v814 = vadd.f32 0.0, %v813
        %815 = vmatmul.bf16.gmra.mxu0 %v773
        %v816 = vpop.f32.mrf.mxu0
        %v817 = vadd.f32 0.0, %v816
        %v818 = vpop.f32.mrf.mxu0
        %v819 = vadd.f32 0.0, %v818
        %820 = vmatmul.bf16.gmra.mxu0 %v776
        %v821 = vpop.f32.mrf.mxu0
        %v822 = vadd.f32 0.0, %v821
        %v823 = vpop.f32.mrf.mxu0
        %v824 = vadd.f32 0.0, %v823
        %825 = vdwg.mxu0
        %v826 = vadd.f32 %v658, %v788
        %v827 = vadd.f32 %v682, %v812
        %v828 = vadd.f32 %v660, %v790
        %v829 = vadd.f32 %v684, %v814
        %v830 = vadd.f32 %v663, %v793
        %v831 = vadd.f32 %v687, %v817
        %v832 = vadd.f32 %v665, %v795
        %v833 = vadd.f32 %v689, %v819
        %v834 = vadd.f32 %v668, %v798
        %v835 = vadd.f32 %v692, %v822
        %v836 = vadd.f32 %v670, %v800
        %v837 = vadd.f32 %v694, %v824
        %v838 = vld [vmem:[%s355 + $0x18] sm:$0x3]
        %s839 = scalar_lea.vmem [#allocation3], 240
        %v840 = vld [vmem:[%s839] sm:$0xff]
        %v841 = vld [vmem:[%s839 + $0x8] sm:$0xff]
        %v842 = vld [vmem:[%s839 + $0x10] sm:$0xff]
        %v843 = vld [vmem:[%s839 + $0x18] sm:$0xff]
        %v844 = vld [vmem:[%s839 + $0x20] sm:$0xff]
        %v845 = vld [vmem:[%s839 + $0x28] sm:$0xff]
        %v846 = vld [vmem:[%s839 + $0x30] sm:$0xff]
        %v847 = vld [vmem:[%s839 + $0x38] sm:$0xff]
        %v848 = vld [vmem:[%s839 + $0x40] sm:$0xff]
        %v849 = vld [vmem:[%s839 + $0x48] sm:$0xff]
        %v851 = vunpack.c.l.b16 %v838
        %v852 = vpack.c.b16 %v851, %v851
        %vm853 = vsmask.f32 6400
        %v855 = vshrl.u32 %v710, 16
        %v857 = vrot.slane %v855, 1
        %v858 = vshll.u32 %v710, 16
        %v860 = vrot.slane %v858, 2
        %v861 = vor.u32 %v857, %v860
        %v862 = vrot.slane %v468, 1
        %v863 = vrot.slane %v464, 2
        %v864 = vor.u32 %v862, %v863
        %v865 = vsel %vm853, %v861, %v864
        %v866 = vrot.slane %v476, 1
        %v867 = vrot.slane %v472, 2
        %v868 = vor.u32 %v866, %v867
        %v869 = vsel %vm853, %v864, %v868
        %v871 = vshrl.u32 %v852, 16
        %v873 = vrot.slane %v871, 1
        %v874 = vshll.u32 %v852, 16
        %v876 = vrot.slane %v874, 2
        %v877 = vor.u32 %v873, %v876
        %v878 = vsel %vm853, %v868, %v877
        %v889 = vunpack.c.l.b16 %v840
        %v890 = vunpack.c.h.b16 %v840
        %v891 = vunpack.c.l.b16 %v841
        %v892 = vunpack.c.h.b16 %v841
        %v893 = vunpack.c.l.b16 %v842
        %v894 = vunpack.c.h.b16 %v842
        %v895 = vunpack.c.l.b16 %v843
        %v896 = vunpack.c.h.b16 %v843
        %v897 = vunpack.c.l.b16 %v844
        %v898 = vunpack.c.h.b16 %v844
        %v899 = vunpack.c.l.b16 %v845
        %v900 = vunpack.c.h.b16 %v845
        %v901 = vunpack.c.l.b16 %v846
        %v902 = vunpack.c.h.b16 %v846
        %v903 = vunpack.c.l.b16 %v847
        %v904 = vunpack.c.h.b16 %v847
        %v905 = vunpack.c.l.b16 %v848
        %v906 = vunpack.c.h.b16 %v848
        %v907 = vunpack.c.l.b16 %v849
        %v908 = vunpack.c.h.b16 %v849
        %v909 = vpack.c.b16 %v891, %v889
        %v910 = vpack.c.b16 %v892, %v890
        %v911 = vpack.c.b16 %v895, %v893
        %v912 = vpack.c.b16 %v896, %v894
        %v913 = vpack.c.b16 %v899, %v897
        %v914 = vpack.c.b16 %v900, %v898
        %v915 = vpack.c.b16 %v903, %v901
        %v916 = vpack.c.b16 %v904, %v902
        %v917 = vpack.c.b16 %v907, %v905
        %v918 = vpack.c.b16 %v908, %v906
        %v930 = vsel %vm534, %v865, 0
        %v933 = vsel %vm534, %v869, 0
        %v936 = vsel %vm534, %v878, 0
        %938 = vmatpush.bf16.msra.mxu0 0
        %939 = vmatpush.bf16.msra.mxu0 0
        %940 = vmatpush.bf16.msra.mxu0 0
        %941 = vmatpush.bf16.msra.mxu0 %v917
        %942 = vmatpush.bf16.msra.mxu0 %v915
        %943 = vmatpush.bf16.msra.mxu0 %v913
        %944 = vmatpush.bf16.msra.mxu0 %v911
        %945 = vmatpush.bf16.msra.mxu0 %v909
        %946 = vmatmul.bf16.gmra.mxu0 %v930
        %v947 = vpop.f32.mrf.mxu0
        %v948 = vadd.f32 0.0, %v947
        %v949 = vpop.f32.mrf.mxu0
        %v950 = vadd.f32 0.0, %v949
        %951 = vmatmul.bf16.gmra.mxu0 %v933
        %v952 = vpop.f32.mrf.mxu0
        %v953 = vadd.f32 0.0, %v952
        %v954 = vpop.f32.mrf.mxu0
        %v955 = vadd.f32 0.0, %v954
        %956 = vmatmul.bf16.gmra.mxu0 %v936
        %v957 = vpop.f32.mrf.mxu0
        %v958 = vadd.f32 0.0, %v957
        %v959 = vpop.f32.mrf.mxu0
        %v960 = vadd.f32 0.0, %v959
        %961 = vdwg.mxu0
        %962 = vmatpush.bf16.msra.mxu0 0
        %963 = vmatpush.bf16.msra.mxu0 0
        %964 = vmatpush.bf16.msra.mxu0 0
        %965 = vmatpush.bf16.msra.mxu0 %v918
        %966 = vmatpush.bf16.msra.mxu0 %v916
        %967 = vmatpush.bf16.msra.mxu0 %v914
        %968 = vmatpush.bf16.msra.mxu0 %v912
        %969 = vmatpush.bf16.msra.mxu0 %v910
        %970 = vmatmul.bf16.gmra.mxu0 %v930
        %v971 = vpop.f32.mrf.mxu0
        %v972 = vadd.f32 0.0, %v971
        %v973 = vpop.f32.mrf.mxu0
        %v974 = vadd.f32 0.0, %v973
        %975 = vmatmul.bf16.gmra.mxu0 %v933
        %v976 = vpop.f32.mrf.mxu0
        %v977 = vadd.f32 0.0, %v976
        %v978 = vpop.f32.mrf.mxu0
        %v979 = vadd.f32 0.0, %v978
        %980 = vmatmul.bf16.gmra.mxu0 %v936
        %v981 = vpop.f32.mrf.mxu0
        %v982 = vadd.f32 0.0, %v981
        %v983 = vpop.f32.mrf.mxu0
        %v984 = vadd.f32 0.0, %v983
        %985 = vdwg.mxu0
        %v986 = vadd.f32 %v826, %v948
        %v987 = vadd.f32 %v827, %v972
        %v988 = vadd.f32 %v828, %v950
        %v989 = vadd.f32 %v829, %v974
        %v990 = vadd.f32 %v830, %v953
        %v991 = vadd.f32 %v831, %v977
        %v992 = vadd.f32 %v832, %v955
        %v993 = vadd.f32 %v833, %v979
        %v994 = vadd.f32 %v834, %v958
        %v995 = vadd.f32 %v835, %v982
        %v996 = vadd.f32 %v836, %v960
        %v997 = vadd.f32 %v837, %v984
        %v998 = vld [vmem:[%s355] sm:$0xc]
        %s999 = scalar_lea.vmem [#allocation3], 320
        %v1000 = vld [vmem:[%s999] sm:$0xff]
        %v1001 = vld [vmem:[%s999 + $0x8] sm:$0xff]
        %v1002 = vld [vmem:[%s999 + $0x10] sm:$0xff]
        %v1003 = vld [vmem:[%s999 + $0x18] sm:$0xff]
        %v1004 = vld [vmem:[%s999 + $0x20] sm:$0xff]
        %v1005 = vld [vmem:[%s999 + $0x28] sm:$0xff]
        %v1006 = vld [vmem:[%s999 + $0x30] sm:$0xff]
        %v1007 = vld [vmem:[%s999 + $0x38] sm:$0xff]
        %v1008 = vld [vmem:[%s999 + $0x40] sm:$0xff]
        %v1009 = vld [vmem:[%s999 + $0x48] sm:$0xff]
        %v1011 = vunpack.c.l.b16 %v998
        %v1012 = vpack.c.b16 %v445, %v1011
        %vm1013 = vcmask 1045504
        %v1014 = vrot.slane %v1012, 2
        %v1015 = vrot.slane %v452, 2
        %v1016 = vsel %vm1013, %v1014, %v1015
        %v1017 = vrot.slane %v453, 2
        %v1018 = vsel %vm1013, %v1015, %v1017
        %v1019 = vrot.slane %v852, 2
        %v1020 = vsel %vm1013, %v1017, %v1019
        %v1031 = vunpack.c.l.b16 %v1000
        %v1032 = vunpack.c.h.b16 %v1000
        %v1033 = vunpack.c.l.b16 %v1001
        %v1034 = vunpack.c.h.b16 %v1001
        %v1035 = vunpack.c.l.b16 %v1002
        %v1036 = vunpack.c.h.b16 %v1002
        %v1037 = vunpack.c.l.b16 %v1003
        %v1038 = vunpack.c.h.b16 %v1003
        %v1039 = vunpack.c.l.b16 %v1004
        %v1040 = vunpack.c.h.b16 %v1004
        %v1041 = vunpack.c.l.b16 %v1005
        %v1042 = vunpack.c.h.b16 %v1005
        %v1043 = vunpack.c.l.b16 %v1006
        %v1044 = vunpack.c.h.b16 %v1006
        %v1045 = vunpack.c.l.b16 %v1007
        %v1046 = vunpack.c.h.b16 %v1007
        %v1047 = vunpack.c.l.b16 %v1008
        %v1048 = vunpack.c.h.b16 %v1008
        %v1049 = vunpack.c.l.b16 %v1009
        %v1050 = vunpack.c.h.b16 %v1009
        %v1051 = vpack.c.b16 %v1033, %v1031
        %v1052 = vpack.c.b16 %v1034, %v1032
        %v1053 = vpack.c.b16 %v1037, %v1035
        %v1054 = vpack.c.b16 %v1038, %v1036
        %v1055 = vpack.c.b16 %v1041, %v1039
        %v1056 = vpack.c.b16 %v1042, %v1040
        %v1057 = vpack.c.b16 %v1045, %v1043
        %v1058 = vpack.c.b16 %v1046, %v1044
        %v1059 = vpack.c.b16 %v1049, %v1047
        %v1060 = vpack.c.b16 %v1050, %v1048
        %v1072 = vsel %vm534, %v1016, 0
        %v1075 = vsel %vm534, %v1018, 0
        %v1078 = vsel %vm534, %v1020, 0
        %1080 = vmatpush.bf16.msra.mxu0 0
        %1081 = vmatpush.bf16.msra.mxu0 0
        %1082 = vmatpush.bf16.msra.mxu0 0
        %1083 = vmatpush.bf16.msra.mxu0 %v1059
        %1084 = vmatpush.bf16.msra.mxu0 %v1057
        %1085 = vmatpush.bf16.msra.mxu0 %v1055
        %1086 = vmatpush.bf16.msra.mxu0 %v1053
        %1087 = vmatpush.bf16.msra.mxu0 %v1051
        %1088 = vmatmul.bf16.gmra.mxu0 %v1072
        %v1089 = vpop.f32.mrf.mxu0
        %v1090 = vadd.f32 0.0, %v1089
        %v1091 = vpop.f32.mrf.mxu0
        %v1092 = vadd.f32 0.0, %v1091
        %1093 = vmatmul.bf16.gmra.mxu0 %v1075
        %v1094 = vpop.f32.mrf.mxu0
        %v1095 = vadd.f32 0.0, %v1094
        %v1096 = vpop.f32.mrf.mxu0
        %v1097 = vadd.f32 0.0, %v1096
        %1098 = vmatmul.bf16.gmra.mxu0 %v1078
        %v1099 = vpop.f32.mrf.mxu0
        %v1100 = vadd.f32 0.0, %v1099
        %v1101 = vpop.f32.mrf.mxu0
        %v1102 = vadd.f32 0.0, %v1101
        %1103 = vdwg.mxu0
        %1104 = vmatpush.bf16.msra.mxu0 0
        %1105 = vmatpush.bf16.msra.mxu0 0
        %1106 = vmatpush.bf16.msra.mxu0 0
        %1107 = vmatpush.bf16.msra.mxu0 %v1060
        %1108 = vmatpush.bf16.msra.mxu0 %v1058
        %1109 = vmatpush.bf16.msra.mxu0 %v1056
        %1110 = vmatpush.bf16.msra.mxu0 %v1054
        %1111 = vmatpush.bf16.msra.mxu0 %v1052
        %1112 = vmatmul.bf16.gmra.mxu0 %v1072
        %v1113 = vpop.f32.mrf.mxu0
        %v1114 = vadd.f32 0.0, %v1113
        %v1115 = vpop.f32.mrf.mxu0
        %v1116 = vadd.f32 0.0, %v1115
        %1117 = vmatmul.bf16.gmra.mxu0 %v1075
        %v1118 = vpop.f32.mrf.mxu0
        %v1119 = vadd.f32 0.0, %v1118
        %v1120 = vpop.f32.mrf.mxu0
        %v1121 = vadd.f32 0.0, %v1120
        %1122 = vmatmul.bf16.gmra.mxu0 %v1078
        %v1123 = vpop.f32.mrf.mxu0
        %v1124 = vadd.f32 0.0, %v1123
        %v1125 = vpop.f32.mrf.mxu0
        %v1126 = vadd.f32 0.0, %v1125
        %1127 = vdwg.mxu0
        %v1128 = vadd.f32 %v986, %v1090
        %v1129 = vadd.f32 %v987, %v1114
        %v1130 = vadd.f32 %v988, %v1092
        %v1131 = vadd.f32 %v989, %v1116
        %v1132 = vadd.f32 %v990, %v1095
        %v1133 = vadd.f32 %v991, %v1119
        %v1134 = vadd.f32 %v992, %v1097
        %v1135 = vadd.f32 %v993, %v1121
        %v1136 = vadd.f32 %v994, %v1100
        %v1137 = vadd.f32 %v995, %v1124
        %v1138 = vadd.f32 %v996, %v1102
        %v1139 = vadd.f32 %v997, %v1126
        %v1140 = vmax.f32 %v1128, %v1129
        %v1141 = vmax.f32 %v1130, %v1131
        %v1142 = vmax.f32 %v1132, %v1133
        %v1143 = vmax.f32 %v1134, %v1135
        %v1144 = vmax.f32 %v1136, %v1137
        %v1145 = vmax.f32 %v1138, %v1139
        %v1147 = vperm.slane %v402, 0
        %v1149 = vadd.f32 %v1140, %v1147
        %v1150 = vadd.f32 %v1141, %v1147
        %v1151 = vadd.f32 %v1142, %v1147
        %v1152 = vadd.f32 %v1143, %v1147
        %v1153 = vadd.f32 %v1144, %v1147
        %v1154 = vadd.f32 %v1145, %v1147
        %v1155 = vmax.f32 %v1149, 0.0
        %v1156 = vmax.f32 %v1150, 0.0
        %v1157 = vmax.f32 %v1151, 0.0
        %v1158 = vmax.f32 %v1152, 0.0
        %v1159 = vmax.f32 %v1153, 0.0
        %v1160 = vmax.f32 %v1154, 0.0
        %v1161 = vpack.c.bf16 %v1156, %v1155
        %v1162 = vpack.c.bf16 %v1158, %v1157
        %v1163 = vpack.c.bf16 %v1160, %v1159
        %v1167 = vunpack.c.l.b16 %v403
        %v1168 = vunpack.c.l.b16 %v404
        %v1169 = vunpack.c.l.b16 %v405
        %v1170 = vpack.c.b16 %v1168, %v1167
        %v1171 = vpack.c.b16 %v1169, %v1169
        %vm1172 = vcmask 392192
        %v1174 = vsel %vm1172, %v1170, 0
        %v1177 = vsel %vm1172, %v1171, 0
        %1179 = vmatpush.bf16.msra.mxu0 0
        %1180 = vmatpush.bf16.msra.mxu0 0
        %1181 = vmatpush.bf16.msra.mxu0 0
        %1182 = vmatpush.bf16.msra.mxu0 0
        %1183 = vmatpush.bf16.msra.mxu0 0
        %1184 = vmatpush.bf16.msra.mxu0 %v1163
        %1185 = vmatpush.bf16.msra.mxu0 %v1162
        %1186 = vmatpush.bf16.msra.mxu0 %v1161
        %1187 = vmatmul.bf16.gmra.mxu0 %v1174
        %v1188 = vpop.f32.mrf.mxu0
        %v1189 = vadd.f32 0.0, %v1188
        %v1190 = vpop.f32.mrf.mxu0
        %v1191 = vadd.f32 0.0, %v1190
        %1192 = vmatmul.bf16.gmra.mxu0 %v1177
        %v1193 = vpop.f32.mrf.mxu0
        %v1194 = vadd.f32 0.0, %v1193
        %v1195 = vpop.f32.mrf.mxu0
        %1196 = vdwg.mxu0
        %v1200 = vunpack.c.l.b16 %v406
        %v1201 = vunpack.c.l.b16 %v407
        %v1202 = vunpack.c.l.b16 %v408
        %v1203 = vpack.c.b16 %v1201, %v1200
        %v1204 = vpack.c.b16 %v1202, %v1202
        %v1206 = vsel %vm1172, %v1203, 0
        %v1209 = vsel %vm1172, %v1204, 0
        %1211 = vmatpush.bf16.msra.mxu0 0
        %1212 = vmatpush.bf16.msra.mxu0 0
        %1213 = vmatpush.bf16.msra.mxu0 0
        %1214 = vmatpush.bf16.msra.mxu0 0
        %1215 = vmatpush.bf16.msra.mxu0 0
        %1216 = vmatpush.bf16.msra.mxu0 %v1163
        %1217 = vmatpush.bf16.msra.mxu0 %v1162
        %1218 = vmatpush.bf16.msra.mxu0 %v1161
        %1219 = vmatmul.bf16.gmra.mxu0 %v1206
        %v1220 = vpop.f32.mrf.mxu0
        %v1221 = vadd.f32 0.0, %v1220
        %v1222 = vpop.f32.mrf.mxu0
        %v1223 = vadd.f32 0.0, %v1222
        %1224 = vmatmul.bf16.gmra.mxu0 %v1209
        %v1225 = vpop.f32.mrf.mxu0
        %v1226 = vadd.f32 0.0, %v1225
        %v1227 = vpop.f32.mrf.mxu0
        %1228 = vdwg.mxu0
        %v1229 = vmax.f32 %v1189, %v1221
        %v1230 = vmax.f32 %v1191, %v1223
        %v1231 = vmax.f32 %v1194, %v1226
        %v1232 = vpack.c.bf16 %v1229, %v1229
        %v1233 = vpack.c.bf16 %v1230, %v1230
        %v1234 = vpack.c.bf16 %v1231, %v1231
        %1235 = vst [vmem:[%s398] sm:$0xf] %v1232
        %1236 = vst [vmem:[%s398 + $0x4] sm:$0xf] %v1233
        %1237 = vst [vmem:[%s398 + $0x8] sm:$0xf] %v1234
        %s1238 = scalar_lea.vmem %s355, 28 [#allocation2]
        %v1239 = vld [vmem:[%s1238] sm:$0xf]
        %v1240 = vld [vmem:[%s1238 + $0x4] sm:$0xf]
        %v1241 = vld [vmem:[%s1238 + $0x8] sm:$0xf]
        %v1242 = vld [vmem:[%s1238 + $0xc] sm:$0xf]
        %v1243 = vld [vmem:[%s1238 + $0x10] sm:$0xf]
        %v1244 = vld [vmem:[%s1238 + $0x14] sm:$0xf]
        %v1245 = vld [vmem:[#allocation3] sm:$0xff]
        %v1246 = vld [vmem:[#allocation3 + $0x8] sm:$0xff]
        %v1247 = vld [vmem:[#allocation3 + $0x10] sm:$0xff]
        %v1248 = vld [vmem:[#allocation3 + $0x18] sm:$0xff]
        %v1249 = vld [vmem:[#allocation3 + $0x20] sm:$0xff]
        %v1250 = vld [vmem:[#allocation3 + $0x28] sm:$0xff]
        %v1251 = vld [vmem:[#allocation3 + $0x30] sm:$0xff]
        %v1252 = vld [vmem:[#allocation3 + $0x38] sm:$0xff]
        %v1253 = vld [vmem:[#allocation3 + $0x40] sm:$0xff]
        %v1254 = vld [vmem:[#allocation3 + $0x48] sm:$0xff]
        %v1255 = vld [vmem:[%s1238 + $0x18] sm:$0x1]
        %v1256 = vld [vmem:[%s426] sm:$0xff]
        %v1257 = vld [vmem:[%s426 + $0x8] sm:$0xff]
        %v1258 = vld [vmem:[%s426 + $0x10] sm:$0xff]
        %v1259 = vld [vmem:[%s426 + $0x18] sm:$0xff]
        %v1260 = vld [vmem:[%s426 + $0x20] sm:$0xff]
        %v1261 = vld [vmem:[%s426 + $0x28] sm:$0xff]
        %v1262 = vld [vmem:[%s426 + $0x30] sm:$0xff]
        %v1263 = vld [vmem:[%s426 + $0x38] sm:$0xff]
        %v1264 = vld [vmem:[%s426 + $0x40] sm:$0xff]
        %v1265 = vld [vmem:[%s426 + $0x48] sm:$0xff]
        %v1273 = vunpack.c.l.b16 %v1239
        %v1274 = vunpack.c.l.b16 %v1240
        %v1275 = vunpack.c.l.b16 %v1241
        %v1276 = vunpack.c.l.b16 %v1242
        %v1277 = vunpack.c.l.b16 %v1243
        %v1278 = vunpack.c.l.b16 %v1244
        %v1279 = vunpack.c.l.b16 %v1255
        %v1280 = vpack.c.b16 %v1274, %v1273
        %v1281 = vpack.c.b16 %v1276, %v1275
        %v1282 = vpack.c.b16 %v1278, %v1277
        %v1283 = vpack.c.b16 %v1279, %v1279
        %v1285 = vshrl.u32 %v1280, 16
        %v1287 = vshll.u32 %v1280, 16
        %v1289 = vrot.slane %v1287, 1
        %v1290 = vor.u32 %v1285, %v1289
        %v1292 = vshll.u32 %v1281, 16
        %v1294 = vrot.slane %v1292, 1
        %v1295 = vsel %vm455, %v1290, %v1294
        %v1296 = vshrl.u32 %v1281, 16
        %v1298 = vor.u32 %v1296, %v1294
        %v1300 = vshll.u32 %v1282, 16
        %v1302 = vrot.slane %v1300, 1
        %v1303 = vsel %vm455, %v1298, %v1302
        %v1304 = vshrl.u32 %v1282, 16
        %v1306 = vor.u32 %v1304, %v1302
        %v1308 = vshll.u32 %v1283, 16
        %v1310 = vrot.slane %v1308, 1
        %v1311 = vsel %vm455, %v1306, %v1310
        %v1322 = vunpack.c.l.b16 %v1256
        %v1323 = vunpack.c.h.b16 %v1256
        %v1324 = vunpack.c.l.b16 %v1257
        %v1325 = vunpack.c.h.b16 %v1257
        %v1326 = vunpack.c.l.b16 %v1258
        %v1327 = vunpack.c.h.b16 %v1258
        %v1328 = vunpack.c.l.b16 %v1259
        %v1329 = vunpack.c.h.b16 %v1259
        %v1330 = vunpack.c.l.b16 %v1260
        %v1331 = vunpack.c.h.b16 %v1260
        %v1332 = vunpack.c.l.b16 %v1261
        %v1333 = vunpack.c.h.b16 %v1261
        %v1334 = vunpack.c.l.b16 %v1262
        %v1335 = vunpack.c.h.b16 %v1262
        %v1336 = vunpack.c.l.b16 %v1263
        %v1337 = vunpack.c.h.b16 %v1263
        %v1338 = vunpack.c.l.b16 %v1264
        %v1339 = vunpack.c.h.b16 %v1264
        %v1340 = vunpack.c.l.b16 %v1265
        %v1341 = vunpack.c.h.b16 %v1265
        %v1342 = vpack.c.b16 %v1324, %v1322
        %v1343 = vpack.c.b16 %v1325, %v1323
        %v1344 = vpack.c.b16 %v1328, %v1326
        %v1345 = vpack.c.b16 %v1329, %v1327
        %v1346 = vpack.c.b16 %v1332, %v1330
        %v1347 = vpack.c.b16 %v1333, %v1331
        %v1348 = vpack.c.b16 %v1336, %v1334
        %v1349 = vpack.c.b16 %v1337, %v1335
        %v1350 = vpack.c.b16 %v1340, %v1338
        %v1351 = vpack.c.b16 %v1341, %v1339
        %v1363 = vsel %vm534, %v1295, 0
        %v1366 = vsel %vm534, %v1303, 0
        %v1369 = vsel %vm534, %v1311, 0
        %1371 = vmatpush.bf16.msra.mxu0 0
        %1372 = vmatpush.bf16.msra.mxu0 0
        %1373 = vmatpush.bf16.msra.mxu0 0
        %1374 = vmatpush.bf16.msra.mxu0 %v1350
        %1375 = vmatpush.bf16.msra.mxu0 %v1348
        %1376 = vmatpush.bf16.msra.mxu0 %v1346
        %1377 = vmatpush.bf16.msra.mxu0 %v1344
        %1378 = vmatpush.bf16.msra.mxu0 %v1342
        %1379 = vmatmul.bf16.gmra.mxu0 %v1363
        %v1380 = vpop.f32.mrf.mxu0
        %v1381 = vadd.f32 0.0, %v1380
        %v1382 = vpop.f32.mrf.mxu0
        %v1383 = vadd.f32 0.0, %v1382
        %1384 = vmatmul.bf16.gmra.mxu0 %v1366
        %v1385 = vpop.f32.mrf.mxu0
        %v1386 = vadd.f32 0.0, %v1385
        %v1387 = vpop.f32.mrf.mxu0
        %v1388 = vadd.f32 0.0, %v1387
        %1389 = vmatmul.bf16.gmra.mxu0 %v1369
        %v1390 = vpop.f32.mrf.mxu0
        %v1391 = vadd.f32 0.0, %v1390
        %v1392 = vpop.f32.mrf.mxu0
        %v1393 = vadd.f32 0.0, %v1392
        %1394 = vdwg.mxu0
        %1395 = vmatpush.bf16.msra.mxu0 0
        %1396 = vmatpush.bf16.msra.mxu0 0
        %1397 = vmatpush.bf16.msra.mxu0 0
        %1398 = vmatpush.bf16.msra.mxu0 %v1351
        %1399 = vmatpush.bf16.msra.mxu0 %v1349
        %1400 = vmatpush.bf16.msra.mxu0 %v1347
        %1401 = vmatpush.bf16.msra.mxu0 %v1345
        %1402 = vmatpush.bf16.msra.mxu0 %v1343
        %1403 = vmatmul.bf16.gmra.mxu0 %v1363
        %v1404 = vpop.f32.mrf.mxu0
        %v1405 = vadd.f32 0.0, %v1404
        %v1406 = vpop.f32.mrf.mxu0
        %v1407 = vadd.f32 0.0, %v1406
        %1408 = vmatmul.bf16.gmra.mxu0 %v1366
        %v1409 = vpop.f32.mrf.mxu0
        %v1410 = vadd.f32 0.0, %v1409
        %v1411 = vpop.f32.mrf.mxu0
        %v1412 = vadd.f32 0.0, %v1411
        %1413 = vmatmul.bf16.gmra.mxu0 %v1369
        %v1414 = vpop.f32.mrf.mxu0
        %v1415 = vadd.f32 0.0, %v1414
        %v1416 = vpop.f32.mrf.mxu0
        %v1417 = vadd.f32 0.0, %v1416
        %1418 = vdwg.mxu0
        %v1429 = vunpack.c.l.b16 %v1245
        %v1430 = vunpack.c.h.b16 %v1245
        %v1431 = vunpack.c.l.b16 %v1246
        %v1432 = vunpack.c.h.b16 %v1246
        %v1433 = vunpack.c.l.b16 %v1247
        %v1434 = vunpack.c.h.b16 %v1247
        %v1435 = vunpack.c.l.b16 %v1248
        %v1436 = vunpack.c.h.b16 %v1248
        %v1437 = vunpack.c.l.b16 %v1249
        %v1438 = vunpack.c.h.b16 %v1249
        %v1439 = vunpack.c.l.b16 %v1250
        %v1440 = vunpack.c.h.b16 %v1250
        %v1441 = vunpack.c.l.b16 %v1251
        %v1442 = vunpack.c.h.b16 %v1251
        %v1443 = vunpack.c.l.b16 %v1252
        %v1444 = vunpack.c.h.b16 %v1252
        %v1445 = vunpack.c.l.b16 %v1253
        %v1446 = vunpack.c.h.b16 %v1253
        %v1447 = vunpack.c.l.b16 %v1254
        %v1448 = vunpack.c.h.b16 %v1254
        %v1449 = vpack.c.b16 %v1431, %v1429
        %v1450 = vpack.c.b16 %v1432, %v1430
        %v1451 = vpack.c.b16 %v1435, %v1433
        %v1452 = vpack.c.b16 %v1436, %v1434
        %v1453 = vpack.c.b16 %v1439, %v1437
        %v1454 = vpack.c.b16 %v1440, %v1438
        %v1455 = vpack.c.b16 %v1443, %v1441
        %v1456 = vpack.c.b16 %v1444, %v1442
        %v1457 = vpack.c.b16 %v1447, %v1445
        %v1458 = vpack.c.b16 %v1448, %v1446
        %v1469 = vsel %vm534, %v1280, 0
        %v1471 = vsel %vm534, %v1281, 0
        %v1473 = vsel %vm534, %v1282, 0
        %1475 = vmatpush.bf16.msra.mxu0 0
        %1476 = vmatpush.bf16.msra.mxu0 0
        %1477 = vmatpush.bf16.msra.mxu0 0
        %1478 = vmatpush.bf16.msra.mxu0 %v1457
        %1479 = vmatpush.bf16.msra.mxu0 %v1455
        %1480 = vmatpush.bf16.msra.mxu0 %v1453
        %1481 = vmatpush.bf16.msra.mxu0 %v1451
        %1482 = vmatpush.bf16.msra.mxu0 %v1449
        %1483 = vmatmul.bf16.gmra.mxu0 %v1469
        %v1484 = vpop.f32.mrf.mxu0
        %v1485 = vadd.f32 %v1381, %v1484
        %v1486 = vpop.f32.mrf.mxu0
        %v1487 = vadd.f32 %v1383, %v1486
        %1488 = vmatmul.bf16.gmra.mxu0 %v1471
        %v1489 = vpop.f32.mrf.mxu0
        %v1490 = vadd.f32 %v1386, %v1489
        %v1491 = vpop.f32.mrf.mxu0
        %v1492 = vadd.f32 %v1388, %v1491
        %1493 = vmatmul.bf16.gmra.mxu0 %v1473
        %v1494 = vpop.f32.mrf.mxu0
        %v1495 = vadd.f32 %v1391, %v1494
        %v1496 = vpop.f32.mrf.mxu0
        %v1497 = vadd.f32 %v1393, %v1496
        %1498 = vdwg.mxu0
        %1499 = vmatpush.bf16.msra.mxu0 0
        %1500 = vmatpush.bf16.msra.mxu0 0
        %1501 = vmatpush.bf16.msra.mxu0 0
        %1502 = vmatpush.bf16.msra.mxu0 %v1458
        %1503 = vmatpush.bf16.msra.mxu0 %v1456
        %1504 = vmatpush.bf16.msra.mxu0 %v1454
        %1505 = vmatpush.bf16.msra.mxu0 %v1452
        %1506 = vmatpush.bf16.msra.mxu0 %v1450
        %1507 = vmatmul.bf16.gmra.mxu0 %v1469
        %v1508 = vpop.f32.mrf.mxu0
        %v1509 = vadd.f32 %v1405, %v1508
        %v1510 = vpop.f32.mrf.mxu0
        %v1511 = vadd.f32 %v1407, %v1510
        %1512 = vmatmul.bf16.gmra.mxu0 %v1471
        %v1513 = vpop.f32.mrf.mxu0
        %v1514 = vadd.f32 %v1410, %v1513
        %v1515 = vpop.f32.mrf.mxu0
        %v1516 = vadd.f32 %v1412, %v1515
        %1517 = vmatmul.bf16.gmra.mxu0 %v1473
        %v1518 = vpop.f32.mrf.mxu0
        %v1519 = vadd.f32 %v1415, %v1518
        %v1520 = vpop.f32.mrf.mxu0
        %v1521 = vadd.f32 %v1417, %v1520
        %1522 = vdwg.mxu0
        %v1523 = vld [vmem:[%s1238] sm:$0xe]
        %v1524 = vld [vmem:[%s697] sm:$0xff]
        %v1525 = vld [vmem:[%s697 + $0x8] sm:$0xff]
        %v1526 = vld [vmem:[%s697 + $0x10] sm:$0xff]
        %v1527 = vld [vmem:[%s697 + $0x18] sm:$0xff]
        %v1528 = vld [vmem:[%s697 + $0x20] sm:$0xff]
        %v1529 = vld [vmem:[%s697 + $0x28] sm:$0xff]
        %v1530 = vld [vmem:[%s697 + $0x30] sm:$0xff]
        %v1531 = vld [vmem:[%s697 + $0x38] sm:$0xff]
        %v1532 = vld [vmem:[%s697 + $0x40] sm:$0xff]
        %v1533 = vld [vmem:[%s697 + $0x48] sm:$0xff]
        %v1535 = vunpack.c.l.b16 %v1523
        %v1536 = vpack.c.b16 %v1274, %v1535
        %v1537 = vrot.slane %v1536, 1
        %v1538 = vrot.slane %v1281, 1
        %v1539 = vsel %vm711, %v1537, %v1538
        %v1540 = vrot.slane %v1282, 1
        %v1541 = vsel %vm711, %v1538, %v1540
        %v1542 = vrot.slane %v1283, 1
        %v1543 = vsel %vm711, %v1540, %v1542
        %v1554 = vunpack.c.l.b16 %v1524
        %v1555 = vunpack.c.h.b16 %v1524
        %v1556 = vunpack.c.l.b16 %v1525
        %v1557 = vunpack.c.h.b16 %v1525
        %v1558 = vunpack.c.l.b16 %v1526
        %v1559 = vunpack.c.h.b16 %v1526
        %v1560 = vunpack.c.l.b16 %v1527
        %v1561 = vunpack.c.h.b16 %v1527
        %v1562 = vunpack.c.l.b16 %v1528
        %v1563 = vunpack.c.h.b16 %v1528
        %v1564 = vunpack.c.l.b16 %v1529
        %v1565 = vunpack.c.h.b16 %v1529
        %v1566 = vunpack.c.l.b16 %v1530
        %v1567 = vunpack.c.h.b16 %v1530
        %v1568 = vunpack.c.l.b16 %v1531
        %v1569 = vunpack.c.h.b16 %v1531
        %v1570 = vunpack.c.l.b16 %v1532
        %v1571 = vunpack.c.h.b16 %v1532
        %v1572 = vunpack.c.l.b16 %v1533
        %v1573 = vunpack.c.h.b16 %v1533
        %v1574 = vpack.c.b16 %v1556, %v1554
        %v1575 = vpack.c.b16 %v1557, %v1555
        %v1576 = vpack.c.b16 %v1560, %v1558
        %v1577 = vpack.c.b16 %v1561, %v1559
        %v1578 = vpack.c.b16 %v1564, %v1562
        %v1579 = vpack.c.b16 %v1565, %v1563
        %v1580 = vpack.c.b16 %v1568, %v1566
        %v1581 = vpack.c.b16 %v1569, %v1567
        %v1582 = vpack.c.b16 %v1572, %v1570
        %v1583 = vpack.c.b16 %v1573, %v1571
        %v1595 = vsel %vm534, %v1539, 0
        %v1598 = vsel %vm534, %v1541, 0
        %v1601 = vsel %vm534, %v1543, 0
        %1603 = vmatpush.bf16.msra.mxu0 0
        %1604 = vmatpush.bf16.msra.mxu0 0
        %1605 = vmatpush.bf16.msra.mxu0 0
        %1606 = vmatpush.bf16.msra.mxu0 %v1582
        %1607 = vmatpush.bf16.msra.mxu0 %v1580
        %1608 = vmatpush.bf16.msra.mxu0 %v1578
        %1609 = vmatpush.bf16.msra.mxu0 %v1576
        %1610 = vmatpush.bf16.msra.mxu0 %v1574
        %1611 = vmatmul.bf16.gmra.mxu0 %v1595
        %v1612 = vpop.f32.mrf.mxu0
        %v1613 = vadd.f32 0.0, %v1612
        %v1614 = vpop.f32.mrf.mxu0
        %v1615 = vadd.f32 0.0, %v1614
        %1616 = vmatmul.bf16.gmra.mxu0 %v1598
        %v1617 = vpop.f32.mrf.mxu0
        %v1618 = vadd.f32 0.0, %v1617
        %v1619 = vpop.f32.mrf.mxu0
        %v1620 = vadd.f32 0.0, %v1619
        %1621 = vmatmul.bf16.gmra.mxu0 %v1601
        %v1622 = vpop.f32.mrf.mxu0
        %v1623 = vadd.f32 0.0, %v1622
        %v1624 = vpop.f32.mrf.mxu0
        %v1625 = vadd.f32 0.0, %v1624
        %1626 = vdwg.mxu0
        %1627 = vmatpush.bf16.msra.mxu0 0
        %1628 = vmatpush.bf16.msra.mxu0 0
        %1629 = vmatpush.bf16.msra.mxu0 0
        %1630 = vmatpush.bf16.msra.mxu0 %v1583
        %1631 = vmatpush.bf16.msra.mxu0 %v1581
        %1632 = vmatpush.bf16.msra.mxu0 %v1579
        %1633 = vmatpush.bf16.msra.mxu0 %v1577
        %1634 = vmatpush.bf16.msra.mxu0 %v1575
        %1635 = vmatmul.bf16.gmra.mxu0 %v1595
        %v1636 = vpop.f32.mrf.mxu0
        %v1637 = vadd.f32 0.0, %v1636
        %v1638 = vpop.f32.mrf.mxu0
        %v1639 = vadd.f32 0.0, %v1638
        %1640 = vmatmul.bf16.gmra.mxu0 %v1598
        %v1641 = vpop.f32.mrf.mxu0
        %v1642 = vadd.f32 0.0, %v1641
        %v1643 = vpop.f32.mrf.mxu0
        %v1644 = vadd.f32 0.0, %v1643
        %1645 = vmatmul.bf16.gmra.mxu0 %v1601
        %v1646 = vpop.f32.mrf.mxu0
        %v1647 = vadd.f32 0.0, %v1646
        %v1648 = vpop.f32.mrf.mxu0
        %v1649 = vadd.f32 0.0, %v1648
        %1650 = vdwg.mxu0
        %v1651 = vadd.f32 %v1485, %v1613
        %v1652 = vadd.f32 %v1509, %v1637
        %v1653 = vadd.f32 %v1487, %v1615
        %v1654 = vadd.f32 %v1511, %v1639
        %v1655 = vadd.f32 %v1490, %v1618
        %v1656 = vadd.f32 %v1514, %v1642
        %v1657 = vadd.f32 %v1492, %v1620
        %v1658 = vadd.f32 %v1516, %v1644
        %v1659 = vadd.f32 %v1495, %v1623
        %v1660 = vadd.f32 %v1519, %v1647
        %v1661 = vadd.f32 %v1497, %v1625
        %v1662 = vadd.f32 %v1521, %v1649
        %v1663 = vld [vmem:[%s1238 + $0x18] sm:$0x3]
        %v1664 = vld [vmem:[%s839] sm:$0xff]
        %v1665 = vld [vmem:[%s839 + $0x8] sm:$0xff]
        %v1666 = vld [vmem:[%s839 + $0x10] sm:$0xff]
        %v1667 = vld [vmem:[%s839 + $0x18] sm:$0xff]
        %v1668 = vld [vmem:[%s839 + $0x20] sm:$0xff]
        %v1669 = vld [vmem:[%s839 + $0x28] sm:$0xff]
        %v1670 = vld [vmem:[%s839 + $0x30] sm:$0xff]
        %v1671 = vld [vmem:[%s839 + $0x38] sm:$0xff]
        %v1672 = vld [vmem:[%s839 + $0x40] sm:$0xff]
        %v1673 = vld [vmem:[%s839 + $0x48] sm:$0xff]
        %v1675 = vunpack.c.l.b16 %v1663
        %v1676 = vpack.c.b16 %v1675, %v1675
        %v1678 = vshrl.u32 %v1536, 16
        %v1680 = vrot.slane %v1678, 1
        %v1681 = vshll.u32 %v1536, 16
        %v1683 = vrot.slane %v1681, 2
        %v1684 = vor.u32 %v1680, %v1683
        %v1685 = vrot.slane %v1296, 1
        %v1686 = vrot.slane %v1292, 2
        %v1687 = vor.u32 %v1685, %v1686
        %v1688 = vsel %vm853, %v1684, %v1687
        %v1689 = vrot.slane %v1304, 1
        %v1690 = vrot.slane %v1300, 2
        %v1691 = vor.u32 %v1689, %v1690
        %v1692 = vsel %vm853, %v1687, %v1691
        %v1694 = vshrl.u32 %v1676, 16
        %v1696 = vrot.slane %v1694, 1
        %v1697 = vshll.u32 %v1676, 16
        %v1699 = vrot.slane %v1697, 2
        %v1700 = vor.u32 %v1696, %v1699
        %v1701 = vsel %vm853, %v1691, %v1700
        %v1712 = vunpack.c.l.b16 %v1664
        %v1713 = vunpack.c.h.b16 %v1664
        %v1714 = vunpack.c.l.b16 %v1665
        %v1715 = vunpack.c.h.b16 %v1665
        %v1716 = vunpack.c.l.b16 %v1666
        %v1717 = vunpack.c.h.b16 %v1666
        %v1718 = vunpack.c.l.b16 %v1667
        %v1719 = vunpack.c.h.b16 %v1667
        %v1720 = vunpack.c.l.b16 %v1668
        %v1721 = vunpack.c.h.b16 %v1668
        %v1722 = vunpack.c.l.b16 %v1669
        %v1723 = vunpack.c.h.b16 %v1669
        %v1724 = vunpack.c.l.b16 %v1670
        %v1725 = vunpack.c.h.b16 %v1670
        %v1726 = vunpack.c.l.b16 %v1671
        %v1727 = vunpack.c.h.b16 %v1671
        %v1728 = vunpack.c.l.b16 %v1672
        %v1729 = vunpack.c.h.b16 %v1672
        %v1730 = vunpack.c.l.b16 %v1673
        %v1731 = vunpack.c.h.b16 %v1673
        %v1732 = vpack.c.b16 %v1714, %v1712
        %v1733 = vpack.c.b16 %v1715, %v1713
        %v1734 = vpack.c.b16 %v1718, %v1716
        %v1735 = vpack.c.b16 %v1719, %v1717
        %v1736 = vpack.c.b16 %v1722, %v1720
        %v1737 = vpack.c.b16 %v1723, %v1721
        %v1738 = vpack.c.b16 %v1726, %v1724
        %v1739 = vpack.c.b16 %v1727, %v1725
        %v1740 = vpack.c.b16 %v1730, %v1728
        %v1741 = vpack.c.b16 %v1731, %v1729
        %v1753 = vsel %vm534, %v1688, 0
        %v1756 = vsel %vm534, %v1692, 0
        %v1759 = vsel %vm534, %v1701, 0
        %1761 = vmatpush.bf16.msra.mxu0 0
        %1762 = vmatpush.bf16.msra.mxu0 0
        %1763 = vmatpush.bf16.msra.mxu0 0
        %1764 = vmatpush.bf16.msra.mxu0 %v1740
        %1765 = vmatpush.bf16.msra.mxu0 %v1738
        %1766 = vmatpush.bf16.msra.mxu0 %v1736
        %1767 = vmatpush.bf16.msra.mxu0 %v1734
        %1768 = vmatpush.bf16.msra.mxu0 %v1732
        %1769 = vmatmul.bf16.gmra.mxu0 %v1753
        %v1770 = vpop.f32.mrf.mxu0
        %v1771 = vadd.f32 0.0, %v1770
        %v1772 = vpop.f32.mrf.mxu0
        %v1773 = vadd.f32 0.0, %v1772
        %1774 = vmatmul.bf16.gmra.mxu0 %v1756
        %v1775 = vpop.f32.mrf.mxu0
        %v1776 = vadd.f32 0.0, %v1775
        %v1777 = vpop.f32.mrf.mxu0
        %v1778 = vadd.f32 0.0, %v1777
        %1779 = vmatmul.bf16.gmra.mxu0 %v1759
        %v1780 = vpop.f32.mrf.mxu0
        %v1781 = vadd.f32 0.0, %v1780
        %v1782 = vpop.f32.mrf.mxu0
        %v1783 = vadd.f32 0.0, %v1782
        %1784 = vdwg.mxu0
        %1785 = vmatpush.bf16.msra.mxu0 0
        %1786 = vmatpush.bf16.msra.mxu0 0
        %1787 = vmatpush.bf16.msra.mxu0 0
        %1788 = vmatpush.bf16.msra.mxu0 %v1741
        %1789 = vmatpush.bf16.msra.mxu0 %v1739
        %1790 = vmatpush.bf16.msra.mxu0 %v1737
        %1791 = vmatpush.bf16.msra.mxu0 %v1735
        %1792 = vmatpush.bf16.msra.mxu0 %v1733
        %1793 = vmatmul.bf16.gmra.mxu0 %v1753
        %v1794 = vpop.f32.mrf.mxu0
        %v1795 = vadd.f32 0.0, %v1794
        %v1796 = vpop.f32.mrf.mxu0
        %v1797 = vadd.f32 0.0, %v1796
        %1798 = vmatmul.bf16.gmra.mxu0 %v1756
        %v1799 = vpop.f32.mrf.mxu0
        %v1800 = vadd.f32 0.0, %v1799
        %v1801 = vpop.f32.mrf.mxu0
        %v1802 = vadd.f32 0.0, %v1801
        %1803 = vmatmul.bf16.gmra.mxu0 %v1759
        %v1804 = vpop.f32.mrf.mxu0
        %v1805 = vadd.f32 0.0, %v1804
        %v1806 = vpop.f32.mrf.mxu0
        %v1807 = vadd.f32 0.0, %v1806
        %1808 = vdwg.mxu0
        %v1809 = vadd.f32 %v1651, %v1771
        %v1810 = vadd.f32 %v1652, %v1795
        %v1811 = vadd.f32 %v1653, %v1773
        %v1812 = vadd.f32 %v1654, %v1797
        %v1813 = vadd.f32 %v1655, %v1776
        %v1814 = vadd.f32 %v1656, %v1800
        %v1815 = vadd.f32 %v1657, %v1778
        %v1816 = vadd.f32 %v1658, %v1802
        %v1817 = vadd.f32 %v1659, %v1781
        %v1818 = vadd.f32 %v1660, %v1805
        %v1819 = vadd.f32 %v1661, %v1783
        %v1820 = vadd.f32 %v1662, %v1807
        %v1821 = vld [vmem:[%s1238] sm:$0xc]
        %v1822 = vld [vmem:[%s999] sm:$0xff]
        %v1823 = vld [vmem:[%s999 + $0x8] sm:$0xff]
        %v1824 = vld [vmem:[%s999 + $0x10] sm:$0xff]
        %v1825 = vld [vmem:[%s999 + $0x18] sm:$0xff]
        %v1826 = vld [vmem:[%s999 + $0x20] sm:$0xff]
        %v1827 = vld [vmem:[%s999 + $0x28] sm:$0xff]
        %v1828 = vld [vmem:[%s999 + $0x30] sm:$0xff]
        %v1829 = vld [vmem:[%s999 + $0x38] sm:$0xff]
        %v1830 = vld [vmem:[%s999 + $0x40] sm:$0xff]
        %v1831 = vld [vmem:[%s999 + $0x48] sm:$0xff]
        %v1833 = vunpack.c.l.b16 %v1821
        %v1834 = vpack.c.b16 %v1274, %v1833
        %v1835 = vrot.slane %v1834, 2
        %v1836 = vrot.slane %v1281, 2
        %v1837 = vsel %vm1013, %v1835, %v1836
        %v1838 = vrot.slane %v1282, 2
        %v1839 = vsel %vm1013, %v1836, %v1838
        %v1840 = vrot.slane %v1676, 2
        %v1841 = vsel %vm1013, %v1838, %v1840
        %v1852 = vunpack.c.l.b16 %v1822
        %v1853 = vunpack.c.h.b16 %v1822
        %v1854 = vunpack.c.l.b16 %v1823
        %v1855 = vunpack.c.h.b16 %v1823
        %v1856 = vunpack.c.l.b16 %v1824
        %v1857 = vunpack.c.h.b16 %v1824
        %v1858 = vunpack.c.l.b16 %v1825
        %v1859 = vunpack.c.h.b16 %v1825
        %v1860 = vunpack.c.l.b16 %v1826
        %v1861 = vunpack.c.h.b16 %v1826
        %v1862 = vunpack.c.l.b16 %v1827
        %v1863 = vunpack.c.h.b16 %v1827
        %v1864 = vunpack.c.l.b16 %v1828
        %v1865 = vunpack.c.h.b16 %v1828
        %v1866 = vunpack.c.l.b16 %v1829
        %v1867 = vunpack.c.h.b16 %v1829
        %v1868 = vunpack.c.l.b16 %v1830
        %v1869 = vunpack.c.h.b16 %v1830
        %v1870 = vunpack.c.l.b16 %v1831
        %v1871 = vunpack.c.h.b16 %v1831
        %v1872 = vpack.c.b16 %v1854, %v1852
        %v1873 = vpack.c.b16 %v1855, %v1853
        %v1874 = vpack.c.b16 %v1858, %v1856
        %v1875 = vpack.c.b16 %v1859, %v1857
        %v1876 = vpack.c.b16 %v1862, %v1860
        %v1877 = vpack.c.b16 %v1863, %v1861
        %v1878 = vpack.c.b16 %v1866, %v1864
        %v1879 = vpack.c.b16 %v1867, %v1865
        %v1880 = vpack.c.b16 %v1870, %v1868
        %v1881 = vpack.c.b16 %v1871, %v1869
        %v1893 = vsel %vm534, %v1837, 0
        %v1896 = vsel %vm534, %v1839, 0
        %v1899 = vsel %vm534, %v1841, 0
        %1901 = vmatpush.bf16.msra.mxu0 0
        %1902 = vmatpush.bf16.msra.mxu0 0
        %1903 = vmatpush.bf16.msra.mxu0 0
        %1904 = vmatpush.bf16.msra.mxu0 %v1880
        %1905 = vmatpush.bf16.msra.mxu0 %v1878
        %1906 = vmatpush.bf16.msra.mxu0 %v1876
        %1907 = vmatpush.bf16.msra.mxu0 %v1874
        %1908 = vmatpush.bf16.msra.mxu0 %v1872
        %1909 = vmatmul.bf16.gmra.mxu0 %v1893
        %v1910 = vpop.f32.mrf.mxu0
        %v1911 = vadd.f32 0.0, %v1910
        %v1912 = vpop.f32.mrf.mxu0
        %v1913 = vadd.f32 0.0, %v1912
        %1914 = vmatmul.bf16.gmra.mxu0 %v1896
        %v1915 = vpop.f32.mrf.mxu0
        %v1916 = vadd.f32 0.0, %v1915
        %v1917 = vpop.f32.mrf.mxu0
        %v1918 = vadd.f32 0.0, %v1917
        %1919 = vmatmul.bf16.gmra.mxu0 %v1899
        %v1920 = vpop.f32.mrf.mxu0
        %v1921 = vadd.f32 0.0, %v1920
        %v1922 = vpop.f32.mrf.mxu0
        %v1923 = vadd.f32 0.0, %v1922
        %1924 = vdwg.mxu0
        %1925 = vmatpush.bf16.msra.mxu0 0
        %1926 = vmatpush.bf16.msra.mxu0 0
        %1927 = vmatpush.bf16.msra.mxu0 0
        %1928 = vmatpush.bf16.msra.mxu0 %v1881
        %1929 = vmatpush.bf16.msra.mxu0 %v1879
        %1930 = vmatpush.bf16.msra.mxu0 %v1877
        %1931 = vmatpush.bf16.msra.mxu0 %v1875
        %1932 = vmatpush.bf16.msra.mxu0 %v1873
        %1933 = vmatmul.bf16.gmra.mxu0 %v1893
        %v1934 = vpop.f32.mrf.mxu0
        %v1935 = vadd.f32 0.0, %v1934
        %v1936 = vpop.f32.mrf.mxu0
        %v1937 = vadd.f32 0.0, %v1936
        %1938 = vmatmul.bf16.gmra.mxu0 %v1896
        %v1939 = vpop.f32.mrf.mxu0
        %v1940 = vadd.f32 0.0, %v1939
        %v1941 = vpop.f32.mrf.mxu0
        %v1942 = vadd.f32 0.0, %v1941
        %1943 = vmatmul.bf16.gmra.mxu0 %v1899
        %v1944 = vpop.f32.mrf.mxu0
        %v1945 = vadd.f32 0.0, %v1944
        %v1946 = vpop.f32.mrf.mxu0
        %v1947 = vadd.f32 0.0, %v1946
        %1948 = vdwg.mxu0
        %v1949 = vadd.f32 %v1809, %v1911
        %v1950 = vadd.f32 %v1810, %v1935
        %v1951 = vadd.f32 %v1811, %v1913
        %v1952 = vadd.f32 %v1812, %v1937
        %v1953 = vadd.f32 %v1813, %v1916
        %v1954 = vadd.f32 %v1814, %v1940
        %v1955 = vadd.f32 %v1815, %v1918
        %v1956 = vadd.f32 %v1816, %v1942
        %v1957 = vadd.f32 %v1817, %v1921
        %v1958 = vadd.f32 %v1818, %v1945
        %v1959 = vadd.f32 %v1819, %v1923
        %v1960 = vadd.f32 %v1820, %v1947
        %v1961 = vmax.f32 %v1949, %v1950
        %v1962 = vmax.f32 %v1951, %v1952
        %v1963 = vmax.f32 %v1953, %v1954
        %v1964 = vmax.f32 %v1955, %v1956
        %v1965 = vmax.f32 %v1957, %v1958
        %v1966 = vmax.f32 %v1959, %v1960
        %v1967 = vadd.f32 %v1961, %v1147
        %v1968 = vadd.f32 %v1962, %v1147
        %v1969 = vadd.f32 %v1963, %v1147
        %v1970 = vadd.f32 %v1964, %v1147
        %v1971 = vadd.f32 %v1965, %v1147
        %v1972 = vadd.f32 %v1966, %v1147
        %v1973 = vmax.f32 %v1967, 0.0
        %v1974 = vmax.f32 %v1968, 0.0
        %v1975 = vmax.f32 %v1969, 0.0
        %v1976 = vmax.f32 %v1970, 0.0
        %v1977 = vmax.f32 %v1971, 0.0
        %v1978 = vmax.f32 %v1972, 0.0
        %v1979 = vpack.c.bf16 %v1974, %v1973
        %v1980 = vpack.c.bf16 %v1976, %v1975
        %v1981 = vpack.c.bf16 %v1978, %v1977
        %1982 = vmatpush.bf16.msra.mxu0 0
        %1983 = vmatpush.bf16.msra.mxu0 0
        %1984 = vmatpush.bf16.msra.mxu0 0
        %1985 = vmatpush.bf16.msra.mxu0 0
        %1986 = vmatpush.bf16.msra.mxu0 0
        %1987 = vmatpush.bf16.msra.mxu0 %v1981
        %1988 = vmatpush.bf16.msra.mxu0 %v1980
        %1989 = vmatpush.bf16.msra.mxu0 %v1979
        %1990 = vmatmul.bf16.gmra.mxu0 %v1174
        %v1991 = vpop.f32.mrf.mxu0
        %v1992 = vadd.f32 0.0, %v1991
        %v1993 = vpop.f32.mrf.mxu0
        %v1994 = vadd.f32 0.0, %v1993
        %1995 = vmatmul.bf16.gmra.mxu0 %v1177
        %v1996 = vpop.f32.mrf.mxu0
        %v1997 = vadd.f32 0.0, %v1996
        %v1998 = vpop.f32.mrf.mxu0
        %1999 = vdwg.mxu0
        %2000 = vmatpush.bf16.msra.mxu0 0
        %2001 = vmatpush.bf16.msra.mxu0 0
        %2002 = vmatpush.bf16.msra.mxu0 0
        %2003 = vmatpush.bf16.msra.mxu0 0
        %2004 = vmatpush.bf16.msra.mxu0 0
        %2005 = vmatpush.bf16.msra.mxu0 %v1981
        %2006 = vmatpush.bf16.msra.mxu0 %v1980
        %2007 = vmatpush.bf16.msra.mxu0 %v1979
        %2008 = vmatmul.bf16.gmra.mxu0 %v1206
        %v2009 = vpop.f32.mrf.mxu0
        %v2010 = vadd.f32 0.0, %v2009
        %v2011 = vpop.f32.mrf.mxu0
        %v2012 = vadd.f32 0.0, %v2011
        %2013 = vmatmul.bf16.gmra.mxu0 %v1209
        %v2014 = vpop.f32.mrf.mxu0
        %v2015 = vadd.f32 0.0, %v2014
        %v2016 = vpop.f32.mrf.mxu0
        %2017 = vdwg.mxu0
        %v2018 = vmax.f32 %v1992, %v2010
        %v2019 = vmax.f32 %v1994, %v2012
        %v2020 = vmax.f32 %v1997, %v2015
        %v2021 = vpack.c.bf16 %v2018, %v2018
        %v2022 = vpack.c.bf16 %v2019, %v2019
        %v2023 = vpack.c.bf16 %v2020, %v2020
        %s2024 = scalar_lea.vmem %s398, 12 [#allocation10]
        %2025 = vst [vmem:[%s2024] sm:$0xf] %v2021
        %2026 = vst [vmem:[%s2024 + $0x4] sm:$0xf] %v2022
        %2027 = vst [vmem:[%s2024 + $0x8] sm:$0xf] %v2023
        %s2028 = sand.u32 %s153, 1
        %s2029 = sand.u32 %s153, 1
        %s2030 = smul.addr %s2029, 24
        %s2031 = scalar_lea.vmem [#allocation10], %s2030
        // Predicated region
        $region98: #{cnn_forward.3} parent=76 // pred_check
          %p2032 = pneg %p163
        $region99: #{cnn_forward.3} parent=76 // pred_check_branch
          %2034 = sbr.rel (%p2032) target = $region101
        $region100: #{cnn_forward.3} parent=76 // pred_region
          %s2035 = smul.u32 2, %s24
          %s2036 = smul.addr %s2035, 9
          %s2037 = sadd.s32 %s23, %s2036
          %s2038 = smul.addr %s2037, 4
          %s2039 = scalar_lea.vmem %s5, %s2038
          // Predicated region
          $region102: #{cnn_forward.3} parent=100 // pred_check
            _
          $region103: #{cnn_forward.3} parent=100 // pred_check_branch
            %2041 = sbr.rel (0) target = $region105
          $region104: #{cnn_forward.3} parent=100 // pred_region
            // Predicated region
            $region106: #{cnn_forward.3} parent=104 // pred_check
              _
            $region107: #{cnn_forward.3} parent=104 // pred_check_branch
              %2043 = sbr.rel target = $region109
            $region108: #{cnn_forward.3} parent=104 // pred_region
              // Predicated region
              $region121: #{cnn_forward.3} parent=108 // pred_check
                _
              $region122: #{cnn_forward.3} parent=108 // pred_check_branch
                %2069 = sbr.rel (0) target = $region124
              $region123: #{cnn_forward.3} parent=108 // pred_region
                loop: start=0, step=1, limit=1
                $region125: #{cnn_forward.3} parent=123 // loop_pre_header
                  _
                $region126: #{cnn_forward.3} parent=123 // loop_header
                  %s2071 = sphi 0, %s2075
                  %p2072 = scmp.ge.s32.totalorder %s2071, 1
                  %s2076 = sphi %s2031, %s2031
                  %s2077 = sphi %s2039, %s2039
                $region127: #{cnn_forward.3} parent=123 // loop_header_branch
                  %2074 = sbr.rel (%p2072) target = $region131
                $region128: #{cnn_forward.3} parent=123 // loop_body
                  _
                $region129: #{cnn_forward.3} parent=123 // loop_footer
                  %s2075 = sadd.s32 1, %s2071
                $region130: #{cnn_forward.3} parent=123 // loop_footer_branch
                  %2070 = sbr.rel target = $region126
                $region131: #{cnn_forward.3} parent=123 // loop_exit
                  _
                %s2079 = ssub.s32 16, 1
                loop: start=0, step=1, limit=1
                $region132: #{cnn_forward.3} parent=123 // loop_pre_header
                  _
                $region133: #{cnn_forward.3} parent=123 // loop_header
                  %s2081 = sphi 0, %s2085
                  %p2082 = scmp.ge.s32.totalorder %s2081, 1
                  %s2086 = sphi %s2031, %s2031
                  %s2087 = sphi %s2039, %s2039
                $region134: #{cnn_forward.3} parent=123 // loop_header_branch
                  %2084 = sbr.rel (%p2082) target = $region138
                $region135: #{cnn_forward.3} parent=123 // loop_body
                  %v2088 = vld [vmem:[%s2086] sm:%s2079]
                  %2089 = vst [vmem:[%s2087] sm:%s2079] %v2088
                  %v2090 = vld [vmem:[%s2086 + $0x4] sm:%s2079]
                  %2091 = vst [vmem:[%s2087 + $0xc] sm:%s2079] %v2090
                  %v2092 = vld [vmem:[%s2086 + $0x8] sm:%s2079]
                  %2093 = vst [vmem:[%s2087 + $0x18] sm:%s2079] %v2092
                  %v2094 = vld [vmem:[%s2086 + $0xc] sm:%s2079]
                  %2095 = vst [vmem:[%s2087 + $0x24] sm:%s2079] %v2094
                  %v2096 = vld [vmem:[%s2086 + $0x10] sm:%s2079]
                  %2097 = vst [vmem:[%s2087 + $0x30] sm:%s2079] %v2096
                  %v2098 = vld [vmem:[%s2086 + $0x14] sm:%s2079]
                  %2099 = vst [vmem:[%s2087 + $0x3c] sm:%s2079] %v2098
                $region136: #{cnn_forward.3} parent=123 // loop_footer
                  %s2085 = sadd.s32 1, %s2081
                $region137: #{cnn_forward.3} parent=123 // loop_footer_branch
                  %2080 = sbr.rel target = $region133
                $region138: #{cnn_forward.3} parent=123 // loop_exit
                  _
              $region124: #{cnn_forward.3} parent=108 // pred_fallthru
                _
            $region109: #{cnn_forward.3} parent=104 // pred_fallthru
              _
            // Predicated region
            $region110: #{cnn_forward.3} parent=104 // pred_check
              _
            $region111: #{cnn_forward.3} parent=104 // pred_check_branch
              %2045 = sbr.rel (0) target = $region113
            $region112: #{cnn_forward.3} parent=104 // pred_region
              %s2047 = ssub.s32 16, 1
              loop: start=0, step=1, limit=1
              $region114: #{cnn_forward.3} parent=112 // loop_pre_header
                _
              $region115: #{cnn_forward.3} parent=112 // loop_header
                %s2049 = sphi 0, %s2053
                %p2050 = scmp.ge.s32.totalorder %s2049, 1
                %s2054 = sphi %s2031, %s2031
                %s2055 = sphi %s2039, %s2039
              $region116: #{cnn_forward.3} parent=112 // loop_header_branch
                %2052 = sbr.rel (%p2050) target = $region120
              $region117: #{cnn_forward.3} parent=112 // loop_body
                %v2056 = vld [vmem:[%s2054] sm:%s2047]
                %2057 = vst [vmem:[%s2055] sm:%s2047] %v2056
                %v2058 = vld [vmem:[%s2054 + $0x4] sm:%s2047]
                %2059 = vst [vmem:[%s2055 + $0xc] sm:%s2047] %v2058
                %v2060 = vld [vmem:[%s2054 + $0x8] sm:%s2047]
                %2061 = vst [vmem:[%s2055 + $0x18] sm:%s2047] %v2060
                %v2062 = vld [vmem:[%s2054 + $0xc] sm:%s2047]
                %2063 = vst [vmem:[%s2055 + $0x24] sm:%s2047] %v2062
                %v2064 = vld [vmem:[%s2054 + $0x10] sm:%s2047]
                %2065 = vst [vmem:[%s2055 + $0x30] sm:%s2047] %v2064
                %v2066 = vld [vmem:[%s2054 + $0x14] sm:%s2047]
                %2067 = vst [vmem:[%s2055 + $0x3c] sm:%s2047] %v2066
              $region118: #{cnn_forward.3} parent=112 // loop_footer
                %s2053 = sadd.s32 1, %s2049
              $region119: #{cnn_forward.3} parent=112 // loop_footer_branch
                %2048 = sbr.rel target = $region115
              $region120: #{cnn_forward.3} parent=112 // loop_exit
                _
            $region113: #{cnn_forward.3} parent=104 // pred_fallthru
              _
          $region105: #{cnn_forward.3} parent=100 // pred_fallthru
            _
          %2100 = vnop
        $region101: #{cnn_forward.3} parent=76 // pred_fallthru
          _
      $region77: #{cnn_forward.3} parent=5 // pred_fallthru
        _
      %p2101 = scmp.le.s32.totalorder 2, %s14
      // Predicated region
      $region139: #{cnn_forward.3} parent=5 // pred_check
        %p2102 = pneg %p2101
      $region140: #{cnn_forward.3} parent=5 // pred_check_branch
        %2104 = sbr.rel (%p2102) target = $region142
      $region141: #{cnn_forward.3} parent=5 // pred_region
        %s2105 = ssub.s32 %s14, 2
        // Predicated region
        $region143: #{cnn_forward.3} parent=141 // pred_check
          %p2106 = pneg %p169
        $region144: #{cnn_forward.3} parent=141 // pred_check_branch
          %2108 = sbr.rel (%p2106) target = $region146
        $region145: #{cnn_forward.3} parent=141 // pred_region
          %s2109 = sand.u32 %s154, 1
          %s2110 = sand.u32 %s154, 1
          %s2111 = smul.addr %s2110, 24
          %s2112 = scalar_lea.vmem [#allocation10], %s2111
        $region146: #{cnn_forward.3} parent=141 // pred_fallthru
          _
      $region142: #{cnn_forward.3} parent=5 // pred_fallthru
        _
    $region6: #{cnn_forward.3} parent=1 // loop_footer
      %s18 = sadd.s32 1, %s14
    $region7: #{cnn_forward.3} parent=1 // loop_footer_branch
      %13 = sbr.rel target = $region3
    $region8: #{cnn_forward.3} parent=1 // loop_exit
      _
    %2113 = vsyncpa [#allocation4], 1
    %s2114 = scalar_lea.sflag [#allocation4], 1
    %2115 = vsyncpa %s2114, 1
    %2116 = vsyncpa [#allocation6], 1
    %2117 = vsyncpa [#allocation9], 1

// kernel: cnn_forward.5
$region0: #{cnn_forward.5}
  #allocation0 [shape = 'u32[]', space=smem, size = 0x4, offset = 0x4, fixed_abs, tag = 'smem constant byte address 0x4 - core index']
  #allocation1 [shape = 'u32[72,128]{1,0:T(1,128)}', space=vmem, size = 0x9000, scoped, tag = 'internal scratch']
  %s0 = inlined_call_operand.vmem [shape: bf16[2,4608], index: 0, kind: input, shape index: {}]
  %s1 = inlined_call_operand.vmem [shape: bf16[4608,128], index: 1, kind: input, shape index: {}]
  %s2 = inlined_call_operand.vmem [shape: f32[1,128], index: 2, kind: input, shape index: {}]
  %s3 = inlined_call_operand.hbm [shape: f32[2,128], index: 3, kind: output, shape index: {}]
  %s4 = sld [smem:[#allocation0]]
  $region22: #{cnn_forward.5} parent=0
    _
  %s6 = ssub.s32 1, %s4
  %s7 = scalar_select 0, %s6, %s4
  $region1: #{cnn_forward.5} parent=0
    #allocation2 [shape = 'u8[1024]{0}', space=vmem, size = 0x400, scoped, tag = 'output window, operand 0, single buffered']
    #allocation3 [shape = 's32[1]{0}', space=sflag, size = 0x4, scoped, tag = 'scoped memory for cnn_forward.5']
    %8 = vsyncpa [#allocation3], 0
    // Predicated region
    $region2: #{cnn_forward.5} parent=1 // pred_check
      _
    $region3: #{cnn_forward.5} parent=1 // pred_check_branch
      %10 = sbr.rel (0) target = $region5
    $region4: #{cnn_forward.5} parent=1 // pred_region
      _
    $region5: #{cnn_forward.5} parent=1 // pred_fallthru
      _
    // Predicated region
    $region6: #{cnn_forward.5} parent=1 // pred_check
      _
    $region7: #{cnn_forward.5} parent=1 // pred_check_branch
      %12 = sbr.rel (0) target = $region9
    $region8: #{cnn_forward.5} parent=1 // pred_region
      _
    $region9: #{cnn_forward.5} parent=1 // pred_fallthru
      _
    // Predicated region
    $region10: #{cnn_forward.5} parent=1 // pred_check
      _
    $region11: #{cnn_forward.5} parent=1 // pred_check_branch
      %14 = sbr.rel (0) target = $region13
    $region12: #{cnn_forward.5} parent=1 // pred_region
      _
    $region13: #{cnn_forward.5} parent=1 // pred_fallthru
      _
    %v15 = vld [vmem:[%s0] sm:$0xff]
    %v16 = vld [vmem:[%s0 + $0x8] sm:$0xff]
    %v17 = vld [vmem:[%s0 + $0x10] sm:$0xff]
    %v18 = vld [vmem:[%s0 + $0x18] sm:$0xff]
    %v19 = vld [vmem:[%s0 + $0x20] sm:$0xf]
    %v20 = vld [vmem:[%s1] sm:$0xf]
    %v21 = vld [vmem:[%s1 + $0x4] sm:$0xf]
    %v22 = vld [vmem:[%s1 + $0x8] sm:$0xf]
    %v23 = vld [vmem:[%s1 + $0xc] sm:$0xf]
    %v24 = vld [vmem:[%s1 + $0x10] sm:$0xf]
    %v25 = vld [vmem:[%s1 + $0x14] sm:$0xf]
    %v26 = vld [vmem:[%s1 + $0x18] sm:$0xf]
    %v27 = vld [vmem:[%s1 + $0x1c] sm:$0xf]
    %v28 = vld [vmem:[%s1 + $0x20] sm:$0xf]
    %v29 = vld [vmem:[%s1 + $0x24] sm:$0xf]
    %v30 = vld [vmem:[%s1 + $0x28] sm:$0xf]
    %v31 = vld [vmem:[%s1 + $0x2c] sm:$0xf]
    %v32 = vld [vmem:[%s1 + $0x30] sm:$0xf]
    %v33 = vld [vmem:[%s1 + $0x34] sm:$0xf]
    %v34 = vld [vmem:[%s1 + $0x38] sm:$0xf]
    %v35 = vld [vmem:[%s1 + $0x3c] sm:$0xf]
    %v36 = vld [vmem:[%s1 + $0x40] sm:$0xf]
    %v37 = vld [vmem:[%s1 + $0x44] sm:$0xf]
    %v38 = vld [vmem:[%s1 + $0x48] sm:$0xf]
    %v39 = vld [vmem:[%s1 + $0x4c] sm:$0xf]
    %v40 = vld [vmem:[%s1 + $0x50] sm:$0xf]
    %v41 = vld [vmem:[%s1 + $0x54] sm:$0xf]
    %v42 = vld [vmem:[%s1 + $0x58] sm:$0xf]
    %v43 = vld [vmem:[%s1 + $0x5c] sm:$0xf]
    %v44 = vld [vmem:[%s1 + $0x60] sm:$0xf]
    %v45 = vld [vmem:[%s1 + $0x64] sm:$0xf]
    %v46 = vld [vmem:[%s1 + $0x68] sm:$0xf]
    %v47 = vld [vmem:[%s1 + $0x6c] sm:$0xf]
    %v48 = vld [vmem:[%s1 + $0x70] sm:$0xf]
    %v49 = vld [vmem:[%s1 + $0x74] sm:$0xf]
    %v50 = vld [vmem:[%s1 + $0x78] sm:$0xf]
    %v51 = vld [vmem:[%s1 + $0x7c] sm:$0xf]
    %v52 = vld [vmem:[%s1 + $0x80] sm:$0xf]
    %v53 = vld [vmem:[%s1 + $0x84] sm:$0xf]
    %v54 = vld [vmem:[%s1 + $0x88] sm:$0xf]
    %v55 = vld [vmem:[%s1 + $0x8c] sm:$0xf]
    %v56 = vld [vmem:[%s1 + $0x90] sm:$0xf]
    %v57 = vld [vmem:[%s1 + $0x94] sm:$0xf]
    %v58 = vld [vmem:[%s1 + $0x98] sm:$0xf]
    %v59 = vld [vmem:[%s1 + $0x9c] sm:$0xf]
    %v60 = vld [vmem:[%s1 + $0xa0] sm:$0xf]
    %v61 = vld [vmem:[%s1 + $0xa4] sm:$0xf]
    %v62 = vld [vmem:[%s1 + $0xa8] sm:$0xf]
    %v63 = vld [vmem:[%s1 + $0xac] sm:$0xf]
    %v64 = vld [vmem:[%s1 + $0xb0] sm:$0xf]
    %v65 = vld [vmem:[%s1 + $0xb4] sm:$0xf]
    %v66 = vld [vmem:[%s1 + $0xb8] sm:$0xf]
    %v67 = vld [vmem:[%s1 + $0xbc] sm:$0xf]
    %v68 = vld [vmem:[%s1 + $0xc0] sm:$0xf]
    %v69 = vld [vmem:[%s1 + $0xc4] sm:$0xf]
    %v70 = vld [vmem:[%s1 + $0xc8] sm:$0xf]
    %v71 = vld [vmem:[%s1 + $0xcc] sm:$0xf]
    %v72 = vld [vmem:[%s1 + $0xd0] sm:$0xf]
    %v73 = vld [vmem:[%s1 + $0xd4] sm:$0xf]
    %v74 = vld [vmem:[%s1 + $0xd8] sm:$0xf]
    %v75 = vld [vmem:[%s1 + $0xdc] sm:$0xf]
    %v76 = vld [vmem:[%s1 + $0xe0] sm:$0xf]
    %v77 = vld [vmem:[%s1 + $0xe4] sm:$0xf]
    %v78 = vld [vmem:[%s1 + $0xe8] sm:$0xf]
    %v79 = vld [vmem:[%s1 + $0xec] sm:$0xf]
    %v80 = vld [vmem:[%s1 + $0xf0] sm:$0xf]
    %v81 = vld [vmem:[%s1 + $0xf4] sm:$0xf]
    %v82 = vld [vmem:[%s1 + $0xf8] sm:$0xf]
    %v83 = vld [vmem:[%s1 + $0xfc] sm:$0xf]
    %v84 = vld [vmem:[%s1 + $0x100] sm:$0xf]
    %v85 = vld [vmem:[%s1 + $0x104] sm:$0xf]
    %v86 = vld [vmem:[%s1 + $0x108] sm:$0xf]
    %v87 = vld [vmem:[%s1 + $0x10c] sm:$0xf]
    %v88 = vld [vmem:[%s1 + $0x110] sm:$0xf]
    %v89 = vld [vmem:[%s1 + $0x114] sm:$0xf]
    %v90 = vld [vmem:[%s1 + $0x118] sm:$0xf]
    %v91 = vld [vmem:[%s1 + $0x11c] sm:$0xf]
    %v92 = vld [vmem:[%s1 + $0x120] sm:$0xf]
    %v93 = vld [vmem:[%s1 + $0x124] sm:$0xf]
    %v94 = vld [vmem:[%s1 + $0x128] sm:$0xf]
    %v95 = vld [vmem:[%s1 + $0x12c] sm:$0xf]
    %v96 = vld [vmem:[%s1 + $0x130] sm:$0xf]
    %v97 = vld [vmem:[%s1 + $0x134] sm:$0xf]
    %v98 = vld [vmem:[%s1 + $0x138] sm:$0xf]
    %v99 = vld [vmem:[%s1 + $0x13c] sm:$0xf]
    %v100 = vld [vmem:[%s1 + $0x140] sm:$0xf]
    %v101 = vld [vmem:[%s1 + $0x144] sm:$0xf]
    %v102 = vld [vmem:[%s1 + $0x148] sm:$0xf]
    %v103 = vld [vmem:[%s1 + $0x14c] sm:$0xf]
    %v104 = vld [vmem:[%s1 + $0x150] sm:$0xf]
    %v105 = vld [vmem:[%s1 + $0x154] sm:$0xf]
    %v106 = vld [vmem:[%s1 + $0x158] sm:$0xf]
    %v107 = vld [vmem:[%s1 + $0x15c] sm:$0xf]
    %v108 = vld [vmem:[%s1 + $0x160] sm:$0xf]
    %v109 = vld [vmem:[%s1 + $0x164] sm:$0xf]
    %v110 = vld [vmem:[%s1 + $0x168] sm:$0xf]
    %v111 = vld [vmem:[%s1 + $0x16c] sm:$0xf]
    %v112 = vld [vmem:[%s1 + $0x170] sm:$0xf]
    %v113 = vld [vmem:[%s1 + $0x174] sm:$0xf]
    %v114 = vld [vmem:[%s1 + $0x178] sm:$0xf]
    %v115 = vld [vmem:[%s1 + $0x17c] sm:$0xf]
    %v116 = vld [vmem:[%s1 + $0x180] sm:$0xf]
    %v117 = vld [vmem:[%s1 + $0x184] sm:$0xf]
    %v118 = vld [vmem:[%s1 + $0x188] sm:$0xf]
    %v119 = vld [vmem:[%s1 + $0x18c] sm:$0xf]
    %v120 = vld [vmem:[%s1 + $0x190] sm:$0xf]
    %v121 = vld [vmem:[%s1 + $0x194] sm:$0xf]
    %v122 = vld [vmem:[%s1 + $0x198] sm:$0xf]
    %v123 = vld [vmem:[%s1 + $0x19c] sm:$0xf]
    %v124 = vld [vmem:[%s1 + $0x1a0] sm:$0xf]
    %v125 = vld [vmem:[%s1 + $0x1a4] sm:$0xf]
    %v126 = vld [vmem:[%s1 + $0x1a8] sm:$0xf]
    %v127 = vld [vmem:[%s1 + $0x1ac] sm:$0xf]
    %v128 = vld [vmem:[%s1 + $0x1b0] sm:$0xf]
    %v129 = vld [vmem:[%s1 + $0x1b4] sm:$0xf]
    %v130 = vld [vmem:[%s1 + $0x1b8] sm:$0xf]
    %v131 = vld [vmem:[%s1 + $0x1bc] sm:$0xf]
    %v132 = vld [vmem:[%s1 + $0x1c0] sm:$0xf]
    %v133 = vld [vmem:[%s1 + $0x1c4] sm:$0xf]
    %v134 = vld [vmem:[%s1 + $0x1c8] sm:$0xf]
    %v135 = vld [vmem:[%s1 + $0x1cc] sm:$0xf]
    %v136 = vld [vmem:[%s1 + $0x1d0] sm:$0xf]
    %v137 = vld [vmem:[%s1 + $0x1d4] sm:$0xf]
    %v138 = vld [vmem:[%s1 + $0x1d8] sm:$0xf]
    %v139 = vld [vmem:[%s1 + $0x1dc] sm:$0xf]
    %v140 = vld [vmem:[%s1 + $0x1e0] sm:$0xf]
    %v141 = vld [vmem:[%s1 + $0x1e4] sm:$0xf]
    %v142 = vld [vmem:[%s1 + $0x1e8] sm:$0xf]
    %v143 = vld [vmem:[%s1 + $0x1ec] sm:$0xf]
    %v144 = vld [vmem:[%s1 + $0x1f0] sm:$0xf]
    %v145 = vld [vmem:[%s1 + $0x1f4] sm:$0xf]
    %v146 = vld [vmem:[%s1 + $0x1f8] sm:$0xf]
    %v147 = vld [vmem:[%s1 + $0x1fc] sm:$0xf]
    %v148 = vld [vmem:[%s1 + $0x200] sm:$0xf]
    %v149 = vld [vmem:[%s1 + $0x204] sm:$0xf]
    %v150 = vld [vmem:[%s1 + $0x208] sm:$0xf]
    %v151 = vld [vmem:[%s1 + $0x20c] sm:$0xf]
    %v152 = vld [vmem:[%s1 + $0x210] sm:$0xf]
    %v153 = vld [vmem:[%s1 + $0x214] sm:$0xf]
    %v154 = vld [vmem:[%s1 + $0x218] sm:$0xf]
    %v155 = vld [vmem:[%s1 + $0x21c] sm:$0xf]
    %v156 = vld [vmem:[%s1 + $0x220] sm:$0xf]
    %v157 = vld [vmem:[%s1 + $0x224] sm:$0xf]
    %v158 = vld [vmem:[%s1 + $0x228] sm:$0xf]
    %v159 = vld [vmem:[%s1 + $0x22c] sm:$0xf]
    %v160 = vld [vmem:[%s1 + $0x230] sm:$0xf]
    %v161 = vld [vmem:[%s1 + $0x234] sm:$0xf]
    %v162 = vld [vmem:[%s1 + $0x238] sm:$0xf]
    %v163 = vld [vmem:[%s1 + $0x23c] sm:$0xf]
    %v164 = vld [vmem:[%s1 + $0x240] sm:$0xf]
    %v165 = vld [vmem:[%s1 + $0x244] sm:$0xf]
    %v166 = vld [vmem:[%s1 + $0x248] sm:$0xf]
    %v167 = vld [vmem:[%s1 + $0x24c] sm:$0xf]
    %v168 = vld [vmem:[%s1 + $0x250] sm:$0xf]
    %v169 = vld [vmem:[%s1 + $0x254] sm:$0xf]
    %v170 = vld [vmem:[%s1 + $0x258] sm:$0xf]
    %v171 = vld [vmem:[%s1 + $0x25c] sm:$0xf]
    %v172 = vld [vmem:[%s1 + $0x260] sm:$0xf]
    %v173 = vld [vmem:[%s1 + $0x264] sm:$0xf]
    %v174 = vld [vmem:[%s1 + $0x268] sm:$0xf]
    %v175 = vld [vmem:[%s1 + $0x26c] sm:$0xf]
    %v176 = vld [vmem:[%s1 + $0x270] sm:$0xf]
    %v177 = vld [vmem:[%s1 + $0x274] sm:$0xf]
    %v178 = vld [vmem:[%s1 + $0x278] sm:$0xf]
    %v179 = vld [vmem:[%s1 + $0x27c] sm:$0xf]
    %v180 = vld [vmem:[%s1 + $0x280] sm:$0xf]
    %v181 = vld [vmem:[%s1 + $0x284] sm:$0xf]
    %v182 = vld [vmem:[%s1 + $0x288] sm:$0xf]
    %v183 = vld [vmem:[%s1 + $0x28c] sm:$0xf]
    %v184 = vld [vmem:[%s1 + $0x290] sm:$0xf]
    %v185 = vld [vmem:[%s1 + $0x294] sm:$0xf]
    %v186 = vld [vmem:[%s1 + $0x298] sm:$0xf]
    %v187 = vld [vmem:[%s1 + $0x29c] sm:$0xf]
    %v188 = vld [vmem:[%s1 + $0x2a0] sm:$0xf]
    %v189 = vld [vmem:[%s1 + $0x2a4] sm:$0xf]
    %v190 = vld [vmem:[%s1 + $0x2a8] sm:$0xf]
    %v191 = vld [vmem:[%s1 + $0x2ac] sm:$0xf]
    %v192 = vld [vmem:[%s1 + $0x2b0] sm:$0xf]
    %v193 = vld [vmem:[%s1 + $0x2b4] sm:$0xf]
    %v194 = vld [vmem:[%s1 + $0x2b8] sm:$0xf]
    %v195 = vld [vmem:[%s1 + $0x2bc] sm:$0xf]
    %v196 = vld [vmem:[%s1 + $0x2c0] sm:$0xf]
    %v197 = vld [vmem:[%s1 + $0x2c4] sm:$0xf]
    %v198 = vld [vmem:[%s1 + $0x2c8] sm:$0xf]
    %v199 = vld [vmem:[%s1 + $0x2cc] sm:$0xf]
    %v200 = vld [vmem:[%s1 + $0x2d0] sm:$0xf]
    %v201 = vld [vmem:[%s1 + $0x2d4] sm:$0xf]
    %v202 = vld [vmem:[%s1 + $0x2d8] sm:$0xf]
    %v203 = vld [vmem:[%s1 + $0x2dc] sm:$0xf]
    %v204 = vld [vmem:[%s1 + $0x2e0] sm:$0xf]
    %v205 = vld [vmem:[%s1 + $0x2e4] sm:$0xf]
    %v206 = vld [vmem:[%s1 + $0x2e8] sm:$0xf]
    %v207 = vld [vmem:[%s1 + $0x2ec] sm:$0xf]
    %v208 = vld [vmem:[%s1 + $0x2f0] sm:$0xf]
    %v209 = vld [vmem:[%s1 + $0x2f4] sm:$0xf]
    %v210 = vld [vmem:[%s1 + $0x2f8] sm:$0xf]
    %v211 = vld [vmem:[%s1 + $0x2fc] sm:$0xf]
    %v212 = vld [vmem:[%s1 + $0x300] sm:$0xf]
    %v213 = vld [vmem:[%s1 + $0x304] sm:$0xf]
    %v214 = vld [vmem:[%s1 + $0x308] sm:$0xf]
    %v215 = vld [vmem:[%s1 + $0x30c] sm:$0xf]
    %v216 = vld [vmem:[%s1 + $0x310] sm:$0xf]
    %v217 = vld [vmem:[%s1 + $0x314] sm:$0xf]
    %v218 = vld [vmem:[%s1 + $0x318] sm:$0xf]
    %v219 = vld [vmem:[%s1 + $0x31c] sm:$0xf]
    %v220 = vld [vmem:[%s1 + $0x320] sm:$0xf]
    %v221 = vld [vmem:[%s1 + $0x324] sm:$0xf]
    %v222 = vld [vmem:[%s1 + $0x328] sm:$0xf]
    %v223 = vld [vmem:[%s1 + $0x32c] sm:$0xf]
    %v224 = vld [vmem:[%s1 + $0x330] sm:$0xf]
    %v225 = vld [vmem:[%s1 + $0x334] sm:$0xf]
    %v226 = vld [vmem:[%s1 + $0x338] sm:$0xf]
    %v227 = vld [vmem:[%s1 + $0x33c] sm:$0xf]
    %v228 = vld [vmem:[%s1 + $0x340] sm:$0xf]
    %v229 = vld [vmem:[%s1 + $0x344] sm:$0xf]
    %v230 = vld [vmem:[%s1 + $0x348] sm:$0xf]
    %v231 = vld [vmem:[%s1 + $0x34c] sm:$0xf]
    %v232 = vld [vmem:[%s1 + $0x350] sm:$0xf]
    %v233 = vld [vmem:[%s1 + $0x354] sm:$0xf]
    %v234 = vld [vmem:[%s1 + $0x358] sm:$0xf]
    %v235 = vld [vmem:[%s1 + $0x35c] sm:$0xf]
    %v236 = vld [vmem:[%s1 + $0x360] sm:$0xf]
    %v237 = vld [vmem:[%s1 + $0x364] sm:$0xf]
    %v238 = vld [vmem:[%s1 + $0x368] sm:$0xf]
    %v239 = vld [vmem:[%s1 + $0x36c] sm:$0xf]
    %v240 = vld [vmem:[%s1 + $0x370] sm:$0xf]
    %v241 = vld [vmem:[%s1 + $0x374] sm:$0xf]
    %v242 = vld [vmem:[%s1 + $0x378] sm:$0xf]
    %v243 = vld [vmem:[%s1 + $0x37c] sm:$0xf]
    %v244 = vld [vmem:[%s1 + $0x380] sm:$0xf]
    %v245 = vld [vmem:[%s1 + $0x384] sm:$0xf]
    %v246 = vld [vmem:[%s1 + $0x388] sm:$0xf]
    %v247 = vld [vmem:[%s1 + $0x38c] sm:$0xf]
    %v248 = vld [vmem:[%s1 + $0x390] sm:$0xf]
    %v249 = vld [vmem:[%s1 + $0x394] sm:$0xf]
    %v250 = vld [vmem:[%s1 + $0x398] sm:$0xf]
    %v251 = vld [vmem:[%s1 + $0x39c] sm:$0xf]
    %v252 = vld [vmem:[%s1 + $0x3a0] sm:$0xf]
    %v253 = vld [vmem:[%s1 + $0x3a4] sm:$0xf]
    %v254 = vld [vmem:[%s1 + $0x3a8] sm:$0xf]
    %v255 = vld [vmem:[%s1 + $0x3ac] sm:$0xf]
    %v256 = vld [vmem:[%s1 + $0x3b0] sm:$0xf]
    %v257 = vld [vmem:[%s1 + $0x3b4] sm:$0xf]
    %v258 = vld [vmem:[%s1 + $0x3b8] sm:$0xf]
    %v259 = vld [vmem:[%s1 + $0x3bc] sm:$0xf]
    %v260 = vld [vmem:[%s1 + $0x3c0] sm:$0xf]
    %v261 = vld [vmem:[%s1 + $0x3c4] sm:$0xf]
    %v262 = vld [vmem:[%s1 + $0x3c8] sm:$0xf]
    %v263 = vld [vmem:[%s1 + $0x3cc] sm:$0xf]
    %v264 = vld [vmem:[%s1 + $0x3d0] sm:$0xf]
    %v265 = vld [vmem:[%s1 + $0x3d4] sm:$0xf]
    %v266 = vld [vmem:[%s1 + $0x3d8] sm:$0xf]
    %v267 = vld [vmem:[%s1 + $0x3dc] sm:$0xf]
    %v268 = vld [vmem:[%s1 + $0x3e0] sm:$0xf]
    %v269 = vld [vmem:[%s1 + $0x3e4] sm:$0xf]
    %v270 = vld [vmem:[%s1 + $0x3e8] sm:$0xf]
    %v271 = vld [vmem:[%s1 + $0x3ec] sm:$0xf]
    %v272 = vld [vmem:[%s1 + $0x3f0] sm:$0xf]
    %v273 = vld [vmem:[%s1 + $0x3f4] sm:$0xf]
    %v274 = vld [vmem:[%s1 + $0x3f8] sm:$0xf]
    %v275 = vld [vmem:[%s1 + $0x3fc] sm:$0xf]
    %v276 = vld [vmem:[%s1 + $0x400] sm:$0xf]
    %v277 = vld [vmem:[%s1 + $0x404] sm:$0xf]
    %v278 = vld [vmem:[%s1 + $0x408] sm:$0xf]
    %v279 = vld [vmem:[%s1 + $0x40c] sm:$0xf]
    %v280 = vld [vmem:[%s1 + $0x410] sm:$0xf]
    %v281 = vld [vmem:[%s1 + $0x414] sm:$0xf]
    %v282 = vld [vmem:[%s1 + $0x418] sm:$0xf]
    %v283 = vld [vmem:[%s1 + $0x41c] sm:$0xf]
    %v284 = vld [vmem:[%s1 + $0x420] sm:$0xf]
    %v285 = vld [vmem:[%s1 + $0x424] sm:$0xf]
    %v286 = vld [vmem:[%s1 + $0x428] sm:$0xf]
    %v287 = vld [vmem:[%s1 + $0x42c] sm:$0xf]
    %v288 = vld [vmem:[%s1 + $0x430] sm:$0xf]
    %v289 = vld [vmem:[%s1 + $0x434] sm:$0xf]
    %v290 = vld [vmem:[%s1 + $0x438] sm:$0xf]
    %v291 = vld [vmem:[%s1 + $0x43c] sm:$0xf]
    %v292 = vld [vmem:[%s1 + $0x440] sm:$0xf]
    %v293 = vld [vmem:[%s1 + $0x444] sm:$0xf]
    %v294 = vld [vmem:[%s1 + $0x448] sm:$0xf]
    %v295 = vld [vmem:[%s1 + $0x44c] sm:$0xf]
    %v296 = vld [vmem:[%s1 + $0x450] sm:$0xf]
    %v297 = vld [vmem:[%s1 + $0x454] sm:$0xf]
    %v298 = vld [vmem:[%s1 + $0x458] sm:$0xf]
    %v299 = vld [vmem:[%s1 + $0x45c] sm:$0xf]
    %v300 = vld [vmem:[%s1 + $0x460] sm:$0xf]
    %v301 = vld [vmem:[%s1 + $0x464] sm:$0xf]
    %v302 = vld [vmem:[%s1 + $0x468] sm:$0xf]
    %v303 = vld [vmem:[%s1 + $0x46c] sm:$0xf]
    %v304 = vld [vmem:[%s1 + $0x470] sm:$0xf]
    %v305 = vld [vmem:[%s1 + $0x474] sm:$0xf]
    %v306 = vld [vmem:[%s1 + $0x478] sm:$0xf]
    %v307 = vld [vmem:[%s1 + $0x47c] sm:$0xf]
    %v308 = vld [vmem:[%s1 + $0x480] sm:$0xf]
    %v309 = vld [vmem:[%s1 + $0x484] sm:$0xf]
    %v310 = vld [vmem:[%s1 + $0x488] sm:$0xf]
    %v311 = vld [vmem:[%s1 + $0x48c] sm:$0xf]
    %v312 = vld [vmem:[%s1 + $0x490] sm:$0xf]
    %v313 = vld [vmem:[%s1 + $0x494] sm:$0xf]
    %v314 = vld [vmem:[%s1 + $0x498] sm:$0xf]
    %v315 = vld [vmem:[%s1 + $0x49c] sm:$0xf]
    %v316 = vld [vmem:[%s1 + $0x4a0] sm:$0xf]
    %v317 = vld [vmem:[%s1 + $0x4a4] sm:$0xf]
    %v318 = vld [vmem:[%s1 + $0x4a8] sm:$0xf]
    %v319 = vld [vmem:[%s1 + $0x4ac] sm:$0xf]
    %v320 = vld [vmem:[%s1 + $0x4b0] sm:$0xf]
    %v321 = vld [vmem:[%s1 + $0x4b4] sm:$0xf]
    %v322 = vld [vmem:[%s1 + $0x4b8] sm:$0xf]
    %v323 = vld [vmem:[%s1 + $0x4bc] sm:$0xf]
    %v324 = vld [vmem:[%s1 + $0x4c0] sm:$0xf]
    %v325 = vld [vmem:[%s1 + $0x4c4] sm:$0xf]
    %v326 = vld [vmem:[%s1 + $0x4c8] sm:$0xf]
    %v327 = vld [vmem:[%s1 + $0x4cc] sm:$0xf]
    %v328 = vld [vmem:[%s1 + $0x4d0] sm:$0xf]
    %v329 = vld [vmem:[%s1 + $0x4d4] sm:$0xf]
    %v330 = vld [vmem:[%s1 + $0x4d8] sm:$0xf]
    %v331 = vld [vmem:[%s1 + $0x4dc] sm:$0xf]
    %v332 = vld [vmem:[%s1 + $0x4e0] sm:$0xf]
    %v333 = vld [vmem:[%s1 + $0x4e4] sm:$0xf]
    %v334 = vld [vmem:[%s1 + $0x4e8] sm:$0xf]
    %v335 = vld [vmem:[%s1 + $0x4ec] sm:$0xf]
    %v336 = vld [vmem:[%s1 + $0x4f0] sm:$0xf]
    %v337 = vld [vmem:[%s1 + $0x4f4] sm:$0xf]
    %v338 = vld [vmem:[%s1 + $0x4f8] sm:$0xf]
    %v339 = vld [vmem:[%s1 + $0x4fc] sm:$0xf]
    %v340 = vld [vmem:[%s1 + $0x500] sm:$0xf]
    %v341 = vld [vmem:[%s1 + $0x504] sm:$0xf]
    %v342 = vld [vmem:[%s1 + $0x508] sm:$0xf]
    %v343 = vld [vmem:[%s1 + $0x50c] sm:$0xf]
    %v344 = vld [vmem:[%s1 + $0x510] sm:$0xf]
    %v345 = vld [vmem:[%s1 + $0x514] sm:$0xf]
    %v346 = vld [vmem:[%s1 + $0x518] sm:$0xf]
    %v347 = vld [vmem:[%s1 + $0x51c] sm:$0xf]
    %v348 = vld [vmem:[%s1 + $0x520] sm:$0xf]
    %v349 = vld [vmem:[%s1 + $0x524] sm:$0xf]
    %v350 = vld [vmem:[%s1 + $0x528] sm:$0xf]
    %v351 = vld [vmem:[%s1 + $0x52c] sm:$0xf]
    %v352 = vld [vmem:[%s1 + $0x530] sm:$0xf]
    %v353 = vld [vmem:[%s1 + $0x534] sm:$0xf]
    %v354 = vld [vmem:[%s1 + $0x538] sm:$0xf]
    %v355 = vld [vmem:[%s1 + $0x53c] sm:$0xf]
    %v356 = vld [vmem:[%s1 + $0x540] sm:$0xf]
    %v357 = vld [vmem:[%s1 + $0x544] sm:$0xf]
    %v358 = vld [vmem:[%s1 + $0x548] sm:$0xf]
    %v359 = vld [vmem:[%s1 + $0x54c] sm:$0xf]
    %v360 = vld [vmem:[%s1 + $0x550] sm:$0xf]
    %v361 = vld [vmem:[%s1 + $0x554] sm:$0xf]
    %v362 = vld [vmem:[%s1 + $0x558] sm:$0xf]
    %v363 = vld [vmem:[%s1 + $0x55c] sm:$0xf]
    %v364 = vld [vmem:[%s1 + $0x560] sm:$0xf]
    %v365 = vld [vmem:[%s1 + $0x564] sm:$0xf]
    %v366 = vld [vmem:[%s1 + $0x568] sm:$0xf]
    %v367 = vld [vmem:[%s1 + $0x56c] sm:$0xf]
    %v368 = vld [vmem:[%s1 + $0x570] sm:$0xf]
    %v369 = vld [vmem:[%s1 + $0x574] sm:$0xf]
    %v370 = vld [vmem:[%s1 + $0x578] sm:$0xf]
    %v371 = vld [vmem:[%s1 + $0x57c] sm:$0xf]
    %v372 = vld [vmem:[%s1 + $0x580] sm:$0xf]
    %v373 = vld [vmem:[%s1 + $0x584] sm:$0xf]
    %v374 = vld [vmem:[%s1 + $0x588] sm:$0xf]
    %v375 = vld [vmem:[%s1 + $0x58c] sm:$0xf]
    %v376 = vld [vmem:[%s1 + $0x590] sm:$0xf]
    %v377 = vld [vmem:[%s1 + $0x594] sm:$0xf]
    %v378 = vld [vmem:[%s1 + $0x598] sm:$0xf]
    %v379 = vld [vmem:[%s1 + $0x59c] sm:$0xf]
    %v380 = vld [vmem:[%s1 + $0x5a0] sm:$0xf]
    %v381 = vld [vmem:[%s1 + $0x5a4] sm:$0xf]
    %v382 = vld [vmem:[%s1 + $0x5a8] sm:$0xf]
    %v383 = vld [vmem:[%s1 + $0x5ac] sm:$0xf]
    %v384 = vld [vmem:[%s1 + $0x5b0] sm:$0xf]
    %v385 = vld [vmem:[%s1 + $0x5b4] sm:$0xf]
    %v386 = vld [vmem:[%s1 + $0x5b8] sm:$0xf]
    %v387 = vld [vmem:[%s1 + $0x5bc] sm:$0xf]
    %v388 = vld [vmem:[%s1 + $0x5c0] sm:$0xf]
    %v389 = vld [vmem:[%s1 + $0x5c4] sm:$0xf]
    %v390 = vld [vmem:[%s1 + $0x5c8] sm:$0xf]
    %v391 = vld [vmem:[%s1 + $0x5cc] sm:$0xf]
    %v392 = vld [vmem:[%s1 + $0x5d0] sm:$0xf]
    %v393 = vld [vmem:[%s1 + $0x5d4] sm:$0xf]
    %v394 = vld [vmem:[%s1 + $0x5d8] sm:$0xf]
    %v395 = vld [vmem:[%s1 + $0x5dc] sm:$0xf]
    %v396 = vld [vmem:[%s1 + $0x5e0] sm:$0xf]
    %v397 = vld [vmem:[%s1 + $0x5e4] sm:$0xf]
    %v398 = vld [vmem:[%s1 + $0x5e8] sm:$0xf]
    %v399 = vld [vmem:[%s1 + $0x5ec] sm:$0xf]
    %v400 = vld [vmem:[%s1 + $0x5f0] sm:$0xf]
    %v401 = vld [vmem:[%s1 + $0x5f4] sm:$0xf]
    %v402 = vld [vmem:[%s1 + $0x5f8] sm:$0xf]
    %v403 = vld [vmem:[%s1 + $0x5fc] sm:$0xf]
    %v404 = vld [vmem:[%s1 + $0x600] sm:$0xf]
    %v405 = vld [vmem:[%s1 + $0x604] sm:$0xf]
    %v406 = vld [vmem:[%s1 + $0x608] sm:$0xf]
    %v407 = vld [vmem:[%s1 + $0x60c] sm:$0xf]
    %v408 = vld [vmem:[%s1 + $0x610] sm:$0xf]
    %v409 = vld [vmem:[%s1 + $0x614] sm:$0xf]
    %v410 = vld [vmem:[%s1 + $0x618] sm:$0xf]
    %v411 = vld [vmem:[%s1 + $0x61c] sm:$0xf]
    %v412 = vld [vmem:[%s1 + $0x620] sm:$0xf]
    %v413 = vld [vmem:[%s1 + $0x624] sm:$0xf]
    %v414 = vld [vmem:[%s1 + $0x628] sm:$0xf]
    %v415 = vld [vmem:[%s1 + $0x62c] sm:$0xf]
    %v416 = vld [vmem:[%s1 + $0x630] sm:$0xf]
    %v417 = vld [vmem:[%s1 + $0x634] sm:$0xf]
    %v418 = vld [vmem:[%s1 + $0x638] sm:$0xf]
    %v419 = vld [vmem:[%s1 + $0x63c] sm:$0xf]
    %v420 = vld [vmem:[%s1 + $0x640] sm:$0xf]
    %v421 = vld [vmem:[%s1 + $0x644] sm:$0xf]
    %v422 = vld [vmem:[%s1 + $0x648] sm:$0xf]
    %v423 = vld [vmem:[%s1 + $0x64c] sm:$0xf]
    %v424 = vld [vmem:[%s1 + $0x650] sm:$0xf]
    %v425 = vld [vmem:[%s1 + $0x654] sm:$0xf]
    %v426 = vld [vmem:[%s1 + $0x658] sm:$0xf]
    %v427 = vld [vmem:[%s1 + $0x65c] sm:$0xf]
    %v428 = vld [vmem:[%s1 + $0x660] sm:$0xf]
    %v429 = vld [vmem:[%s1 + $0x664] sm:$0xf]
    %v430 = vld [vmem:[%s1 + $0x668] sm:$0xf]
    %v431 = vld [vmem:[%s1 + $0x66c] sm:$0xf]
    %v432 = vld [vmem:[%s1 + $0x670] sm:$0xf]
    %v433 = vld [vmem:[%s1 + $0x674] sm:$0xf]
    %v434 = vld [vmem:[%s1 + $0x678] sm:$0xf]
    %v435 = vld [vmem:[%s1 + $0x67c] sm:$0xf]
    %v436 = vld [vmem:[%s1 + $0x680] sm:$0xf]
    %v437 = vld [vmem:[%s1 + $0x684] sm:$0xf]
    %v438 = vld [vmem:[%s1 + $0x688] sm:$0xf]
    %v439 = vld [vmem:[%s1 + $0x68c] sm:$0xf]
    %v440 = vld [vmem:[%s1 + $0x690] sm:$0xf]
    %v441 = vld [vmem:[%s1 + $0x694] sm:$0xf]
    %v442 = vld [vmem:[%s1 + $0x698] sm:$0xf]
    %v443 = vld [vmem:[%s1 + $0x69c] sm:$0xf]
    %v444 = vld [vmem:[%s1 + $0x6a0] sm:$0xf]
    %v445 = vld [vmem:[%s1 + $0x6a4] sm:$0xf]
    %v446 = vld [vmem:[%s1 + $0x6a8] sm:$0xf]
    %v447 = vld [vmem:[%s1 + $0x6ac] sm:$0xf]
    %v448 = vld [vmem:[%s1 + $0x6b0] sm:$0xf]
    %v449 = vld [vmem:[%s1 + $0x6b4] sm:$0xf]
    %v450 = vld [vmem:[%s1 + $0x6b8] sm:$0xf]
    %v451 = vld [vmem:[%s1 + $0x6bc] sm:$0xf]
    %v452 = vld [vmem:[%s1 + $0x6c0] sm:$0xf]
    %v453 = vld [vmem:[%s1 + $0x6c4] sm:$0xf]
    %v454 = vld [vmem:[%s1 + $0x6c8] sm:$0xf]
    %v455 = vld [vmem:[%s1 + $0x6cc] sm:$0xf]
    %v456 = vld [vmem:[%s1 + $0x6d0] sm:$0xf]
    %v457 = vld [vmem:[%s1 + $0x6d4] sm:$0xf]
    %v458 = vld [vmem:[%s1 + $0x6d8] sm:$0xf]
    %v459 = vld [vmem:[%s1 + $0x6dc] sm:$0xf]
    %v460 = vld [vmem:[%s1 + $0x6e0] sm:$0xf]
    %v461 = vld [vmem:[%s1 + $0x6e4] sm:$0xf]
    %v462 = vld [vmem:[%s1 + $0x6e8] sm:$0xf]
    %v463 = vld [vmem:[%s1 + $0x6ec] sm:$0xf]
    %v464 = vld [vmem:[%s1 + $0x6f0] sm:$0xf]
    %v465 = vld [vmem:[%s1 + $0x6f4] sm:$0xf]
    %v466 = vld [vmem:[%s1 + $0x6f8] sm:$0xf]
    %v467 = vld [vmem:[%s1 + $0x6fc] sm:$0xf]
    %v468 = vld [vmem:[%s1 + $0x700] sm:$0xf]
    %v469 = vld [vmem:[%s1 + $0x704] sm:$0xf]
    %v470 = vld [vmem:[%s1 + $0x708] sm:$0xf]
    %v471 = vld [vmem:[%s1 + $0x70c] sm:$0xf]
    %v472 = vld [vmem:[%s1 + $0x710] sm:$0xf]
    %v473 = vld [vmem:[%s1 + $0x714] sm:$0xf]
    %v474 = vld [vmem:[%s1 + $0x718] sm:$0xf]
    %v475 = vld [vmem:[%s1 + $0x71c] sm:$0xf]
    %v476 = vld [vmem:[%s1 + $0x720] sm:$0xf]
    %v477 = vld [vmem:[%s1 + $0x724] sm:$0xf]
    %v478 = vld [vmem:[%s1 + $0x728] sm:$0xf]
    %v479 = vld [vmem:[%s1 + $0x72c] sm:$0xf]
    %v480 = vld [vmem:[%s1 + $0x730] sm:$0xf]
    %v481 = vld [vmem:[%s1 + $0x734] sm:$0xf]
    %v482 = vld [vmem:[%s1 + $0x738] sm:$0xf]
    %v483 = vld [vmem:[%s1 + $0x73c] sm:$0xf]
    %v484 = vld [vmem:[%s1 + $0x740] sm:$0xf]
    %v485 = vld [vmem:[%s1 + $0x744] sm:$0xf]
    %v486 = vld [vmem:[%s1 + $0x748] sm:$0xf]
    %v487 = vld [vmem:[%s1 + $0x74c] sm:$0xf]
    %v488 = vld [vmem:[%s1 + $0x750] sm:$0xf]
    %v489 = vld [vmem:[%s1 + $0x754] sm:$0xf]
    %v490 = vld [vmem:[%s1 + $0x758] sm:$0xf]
    %v491 = vld [vmem:[%s1 + $0x75c] sm:$0xf]
    %v492 = vld [vmem:[%s1 + $0x760] sm:$0xf]
    %v493 = vld [vmem:[%s1 + $0x764] sm:$0xf]
    %v494 = vld [vmem:[%s1 + $0x768] sm:$0xf]
    %v495 = vld [vmem:[%s1 + $0x76c] sm:$0xf]
    %v496 = vld [vmem:[%s1 + $0x770] sm:$0xf]
    %v497 = vld [vmem:[%s1 + $0x774] sm:$0xf]
    %v498 = vld [vmem:[%s1 + $0x778] sm:$0xf]
    %v499 = vld [vmem:[%s1 + $0x77c] sm:$0xf]
    %v500 = vld [vmem:[%s1 + $0x780] sm:$0xf]
    %v501 = vld [vmem:[%s1 + $0x784] sm:$0xf]
    %v502 = vld [vmem:[%s1 + $0x788] sm:$0xf]
    %v503 = vld [vmem:[%s1 + $0x78c] sm:$0xf]
    %v504 = vld [vmem:[%s1 + $0x790] sm:$0xf]
    %v505 = vld [vmem:[%s1 + $0x794] sm:$0xf]
    %v506 = vld [vmem:[%s1 + $0x798] sm:$0xf]
    %v507 = vld [vmem:[%s1 + $0x79c] sm:$0xf]
    %v508 = vld [vmem:[%s1 + $0x7a0] sm:$0xf]
    %v509 = vld [vmem:[%s1 + $0x7a4] sm:$0xf]
    %v510 = vld [vmem:[%s1 + $0x7a8] sm:$0xf]
    %v511 = vld [vmem:[%s1 + $0x7ac] sm:$0xf]
    %v512 = vld [vmem:[%s1 + $0x7b0] sm:$0xf]
    %v513 = vld [vmem:[%s1 + $0x7b4] sm:$0xf]
    %v514 = vld [vmem:[%s1 + $0x7b8] sm:$0xf]
    %v515 = vld [vmem:[%s1 + $0x7bc] sm:$0xf]
    %v516 = vld [vmem:[%s1 + $0x7c0] sm:$0xf]
    %v517 = vld [vmem:[%s1 + $0x7c4] sm:$0xf]
    %v518 = vld [vmem:[%s1 + $0x7c8] sm:$0xf]
    %v519 = vld [vmem:[%s1 + $0x7cc] sm:$0xf]
    %v520 = vld [vmem:[%s1 + $0x7d0] sm:$0xf]
    %v521 = vld [vmem:[%s1 + $0x7d4] sm:$0xf]
    %v522 = vld [vmem:[%s1 + $0x7d8] sm:$0xf]
    %v523 = vld [vmem:[%s1 + $0x7dc] sm:$0xf]
    %v524 = vld [vmem:[%s1 + $0x7e0] sm:$0xf]
    %v525 = vld [vmem:[%s1 + $0x7e4] sm:$0xf]
    %v526 = vld [vmem:[%s1 + $0x7e8] sm:$0xf]
    %v527 = vld [vmem:[%s1 + $0x7ec] sm:$0xf]
    %v528 = vld [vmem:[%s1 + $0x7f0] sm:$0xf]
    %v529 = vld [vmem:[%s1 + $0x7f4] sm:$0xf]
    %v530 = vld [vmem:[%s1 + $0x7f8] sm:$0xf]
    %v531 = vld [vmem:[%s1 + $0x7fc] sm:$0xf]
    %v532 = vld [vmem:[%s1 + $0x800] sm:$0xf]
    %v533 = vld [vmem:[%s1 + $0x804] sm:$0xf]
    %v534 = vld [vmem:[%s1 + $0x808] sm:$0xf]
    %v535 = vld [vmem:[%s1 + $0x80c] sm:$0xf]
    %v536 = vld [vmem:[%s1 + $0x810] sm:$0xf]
    %v537 = vld [vmem:[%s1 + $0x814] sm:$0xf]
    %v538 = vld [vmem:[%s1 + $0x818] sm:$0xf]
    %v539 = vld [vmem:[%s1 + $0x81c] sm:$0xf]
    %v540 = vld [vmem:[%s1 + $0x820] sm:$0xf]
    %v541 = vld [vmem:[%s1 + $0x824] sm:$0xf]
    %v542 = vld [vmem:[%s1 + $0x828] sm:$0xf]
    %v543 = vld [vmem:[%s1 + $0x82c] sm:$0xf]
    %v544 = vld [vmem:[%s1 + $0x830] sm:$0xf]
    %v545 = vld [vmem:[%s1 + $0x834] sm:$0xf]
    %v546 = vld [vmem:[%s1 + $0x838] sm:$0xf]
    %v547 = vld [vmem:[%s1 + $0x83c] sm:$0xf]
    %v548 = vld [vmem:[%s1 + $0x840] sm:$0xf]
    %v549 = vld [vmem:[%s1 + $0x844] sm:$0xf]
    %v550 = vld [vmem:[%s1 + $0x848] sm:$0xf]
    %v551 = vld [vmem:[%s1 + $0x84c] sm:$0xf]
    %v552 = vld [vmem:[%s1 + $0x850] sm:$0xf]
    %v553 = vld [vmem:[%s1 + $0x854] sm:$0xf]
    %v554 = vld [vmem:[%s1 + $0x858] sm:$0xf]
    %v555 = vld [vmem:[%s1 + $0x85c] sm:$0xf]
    %v556 = vld [vmem:[%s1 + $0x860] sm:$0xf]
    %v557 = vld [vmem:[%s1 + $0x864] sm:$0xf]
    %v558 = vld [vmem:[%s1 + $0x868] sm:$0xf]
    %v559 = vld [vmem:[%s1 + $0x86c] sm:$0xf]
    %v560 = vld [vmem:[%s1 + $0x870] sm:$0xf]
    %v561 = vld [vmem:[%s1 + $0x874] sm:$0xf]
    %v562 = vld [vmem:[%s1 + $0x878] sm:$0xf]
    %v563 = vld [vmem:[%s1 + $0x87c] sm:$0xf]
    %v564 = vld [vmem:[%s1 + $0x880] sm:$0xf]
    %v565 = vld [vmem:[%s1 + $0x884] sm:$0xf]
    %v566 = vld [vmem:[%s1 + $0x888] sm:$0xf]
    %v567 = vld [vmem:[%s1 + $0x88c] sm:$0xf]
    %v568 = vld [vmem:[%s1 + $0x890] sm:$0xf]
    %v569 = vld [vmem:[%s1 + $0x894] sm:$0xf]
    %v570 = vld [vmem:[%s1 + $0x898] sm:$0xf]
    %v571 = vld [vmem:[%s1 + $0x89c] sm:$0xf]
    %v572 = vld [vmem:[%s1 + $0x8a0] sm:$0xf]
    %v573 = vld [vmem:[%s1 + $0x8a4] sm:$0xf]
    %v574 = vld [vmem:[%s1 + $0x8a8] sm:$0xf]
    %v575 = vld [vmem:[%s1 + $0x8ac] sm:$0xf]
    %v576 = vld [vmem:[%s1 + $0x8b0] sm:$0xf]
    %v577 = vld [vmem:[%s1 + $0x8b4] sm:$0xf]
    %v578 = vld [vmem:[%s1 + $0x8b8] sm:$0xf]
    %v579 = vld [vmem:[%s1 + $0x8bc] sm:$0xf]
    %v580 = vld [vmem:[%s1 + $0x8c0] sm:$0xf]
    %v581 = vld [vmem:[%s1 + $0x8c4] sm:$0xf]
    %v582 = vld [vmem:[%s1 + $0x8c8] sm:$0xf]
    %v583 = vld [vmem:[%s1 + $0x8cc] sm:$0xf]
    %v584 = vld [vmem:[%s1 + $0x8d0] sm:$0xf]
    %v585 = vld [vmem:[%s1 + $0x8d4] sm:$0xf]
    %v586 = vld [vmem:[%s1 + $0x8d8] sm:$0xf]
    %v587 = vld [vmem:[%s1 + $0x8dc] sm:$0xf]
    %v588 = vld [vmem:[%s1 + $0x8e0] sm:$0xf]
    %v589 = vld [vmem:[%s1 + $0x8e4] sm:$0xf]
    %v590 = vld [vmem:[%s1 + $0x8e8] sm:$0xf]
    %v591 = vld [vmem:[%s1 + $0x8ec] sm:$0xf]
    %v592 = vld [vmem:[%s1 + $0x8f0] sm:$0xf]
    %v593 = vld [vmem:[%s1 + $0x8f4] sm:$0xf]
    %v594 = vld [vmem:[%s1 + $0x8f8] sm:$0xf]
    %v595 = vld [vmem:[%s1 + $0x8fc] sm:$0xf]
    %v596 = vld [vmem:[%s2] sm:$0x1]
    %v598 = vperm.slane %v596, 0
    %601 = vst [vmem:[#allocation1] ss:$9 sm:$0xff] %v15
    %v602 = vld [vmem:[#allocation1] sm:$0xff]
    %v603 = vld [vmem:[#allocation1 + $0x9] sm:$0xff]
    %v604 = vld [vmem:[#allocation1 + $0x12] sm:$0xff]
    %v605 = vld [vmem:[#allocation1 + $0x1b] sm:$0xff]
    %v606 = vld [vmem:[#allocation1 + $0x24] sm:$0xff]
    %v607 = vld [vmem:[#allocation1 + $0x2d] sm:$0xff]
    %v608 = vld [vmem:[#allocation1 + $0x36] sm:$0xff]
    %v609 = vld [vmem:[#allocation1 + $0x3f] sm:$0xff]
    %611 = vst [vmem:[#allocation1] ss:$9 sm:$0xff] %v16
    %v612 = vld [vmem:[#allocation1] sm:$0xff]
    %v613 = vld [vmem:[#allocation1 + $0x9] sm:$0xff]
    %v614 = vld [vmem:[#allocation1 + $0x12] sm:$0xff]
    %v615 = vld [vmem:[#allocation1 + $0x1b] sm:$0xff]
    %v616 = vld [vmem:[#allocation1 + $0x24] sm:$0xff]
    %v617 = vld [vmem:[#allocation1 + $0x2d] sm:$0xff]
    %v618 = vld [vmem:[#allocation1 + $0x36] sm:$0xff]
    %v619 = vld [vmem:[#allocation1 + $0x3f] sm:$0xff]
    %621 = vst [vmem:[#allocation1] ss:$9 sm:$0xff] %v17
    %v622 = vld [vmem:[#allocation1] sm:$0xff]
    %v623 = vld [vmem:[#allocation1 + $0x9] sm:$0xff]
    %v624 = vld [vmem:[#allocation1 + $0x12] sm:$0xff]
    %v625 = vld [vmem:[#allocation1 + $0x1b] sm:$0xff]
    %v626 = vld [vmem:[#allocation1 + $0x24] sm:$0xff]
    %v627 = vld [vmem:[#allocation1 + $0x2d] sm:$0xff]
    %v628 = vld [vmem:[#allocation1 + $0x36] sm:$0xff]
    %v629 = vld [vmem:[#allocation1 + $0x3f] sm:$0xff]
    %631 = vst [vmem:[#allocation1] ss:$9 sm:$0xff] %v18
    %v632 = vld [vmem:[#allocation1] sm:$0xff]
    %v633 = vld [vmem:[#allocation1 + $0x9] sm:$0xff]
    %v634 = vld [vmem:[#allocation1 + $0x12] sm:$0xff]
    %v635 = vld [vmem:[#allocation1 + $0x1b] sm:$0xff]
    %v636 = vld [vmem:[#allocation1 + $0x24] sm:$0xff]
    %v637 = vld [vmem:[#allocation1 + $0x2d] sm:$0xff]
    %v638 = vld [vmem:[#allocation1 + $0x36] sm:$0xff]
    %v639 = vld [vmem:[#allocation1 + $0x3f] sm:$0xff]
    %641 = vst [vmem:[#allocation1] ss:$9 sm:$0xff] %v19
    %v642 = vld [vmem:[#allocation1] sm:$0xff]
    %v643 = vld [vmem:[#allocation1 + $0x9] sm:$0xff]
    %v644 = vld [vmem:[#allocation1 + $0x12] sm:$0xff]
    %v645 = vld [vmem:[#allocation1 + $0x1b] sm:$0xff]
    %v1258 = vunpack.c.l.b16 %v20
    %v1259 = vunpack.c.l.b16 %v21
    %v1260 = vunpack.c.l.b16 %v22
    %v1261 = vunpack.c.l.b16 %v23
    %v1262 = vunpack.c.l.b16 %v24
    %v1263 = vunpack.c.l.b16 %v25
    %v1264 = vunpack.c.l.b16 %v26
    %v1265 = vunpack.c.l.b16 %v27
    %v1266 = vunpack.c.l.b16 %v28
    %v1267 = vunpack.c.l.b16 %v29
    %v1268 = vunpack.c.l.b16 %v30
    %v1269 = vunpack.c.l.b16 %v31
    %v1270 = vunpack.c.l.b16 %v32
    %v1271 = vunpack.c.l.b16 %v33
    %v1272 = vunpack.c.l.b16 %v34
    %v1273 = vunpack.c.l.b16 %v35
    %v1274 = vunpack.c.l.b16 %v36
    %v1275 = vunpack.c.l.b16 %v37
    %v1276 = vunpack.c.l.b16 %v38
    %v1277 = vunpack.c.l.b16 %v39
    %v1278 = vunpack.c.l.b16 %v40
    %v1279 = vunpack.c.l.b16 %v41
    %v1280 = vunpack.c.l.b16 %v42
    %v1281 = vunpack.c.l.b16 %v43
    %v1282 = vunpack.c.l.b16 %v44
    %v1283 = vunpack.c.l.b16 %v45
    %v1284 = vunpack.c.l.b16 %v46
    %v1285 = vunpack.c.l.b16 %v47
    %v1286 = vunpack.c.l.b16 %v48
    %v1287 = vunpack.c.l.b16 %v49
    %v1288 = vunpack.c.l.b16 %v50
    %v1289 = vunpack.c.l.b16 %v51
    %v1290 = vunpack.c.l.b16 %v52
    %v1291 = vunpack.c.l.b16 %v53
    %v1292 = vunpack.c.l.b16 %v54
    %v1293 = vunpack.c.l.b16 %v55
    %v1294 = vunpack.c.l.b16 %v56
    %v1295 = vunpack.c.l.b16 %v57
    %v1296 = vunpack.c.l.b16 %v58
    %v1297 = vunpack.c.l.b16 %v59
    %v1298 = vunpack.c.l.b16 %v60
    %v1299 = vunpack.c.l.b16 %v61
    %v1300 = vunpack.c.l.b16 %v62
    %v1301 = vunpack.c.l.b16 %v63
    %v1302 = vunpack.c.l.b16 %v64
    %v1303 = vunpack.c.l.b16 %v65
    %v1304 = vunpack.c.l.b16 %v66
    %v1305 = vunpack.c.l.b16 %v67
    %v1306 = vunpack.c.l.b16 %v68
    %v1307 = vunpack.c.l.b16 %v69
    %v1308 = vunpack.c.l.b16 %v70
    %v1309 = vunpack.c.l.b16 %v71
    %v1310 = vunpack.c.l.b16 %v72
    %v1311 = vunpack.c.l.b16 %v73
    %v1312 = vunpack.c.l.b16 %v74
    %v1313 = vunpack.c.l.b16 %v75
    %v1314 = vunpack.c.l.b16 %v76
    %v1315 = vunpack.c.l.b16 %v77
    %v1316 = vunpack.c.l.b16 %v78
    %v1317 = vunpack.c.l.b16 %v79
    %v1318 = vunpack.c.l.b16 %v80
    %v1319 = vunpack.c.l.b16 %v81
    %v1320 = vunpack.c.l.b16 %v82
    %v1321 = vunpack.c.l.b16 %v83
    %v1322 = vunpack.c.l.b16 %v84
    %v1323 = vunpack.c.l.b16 %v85
    %v1324 = vunpack.c.l.b16 %v86
    %v1325 = vunpack.c.l.b16 %v87
    %v1326 = vunpack.c.l.b16 %v88
    %v1327 = vunpack.c.l.b16 %v89
    %v1328 = vunpack.c.l.b16 %v90
    %v1329 = vunpack.c.l.b16 %v91
    %v1330 = vunpack.c.l.b16 %v92
    %v1331 = vunpack.c.l.b16 %v93
    %v1332 = vunpack.c.l.b16 %v94
    %v1333 = vunpack.c.l.b16 %v95
    %v1334 = vunpack.c.l.b16 %v96
    %v1335 = vunpack.c.l.b16 %v97
    %v1336 = vunpack.c.l.b16 %v98
    %v1337 = vunpack.c.l.b16 %v99
    %v1338 = vunpack.c.l.b16 %v100
    %v1339 = vunpack.c.l.b16 %v101
    %v1340 = vunpack.c.l.b16 %v102
    %v1341 = vunpack.c.l.b16 %v103
    %v1342 = vunpack.c.l.b16 %v104
    %v1343 = vunpack.c.l.b16 %v105
    %v1344 = vunpack.c.l.b16 %v106
    %v1345 = vunpack.c.l.b16 %v107
    %v1346 = vunpack.c.l.b16 %v108
    %v1347 = vunpack.c.l.b16 %v109
    %v1348 = vunpack.c.l.b16 %v110
    %v1349 = vunpack.c.l.b16 %v111
    %v1350 = vunpack.c.l.b16 %v112
    %v1351 = vunpack.c.l.b16 %v113
    %v1352 = vunpack.c.l.b16 %v114
    %v1353 = vunpack.c.l.b16 %v115
    %v1354 = vunpack.c.l.b16 %v116
    %v1355 = vunpack.c.l.b16 %v117
    %v1356 = vunpack.c.l.b16 %v118
    %v1357 = vunpack.c.l.b16 %v119
    %v1358 = vunpack.c.l.b16 %v120
    %v1359 = vunpack.c.l.b16 %v121
    %v1360 = vunpack.c.l.b16 %v122
    %v1361 = vunpack.c.l.b16 %v123
    %v1362 = vunpack.c.l.b16 %v124
    %v1363 = vunpack.c.l.b16 %v125
    %v1364 = vunpack.c.l.b16 %v126
    %v1365 = vunpack.c.l.b16 %v127
    %v1366 = vunpack.c.l.b16 %v128
    %v1367 = vunpack.c.l.b16 %v129
    %v1368 = vunpack.c.l.b16 %v130
    %v1369 = vunpack.c.l.b16 %v131
    %v1370 = vunpack.c.l.b16 %v132
    %v1371 = vunpack.c.l.b16 %v133
    %v1372 = vunpack.c.l.b16 %v134
    %v1373 = vunpack.c.l.b16 %v135
    %v1374 = vunpack.c.l.b16 %v136
    %v1375 = vunpack.c.l.b16 %v137
    %v1376 = vunpack.c.l.b16 %v138
    %v1377 = vunpack.c.l.b16 %v139
    %v1378 = vunpack.c.l.b16 %v140
    %v1379 = vunpack.c.l.b16 %v141
    %v1380 = vunpack.c.l.b16 %v142
    %v1381 = vunpack.c.l.b16 %v143
    %v1382 = vunpack.c.l.b16 %v144
    %v1383 = vunpack.c.l.b16 %v145
    %v1384 = vunpack.c.l.b16 %v146
    %v1385 = vunpack.c.l.b16 %v147
    %v1386 = vunpack.c.l.b16 %v148
    %v1387 = vunpack.c.l.b16 %v149
    %v1388 = vunpack.c.l.b16 %v150
    %v1389 = vunpack.c.l.b16 %v151
    %v1390 = vunpack.c.l.b16 %v152
    %v1391 = vunpack.c.l.b16 %v153
    %v1392 = vunpack.c.l.b16 %v154
    %v1393 = vunpack.c.l.b16 %v155
    %v1394 = vunpack.c.l.b16 %v156
    %v1395 = vunpack.c.l.b16 %v157
    %v1396 = vunpack.c.l.b16 %v158
    %v1397 = vunpack.c.l.b16 %v159
    %v1398 = vunpack.c.l.b16 %v160
    %v1399 = vunpack.c.l.b16 %v161
    %v1400 = vunpack.c.l.b16 %v162
    %v1401 = vunpack.c.l.b16 %v163
    %v1402 = vunpack.c.l.b16 %v164
    %v1403 = vunpack.c.l.b16 %v165
    %v1404 = vunpack.c.l.b16 %v166
    %v1405 = vunpack.c.l.b16 %v167
    %v1406 = vunpack.c.l.b16 %v168
    %v1407 = vunpack.c.l.b16 %v169
    %v1408 = vunpack.c.l.b16 %v170
    %v1409 = vunpack.c.l.b16 %v171
    %v1410 = vunpack.c.l.b16 %v172
    %v1411 = vunpack.c.l.b16 %v173
    %v1412 = vunpack.c.l.b16 %v174
    %v1413 = vunpack.c.l.b16 %v175
    %v1414 = vunpack.c.l.b16 %v176
    %v1415 = vunpack.c.l.b16 %v177
    %v1416 = vunpack.c.l.b16 %v178
    %v1417 = vunpack.c.l.b16 %v179
    %v1418 = vunpack.c.l.b16 %v180
    %v1419 = vunpack.c.l.b16 %v181
    %v1420 = vunpack.c.l.b16 %v182
    %v1421 = vunpack.c.l.b16 %v183
    %v1422 = vunpack.c.l.b16 %v184
    %v1423 = vunpack.c.l.b16 %v185
    %v1424 = vunpack.c.l.b16 %v186
    %v1425 = vunpack.c.l.b16 %v187
    %v1426 = vunpack.c.l.b16 %v188
    %v1427 = vunpack.c.l.b16 %v189
    %v1428 = vunpack.c.l.b16 %v190
    %v1429 = vunpack.c.l.b16 %v191
    %v1430 = vunpack.c.l.b16 %v192
    %v1431 = vunpack.c.l.b16 %v193
    %v1432 = vunpack.c.l.b16 %v194
    %v1433 = vunpack.c.l.b16 %v195
    %v1434 = vunpack.c.l.b16 %v196
    %v1435 = vunpack.c.l.b16 %v197
    %v1436 = vunpack.c.l.b16 %v198
    %v1437 = vunpack.c.l.b16 %v199
    %v1438 = vunpack.c.l.b16 %v200
    %v1439 = vunpack.c.l.b16 %v201
    %v1440 = vunpack.c.l.b16 %v202
    %v1441 = vunpack.c.l.b16 %v203
    %v1442 = vunpack.c.l.b16 %v204
    %v1443 = vunpack.c.l.b16 %v205
    %v1444 = vunpack.c.l.b16 %v206
    %v1445 = vunpack.c.l.b16 %v207
    %v1446 = vunpack.c.l.b16 %v208
    %v1447 = vunpack.c.l.b16 %v209
    %v1448 = vunpack.c.l.b16 %v210
    %v1449 = vunpack.c.l.b16 %v211
    %v1450 = vunpack.c.l.b16 %v212
    %v1451 = vunpack.c.l.b16 %v213
    %v1452 = vunpack.c.l.b16 %v214
    %v1453 = vunpack.c.l.b16 %v215
    %v1454 = vunpack.c.l.b16 %v216
    %v1455 = vunpack.c.l.b16 %v217
    %v1456 = vunpack.c.l.b16 %v218
    %v1457 = vunpack.c.l.b16 %v219
    %v1458 = vunpack.c.l.b16 %v220
    %v1459 = vunpack.c.l.b16 %v221
    %v1460 = vunpack.c.l.b16 %v222
    %v1461 = vunpack.c.l.b16 %v223
    %v1462 = vunpack.c.l.b16 %v224
    %v1463 = vunpack.c.l.b16 %v225
    %v1464 = vunpack.c.l.b16 %v226
    %v1465 = vunpack.c.l.b16 %v227
    %v1466 = vunpack.c.l.b16 %v228
    %v1467 = vunpack.c.l.b16 %v229
    %v1468 = vunpack.c.l.b16 %v230
    %v1469 = vunpack.c.l.b16 %v231
    %v1470 = vunpack.c.l.b16 %v232
    %v1471 = vunpack.c.l.b16 %v233
    %v1472 = vunpack.c.l.b16 %v234
    %v1473 = vunpack.c.l.b16 %v235
    %v1474 = vunpack.c.l.b16 %v236
    %v1475 = vunpack.c.l.b16 %v237
    %v1476 = vunpack.c.l.b16 %v238
    %v1477 = vunpack.c.l.b16 %v239
    %v1478 = vunpack.c.l.b16 %v240
    %v1479 = vunpack.c.l.b16 %v241
    %v1480 = vunpack.c.l.b16 %v242
    %v1481 = vunpack.c.l.b16 %v243
    %v1482 = vunpack.c.l.b16 %v244
    %v1483 = vunpack.c.l.b16 %v245
    %v1484 = vunpack.c.l.b16 %v246
    %v1485 = vunpack.c.l.b16 %v247
    %v1486 = vunpack.c.l.b16 %v248
    %v1487 = vunpack.c.l.b16 %v249
    %v1488 = vunpack.c.l.b16 %v250
    %v1489 = vunpack.c.l.b16 %v251
    %v1490 = vunpack.c.l.b16 %v252
    %v1491 = vunpack.c.l.b16 %v253
    %v1492 = vunpack.c.l.b16 %v254
    %v1493 = vunpack.c.l.b16 %v255
    %v1494 = vunpack.c.l.b16 %v256
    %v1495 = vunpack.c.l.b16 %v257
    %v1496 = vunpack.c.l.b16 %v258
    %v1497 = vunpack.c.l.b16 %v259
    %v1498 = vunpack.c.l.b16 %v260
    %v1499 = vunpack.c.l.b16 %v261
    %v1500 = vunpack.c.l.b16 %v262
    %v1501 = vunpack.c.l.b16 %v263
    %v1502 = vunpack.c.l.b16 %v264
    %v1503 = vunpack.c.l.b16 %v265
    %v1504 = vunpack.c.l.b16 %v266
    %v1505 = vunpack.c.l.b16 %v267
    %v1506 = vunpack.c.l.b16 %v268
    %v1507 = vunpack.c.l.b16 %v269
    %v1508 = vunpack.c.l.b16 %v270
    %v1509 = vunpack.c.l.b16 %v271
    %v1510 = vunpack.c.l.b16 %v272
    %v1511 = vunpack.c.l.b16 %v273
    %v1512 = vunpack.c.l.b16 %v274
    %v1513 = vunpack.c.l.b16 %v275
    %v1514 = vunpack.c.l.b16 %v276
    %v1515 = vunpack.c.l.b16 %v277
    %v1516 = vunpack.c.l.b16 %v278
    %v1517 = vunpack.c.l.b16 %v279
    %v1518 = vunpack.c.l.b16 %v280
    %v1519 = vunpack.c.l.b16 %v281
    %v1520 = vunpack.c.l.b16 %v282
    %v1521 = vunpack.c.l.b16 %v283
    %v1522 = vunpack.c.l.b16 %v284
    %v1523 = vunpack.c.l.b16 %v285
    %v1524 = vunpack.c.l.b16 %v286
    %v1525 = vunpack.c.l.b16 %v287
    %v1526 = vunpack.c.l.b16 %v288
    %v1527 = vunpack.c.l.b16 %v289
    %v1528 = vunpack.c.l.b16 %v290
    %v1529 = vunpack.c.l.b16 %v291
    %v1530 = vunpack.c.l.b16 %v292
    %v1531 = vunpack.c.l.b16 %v293
    %v1532 = vunpack.c.l.b16 %v294
    %v1533 = vunpack.c.l.b16 %v295
    %v1534 = vunpack.c.l.b16 %v296
    %v1535 = vunpack.c.l.b16 %v297
    %v1536 = vunpack.c.l.b16 %v298
    %v1537 = vunpack.c.l.b16 %v299
    %v1538 = vunpack.c.l.b16 %v300
    %v1539 = vunpack.c.l.b16 %v301
    %v1540 = vunpack.c.l.b16 %v302
    %v1541 = vunpack.c.l.b16 %v303
    %v1542 = vunpack.c.l.b16 %v304
    %v1543 = vunpack.c.l.b16 %v305
    %v1544 = vunpack.c.l.b16 %v306
    %v1545 = vunpack.c.l.b16 %v307
    %v1546 = vunpack.c.l.b16 %v308
    %v1547 = vunpack.c.l.b16 %v309
    %v1548 = vunpack.c.l.b16 %v310
    %v1549 = vunpack.c.l.b16 %v311
    %v1550 = vunpack.c.l.b16 %v312
    %v1551 = vunpack.c.l.b16 %v313
    %v1552 = vunpack.c.l.b16 %v314
    %v1553 = vunpack.c.l.b16 %v315
    %v1554 = vunpack.c.l.b16 %v316
    %v1555 = vunpack.c.l.b16 %v317
    %v1556 = vunpack.c.l.b16 %v318
    %v1557 = vunpack.c.l.b16 %v319
    %v1558 = vunpack.c.l.b16 %v320
    %v1559 = vunpack.c.l.b16 %v321
    %v1560 = vunpack.c.l.b16 %v322
    %v1561 = vunpack.c.l.b16 %v323
    %v1562 = vunpack.c.l.b16 %v324
    %v1563 = vunpack.c.l.b16 %v325
    %v1564 = vunpack.c.l.b16 %v326
    %v1565 = vunpack.c.l.b16 %v327
    %v1566 = vunpack.c.l.b16 %v328
    %v1567 = vunpack.c.l.b16 %v329
    %v1568 = vunpack.c.l.b16 %v330
    %v1569 = vunpack.c.l.b16 %v331
    %v1570 = vunpack.c.l.b16 %v332
    %v1571 = vunpack.c.l.b16 %v333
    %v1572 = vunpack.c.l.b16 %v334
    %v1573 = vunpack.c.l.b16 %v335
    %v1574 = vunpack.c.l.b16 %v336
    %v1575 = vunpack.c.l.b16 %v337
    %v1576 = vunpack.c.l.b16 %v338
    %v1577 = vunpack.c.l.b16 %v339
    %v1578 = vunpack.c.l.b16 %v340
    %v1579 = vunpack.c.l.b16 %v341
    %v1580 = vunpack.c.l.b16 %v342
    %v1581 = vunpack.c.l.b16 %v343
    %v1582 = vunpack.c.l.b16 %v344
    %v1583 = vunpack.c.l.b16 %v345
    %v1584 = vunpack.c.l.b16 %v346
    %v1585 = vunpack.c.l.b16 %v347
    %v1586 = vunpack.c.l.b16 %v348
    %v1587 = vunpack.c.l.b16 %v349
    %v1588 = vunpack.c.l.b16 %v350
    %v1589 = vunpack.c.l.b16 %v351
    %v1590 = vunpack.c.l.b16 %v352
    %v1591 = vunpack.c.l.b16 %v353
    %v1592 = vunpack.c.l.b16 %v354
    %v1593 = vunpack.c.l.b16 %v355
    %v1594 = vunpack.c.l.b16 %v356
    %v1595 = vunpack.c.l.b16 %v357
    %v1596 = vunpack.c.l.b16 %v358
    %v1597 = vunpack.c.l.b16 %v359
    %v1598 = vunpack.c.l.b16 %v360
    %v1599 = vunpack.c.l.b16 %v361
    %v1600 = vunpack.c.l.b16 %v362
    %v1601 = vunpack.c.l.b16 %v363
    %v1602 = vunpack.c.l.b16 %v364
    %v1603 = vunpack.c.l.b16 %v365
    %v1604 = vunpack.c.l.b16 %v366
    %v1605 = vunpack.c.l.b16 %v367
    %v1606 = vunpack.c.l.b16 %v368
    %v1607 = vunpack.c.l.b16 %v369
    %v1608 = vunpack.c.l.b16 %v370
    %v1609 = vunpack.c.l.b16 %v371
    %v1610 = vunpack.c.l.b16 %v372
    %v1611 = vunpack.c.l.b16 %v373
    %v1612 = vunpack.c.l.b16 %v374
    %v1613 = vunpack.c.l.b16 %v375
    %v1614 = vunpack.c.l.b16 %v376
    %v1615 = vunpack.c.l.b16 %v377
    %v1616 = vunpack.c.l.b16 %v378
    %v1617 = vunpack.c.l.b16 %v379
    %v1618 = vunpack.c.l.b16 %v380
    %v1619 = vunpack.c.l.b16 %v381
    %v1620 = vunpack.c.l.b16 %v382
    %v1621 = vunpack.c.l.b16 %v383
    %v1622 = vunpack.c.l.b16 %v384
    %v1623 = vunpack.c.l.b16 %v385
    %v1624 = vunpack.c.l.b16 %v386
    %v1625 = vunpack.c.l.b16 %v387
    %v1626 = vunpack.c.l.b16 %v388
    %v1627 = vunpack.c.l.b16 %v389
    %v1628 = vunpack.c.l.b16 %v390
    %v1629 = vunpack.c.l.b16 %v391
    %v1630 = vunpack.c.l.b16 %v392
    %v1631 = vunpack.c.l.b16 %v393
    %v1632 = vunpack.c.l.b16 %v394
    %v1633 = vunpack.c.l.b16 %v395
    %v1634 = vunpack.c.l.b16 %v396
    %v1635 = vunpack.c.l.b16 %v397
    %v1636 = vunpack.c.l.b16 %v398
    %v1637 = vunpack.c.l.b16 %v399
    %v1638 = vunpack.c.l.b16 %v400
    %v1639 = vunpack.c.l.b16 %v401
    %v1640 = vunpack.c.l.b16 %v402
    %v1641 = vunpack.c.l.b16 %v403
    %v1642 = vunpack.c.l.b16 %v404
    %v1643 = vunpack.c.l.b16 %v405
    %v1644 = vunpack.c.l.b16 %v406
    %v1645 = vunpack.c.l.b16 %v407
    %v1646 = vunpack.c.l.b16 %v408
    %v1647 = vunpack.c.l.b16 %v409
    %v1648 = vunpack.c.l.b16 %v410
    %v1649 = vunpack.c.l.b16 %v411
    %v1650 = vunpack.c.l.b16 %v412
    %v1651 = vunpack.c.l.b16 %v413
    %v1652 = vunpack.c.l.b16 %v414
    %v1653 = vunpack.c.l.b16 %v415
    %v1654 = vunpack.c.l.b16 %v416
    %v1655 = vunpack.c.l.b16 %v417
    %v1656 = vunpack.c.l.b16 %v418
    %v1657 = vunpack.c.l.b16 %v419
    %v1658 = vunpack.c.l.b16 %v420
    %v1659 = vunpack.c.l.b16 %v421
    %v1660 = vunpack.c.l.b16 %v422
    %v1661 = vunpack.c.l.b16 %v423
    %v1662 = vunpack.c.l.b16 %v424
    %v1663 = vunpack.c.l.b16 %v425
    %v1664 = vunpack.c.l.b16 %v426
    %v1665 = vunpack.c.l.b16 %v427
    %v1666 = vunpack.c.l.b16 %v428
    %v1667 = vunpack.c.l.b16 %v429
    %v1668 = vunpack.c.l.b16 %v430
    %v1669 = vunpack.c.l.b16 %v431
    %v1670 = vunpack.c.l.b16 %v432
    %v1671 = vunpack.c.l.b16 %v433
    %v1672 = vunpack.c.l.b16 %v434
    %v1673 = vunpack.c.l.b16 %v435
    %v1674 = vunpack.c.l.b16 %v436
    %v1675 = vunpack.c.l.b16 %v437
    %v1676 = vunpack.c.l.b16 %v438
    %v1677 = vunpack.c.l.b16 %v439
    %v1678 = vunpack.c.l.b16 %v440
    %v1679 = vunpack.c.l.b16 %v441
    %v1680 = vunpack.c.l.b16 %v442
    %v1681 = vunpack.c.l.b16 %v443
    %v1682 = vunpack.c.l.b16 %v444
    %v1683 = vunpack.c.l.b16 %v445
    %v1684 = vunpack.c.l.b16 %v446
    %v1685 = vunpack.c.l.b16 %v447
    %v1686 = vunpack.c.l.b16 %v448
    %v1687 = vunpack.c.l.b16 %v449
    %v1688 = vunpack.c.l.b16 %v450
    %v1689 = vunpack.c.l.b16 %v451
    %v1690 = vunpack.c.l.b16 %v452
    %v1691 = vunpack.c.l.b16 %v453
    %v1692 = vunpack.c.l.b16 %v454
    %v1693 = vunpack.c.l.b16 %v455
    %v1694 = vunpack.c.l.b16 %v456
    %v1695 = vunpack.c.l.b16 %v457
    %v1696 = vunpack.c.l.b16 %v458
    %v1697 = vunpack.c.l.b16 %v459
    %v1698 = vunpack.c.l.b16 %v460
    %v1699 = vunpack.c.l.b16 %v461
    %v1700 = vunpack.c.l.b16 %v462
    %v1701 = vunpack.c.l.b16 %v463
    %v1702 = vunpack.c.l.b16 %v464
    %v1703 = vunpack.c.l.b16 %v465
    %v1704 = vunpack.c.l.b16 %v466
    %v1705 = vunpack.c.l.b16 %v467
    %v1706 = vunpack.c.l.b16 %v468
    %v1707 = vunpack.c.l.b16 %v469
    %v1708 = vunpack.c.l.b16 %v470
    %v1709 = vunpack.c.l.b16 %v471
    %v1710 = vunpack.c.l.b16 %v472
    %v1711 = vunpack.c.l.b16 %v473
    %v1712 = vunpack.c.l.b16 %v474
    %v1713 = vunpack.c.l.b16 %v475
    %v1714 = vunpack.c.l.b16 %v476
    %v1715 = vunpack.c.l.b16 %v477
    %v1716 = vunpack.c.l.b16 %v478
    %v1717 = vunpack.c.l.b16 %v479
    %v1718 = vunpack.c.l.b16 %v480
    %v1719 = vunpack.c.l.b16 %v481
    %v1720 = vunpack.c.l.b16 %v482
    %v1721 = vunpack.c.l.b16 %v483
    %v1722 = vunpack.c.l.b16 %v484
    %v1723 = vunpack.c.l.b16 %v485
    %v1724 = vunpack.c.l.b16 %v486
    %v1725 = vunpack.c.l.b16 %v487
    %v1726 = vunpack.c.l.b16 %v488
    %v1727 = vunpack.c.l.b16 %v489
    %v1728 = vunpack.c.l.b16 %v490
    %v1729 = vunpack.c.l.b16 %v491
    %v1730 = vunpack.c.l.b16 %v492
    %v1731 = vunpack.c.l.b16 %v493
    %v1732 = vunpack.c.l.b16 %v494
    %v1733 = vunpack.c.l.b16 %v495
    %v1734 = vunpack.c.l.b16 %v496
    %v1735 = vunpack.c.l.b16 %v497
    %v1736 = vunpack.c.l.b16 %v498
    %v1737 = vunpack.c.l.b16 %v499
    %v1738 = vunpack.c.l.b16 %v500
    %v1739 = vunpack.c.l.b16 %v501
    %v1740 = vunpack.c.l.b16 %v502
    %v1741 = vunpack.c.l.b16 %v503
    %v1742 = vunpack.c.l.b16 %v504
    %v1743 = vunpack.c.l.b16 %v505
    %v1744 = vunpack.c.l.b16 %v506
    %v1745 = vunpack.c.l.b16 %v507
    %v1746 = vunpack.c.l.b16 %v508
    %v1747 = vunpack.c.l.b16 %v509
    %v1748 = vunpack.c.l.b16 %v510
    %v1749 = vunpack.c.l.b16 %v511
    %v1750 = vunpack.c.l.b16 %v512
    %v1751 = vunpack.c.l.b16 %v513
    %v1752 = vunpack.c.l.b16 %v514
    %v1753 = vunpack.c.l.b16 %v515
    %v1754 = vunpack.c.l.b16 %v516
    %v1755 = vunpack.c.l.b16 %v517
    %v1756 = vunpack.c.l.b16 %v518
    %v1757 = vunpack.c.l.b16 %v519
    %v1758 = vunpack.c.l.b16 %v520
    %v1759 = vunpack.c.l.b16 %v521
    %v1760 = vunpack.c.l.b16 %v522
    %v1761 = vunpack.c.l.b16 %v523
    %v1762 = vunpack.c.l.b16 %v524
    %v1763 = vunpack.c.l.b16 %v525
    %v1764 = vunpack.c.l.b16 %v526
    %v1765 = vunpack.c.l.b16 %v527
    %v1766 = vunpack.c.l.b16 %v528
    %v1767 = vunpack.c.l.b16 %v529
    %v1768 = vunpack.c.l.b16 %v530
    %v1769 = vunpack.c.l.b16 %v531
    %v1770 = vunpack.c.l.b16 %v532
    %v1771 = vunpack.c.l.b16 %v533
    %v1772 = vunpack.c.l.b16 %v534
    %v1773 = vunpack.c.l.b16 %v535
    %v1774 = vunpack.c.l.b16 %v536
    %v1775 = vunpack.c.l.b16 %v537
    %v1776 = vunpack.c.l.b16 %v538
    %v1777 = vunpack.c.l.b16 %v539
    %v1778 = vunpack.c.l.b16 %v540
    %v1779 = vunpack.c.l.b16 %v541
    %v1780 = vunpack.c.l.b16 %v542
    %v1781 = vunpack.c.l.b16 %v543
    %v1782 = vunpack.c.l.b16 %v544
    %v1783 = vunpack.c.l.b16 %v545
    %v1784 = vunpack.c.l.b16 %v546
    %v1785 = vunpack.c.l.b16 %v547
    %v1786 = vunpack.c.l.b16 %v548
    %v1787 = vunpack.c.l.b16 %v549
    %v1788 = vunpack.c.l.b16 %v550
    %v1789 = vunpack.c.l.b16 %v551
    %v1790 = vunpack.c.l.b16 %v552
    %v1791 = vunpack.c.l.b16 %v553
    %v1792 = vunpack.c.l.b16 %v554
    %v1793 = vunpack.c.l.b16 %v555
    %v1794 = vunpack.c.l.b16 %v556
    %v1795 = vunpack.c.l.b16 %v557
    %v1796 = vunpack.c.l.b16 %v558
    %v1797 = vunpack.c.l.b16 %v559
    %v1798 = vunpack.c.l.b16 %v560
    %v1799 = vunpack.c.l.b16 %v561
    %v1800 = vunpack.c.l.b16 %v562
    %v1801 = vunpack.c.l.b16 %v563
    %v1802 = vunpack.c.l.b16 %v564
    %v1803 = vunpack.c.l.b16 %v565
    %v1804 = vunpack.c.l.b16 %v566
    %v1805 = vunpack.c.l.b16 %v567
    %v1806 = vunpack.c.l.b16 %v568
    %v1807 = vunpack.c.l.b16 %v569
    %v1808 = vunpack.c.l.b16 %v570
    %v1809 = vunpack.c.l.b16 %v571
    %v1810 = vunpack.c.l.b16 %v572
    %v1811 = vunpack.c.l.b16 %v573
    %v1812 = vunpack.c.l.b16 %v574
    %v1813 = vunpack.c.l.b16 %v575
    %v1814 = vunpack.c.l.b16 %v576
    %v1815 = vunpack.c.l.b16 %v577
    %v1816 = vunpack.c.l.b16 %v578
    %v1817 = vunpack.c.l.b16 %v579
    %v1818 = vunpack.c.l.b16 %v580
    %v1819 = vunpack.c.l.b16 %v581
    %v1820 = vunpack.c.l.b16 %v582
    %v1821 = vunpack.c.l.b16 %v583
    %v1822 = vunpack.c.l.b16 %v584
    %v1823 = vunpack.c.l.b16 %v585
    %v1824 = vunpack.c.l.b16 %v586
    %v1825 = vunpack.c.l.b16 %v587
    %v1826 = vunpack.c.l.b16 %v588
    %v1827 = vunpack.c.l.b16 %v589
    %v1828 = vunpack.c.l.b16 %v590
    %v1829 = vunpack.c.l.b16 %v591
    %v1830 = vunpack.c.l.b16 %v592
    %v1831 = vunpack.c.l.b16 %v593
    %v1832 = vunpack.c.l.b16 %v594
    %v1833 = vunpack.c.l.b16 %v595
    %v1834 = vpack.c.b16 %v1259, %v1258
    %v1835 = vpack.c.b16 %v1261, %v1260
    %v1836 = vpack.c.b16 %v1263, %v1262
    %v1837 = vpack.c.b16 %v1265, %v1264
    %v1838 = vpack.c.b16 %v1267, %v1266
    %v1839 = vpack.c.b16 %v1269, %v1268
    %v1840 = vpack.c.b16 %v1271, %v1270
    %v1841 = vpack.c.b16 %v1273, %v1272
    %v1842 = vpack.c.b16 %v1275, %v1274
    %v1843 = vpack.c.b16 %v1277, %v1276
    %v1844 = vpack.c.b16 %v1279, %v1278
    %v1845 = vpack.c.b16 %v1281, %v1280
    %v1846 = vpack.c.b16 %v1283, %v1282
    %v1847 = vpack.c.b16 %v1285, %v1284
    %v1848 = vpack.c.b16 %v1287, %v1286
    %v1849 = vpack.c.b16 %v1289, %v1288
    %v1850 = vpack.c.b16 %v1291, %v1290
    %v1851 = vpack.c.b16 %v1293, %v1292
    %v1852 = vpack.c.b16 %v1295, %v1294
    %v1853 = vpack.c.b16 %v1297, %v1296
    %v1854 = vpack.c.b16 %v1299, %v1298
    %v1855 = vpack.c.b16 %v1301, %v1300
    %v1856 = vpack.c.b16 %v1303, %v1302
    %v1857 = vpack.c.b16 %v1305, %v1304
    %v1858 = vpack.c.b16 %v1307, %v1306
    %v1859 = vpack.c.b16 %v1309, %v1308
    %v1860 = vpack.c.b16 %v1311, %v1310
    %v1861 = vpack.c.b16 %v1313, %v1312
    %v1862 = vpack.c.b16 %v1315, %v1314
    %v1863 = vpack.c.b16 %v1317, %v1316
    %v1864 = vpack.c.b16 %v1319, %v1318
    %v1865 = vpack.c.b16 %v1321, %v1320
    %v1866 = vpack.c.b16 %v1323, %v1322
    %v1867 = vpack.c.b16 %v1325, %v1324
    %v1868 = vpack.c.b16 %v1327, %v1326
    %v1869 = vpack.c.b16 %v1329, %v1328
    %v1870 = vpack.c.b16 %v1331, %v1330
    %v1871 = vpack.c.b16 %v1333, %v1332
    %v1872 = vpack.c.b16 %v1335, %v1334
    %v1873 = vpack.c.b16 %v1337, %v1336
    %v1874 = vpack.c.b16 %v1339, %v1338
    %v1875 = vpack.c.b16 %v1341, %v1340
    %v1876 = vpack.c.b16 %v1343, %v1342
    %v1877 = vpack.c.b16 %v1345, %v1344
    %v1878 = vpack.c.b16 %v1347, %v1346
    %v1879 = vpack.c.b16 %v1349, %v1348
    %v1880 = vpack.c.b16 %v1351, %v1350
    %v1881 = vpack.c.b16 %v1353, %v1352
    %v1882 = vpack.c.b16 %v1355, %v1354
    %v1883 = vpack.c.b16 %v1357, %v1356
    %v1884 = vpack.c.b16 %v1359, %v1358
    %v1885 = vpack.c.b16 %v1361, %v1360
    %v1886 = vpack.c.b16 %v1363, %v1362
    %v1887 = vpack.c.b16 %v1365, %v1364
    %v1888 = vpack.c.b16 %v1367, %v1366
    %v1889 = vpack.c.b16 %v1369, %v1368
    %v1890 = vpack.c.b16 %v1371, %v1370
    %v1891 = vpack.c.b16 %v1373, %v1372
    %v1892 = vpack.c.b16 %v1375, %v1374
    %v1893 = vpack.c.b16 %v1377, %v1376
    %v1894 = vpack.c.b16 %v1379, %v1378
    %v1895 = vpack.c.b16 %v1381, %v1380
    %v1896 = vpack.c.b16 %v1383, %v1382
    %v1897 = vpack.c.b16 %v1385, %v1384
    %v1898 = vpack.c.b16 %v1387, %v1386
    %v1899 = vpack.c.b16 %v1389, %v1388
    %v1900 = vpack.c.b16 %v1391, %v1390
    %v1901 = vpack.c.b16 %v1393, %v1392
    %v1902 = vpack.c.b16 %v1395, %v1394
    %v1903 = vpack.c.b16 %v1397, %v1396
    %v1904 = vpack.c.b16 %v1399, %v1398
    %v1905 = vpack.c.b16 %v1401, %v1400
    %v1906 = vpack.c.b16 %v1403, %v1402
    %v1907 = vpack.c.b16 %v1405, %v1404
    %v1908 = vpack.c.b16 %v1407, %v1406
    %v1909 = vpack.c.b16 %v1409, %v1408
    %v1910 = vpack.c.b16 %v1411, %v1410
    %v1911 = vpack.c.b16 %v1413, %v1412
    %v1912 = vpack.c.b16 %v1415, %v1414
    %v1913 = vpack.c.b16 %v1417, %v1416
    %v1914 = vpack.c.b16 %v1419, %v1418
    %v1915 = vpack.c.b16 %v1421, %v1420
    %v1916 = vpack.c.b16 %v1423, %v1422
    %v1917 = vpack.c.b16 %v1425, %v1424
    %v1918 = vpack.c.b16 %v1427, %v1426
    %v1919 = vpack.c.b16 %v1429, %v1428
    %v1920 = vpack.c.b16 %v1431, %v1430
    %v1921 = vpack.c.b16 %v1433, %v1432
    %v1922 = vpack.c.b16 %v1435, %v1434
    %v1923 = vpack.c.b16 %v1437, %v1436
    %v1924 = vpack.c.b16 %v1439, %v1438
    %v1925 = vpack.c.b16 %v1441, %v1440
    %v1926 = vpack.c.b16 %v1443, %v1442
    %v1927 = vpack.c.b16 %v1445, %v1444
    %v1928 = vpack.c.b16 %v1447, %v1446
    %v1929 = vpack.c.b16 %v1449, %v1448
    %v1930 = vpack.c.b16 %v1451, %v1450
    %v1931 = vpack.c.b16 %v1453, %v1452
    %v1932 = vpack.c.b16 %v1455, %v1454
    %v1933 = vpack.c.b16 %v1457, %v1456
    %v1934 = vpack.c.b16 %v1459, %v1458
    %v1935 = vpack.c.b16 %v1461, %v1460
    %v1936 = vpack.c.b16 %v1463, %v1462
    %v1937 = vpack.c.b16 %v1465, %v1464
    %v1938 = vpack.c.b16 %v1467, %v1466
    %v1939 = vpack.c.b16 %v1469, %v1468
    %v1940 = vpack.c.b16 %v1471, %v1470
    %v1941 = vpack.c.b16 %v1473, %v1472
    %v1942 = vpack.c.b16 %v1475, %v1474
    %v1943 = vpack.c.b16 %v1477, %v1476
    %v1944 = vpack.c.b16 %v1479, %v1478
    %v1945 = vpack.c.b16 %v1481, %v1480
    %v1946 = vpack.c.b16 %v1483, %v1482
    %v1947 = vpack.c.b16 %v1485, %v1484
    %v1948 = vpack.c.b16 %v1487, %v1486
    %v1949 = vpack.c.b16 %v1489, %v1488
    %v1950 = vpack.c.b16 %v1491, %v1490
    %v1951 = vpack.c.b16 %v1493, %v1492
    %v1952 = vpack.c.b16 %v1495, %v1494
    %v1953 = vpack.c.b16 %v1497, %v1496
    %v1954 = vpack.c.b16 %v1499, %v1498
    %v1955 = vpack.c.b16 %v1501, %v1500
    %v1956 = vpack.c.b16 %v1503, %v1502
    %v1957 = vpack.c.b16 %v1505, %v1504
    %v1958 = vpack.c.b16 %v1507, %v1506
    %v1959 = vpack.c.b16 %v1509, %v1508
    %v1960 = vpack.c.b16 %v1511, %v1510
    %v1961 = vpack.c.b16 %v1513, %v1512
    %v1962 = vpack.c.b16 %v1515, %v1514
    %v1963 = vpack.c.b16 %v1517, %v1516
    %v1964 = vpack.c.b16 %v1519, %v1518
    %v1965 = vpack.c.b16 %v1521, %v1520
    %v1966 = vpack.c.b16 %v1523, %v1522
    %v1967 = vpack.c.b16 %v1525, %v1524
    %v1968 = vpack.c.b16 %v1527, %v1526
    %v1969 = vpack.c.b16 %v1529, %v1528
    %v1970 = vpack.c.b16 %v1531, %v1530
    %v1971 = vpack.c.b16 %v1533, %v1532
    %v1972 = vpack.c.b16 %v1535, %v1534
    %v1973 = vpack.c.b16 %v1537, %v1536
    %v1974 = vpack.c.b16 %v1539, %v1538
    %v1975 = vpack.c.b16 %v1541, %v1540
    %v1976 = vpack.c.b16 %v1543, %v1542
    %v1977 = vpack.c.b16 %v1545, %v1544
    %v1978 = vpack.c.b16 %v1547, %v1546
    %v1979 = vpack.c.b16 %v1549, %v1548
    %v1980 = vpack.c.b16 %v1551, %v1550
    %v1981 = vpack.c.b16 %v1553, %v1552
    %v1982 = vpack.c.b16 %v1555, %v1554
    %v1983 = vpack.c.b16 %v1557, %v1556
    %v1984 = vpack.c.b16 %v1559, %v1558
    %v1985 = vpack.c.b16 %v1561, %v1560
    %v1986 = vpack.c.b16 %v1563, %v1562
    %v1987 = vpack.c.b16 %v1565, %v1564
    %v1988 = vpack.c.b16 %v1567, %v1566
    %v1989 = vpack.c.b16 %v1569, %v1568
    %v1990 = vpack.c.b16 %v1571, %v1570
    %v1991 = vpack.c.b16 %v1573, %v1572
    %v1992 = vpack.c.b16 %v1575, %v1574
    %v1993 = vpack.c.b16 %v1577, %v1576
    %v1994 = vpack.c.b16 %v1579, %v1578
    %v1995 = vpack.c.b16 %v1581, %v1580
    %v1996 = vpack.c.b16 %v1583, %v1582
    %v1997 = vpack.c.b16 %v1585, %v1584
    %v1998 = vpack.c.b16 %v1587, %v1586
    %v1999 = vpack.c.b16 %v1589, %v1588
    %v2000 = vpack.c.b16 %v1591, %v1590
    %v2001 = vpack.c.b16 %v1593, %v1592
    %v2002 = vpack.c.b16 %v1595, %v1594
    %v2003 = vpack.c.b16 %v1597, %v1596
    %v2004 = vpack.c.b16 %v1599, %v1598
    %v2005 = vpack.c.b16 %v1601, %v1600
    %v2006 = vpack.c.b16 %v1603, %v1602
    %v2007 = vpack.c.b16 %v1605, %v1604
    %v2008 = vpack.c.b16 %v1607, %v1606
    %v2009 = vpack.c.b16 %v1609, %v1608
    %v2010 = vpack.c.b16 %v1611, %v1610
    %v2011 = vpack.c.b16 %v1613, %v1612
    %v2012 = vpack.c.b16 %v1615, %v1614
    %v2013 = vpack.c.b16 %v1617, %v1616
    %v2014 = vpack.c.b16 %v1619, %v1618
    %v2015 = vpack.c.b16 %v1621, %v1620
    %v2016 = vpack.c.b16 %v1623, %v1622
    %v2017 = vpack.c.b16 %v1625, %v1624
    %v2018 = vpack.c.b16 %v1627, %v1626
    %v2019 = vpack.c.b16 %v1629, %v1628
    %v2020 = vpack.c.b16 %v1631, %v1630
    %v2021 = vpack.c.b16 %v1633, %v1632
    %v2022 = vpack.c.b16 %v1635, %v1634
    %v2023 = vpack.c.b16 %v1637, %v1636
    %v2024 = vpack.c.b16 %v1639, %v1638
    %v2025 = vpack.c.b16 %v1641, %v1640
    %v2026 = vpack.c.b16 %v1643, %v1642
    %v2027 = vpack.c.b16 %v1645, %v1644
    %v2028 = vpack.c.b16 %v1647, %v1646
    %v2029 = vpack.c.b16 %v1649, %v1648
    %v2030 = vpack.c.b16 %v1651, %v1650
    %v2031 = vpack.c.b16 %v1653, %v1652
    %v2032 = vpack.c.b16 %v1655, %v1654
    %v2033 = vpack.c.b16 %v1657, %v1656
    %v2034 = vpack.c.b16 %v1659, %v1658
    %v2035 = vpack.c.b16 %v1661, %v1660
    %v2036 = vpack.c.b16 %v1663, %v1662
    %v2037 = vpack.c.b16 %v1665, %v1664
    %v2038 = vpack.c.b16 %v1667, %v1666
    %v2039 = vpack.c.b16 %v1669, %v1668
    %v2040 = vpack.c.b16 %v1671, %v1670
    %v2041 = vpack.c.b16 %v1673, %v1672
    %v2042 = vpack.c.b16 %v1675, %v1674
    %v2043 = vpack.c.b16 %v1677, %v1676
    %v2044 = vpack.c.b16 %v1679, %v1678
    %v2045 = vpack.c.b16 %v1681, %v1680
    %v2046 = vpack.c.b16 %v1683, %v1682
    %v2047 = vpack.c.b16 %v1685, %v1684
    %v2048 = vpack.c.b16 %v1687, %v1686
    %v2049 = vpack.c.b16 %v1689, %v1688
    %v2050 = vpack.c.b16 %v1691, %v1690
    %v2051 = vpack.c.b16 %v1693, %v1692
    %v2052 = vpack.c.b16 %v1695, %v1694
    %v2053 = vpack.c.b16 %v1697, %v1696
    %v2054 = vpack.c.b16 %v1699, %v1698
    %v2055 = vpack.c.b16 %v1701, %v1700
    %v2056 = vpack.c.b16 %v1703, %v1702
    %v2057 = vpack.c.b16 %v1705, %v1704
    %v2058 = vpack.c.b16 %v1707, %v1706
    %v2059 = vpack.c.b16 %v1709, %v1708
    %v2060 = vpack.c.b16 %v1711, %v1710
    %v2061 = vpack.c.b16 %v1713, %v1712
    %v2062 = vpack.c.b16 %v1715, %v1714
    %v2063 = vpack.c.b16 %v1717, %v1716
    %v2064 = vpack.c.b16 %v1719, %v1718
    %v2065 = vpack.c.b16 %v1721, %v1720
    %v2066 = vpack.c.b16 %v1723, %v1722
    %v2067 = vpack.c.b16 %v1725, %v1724
    %v2068 = vpack.c.b16 %v1727, %v1726
    %v2069 = vpack.c.b16 %v1729, %v1728
    %v2070 = vpack.c.b16 %v1731, %v1730
    %v2071 = vpack.c.b16 %v1733, %v1732
    %v2072 = vpack.c.b16 %v1735, %v1734
    %v2073 = vpack.c.b16 %v1737, %v1736
    %v2074 = vpack.c.b16 %v1739, %v1738
    %v2075 = vpack.c.b16 %v1741, %v1740
    %v2076 = vpack.c.b16 %v1743, %v1742
    %v2077 = vpack.c.b16 %v1745, %v1744
    %v2078 = vpack.c.b16 %v1747, %v1746
    %v2079 = vpack.c.b16 %v1749, %v1748
    %v2080 = vpack.c.b16 %v1751, %v1750
    %v2081 = vpack.c.b16 %v1753, %v1752
    %v2082 = vpack.c.b16 %v1755, %v1754
    %v2083 = vpack.c.b16 %v1757, %v1756
    %v2084 = vpack.c.b16 %v1759, %v1758
    %v2085 = vpack.c.b16 %v1761, %v1760
    %v2086 = vpack.c.b16 %v1763, %v1762
    %v2087 = vpack.c.b16 %v1765, %v1764
    %v2088 = vpack.c.b16 %v1767, %v1766
    %v2089 = vpack.c.b16 %v1769, %v1768
    %v2090 = vpack.c.b16 %v1771, %v1770
    %v2091 = vpack.c.b16 %v1773, %v1772
    %v2092 = vpack.c.b16 %v1775, %v1774
    %v2093 = vpack.c.b16 %v1777, %v1776
    %v2094 = vpack.c.b16 %v1779, %v1778
    %v2095 = vpack.c.b16 %v1781, %v1780
    %v2096 = vpack.c.b16 %v1783, %v1782
    %v2097 = vpack.c.b16 %v1785, %v1784
    %v2098 = vpack.c.b16 %v1787, %v1786
    %v2099 = vpack.c.b16 %v1789, %v1788
    %v2100 = vpack.c.b16 %v1791, %v1790
    %v2101 = vpack.c.b16 %v1793, %v1792
    %v2102 = vpack.c.b16 %v1795, %v1794
    %v2103 = vpack.c.b16 %v1797, %v1796
    %v2104 = vpack.c.b16 %v1799, %v1798
    %v2105 = vpack.c.b16 %v1801, %v1800
    %v2106 = vpack.c.b16 %v1803, %v1802
    %v2107 = vpack.c.b16 %v1805, %v1804
    %v2108 = vpack.c.b16 %v1807, %v1806
    %v2109 = vpack.c.b16 %v1809, %v1808
    %v2110 = vpack.c.b16 %v1811, %v1810
    %v2111 = vpack.c.b16 %v1813, %v1812
    %v2112 = vpack.c.b16 %v1815, %v1814
    %v2113 = vpack.c.b16 %v1817, %v1816
    %v2114 = vpack.c.b16 %v1819, %v1818
    %v2115 = vpack.c.b16 %v1821, %v1820
    %v2116 = vpack.c.b16 %v1823, %v1822
    %v2117 = vpack.c.b16 %v1825, %v1824
    %v2118 = vpack.c.b16 %v1827, %v1826
    %v2119 = vpack.c.b16 %v1829, %v1828
    %v2120 = vpack.c.b16 %v1831, %v1830
    %v2121 = vpack.c.b16 %v1833, %v1832
    %2410 = vmatpush.bf16.msra.mxu0 %v1841
    %2411 = vmatpush.bf16.msra.mxu0 %v1840
    %2412 = vmatpush.bf16.msra.mxu0 %v1839
    %2413 = vmatpush.bf16.msra.mxu0 %v1838
    %2414 = vmatpush.bf16.msra.mxu0 %v1837
    %2415 = vmatpush.bf16.msra.mxu0 %v1836
    %2416 = vmatpush.bf16.msra.mxu0 %v1835
    %2417 = vmatpush.bf16.msra.mxu0 %v1834
    %2418 = vmatmul.bf16.gmra.mxu0 %v602
    %v2419 = vpop.f32.mrf.mxu0
    %v2420 = vadd.f32 %v598, %v2419
    %v2421 = vpop.f32.mrf.mxu0
    %2422 = vdwg.mxu0
    %2423 = vmatpush.bf16.msra.mxu0 %v1849
    %2424 = vmatpush.bf16.msra.mxu0 %v1848
    %2425 = vmatpush.bf16.msra.mxu0 %v1847
    %2426 = vmatpush.bf16.msra.mxu0 %v1846
    %2427 = vmatpush.bf16.msra.mxu0 %v1845
    %2428 = vmatpush.bf16.msra.mxu0 %v1844
    %2429 = vmatpush.bf16.msra.mxu0 %v1843
    %2430 = vmatpush.bf16.msra.mxu0 %v1842
    %2431 = vmatmul.bf16.gmra.mxu0 %v603
    %v2432 = vpop.f32.mrf.mxu0
    %v2433 = vadd.f32 %v2420, %v2432
    %v2434 = vpop.f32.mrf.mxu0
    %2435 = vdwg.mxu0
    %2436 = vmatpush.bf16.msra.mxu0 %v1857
    %2437 = vmatpush.bf16.msra.mxu0 %v1856
    %2438 = vmatpush.bf16.msra.mxu0 %v1855
    %2439 = vmatpush.bf16.msra.mxu0 %v1854
    %2440 = vmatpush.bf16.msra.mxu0 %v1853
    %2441 = vmatpush.bf16.msra.mxu0 %v1852
    %2442 = vmatpush.bf16.msra.mxu0 %v1851
    %2443 = vmatpush.bf16.msra.mxu0 %v1850
    %2444 = vmatmul.bf16.gmra.mxu0 %v604
    %v2445 = vpop.f32.mrf.mxu0
    %v2446 = vadd.f32 %v2433, %v2445
    %v2447 = vpop.f32.mrf.mxu0
    %2448 = vdwg.mxu0
    %2449 = vmatpush.bf16.msra.mxu0 %v1865
    %2450 = vmatpush.bf16.msra.mxu0 %v1864
    %2451 = vmatpush.bf16.msra.mxu0 %v1863
    %2452 = vmatpush.bf16.msra.mxu0 %v1862
    %2453 = vmatpush.bf16.msra.mxu0 %v1861
    %2454 = vmatpush.bf16.msra.mxu0 %v1860
    %2455 = vmatpush.bf16.msra.mxu0 %v1859
    %2456 = vmatpush.bf16.msra.mxu0 %v1858
    %2457 = vmatmul.bf16.gmra.mxu0 %v605
    %v2458 = vpop.f32.mrf.mxu0
    %v2459 = vadd.f32 %v2446, %v2458
    %v2460 = vpop.f32.mrf.mxu0
    %2461 = vdwg.mxu0
    %2462 = vmatpush.bf16.msra.mxu0 %v1873
    %2463 = vmatpush.bf16.msra.mxu0 %v1872
    %2464 = vmatpush.bf16.msra.mxu0 %v1871
    %2465 = vmatpush.bf16.msra.mxu0 %v1870
    %2466 = vmatpush.bf16.msra.mxu0 %v1869
    %2467 = vmatpush.bf16.msra.mxu0 %v1868
    %2468 = vmatpush.bf16.msra.mxu0 %v1867
    %2469 = vmatpush.bf16.msra.mxu0 %v1866
    %2470 = vmatmul.bf16.gmra.mxu0 %v606
    %v2471 = vpop.f32.mrf.mxu0
    %v2472 = vadd.f32 %v2459, %v2471
    %v2473 = vpop.f32.mrf.mxu0
    %2474 = vdwg.mxu0
    %2475 = vmatpush.bf16.msra.mxu0 %v1881
    %2476 = vmatpush.bf16.msra.mxu0 %v1880
    %2477 = vmatpush.bf16.msra.mxu0 %v1879
    %2478 = vmatpush.bf16.msra.mxu0 %v1878
    %2479 = vmatpush.bf16.msra.mxu0 %v1877
    %2480 = vmatpush.bf16.msra.mxu0 %v1876
    %2481 = vmatpush.bf16.msra.mxu0 %v1875
    %2482 = vmatpush.bf16.msra.mxu0 %v1874
    %2483 = vmatmul.bf16.gmra.mxu0 %v607
    %v2484 = vpop.f32.mrf.mxu0
    %v2485 = vadd.f32 %v2472, %v2484
    %v2486 = vpop.f32.mrf.mxu0
    %2487 = vdwg.mxu0
    %2488 = vmatpush.bf16.msra.mxu0 %v1889
    %2489 = vmatpush.bf16.msra.mxu0 %v1888
    %2490 = vmatpush.bf16.msra.mxu0 %v1887
    %2491 = vmatpush.bf16.msra.mxu0 %v1886
    %2492 = vmatpush.bf16.msra.mxu0 %v1885
    %2493 = vmatpush.bf16.msra.mxu0 %v1884
    %2494 = vmatpush.bf16.msra.mxu0 %v1883
    %2495 = vmatpush.bf16.msra.mxu0 %v1882
    %2496 = vmatmul.bf16.gmra.mxu0 %v608
    %v2497 = vpop.f32.mrf.mxu0
    %v2498 = vadd.f32 %v2485, %v2497
    %v2499 = vpop.f32.mrf.mxu0
    %2500 = vdwg.mxu0
    %2501 = vmatpush.bf16.msra.mxu0 %v1897
    %2502 = vmatpush.bf16.msra.mxu0 %v1896
    %2503 = vmatpush.bf16.msra.mxu0 %v1895
    %2504 = vmatpush.bf16.msra.mxu0 %v1894
    %2505 = vmatpush.bf16.msra.mxu0 %v1893
    %2506 = vmatpush.bf16.msra.mxu0 %v1892
    %2507 = vmatpush.bf16.msra.mxu0 %v1891
    %2508 = vmatpush.bf16.msra.mxu0 %v1890
    %2509 = vmatmul.bf16.gmra.mxu0 %v609
    %v2510 = vpop.f32.mrf.mxu0
    %v2511 = vadd.f32 %v2498, %v2510
    %v2512 = vpop.f32.mrf.mxu0
    %2513 = vdwg.mxu0
    %2514 = vmatpush.bf16.msra.mxu0 %v1905
    %2515 = vmatpush.bf16.msra.mxu0 %v1904
    %2516 = vmatpush.bf16.msra.mxu0 %v1903
    %2517 = vmatpush.bf16.msra.mxu0 %v1902
    %2518 = vmatpush.bf16.msra.mxu0 %v1901
    %2519 = vmatpush.bf16.msra.mxu0 %v1900
    %2520 = vmatpush.bf16.msra.mxu0 %v1899
    %2521 = vmatpush.bf16.msra.mxu0 %v1898
    %2522 = vmatmul.bf16.gmra.mxu0 %v612
    %v2523 = vpop.f32.mrf.mxu0
    %v2524 = vadd.f32 %v2511, %v2523
    %v2525 = vpop.f32.mrf.mxu0
    %2526 = vdwg.mxu0
    %2527 = vmatpush.bf16.msra.mxu0 %v1913
    %2528 = vmatpush.bf16.msra.mxu0 %v1912
    %2529 = vmatpush.bf16.msra.mxu0 %v1911
    %2530 = vmatpush.bf16.msra.mxu0 %v1910
    %2531 = vmatpush.bf16.msra.mxu0 %v1909
    %2532 = vmatpush.bf16.msra.mxu0 %v1908
    %2533 = vmatpush.bf16.msra.mxu0 %v1907
    %2534 = vmatpush.bf16.msra.mxu0 %v1906
    %2535 = vmatmul.bf16.gmra.mxu0 %v613
    %v2536 = vpop.f32.mrf.mxu0
    %v2537 = vadd.f32 %v2524, %v2536
    %v2538 = vpop.f32.mrf.mxu0
    %2539 = vdwg.mxu0
    %2540 = vmatpush.bf16.msra.mxu0 %v1921
    %2541 = vmatpush.bf16.msra.mxu0 %v1920
    %2542 = vmatpush.bf16.msra.mxu0 %v1919
    %2543 = vmatpush.bf16.msra.mxu0 %v1918
    %2544 = vmatpush.bf16.msra.mxu0 %v1917
    %2545 = vmatpush.bf16.msra.mxu0 %v1916
    %2546 = vmatpush.bf16.msra.mxu0 %v1915
    %2547 = vmatpush.bf16.msra.mxu0 %v1914
    %2548 = vmatmul.bf16.gmra.mxu0 %v614
    %v2549 = vpop.f32.mrf.mxu0
    %v2550 = vadd.f32 %v2537, %v2549
    %v2551 = vpop.f32.mrf.mxu0
    %2552 = vdwg.mxu0
    %2553 = vmatpush.bf16.msra.mxu0 %v1929
    %2554 = vmatpush.bf16.msra.mxu0 %v1928
    %2555 = vmatpush.bf16.msra.mxu0 %v1927
    %2556 = vmatpush.bf16.msra.mxu0 %v1926
    %2557 = vmatpush.bf16.msra.mxu0 %v1925
    %2558 = vmatpush.bf16.msra.mxu0 %v1924
    %2559 = vmatpush.bf16.msra.mxu0 %v1923
    %2560 = vmatpush.bf16.msra.mxu0 %v1922
    %2561 = vmatmul.bf16.gmra.mxu0 %v615
    %v2562 = vpop.f32.mrf.mxu0
    %v2563 = vadd.f32 %v2550, %v2562
    %v2564 = vpop.f32.mrf.mxu0
    %2565 = vdwg.mxu0
    %2566 = vmatpush.bf16.msra.mxu0 %v1937
    %2567 = vmatpush.bf16.msra.mxu0 %v1936
    %2568 = vmatpush.bf16.msra.mxu0 %v1935
    %2569 = vmatpush.bf16.msra.mxu0 %v1934
    %2570 = vmatpush.bf16.msra.mxu0 %v1933
    %2571 = vmatpush.bf16.msra.mxu0 %v1932
    %2572 = vmatpush.bf16.msra.mxu0 %v1931
    %2573 = vmatpush.bf16.msra.mxu0 %v1930
    %2574 = vmatmul.bf16.gmra.mxu0 %v616
    %v2575 = vpop.f32.mrf.mxu0
    %v2576 = vadd.f32 %v2563, %v2575
    %v2577 = vpop.f32.mrf.mxu0
    %2578 = vdwg.mxu0
    %2579 = vmatpush.bf16.msra.mxu0 %v1945
    %2580 = vmatpush.bf16.msra.mxu0 %v1944
    %2581 = vmatpush.bf16.msra.mxu0 %v1943
    %2582 = vmatpush.bf16.msra.mxu0 %v1942
    %2583 = vmatpush.bf16.msra.mxu0 %v1941
    %2584 = vmatpush.bf16.msra.mxu0 %v1940
    %2585 = vmatpush.bf16.msra.mxu0 %v1939
    %2586 = vmatpush.bf16.msra.mxu0 %v1938
    %2587 = vmatmul.bf16.gmra.mxu0 %v617
    %v2588 = vpop.f32.mrf.mxu0
    %v2589 = vadd.f32 %v2576, %v2588
    %v2590 = vpop.f32.mrf.mxu0
    %2591 = vdwg.mxu0
    %2592 = vmatpush.bf16.msra.mxu0 %v1953
    %2593 = vmatpush.bf16.msra.mxu0 %v1952
    %2594 = vmatpush.bf16.msra.mxu0 %v1951
    %2595 = vmatpush.bf16.msra.mxu0 %v1950
    %2596 = vmatpush.bf16.msra.mxu0 %v1949
    %2597 = vmatpush.bf16.msra.mxu0 %v1948
    %2598 = vmatpush.bf16.msra.mxu0 %v1947
    %2599 = vmatpush.bf16.msra.mxu0 %v1946
    %2600 = vmatmul.bf16.gmra.mxu0 %v618
    %v2601 = vpop.f32.mrf.mxu0
    %v2602 = vadd.f32 %v2589, %v2601
    %v2603 = vpop.f32.mrf.mxu0
    %2604 = vdwg.mxu0
    %2605 = vmatpush.bf16.msra.mxu0 %v1961
    %2606 = vmatpush.bf16.msra.mxu0 %v1960
    %2607 = vmatpush.bf16.msra.mxu0 %v1959
    %2608 = vmatpush.bf16.msra.mxu0 %v1958
    %2609 = vmatpush.bf16.msra.mxu0 %v1957
    %2610 = vmatpush.bf16.msra.mxu0 %v1956
    %2611 = vmatpush.bf16.msra.mxu0 %v1955
    %2612 = vmatpush.bf16.msra.mxu0 %v1954
    %2613 = vmatmul.bf16.gmra.mxu0 %v619
    %v2614 = vpop.f32.mrf.mxu0
    %v2615 = vadd.f32 %v2602, %v2614
    %v2616 = vpop.f32.mrf.mxu0
    %2617 = vdwg.mxu0
    %2618 = vmatpush.bf16.msra.mxu0 %v1969
    %2619 = vmatpush.bf16.msra.mxu0 %v1968
    %2620 = vmatpush.bf16.msra.mxu0 %v1967
    %2621 = vmatpush.bf16.msra.mxu0 %v1966
    %2622 = vmatpush.bf16.msra.mxu0 %v1965
    %2623 = vmatpush.bf16.msra.mxu0 %v1964
    %2624 = vmatpush.bf16.msra.mxu0 %v1963
    %2625 = vmatpush.bf16.msra.mxu0 %v1962
    %2626 = vmatmul.bf16.gmra.mxu0 %v622
    %v2627 = vpop.f32.mrf.mxu0
    %v2628 = vadd.f32 %v2615, %v2627
    %v2629 = vpop.f32.mrf.mxu0
    %2630 = vdwg.mxu0
    %2631 = vmatpush.bf16.msra.mxu0 %v1977
    %2632 = vmatpush.bf16.msra.mxu0 %v1976
    %2633 = vmatpush.bf16.msra.mxu0 %v1975
    %2634 = vmatpush.bf16.msra.mxu0 %v1974
    %2635 = vmatpush.bf16.msra.mxu0 %v1973
    %2636 = vmatpush.bf16.msra.mxu0 %v1972
    %2637 = vmatpush.bf16.msra.mxu0 %v1971
    %2638 = vmatpush.bf16.msra.mxu0 %v1970
    %2639 = vmatmul.bf16.gmra.mxu0 %v623
    %v2640 = vpop.f32.mrf.mxu0
    %v2641 = vadd.f32 %v2628, %v2640
    %v2642 = vpop.f32.mrf.mxu0
    %2643 = vdwg.mxu0
    %2644 = vmatpush.bf16.msra.mxu0 %v1985
    %2645 = vmatpush.bf16.msra.mxu0 %v1984
    %2646 = vmatpush.bf16.msra.mxu0 %v1983
    %2647 = vmatpush.bf16.msra.mxu0 %v1982
    %2648 = vmatpush.bf16.msra.mxu0 %v1981
    %2649 = vmatpush.bf16.msra.mxu0 %v1980
    %2650 = vmatpush.bf16.msra.mxu0 %v1979
    %2651 = vmatpush.bf16.msra.mxu0 %v1978
    %2652 = vmatmul.bf16.gmra.mxu0 %v624
    %v2653 = vpop.f32.mrf.mxu0
    %v2654 = vadd.f32 %v2641, %v2653
    %v2655 = vpop.f32.mrf.mxu0
    %2656 = vdwg.mxu0
    %2657 = vmatpush.bf16.msra.mxu0 %v1993
    %2658 = vmatpush.bf16.msra.mxu0 %v1992
    %2659 = vmatpush.bf16.msra.mxu0 %v1991
    %2660 = vmatpush.bf16.msra.mxu0 %v1990
    %2661 = vmatpush.bf16.msra.mxu0 %v1989
    %2662 = vmatpush.bf16.msra.mxu0 %v1988
    %2663 = vmatpush.bf16.msra.mxu0 %v1987
    %2664 = vmatpush.bf16.msra.mxu0 %v1986
    %2665 = vmatmul.bf16.gmra.mxu0 %v625
    %v2666 = vpop.f32.mrf.mxu0
    %v2667 = vadd.f32 %v2654, %v2666
    %v2668 = vpop.f32.mrf.mxu0
    %2669 = vdwg.mxu0
    %2670 = vmatpush.bf16.msra.mxu0 %v2001
    %2671 = vmatpush.bf16.msra.mxu0 %v2000
    %2672 = vmatpush.bf16.msra.mxu0 %v1999
    %2673 = vmatpush.bf16.msra.mxu0 %v1998
    %2674 = vmatpush.bf16.msra.mxu0 %v1997
    %2675 = vmatpush.bf16.msra.mxu0 %v1996
    %2676 = vmatpush.bf16.msra.mxu0 %v1995
    %2677 = vmatpush.bf16.msra.mxu0 %v1994
    %2678 = vmatmul.bf16.gmra.mxu0 %v626
    %v2679 = vpop.f32.mrf.mxu0
    %v2680 = vadd.f32 %v2667, %v2679
    %v2681 = vpop.f32.mrf.mxu0
    %2682 = vdwg.mxu0
    %2683 = vmatpush.bf16.msra.mxu0 %v2009
    %2684 = vmatpush.bf16.msra.mxu0 %v2008
    %2685 = vmatpush.bf16.msra.mxu0 %v2007
    %2686 = vmatpush.bf16.msra.mxu0 %v2006
    %2687 = vmatpush.bf16.msra.mxu0 %v2005
    %2688 = vmatpush.bf16.msra.mxu0 %v2004
    %2689 = vmatpush.bf16.msra.mxu0 %v2003
    %2690 = vmatpush.bf16.msra.mxu0 %v2002
    %2691 = vmatmul.bf16.gmra.mxu0 %v627
    %v2692 = vpop.f32.mrf.mxu0
    %v2693 = vadd.f32 %v2680, %v2692
    %v2694 = vpop.f32.mrf.mxu0
    %2695 = vdwg.mxu0
    %2696 = vmatpush.bf16.msra.mxu0 %v2017
    %2697 = vmatpush.bf16.msra.mxu0 %v2016
    %2698 = vmatpush.bf16.msra.mxu0 %v2015
    %2699 = vmatpush.bf16.msra.mxu0 %v2014
    %2700 = vmatpush.bf16.msra.mxu0 %v2013
    %2701 = vmatpush.bf16.msra.mxu0 %v2012
    %2702 = vmatpush.bf16.msra.mxu0 %v2011
    %2703 = vmatpush.bf16.msra.mxu0 %v2010
    %2704 = vmatmul.bf16.gmra.mxu0 %v628
    %v2705 = vpop.f32.mrf.mxu0
    %v2706 = vadd.f32 %v2693, %v2705
    %v2707 = vpop.f32.mrf.mxu0
    %2708 = vdwg.mxu0
    %2709 = vmatpush.bf16.msra.mxu0 %v2025
    %2710 = vmatpush.bf16.msra.mxu0 %v2024
    %2711 = vmatpush.bf16.msra.mxu0 %v2023
    %2712 = vmatpush.bf16.msra.mxu0 %v2022
    %2713 = vmatpush.bf16.msra.mxu0 %v2021
    %2714 = vmatpush.bf16.msra.mxu0 %v2020
    %2715 = vmatpush.bf16.msra.mxu0 %v2019
    %2716 = vmatpush.bf16.msra.mxu0 %v2018
    %2717 = vmatmul.bf16.gmra.mxu0 %v629
    %v2718 = vpop.f32.mrf.mxu0
    %v2719 = vadd.f32 %v2706, %v2718
    %v2720 = vpop.f32.mrf.mxu0
    %2721 = vdwg.mxu0
    %2722 = vmatpush.bf16.msra.mxu0 %v2033
    %2723 = vmatpush.bf16.msra.mxu0 %v2032
    %2724 = vmatpush.bf16.msra.mxu0 %v2031
    %2725 = vmatpush.bf16.msra.mxu0 %v2030
    %2726 = vmatpush.bf16.msra.mxu0 %v2029
    %2727 = vmatpush.bf16.msra.mxu0 %v2028
    %2728 = vmatpush.bf16.msra.mxu0 %v2027
    %2729 = vmatpush.bf16.msra.mxu0 %v2026
    %2730 = vmatmul.bf16.gmra.mxu0 %v632
    %v2731 = vpop.f32.mrf.mxu0
    %v2732 = vadd.f32 %v2719, %v2731
    %v2733 = vpop.f32.mrf.mxu0
    %2734 = vdwg.mxu0
    %2735 = vmatpush.bf16.msra.mxu0 %v2041
    %2736 = vmatpush.bf16.msra.mxu0 %v2040
    %2737 = vmatpush.bf16.msra.mxu0 %v2039
    %2738 = vmatpush.bf16.msra.mxu0 %v2038
    %2739 = vmatpush.bf16.msra.mxu0 %v2037
    %2740 = vmatpush.bf16.msra.mxu0 %v2036
    %2741 = vmatpush.bf16.msra.mxu0 %v2035
    %2742 = vmatpush.bf16.msra.mxu0 %v2034
    %2743 = vmatmul.bf16.gmra.mxu0 %v633
    %v2744 = vpop.f32.mrf.mxu0
    %v2745 = vadd.f32 %v2732, %v2744
    %v2746 = vpop.f32.mrf.mxu0
    %2747 = vdwg.mxu0
    %2748 = vmatpush.bf16.msra.mxu0 %v2049
    %2749 = vmatpush.bf16.msra.mxu0 %v2048
    %2750 = vmatpush.bf16.msra.mxu0 %v2047
    %2751 = vmatpush.bf16.msra.mxu0 %v2046
    %2752 = vmatpush.bf16.msra.mxu0 %v2045
    %2753 = vmatpush.bf16.msra.mxu0 %v2044
    %2754 = vmatpush.bf16.msra.mxu0 %v2043
    %2755 = vmatpush.bf16.msra.mxu0 %v2042
    %2756 = vmatmul.bf16.gmra.mxu0 %v634
    %v2757 = vpop.f32.mrf.mxu0
    %v2758 = vadd.f32 %v2745, %v2757
    %v2759 = vpop.f32.mrf.mxu0
    %2760 = vdwg.mxu0
    %2761 = vmatpush.bf16.msra.mxu0 %v2057
    %2762 = vmatpush.bf16.msra.mxu0 %v2056
    %2763 = vmatpush.bf16.msra.mxu0 %v2055
    %2764 = vmatpush.bf16.msra.mxu0 %v2054
    %2765 = vmatpush.bf16.msra.mxu0 %v2053
    %2766 = vmatpush.bf16.msra.mxu0 %v2052
    %2767 = vmatpush.bf16.msra.mxu0 %v2051
    %2768 = vmatpush.bf16.msra.mxu0 %v2050
    %2769 = vmatmul.bf16.gmra.mxu0 %v635
    %v2770 = vpop.f32.mrf.mxu0
    %v2771 = vadd.f32 %v2758, %v2770
    %v2772 = vpop.f32.mrf.mxu0
    %2773 = vdwg.mxu0
    %2774 = vmatpush.bf16.msra.mxu0 %v2065
    %2775 = vmatpush.bf16.msra.mxu0 %v2064
    %2776 = vmatpush.bf16.msra.mxu0 %v2063
    %2777 = vmatpush.bf16.msra.mxu0 %v2062
    %2778 = vmatpush.bf16.msra.mxu0 %v2061
    %2779 = vmatpush.bf16.msra.mxu0 %v2060
    %2780 = vmatpush.bf16.msra.mxu0 %v2059
    %2781 = vmatpush.bf16.msra.mxu0 %v2058
    %2782 = vmatmul.bf16.gmra.mxu0 %v636
    %v2783 = vpop.f32.mrf.mxu0
    %v2784 = vadd.f32 %v2771, %v2783
    %v2785 = vpop.f32.mrf.mxu0
    %2786 = vdwg.mxu0
    %2787 = vmatpush.bf16.msra.mxu0 %v2073
    %2788 = vmatpush.bf16.msra.mxu0 %v2072
    %2789 = vmatpush.bf16.msra.mxu0 %v2071
    %2790 = vmatpush.bf16.msra.mxu0 %v2070
    %2791 = vmatpush.bf16.msra.mxu0 %v2069
    %2792 = vmatpush.bf16.msra.mxu0 %v2068
    %2793 = vmatpush.bf16.msra.mxu0 %v2067
    %2794 = vmatpush.bf16.msra.mxu0 %v2066
    %2795 = vmatmul.bf16.gmra.mxu0 %v637
    %v2796 = vpop.f32.mrf.mxu0
    %v2797 = vadd.f32 %v2784, %v2796
    %v2798 = vpop.f32.mrf.mxu0
    %2799 = vdwg.mxu0
    %2800 = vmatpush.bf16.msra.mxu0 %v2081
    %2801 = vmatpush.bf16.msra.mxu0 %v2080
    %2802 = vmatpush.bf16.msra.mxu0 %v2079
    %2803 = vmatpush.bf16.msra.mxu0 %v2078
    %2804 = vmatpush.bf16.msra.mxu0 %v2077
    %2805 = vmatpush.bf16.msra.mxu0 %v2076
    %2806 = vmatpush.bf16.msra.mxu0 %v2075
    %2807 = vmatpush.bf16.msra.mxu0 %v2074
    %2808 = vmatmul.bf16.gmra.mxu0 %v638
    %v2809 = vpop.f32.mrf.mxu0
    %v2810 = vadd.f32 %v2797, %v2809
    %v2811 = vpop.f32.mrf.mxu0
    %2812 = vdwg.mxu0
    %2813 = vmatpush.bf16.msra.mxu0 %v2089
    %2814 = vmatpush.bf16.msra.mxu0 %v2088
    %2815 = vmatpush.bf16.msra.mxu0 %v2087
    %2816 = vmatpush.bf16.msra.mxu0 %v2086
    %2817 = vmatpush.bf16.msra.mxu0 %v2085
    %2818 = vmatpush.bf16.msra.mxu0 %v2084
    %2819 = vmatpush.bf16.msra.mxu0 %v2083
    %2820 = vmatpush.bf16.msra.mxu0 %v2082
    %2821 = vmatmul.bf16.gmra.mxu0 %v639
    %v2822 = vpop.f32.mrf.mxu0
    %v2823 = vadd.f32 %v2810, %v2822
    %v2824 = vpop.f32.mrf.mxu0
    %2825 = vdwg.mxu0
    %2826 = vmatpush.bf16.msra.mxu0 %v2097
    %2827 = vmatpush.bf16.msra.mxu0 %v2096
    %2828 = vmatpush.bf16.msra.mxu0 %v2095
    %2829 = vmatpush.bf16.msra.mxu0 %v2094
    %2830 = vmatpush.bf16.msra.mxu0 %v2093
    %2831 = vmatpush.bf16.msra.mxu0 %v2092
    %2832 = vmatpush.bf16.msra.mxu0 %v2091
    %2833 = vmatpush.bf16.msra.mxu0 %v2090
    %2834 = vmatmul.bf16.gmra.mxu0 %v642
    %v2835 = vpop.f32.mrf.mxu0
    %v2836 = vadd.f32 %v2823, %v2835
    %v2837 = vpop.f32.mrf.mxu0
    %2838 = vdwg.mxu0
    %2839 = vmatpush.bf16.msra.mxu0 %v2105
    %2840 = vmatpush.bf16.msra.mxu0 %v2104
    %2841 = vmatpush.bf16.msra.mxu0 %v2103
    %2842 = vmatpush.bf16.msra.mxu0 %v2102
    %2843 = vmatpush.bf16.msra.mxu0 %v2101
    %2844 = vmatpush.bf16.msra.mxu0 %v2100
    %2845 = vmatpush.bf16.msra.mxu0 %v2099
    %2846 = vmatpush.bf16.msra.mxu0 %v2098
    %2847 = vmatmul.bf16.gmra.mxu0 %v643
    %v2848 = vpop.f32.mrf.mxu0
    %v2849 = vadd.f32 %v2836, %v2848
    %v2850 = vpop.f32.mrf.mxu0
    %2851 = vdwg.mxu0
    %2852 = vmatpush.bf16.msra.mxu0 %v2113
    %2853 = vmatpush.bf16.msra.mxu0 %v2112
    %2854 = vmatpush.bf16.msra.mxu0 %v2111
    %2855 = vmatpush.bf16.msra.mxu0 %v2110
    %2856 = vmatpush.bf16.msra.mxu0 %v2109
    %2857 = vmatpush.bf16.msra.mxu0 %v2108
    %2858 = vmatpush.bf16.msra.mxu0 %v2107
    %2859 = vmatpush.bf16.msra.mxu0 %v2106
    %2860 = vmatmul.bf16.gmra.mxu0 %v644
    %v2861 = vpop.f32.mrf.mxu0
    %v2862 = vadd.f32 %v2849, %v2861
    %v2863 = vpop.f32.mrf.mxu0
    %2864 = vdwg.mxu0
    %2865 = vmatpush.bf16.msra.mxu0 %v2121
    %2866 = vmatpush.bf16.msra.mxu0 %v2120
    %2867 = vmatpush.bf16.msra.mxu0 %v2119
    %2868 = vmatpush.bf16.msra.mxu0 %v2118
    %2869 = vmatpush.bf16.msra.mxu0 %v2117
    %2870 = vmatpush.bf16.msra.mxu0 %v2116
    %2871 = vmatpush.bf16.msra.mxu0 %v2115
    %2872 = vmatpush.bf16.msra.mxu0 %v2114
    %2873 = vmatmul.bf16.gmra.mxu0 %v645
    %v2874 = vpop.f32.mrf.mxu0
    %v2875 = vadd.f32 %v2862, %v2874
    %v2876 = vpop.f32.mrf.mxu0
    %2877 = vdwg.mxu0
    %2878 = vst [vmem:[#allocation2] sm:$0x3] %v2875
    // Predicated region
    $region14: #{cnn_forward.5} parent=1 // pred_check
      _
    $region15: #{cnn_forward.5} parent=1 // pred_check_branch
      %2880 = sbr.rel (0) target = $region17
    $region16: #{cnn_forward.5} parent=1 // pred_region
      %2882 = vsyncadd [#allocation3], 0
      %s2884 = sshll.u32 [#allocation2], 4
      %s2885 = int_to_ptr.vmem [resolvable:$true] %s2884
      %s2886 = sshll.u32 %s3, 4
      %s2887 = int_to_ptr.hbm [resolvable:$true] %s2886
      %2889 = dma.vmem_to_hbm [thread:$0]  %s2885, 32, %s2887, [#allocation3]
    $region17: #{cnn_forward.5} parent=1 // pred_fallthru
      _
    // Predicated region
    $region18: #{cnn_forward.5} parent=1 // pred_check
      _
    $region19: #{cnn_forward.5} parent=1 // pred_check_branch
      %2891 = sbr.rel (0) target = $region21
    $region20: #{cnn_forward.5} parent=1 // pred_region
      %2893 = dma.done [#allocation3], 32
    $region21: #{cnn_forward.5} parent=1 // pred_fallthru
      _
    %2894 = vsyncpa [#allocation3], 1

// kernel: cnn_forward.4
$region0: #{cnn_forward.4}
  #allocation0 [shape = 'u32[]', space=smem, size = 0x4, offset = 0x4, fixed_abs, tag = 'smem constant byte address 0x4 - core index']
  #allocation1 [shape = 'u32[72,128]{1,0:T(1,128)}', space=vmem, size = 0x9000, scoped, tag = 'internal scratch']
  %s0 = inlined_call_operand.vmem [shape: bf16[2,3,28,640], index: 0, kind: input, shape index: {}]
  %s1 = inlined_call_operand.vmem [shape: bf16[5,640,256], index: 1, kind: input, shape index: {}]
  %s2 = inlined_call_operand.vmem [shape: f32[1,128], index: 2, kind: input, shape index: {}]
  %s3 = inlined_call_operand.vmem [shape: bf16[12,24], index: 3, kind: input, shape index: {}]
  %s4 = inlined_call_operand.vmem [shape: bf16[12,24], index: 4, kind: input, shape index: {}]
  %s5 = inlined_call_operand.vmem [shape: bf16[2,12,384], index: 5, kind: output, shape index: {}]
  %s6 = sld [smem:[#allocation0]]
  $region116: #{cnn_forward.4} parent=0
    _
  %s8 = ssub.s32 1, %s6
  %s9 = scalar_select 0, %s8, %s6
  $region1: #{cnn_forward.4} parent=0
    #allocation2 [shape = 'u8[163840]{0}', space=vmem, size = 0x28000, scoped, tag = 'input window, operand 0']
    #allocation3 [shape = 'u8[16384]{0}', space=vmem, size = 0x4000, scoped, tag = 'output window, operand 0']
    loop: start=0, step=1, limit=5
    $region2: #{cnn_forward.4} parent=1 // loop_pre_header
      _
    $region3: #{cnn_forward.4} parent=1 // loop_header
      %s11 = sphi 0, %s15
      %p12 = scmp.ge.s32.totalorder %s11, 5
      %s18 = sphi 0, %s30
      %s19 = sphi 0, %s26
      %s20 = sphi 0, %s18
      %s21 = sphi 0, %s19
      %s22 = sphi 0, %s20
      %s23 = sphi 0, %s21
      %s35 = sphi 0, %s37
      %s38 = sphi 0, %s35
      %s39 = sphi 0, %s38
      %s55 = sphi 0, %s39
      %s59 = sphi 0, %s59
      %s61 = sphi 0, %s59
      %s62 = sphi 0, %s61
      %s76 = sphi 0, %s62
      %s80 = sphi 0, %s80
      %s82 = sphi 0, %s80
      %s83 = sphi 0, %s82
      %s97 = sphi 0, %s83
      %s101 = sphi 0, %s101
      %s103 = sphi 0, %s101
      %s104 = sphi 0, %s103
      %s118 = sphi 0, %s104
      %s122 = sphi 0, %s122
      %s124 = sphi 0, %s122
      %s125 = sphi 0, %s124
      %s139 = sphi 0, %s125
      %s147 = sphi 0, %s149
      %s150 = sphi 0, %s147
      %s151 = sphi 0, %s150
      %s167 = sphi 0, %s151
    $region4: #{cnn_forward.4} parent=1 // loop_header_branch
      %14 = sbr.rel (%p12) target = $region8
    $region5: #{cnn_forward.4} parent=1 // loop_body
      %s16 = ssub.s32 %s11, 1
      %s17 = ssub.s32 %s11, 2
      %s24 = sadd.s32 1, %s19
      %p25 = scmp.ge.s32.totalorder %s24, 1
      %s26 = scalar_select %p25, 0, %s24
      %s27 = sadd.s32 1, %s18
      %s28 = scalar_select %p25, %s27, %s18
      %p29 = scmp.ge.s32.totalorder %s28, 3
      %s30 = scalar_select %p29, 0, %s28
      %s31 = ssub.s32 %s19, %s26
      %s32 = ssub.s32 %s18, %s30
      %s33 = sor.u32 %s31, %s32
      %p34 = scmp.eq.s32.totalorder %s33, 0
      %s36 = sadd.s32 %s35, 1
      %s37 = scalar_select %p34, %s35, %s36
      %p40 = pneg %p34
      %p41 = scmp.eq.s32.totalorder %s11, 2
      %p42 = por %p40, %p41
      %p43 = scmp.ne.s32.totalorder %s35, %s38
      %p44 = scmp.eq.s32.totalorder %s11, 0
      %p45 = por %p43, %p44
      %p46 = scmp.ne.s32.totalorder %s35, %s38
      %p47 = scmp.eq.s32.totalorder %s16, 2
      %p48 = por %p46, %p47
      %p49 = scmp.ne.s32.totalorder %s38, %s39
      %p50 = scmp.eq.s32.totalorder %s16, 0
      %p51 = por %p49, %p50
      %p52 = scmp.ne.s32.totalorder %s38, %s39
      %p53 = scmp.eq.s32.totalorder %s17, 2
      %p54 = por %p52, %p53
      %p56 = scmp.ne.s32.totalorder %s39, %s55
      %p57 = scmp.eq.s32.totalorder %s17, 0
      %p58 = por %p56, %p57
      %s60 = sadd.s32 %s59, 1
      %p63 = scmp.eq.s32.totalorder %s11, 2
      %p64 = scmp.ne.s32.totalorder %s59, %s61
      %p65 = scmp.eq.s32.totalorder %s11, 0
      %p66 = por %p64, %p65
      %p67 = scmp.ne.s32.totalorder %s59, %s61
      %p68 = scmp.eq.s32.totalorder %s16, 2
      %p69 = por %p67, %p68
      %p70 = scmp.ne.s32.totalorder %s61, %s62
      %p71 = scmp.eq.s32.totalorder %s16, 0
      %p72 = por %p70, %p71
      %p73 = scmp.ne.s32.totalorder %s61, %s62
      %p74 = scmp.eq.s32.totalorder %s17, 2
      %p75 = por %p73, %p74
      %p77 = scmp.ne.s32.totalorder %s62, %s76
      %p78 = scmp.eq.s32.totalorder %s17, 0
      %p79 = por %p77, %p78
      %s81 = sadd.s32 %s80, 1
      %p84 = scmp.eq.s32.totalorder %s11, 2
      %p85 = scmp.ne.s32.totalorder %s80, %s82
      %p86 = scmp.eq.s32.totalorder %s11, 0
      %p87 = por %p85, %p86
      %p88 = scmp.ne.s32.totalorder %s80, %s82
      %p89 = scmp.eq.s32.totalorder %s16, 2
      %p90 = por %p88, %p89
      %p91 = scmp.ne.s32.totalorder %s82, %s83
      %p92 = scmp.eq.s32.totalorder %s16, 0
      %p93 = por %p91, %p92
      %p94 = scmp.ne.s32.totalorder %s82, %s83
      %p95 = scmp.eq.s32.totalorder %s17, 2
      %p96 = por %p94, %p95
      %p98 = scmp.ne.s32.totalorder %s83, %s97
      %p99 = scmp.eq.s32.totalorder %s17, 0
      %p100 = por %p98, %p99
      %s102 = sadd.s32 %s101, 1
      %p105 = scmp.eq.s32.totalorder %s11, 2
      %p106 = scmp.ne.s32.totalorder %s101, %s103
      %p107 = scmp.eq.s32.totalorder %s11, 0
      %p108 = por %p106, %p107
      %p109 = scmp.ne.s32.totalorder %s101, %s103
      %p110 = scmp.eq.s32.totalorder %s16, 2
      %p111 = por %p109, %p110
      %p112 = scmp.ne.s32.totalorder %s103, %s104
      %p113 = scmp.eq.s32.totalorder %s16, 0
      %p114 = por %p112, %p113
      %p115 = scmp.ne.s32.totalorder %s103, %s104
      %p116 = scmp.eq.s32.totalorder %s17, 2
      %p117 = por %p115, %p116
      %p119 = scmp.ne.s32.totalorder %s104, %s118
      %p120 = scmp.eq.s32.totalorder %s17, 0
      %p121 = por %p119, %p120
      %s123 = sadd.s32 %s122, 1
      %p126 = scmp.eq.s32.totalorder %s11, 2
      %p127 = scmp.ne.s32.totalorder %s122, %s124
      %p128 = scmp.eq.s32.totalorder %s11, 0
      %p129 = por %p127, %p128
      %p130 = scmp.ne.s32.totalorder %s122, %s124
      %p131 = scmp.eq.s32.totalorder %s16, 2
      %p132 = por %p130, %p131
      %p133 = scmp.ne.s32.totalorder %s124, %s125
      %p134 = scmp.eq.s32.totalorder %s16, 0
      %p135 = por %p133, %p134
      %p136 = scmp.ne.s32.totalorder %s124, %s125
      %p137 = scmp.eq.s32.totalorder %s17, 2
      %p138 = por %p136, %p137
      %p140 = scmp.ne.s32.totalorder %s125, %s139
      %p141 = scmp.eq.s32.totalorder %s17, 0
      %p142 = por %p140, %p141
      %s143 = ssub.s32 %s19, %s26
      %s144 = ssub.s32 %s18, %s30
      %s145 = sor.u32 %s143, %s144
      %p146 = scmp.eq.s32.totalorder %s145, 0
      %s148 = sadd.s32 %s147, 1
      %s149 = scalar_select %p146, %s147, %s148
      %p152 = pneg %p146
      %p153 = scmp.eq.s32.totalorder %s11, 2
      %p154 = por %p152, %p153
      %p155 = scmp.ne.s32.totalorder %s147, %s150
      %p156 = scmp.eq.s32.totalorder %s11, 0
      %p157 = por %p155, %p156
      %p158 = scmp.ne.s32.totalorder %s147, %s150
      %p159 = scmp.eq.s32.totalorder %s16, 2
      %p160 = por %p158, %p159
      %p161 = scmp.ne.s32.totalorder %s150, %s151
      %p162 = scmp.eq.s32.totalorder %s16, 0
      %p163 = por %p161, %p162
      %p164 = scmp.ne.s32.totalorder %s150, %s151
      %p165 = scmp.eq.s32.totalorder %s17, 2
      %p166 = por %p164, %p165
      %p168 = scmp.ne.s32.totalorder %s151, %s167
      %p169 = scmp.eq.s32.totalorder %s17, 0
      %p170 = por %p168, %p169
      %p171 = scmp.le.s32.totalorder 1, %s11
      %p172 = scmp.lt.s32.totalorder %s11, 4
      %p173 = pnand %p171, %p172
      %p174 = pneg %p173
      // Predicated region
      $region9: #{cnn_forward.4} parent=5 // pred_check
        _
      $region10: #{cnn_forward.4} parent=5 // pred_check_branch
        %176 = sbr.rel (%p173) target = $region12
      $region11: #{cnn_forward.4} parent=5 // pred_region
        %s177 = ssub.s32 %s11, 1
        // Predicated region
        $region13: #{cnn_forward.4} parent=11 // pred_check
          %p178 = pneg %p72
        $region14: #{cnn_forward.4} parent=11 // pred_check_branch
          %180 = sbr.rel (%p178) target = $region16
        $region15: #{cnn_forward.4} parent=11 // pred_region
          _
        $region16: #{cnn_forward.4} parent=11 // pred_fallthru
          _
        // Predicated region
        $region17: #{cnn_forward.4} parent=11 // pred_check
          %p181 = pneg %p93
        $region18: #{cnn_forward.4} parent=11 // pred_check_branch
          %183 = sbr.rel (%p181) target = $region20
        $region19: #{cnn_forward.4} parent=11 // pred_region
          _
        $region20: #{cnn_forward.4} parent=11 // pred_fallthru
          _
        // Predicated region
        $region21: #{cnn_forward.4} parent=11 // pred_check
          %p184 = pneg %p114
        $region22: #{cnn_forward.4} parent=11 // pred_check_branch
          %186 = sbr.rel (%p184) target = $region24
        $region23: #{cnn_forward.4} parent=11 // pred_region
          _
        $region24: #{cnn_forward.4} parent=11 // pred_fallthru
          _
        // Predicated region
        $region25: #{cnn_forward.4} parent=11 // pred_check
          %p187 = pneg %p135
        $region26: #{cnn_forward.4} parent=11 // pred_check_branch
          %189 = sbr.rel (%p187) target = $region28
        $region27: #{cnn_forward.4} parent=11 // pred_region
          _
        $region28: #{cnn_forward.4} parent=11 // pred_fallthru
          _
      $region12: #{cnn_forward.4} parent=5 // pred_fallthru
        _
      %p190 = scmp.lt.s32.totalorder %s11, 3
      // Predicated region
      $region29: #{cnn_forward.4} parent=5 // pred_check
        %p191 = pneg %p190
      $region30: #{cnn_forward.4} parent=5 // pred_check_branch
        %193 = sbr.rel (%p191) target = $region32
      $region31: #{cnn_forward.4} parent=5 // pred_region
        // Predicated region
        $region33: #{cnn_forward.4} parent=31 // pred_check
          %p194 = pneg %p45
        $region34: #{cnn_forward.4} parent=31 // pred_check_branch
          %196 = sbr.rel (%p194) target = $region36
        $region35: #{cnn_forward.4} parent=31 // pred_region
          %s197 = sand.u32 %s35, 1
          %s198 = sand.u32 %s35, 1
          %s199 = smul.addr %s198, 160
          %s200 = scalar_lea.vmem [#allocation2], %s199
          %s201 = smul.u32 2, %s19
          %s202 = smul.addr %s18, 20
          %s203 = smul.addr %s201, 60
          %s204 = sadd.s32 %s202, %s203
          %s205 = smul.addr %s204, 4
          %s206 = scalar_lea.vmem %s0, %s205
          // Predicated region
          $region37: #{cnn_forward.4} parent=35 // pred_check
            _
          $region38: #{cnn_forward.4} parent=35 // pred_check_branch
            %208 = sbr.rel (0) target = $region40
          $region39: #{cnn_forward.4} parent=35 // pred_region
            // Predicated region
            $region41: #{cnn_forward.4} parent=39 // pred_check
              _
            $region42: #{cnn_forward.4} parent=39 // pred_check_branch
              %210 = sbr.rel (0) target = $region44
            $region43: #{cnn_forward.4} parent=39 // pred_region
              %s211 = scalar_lea.vmem %s206, 16
              %s212 = scalar_lea.vmem %s200, 16 [#allocation2]
              loop: start=0, step=1, limit=1
              $region45: #{cnn_forward.4} parent=43 // loop_pre_header
                _
              $region46: #{cnn_forward.4} parent=43 // loop_header
                %s214 = sphi 0, %s218
                %p215 = scmp.ge.s32.totalorder %s214, 1
                %s219 = sphi %s206, %s206
                %s220 = sphi %s200, %s200
              $region47: #{cnn_forward.4} parent=43 // loop_header_branch
                %217 = sbr.rel (%p215) target = $region51
              $region48: #{cnn_forward.4} parent=43 // loop_body
                %v221 = vld [vmem:[%s219] sm:$0xff]
                %222 = vst [vmem:[%s220] sm:$0xff] %v221
                %v223 = vld [vmem:[%s219 + $0x8] sm:$0xff]
                %224 = vst [vmem:[%s220 + $0x8] sm:$0xff] %v223
                %v225 = vld [vmem:[%s219 + $0x14] sm:$0xff]
                %226 = vst [vmem:[%s220 + $0x14] sm:$0xff] %v225
                %v227 = vld [vmem:[%s219 + $0x1c] sm:$0xff]
                %228 = vst [vmem:[%s220 + $0x1c] sm:$0xff] %v227
                %v229 = vld [vmem:[%s219 + $0x28] sm:$0xff]
                %230 = vst [vmem:[%s220 + $0x28] sm:$0xff] %v229
                %v231 = vld [vmem:[%s219 + $0x30] sm:$0xff]
                %232 = vst [vmem:[%s220 + $0x30] sm:$0xff] %v231
                %v233 = vld [vmem:[%s219 + $0x3c] sm:$0xff]
                %234 = vst [vmem:[%s220 + $0x3c] sm:$0xff] %v233
                %v235 = vld [vmem:[%s219 + $0x44] sm:$0xff]
                %236 = vst [vmem:[%s220 + $0x44] sm:$0xff] %v235
                %v237 = vld [vmem:[%s219 + $0xf0] sm:$0xff]
                %238 = vst [vmem:[%s220 + $0x50] sm:$0xff] %v237
                %v239 = vld [vmem:[%s219 + $0xf8] sm:$0xff]
                %240 = vst [vmem:[%s220 + $0x58] sm:$0xff] %v239
                %v241 = vld [vmem:[%s219 + $0x104] sm:$0xff]
                %242 = vst [vmem:[%s220 + $0x64] sm:$0xff] %v241
                %v243 = vld [vmem:[%s219 + $0x10c] sm:$0xff]
                %244 = vst [vmem:[%s220 + $0x6c] sm:$0xff] %v243
                %v245 = vld [vmem:[%s219 + $0x118] sm:$0xff]
                %246 = vst [vmem:[%s220 + $0x78] sm:$0xff] %v245
                %v247 = vld [vmem:[%s219 + $0x120] sm:$0xff]
                %248 = vst [vmem:[%s220 + $0x80] sm:$0xff] %v247
                %v249 = vld [vmem:[%s219 + $0x12c] sm:$0xff]
                %250 = vst [vmem:[%s220 + $0x8c] sm:$0xff] %v249
                %v251 = vld [vmem:[%s219 + $0x134] sm:$0xff]
                %252 = vst [vmem:[%s220 + $0x94] sm:$0xff] %v251
              $region49: #{cnn_forward.4} parent=43 // loop_footer
                %s218 = sadd.s32 1, %s214
              $region50: #{cnn_forward.4} parent=43 // loop_footer_branch
                %213 = sbr.rel target = $region46
              $region51: #{cnn_forward.4} parent=43 // loop_exit
                _
              %s254 = ssub.s32 16, 1
              loop: start=0, step=1, limit=1
              $region52: #{cnn_forward.4} parent=43 // loop_pre_header
                _
              $region53: #{cnn_forward.4} parent=43 // loop_header
                %s256 = sphi 0, %s260
                %p257 = scmp.ge.s32.totalorder %s256, 1
                %s261 = sphi %s211, %s211
                %s262 = sphi %s212, %s212
              $region54: #{cnn_forward.4} parent=43 // loop_header_branch
                %259 = sbr.rel (%p257) target = $region58
              $region55: #{cnn_forward.4} parent=43 // loop_body
                %v263 = vld [vmem:[%s261] sm:%s254]
                %264 = vst [vmem:[%s262] sm:%s254] %v263
                %v265 = vld [vmem:[%s261 + $0x14] sm:%s254]
                %266 = vst [vmem:[%s262 + $0x14] sm:%s254] %v265
                %v267 = vld [vmem:[%s261 + $0x28] sm:%s254]
                %268 = vst [vmem:[%s262 + $0x28] sm:%s254] %v267
                %v269 = vld [vmem:[%s261 + $0x3c] sm:%s254]
                %270 = vst [vmem:[%s262 + $0x3c] sm:%s254] %v269
                %v271 = vld [vmem:[%s261 + $0xf0] sm:%s254]
                %272 = vst [vmem:[%s262 + $0x50] sm:%s254] %v271
                %v273 = vld [vmem:[%s261 + $0x104] sm:%s254]
                %274 = vst [vmem:[%s262 + $0x64] sm:%s254] %v273
                %v275 = vld [vmem:[%s261 + $0x118] sm:%s254]
                %276 = vst [vmem:[%s262 + $0x78] sm:%s254] %v275
                %v277 = vld [vmem:[%s261 + $0x12c] sm:%s254]
                %278 = vst [vmem:[%s262 + $0x8c] sm:%s254] %v277
              $region56: #{cnn_forward.4} parent=43 // loop_footer
                %s260 = sadd.s32 1, %s256
              $region57: #{cnn_forward.4} parent=43 // loop_footer_branch
                %255 = sbr.rel target = $region53
              $region58: #{cnn_forward.4} parent=43 // loop_exit
                _
            $region44: #{cnn_forward.4} parent=39 // pred_fallthru
              _
          $region40: #{cnn_forward.4} parent=35 // pred_fallthru
            _
          %279 = vnop
        $region36: #{cnn_forward.4} parent=31 // pred_fallthru
          _
      $region32: #{cnn_forward.4} parent=5 // pred_fallthru
        _
      %p280 = scmp.le.s32.totalorder 1, %s11
      %p281 = scmp.lt.s32.totalorder %s11, 4
      %p282 = pnand %p280, %p281
      %p283 = pneg %p282
      // Predicated region
      $region59: #{cnn_forward.4} parent=5 // pred_check
        _
      $region60: #{cnn_forward.4} parent=5 // pred_check_branch
        %285 = sbr.rel (%p282) target = $region62
      $region61: #{cnn_forward.4} parent=5 // pred_region
        %s286 = ssub.s32 %s11, 1
        %s287 = sand.u32 %s38, 1
        %s288 = sand.u32 %s38, 1
        %s289 = smul.addr %s288, 160
        %s290 = scalar_lea.vmem [#allocation2], %s289
        // Predicated region
        $region63: #{cnn_forward.4} parent=61 // pred_check
          %p291 = pneg %p51
        $region64: #{cnn_forward.4} parent=61 // pred_check_branch
          %293 = sbr.rel (%p291) target = $region66
        $region65: #{cnn_forward.4} parent=61 // pred_region
          _
        $region66: #{cnn_forward.4} parent=61 // pred_fallthru
          _
        %s294 = sand.u32 %s38, 1
        %s295 = sand.u32 %s38, 1
        %s296 = smul.addr %s295, 160
        %s297 = scalar_lea.vmem [#allocation2], %s296
        %p298 = pneg %p51
        %p299 = pneg %p48
        %p300 = pneg %p72
        %p301 = pneg %p69
        %p302 = pneg %p93
        %p303 = pneg %p90
        %p304 = pneg %p114
        %p305 = pneg %p111
        %p306 = pneg %p135
        %p307 = pneg %p132
        %p308 = pneg %p163
        %p309 = pneg %p160
        %s310 = sand.u32 %s150, 1
        %s311 = sand.u32 %s150, 1
        %s312 = smul.addr %s311, 16
        %s313 = scalar_lea.vmem [#allocation3], %s312
        %s314 = smul.u32 2, %s21
        %s315 = smul.u32 2, %s21
        %v317 = vld [vmem:[%s2] sm:$0x1]
        %v318 = vld [vmem:[%s3] sm:$0xf]
        %v319 = vld [vmem:[%s3 + $0x4] sm:$0x3]
        %v320 = vld [vmem:[%s4] sm:$0xf]
        %v321 = vld [vmem:[%s4 + $0x4] sm:$0x3]
        %v322 = vld [vmem:[%s290] sm:$0xff]
        %v323 = vld [vmem:[%s290 + $0x8] sm:$0xff]
        %v324 = vld [vmem:[%s290 + $0x10] sm:$0xf]
        %v325 = vld [vmem:[%s290 + $0x14] sm:$0xff]
        %v326 = vld [vmem:[%s290 + $0x1c] sm:$0xff]
        %v327 = vld [vmem:[%s290 + $0x24] sm:$0xf]
        %v328 = vld [vmem:[%s290 + $0x28] sm:$0xff]
        %v329 = vld [vmem:[%s290 + $0x30] sm:$0xff]
        %v330 = vld [vmem:[%s290 + $0x38] sm:$0xf]
        %v331 = vld [vmem:[%s1] sm:$0xff]
        %v332 = vld [vmem:[%s1 + $0x8] sm:$0xff]
        %v333 = vld [vmem:[%s1 + $0x10] sm:$0xff]
        %v334 = vld [vmem:[%s1 + $0x18] sm:$0xff]
        %v335 = vld [vmem:[%s1 + $0x20] sm:$0xff]
        %v336 = vld [vmem:[%s1 + $0x28] sm:$0xff]
        %v337 = vld [vmem:[%s1 + $0x30] sm:$0xff]
        %v338 = vld [vmem:[%s1 + $0x38] sm:$0xff]
        %v339 = vld [vmem:[%s1 + $0x40] sm:$0xff]
        %v340 = vld [vmem:[%s1 + $0x48] sm:$0xff]
        %v341 = vld [vmem:[%s1 + $0x50] sm:$0xff]
        %v342 = vld [vmem:[%s1 + $0x58] sm:$0xff]
        %v343 = vld [vmem:[%s1 + $0x60] sm:$0xff]
        %v344 = vld [vmem:[%s1 + $0x68] sm:$0xff]
        %v345 = vld [vmem:[%s1 + $0x70] sm:$0xff]
        %v346 = vld [vmem:[%s1 + $0x78] sm:$0xff]
        %v347 = vld [vmem:[%s1 + $0x80] sm:$0xff]
        %v348 = vld [vmem:[%s1 + $0x88] sm:$0xff]
        %v349 = vld [vmem:[%s1 + $0x90] sm:$0xff]
        %v350 = vld [vmem:[%s1 + $0x98] sm:$0xff]
        %v351 = vld [vmem:[%s1 + $0xa0] sm:$0xff]
        %v352 = vld [vmem:[%s1 + $0xa8] sm:$0xff]
        %v353 = vld [vmem:[%s1 + $0xb0] sm:$0xff]
        %v354 = vld [vmem:[%s1 + $0xb8] sm:$0xff]
        %v355 = vld [vmem:[%s1 + $0xc0] sm:$0xff]
        %v356 = vld [vmem:[%s1 + $0xc8] sm:$0xff]
        %v357 = vld [vmem:[%s1 + $0xd0] sm:$0xff]
        %v358 = vld [vmem:[%s1 + $0xd8] sm:$0xff]
        %v359 = vld [vmem:[%s1 + $0xe0] sm:$0xff]
        %v360 = vld [vmem:[%s1 + $0xe8] sm:$0xff]
        %v361 = vld [vmem:[%s1 + $0xf0] sm:$0xff]
        %v362 = vld [vmem:[%s1 + $0xf8] sm:$0xff]
        %v363 = vld [vmem:[%s1 + $0x100] sm:$0xff]
        %v364 = vld [vmem:[%s1 + $0x108] sm:$0xff]
        %v365 = vld [vmem:[%s1 + $0x110] sm:$0xff]
        %v366 = vld [vmem:[%s1 + $0x118] sm:$0xff]
        %v367 = vld [vmem:[%s1 + $0x120] sm:$0xff]
        %v368 = vld [vmem:[%s1 + $0x128] sm:$0xff]
        %v369 = vld [vmem:[%s1 + $0x130] sm:$0xff]
        %v370 = vld [vmem:[%s1 + $0x138] sm:$0xff]
        %v371 = vld [vmem:[%s1 + $0x140] sm:$0xff]
        %v372 = vld [vmem:[%s1 + $0x148] sm:$0xff]
        %v373 = vld [vmem:[%s1 + $0x150] sm:$0xff]
        %v374 = vld [vmem:[%s1 + $0x158] sm:$0xff]
        %v375 = vld [vmem:[%s1 + $0x160] sm:$0xff]
        %v376 = vld [vmem:[%s1 + $0x168] sm:$0xff]
        %v377 = vld [vmem:[%s1 + $0x170] sm:$0xff]
        %v378 = vld [vmem:[%s1 + $0x178] sm:$0xff]
        %v379 = vld [vmem:[%s1 + $0x180] sm:$0xff]
        %v380 = vld [vmem:[%s1 + $0x188] sm:$0xff]
        %v381 = vld [vmem:[%s1 + $0x190] sm:$0xff]
        %v382 = vld [vmem:[%s1 + $0x198] sm:$0xff]
        %v383 = vld [vmem:[%s1 + $0x1a0] sm:$0xff]
        %v384 = vld [vmem:[%s1 + $0x1a8] sm:$0xff]
        %v385 = vld [vmem:[%s1 + $0x1b0] sm:$0xff]
        %v386 = vld [vmem:[%s1 + $0x1b8] sm:$0xff]
        %v387 = vld [vmem:[%s1 + $0x1c0] sm:$0xff]
        %v388 = vld [vmem:[%s1 + $0x1c8] sm:$0xff]
        %v389 = vld [vmem:[%s1 + $0x1d0] sm:$0xff]
        %v390 = vld [vmem:[%s1 + $0x1d8] sm:$0xff]
        %v391 = vld [vmem:[%s1 + $0x1e0] sm:$0xff]
        %v392 = vld [vmem:[%s1 + $0x1e8] sm:$0xff]
        %v393 = vld [vmem:[%s1 + $0x1f0] sm:$0xff]
        %v394 = vld [vmem:[%s1 + $0x1f8] sm:$0xff]
        %v395 = vld [vmem:[%s1 + $0x200] sm:$0xff]
        %v396 = vld [vmem:[%s1 + $0x208] sm:$0xff]
        %v397 = vld [vmem:[%s1 + $0x210] sm:$0xff]
        %v398 = vld [vmem:[%s1 + $0x218] sm:$0xff]
        %v399 = vld [vmem:[%s1 + $0x220] sm:$0xff]
        %v400 = vld [vmem:[%s1 + $0x228] sm:$0xff]
        %v401 = vld [vmem:[%s1 + $0x230] sm:$0xff]
        %v402 = vld [vmem:[%s1 + $0x238] sm:$0xff]
        %v403 = vld [vmem:[%s1 + $0x240] sm:$0xff]
        %v404 = vld [vmem:[%s1 + $0x248] sm:$0xff]
        %v405 = vld [vmem:[%s1 + $0x250] sm:$0xff]
        %v406 = vld [vmem:[%s1 + $0x258] sm:$0xff]
        %v407 = vld [vmem:[%s1 + $0x260] sm:$0xff]
        %v408 = vld [vmem:[%s1 + $0x268] sm:$0xff]
        %v409 = vld [vmem:[%s1 + $0x270] sm:$0xff]
        %v410 = vld [vmem:[%s1 + $0x278] sm:$0xff]
        %v411 = vld [vmem:[%s290 + $0x3c] sm:$0x11]
        %v412 = vld [vmem:[%s290 + $0x44] sm:$0x11]
        %v413 = vld [vmem:[%s290 + $0x4c] sm:$0x1]
        %s414 = scalar_lea.vmem %s1, 640
        %v415 = vld [vmem:[%s414] sm:$0xff]
        %v416 = vld [vmem:[%s414 + $0x8] sm:$0xff]
        %v417 = vld [vmem:[%s414 + $0x10] sm:$0xff]
        %v418 = vld [vmem:[%s414 + $0x18] sm:$0xff]
        %v419 = vld [vmem:[%s414 + $0x20] sm:$0xff]
        %v420 = vld [vmem:[%s414 + $0x28] sm:$0xff]
        %v421 = vld [vmem:[%s414 + $0x30] sm:$0xff]
        %v422 = vld [vmem:[%s414 + $0x38] sm:$0xff]
        %v423 = vld [vmem:[%s414 + $0x40] sm:$0xff]
        %v424 = vld [vmem:[%s414 + $0x48] sm:$0xff]
        %v425 = vld [vmem:[%s414 + $0x50] sm:$0xff]
        %v426 = vld [vmem:[%s414 + $0x58] sm:$0xff]
        %v427 = vld [vmem:[%s414 + $0x60] sm:$0xff]
        %v428 = vld [vmem:[%s414 + $0x68] sm:$0xff]
        %v429 = vld [vmem:[%s414 + $0x70] sm:$0xff]
        %v430 = vld [vmem:[%s414 + $0x78] sm:$0xff]
        %v431 = vld [vmem:[%s414 + $0x80] sm:$0xff]
        %v432 = vld [vmem:[%s414 + $0x88] sm:$0xff]
        %v433 = vld [vmem:[%s414 + $0x90] sm:$0xff]
        %v434 = vld [vmem:[%s414 + $0x98] sm:$0xff]
        %v435 = vld [vmem:[%s414 + $0xa0] sm:$0xff]
        %v436 = vld [vmem:[%s414 + $0xa8] sm:$0xff]
        %v437 = vld [vmem:[%s414 + $0xb0] sm:$0xff]
        %v438 = vld [vmem:[%s414 + $0xb8] sm:$0xff]
        %v439 = vld [vmem:[%s414 + $0xc0] sm:$0xff]
        %v440 = vld [vmem:[%s414 + $0xc8] sm:$0xff]
        %v441 = vld [vmem:[%s414 + $0xd0] sm:$0xff]
        %v442 = vld [vmem:[%s414 + $0xd8] sm:$0xff]
        %v443 = vld [vmem:[%s414 + $0xe0] sm:$0xff]
        %v444 = vld [vmem:[%s414 + $0xe8] sm:$0xff]
        %v445 = vld [vmem:[%s414 + $0xf0] sm:$0xff]
        %v446 = vld [vmem:[%s414 + $0xf8] sm:$0xff]
        %v447 = vld [vmem:[%s414 + $0x100] sm:$0xff]
        %v448 = vld [vmem:[%s414 + $0x108] sm:$0xff]
        %v449 = vld [vmem:[%s414 + $0x110] sm:$0xff]
        %v450 = vld [vmem:[%s414 + $0x118] sm:$0xff]
        %v451 = vld [vmem:[%s414 + $0x120] sm:$0xff]
        %v452 = vld [vmem:[%s414 + $0x128] sm:$0xff]
        %v453 = vld [vmem:[%s414 + $0x130] sm:$0xff]
        %v454 = vld [vmem:[%s414 + $0x138] sm:$0xff]
        %v455 = vld [vmem:[%s414 + $0x140] sm:$0xff]
        %v456 = vld [vmem:[%s414 + $0x148] sm:$0xff]
        %v457 = vld [vmem:[%s414 + $0x150] sm:$0xff]
        %v458 = vld [vmem:[%s414 + $0x158] sm:$0xff]
        %v459 = vld [vmem:[%s414 + $0x160] sm:$0xff]
        %v460 = vld [vmem:[%s414 + $0x168] sm:$0xff]
        %v461 = vld [vmem:[%s414 + $0x170] sm:$0xff]
        %v462 = vld [vmem:[%s414 + $0x178] sm:$0xff]
        %v463 = vld [vmem:[%s414 + $0x180] sm:$0xff]
        %v464 = vld [vmem:[%s414 + $0x188] sm:$0xff]
        %v465 = vld [vmem:[%s414 + $0x190] sm:$0xff]
        %v466 = vld [vmem:[%s414 + $0x198] sm:$0xff]
        %v467 = vld [vmem:[%s414 + $0x1a0] sm:$0xff]
        %v468 = vld [vmem:[%s414 + $0x1a8] sm:$0xff]
        %v469 = vld [vmem:[%s414 + $0x1b0] sm:$0xff]
        %v470 = vld [vmem:[%s414 + $0x1b8] sm:$0xff]
        %v471 = vld [vmem:[%s414 + $0x1c0] sm:$0xff]
        %v472 = vld [vmem:[%s414 + $0x1c8] sm:$0xff]
        %v473 = vld [vmem:[%s414 + $0x1d0] sm:$0xff]
        %v474 = vld [vmem:[%s414 + $0x1d8] sm:$0xff]
        %v475 = vld [vmem:[%s414 + $0x1e0] sm:$0xff]
        %v476 = vld [vmem:[%s414 + $0x1e8] sm:$0xff]
        %v477 = vld [vmem:[%s414 + $0x1f0] sm:$0xff]
        %v478 = vld [vmem:[%s414 + $0x1f8] sm:$0xff]
        %v479 = vld [vmem:[%s414 + $0x200] sm:$0xff]
        %v480 = vld [vmem:[%s414 + $0x208] sm:$0xff]
        %v481 = vld [vmem:[%s414 + $0x210] sm:$0xff]
        %v482 = vld [vmem:[%s414 + $0x218] sm:$0xff]
        %v483 = vld [vmem:[%s414 + $0x220] sm:$0xff]
        %v484 = vld [vmem:[%s414 + $0x228] sm:$0xff]
        %v485 = vld [vmem:[%s414 + $0x230] sm:$0xff]
        %v486 = vld [vmem:[%s414 + $0x238] sm:$0xff]
        %v487 = vld [vmem:[%s414 + $0x240] sm:$0xff]
        %v488 = vld [vmem:[%s414 + $0x248] sm:$0xff]
        %v489 = vld [vmem:[%s414 + $0x250] sm:$0xff]
        %v490 = vld [vmem:[%s414 + $0x258] sm:$0xff]
        %v491 = vld [vmem:[%s414 + $0x260] sm:$0xff]
        %v492 = vld [vmem:[%s414 + $0x268] sm:$0xff]
        %v493 = vld [vmem:[%s414 + $0x270] sm:$0xff]
        %v494 = vld [vmem:[%s414 + $0x278] sm:$0xff]
        %v507 = vunpack.c.l.b16 %v322
        %v508 = vunpack.c.h.b16 %v322
        %v509 = vunpack.c.l.b16 %v323
        %v510 = vunpack.c.h.b16 %v323
        %v511 = vunpack.c.l.b16 %v324
        %v512 = vunpack.c.l.b16 %v325
        %v513 = vunpack.c.h.b16 %v325
        %v514 = vunpack.c.l.b16 %v326
        %v515 = vunpack.c.h.b16 %v326
        %v516 = vunpack.c.l.b16 %v327
        %v517 = vunpack.c.l.b16 %v328
        %v518 = vunpack.c.h.b16 %v328
        %v519 = vunpack.c.l.b16 %v329
        %v520 = vunpack.c.h.b16 %v329
        %v521 = vunpack.c.l.b16 %v330
        %v522 = vunpack.c.l.b16 %v411
        %v523 = vunpack.c.h.b16 %v411
        %v524 = vunpack.c.l.b16 %v412
        %v525 = vunpack.c.h.b16 %v412
        %v526 = vunpack.c.l.b16 %v413
        %v527 = vpack.c.b16 %v512, %v507
        %v528 = vpack.c.b16 %v513, %v508
        %v529 = vpack.c.b16 %v514, %v509
        %v530 = vpack.c.b16 %v515, %v510
        %v531 = vpack.c.b16 %v516, %v511
        %v532 = vpack.c.b16 %v522, %v517
        %v533 = vpack.c.b16 %v523, %v518
        %v534 = vpack.c.b16 %v524, %v519
        %v535 = vpack.c.b16 %v525, %v520
        %v536 = vpack.c.b16 %v526, %v521
        %vm537 = vsmask.f32 7424
        %v539 = vshrl.u32 %v527, 16
        %v541 = vshll.u32 %v527, 16
        %v543 = vrot.slane %v541, 1
        %v544 = vor.u32 %v539, %v543
        %v546 = vshll.u32 %v532, 16
        %v548 = vrot.slane %v546, 1
        %v549 = vsel %vm537, %v544, %v548
        %v551 = vshrl.u32 %v528, 16
        %v553 = vshll.u32 %v528, 16
        %v555 = vrot.slane %v553, 1
        %v556 = vor.u32 %v551, %v555
        %v558 = vshll.u32 %v533, 16
        %v560 = vrot.slane %v558, 1
        %v561 = vsel %vm537, %v556, %v560
        %v563 = vshrl.u32 %v529, 16
        %v565 = vshll.u32 %v529, 16
        %v567 = vrot.slane %v565, 1
        %v568 = vor.u32 %v563, %v567
        %v570 = vshll.u32 %v534, 16
        %v572 = vrot.slane %v570, 1
        %v573 = vsel %vm537, %v568, %v572
        %v575 = vshrl.u32 %v530, 16
        %v577 = vshll.u32 %v530, 16
        %v579 = vrot.slane %v577, 1
        %v580 = vor.u32 %v575, %v579
        %v582 = vshll.u32 %v535, 16
        %v584 = vrot.slane %v582, 1
        %v585 = vsel %vm537, %v580, %v584
        %v587 = vshrl.u32 %v531, 16
        %v589 = vshll.u32 %v531, 16
        %v591 = vrot.slane %v589, 1
        %v592 = vor.u32 %v587, %v591
        %v594 = vshll.u32 %v536, 16
        %v596 = vrot.slane %v594, 1
        %v597 = vsel %vm537, %v592, %v596
        %v598 = vshrl.u32 %v532, 16
        %v600 = vor.u32 %v598, %v548
        %v601 = vshrl.u32 %v533, 16
        %v603 = vor.u32 %v601, %v560
        %v604 = vshrl.u32 %v534, 16
        %v606 = vor.u32 %v604, %v572
        %v607 = vshrl.u32 %v535, 16
        %v609 = vor.u32 %v607, %v584
        %v610 = vshrl.u32 %v536, 16
        %v612 = vor.u32 %v610, %v596
        %v703 = vunpack.c.l.b16 %v415
        %v704 = vunpack.c.h.b16 %v415
        %v705 = vunpack.c.l.b16 %v416
        %v706 = vunpack.c.h.b16 %v416
        %v707 = vunpack.c.l.b16 %v417
        %v708 = vunpack.c.h.b16 %v417
        %v709 = vunpack.c.l.b16 %v418
        %v710 = vunpack.c.h.b16 %v418
        %v711 = vunpack.c.l.b16 %v419
        %v712 = vunpack.c.h.b16 %v419
        %v713 = vunpack.c.l.b16 %v420
        %v714 = vunpack.c.h.b16 %v420
        %v715 = vunpack.c.l.b16 %v421
        %v716 = vunpack.c.h.b16 %v421
        %v717 = vunpack.c.l.b16 %v422
        %v718 = vunpack.c.h.b16 %v422
        %v719 = vunpack.c.l.b16 %v423
        %v720 = vunpack.c.h.b16 %v423
        %v721 = vunpack.c.l.b16 %v424
        %v722 = vunpack.c.h.b16 %v424
        %v723 = vunpack.c.l.b16 %v425
        %v724 = vunpack.c.h.b16 %v425
        %v725 = vunpack.c.l.b16 %v426
        %v726 = vunpack.c.h.b16 %v426
        %v727 = vunpack.c.l.b16 %v427
        %v728 = vunpack.c.h.b16 %v427
        %v729 = vunpack.c.l.b16 %v428
        %v730 = vunpack.c.h.b16 %v428
        %v731 = vunpack.c.l.b16 %v429
        %v732 = vunpack.c.h.b16 %v429
        %v733 = vunpack.c.l.b16 %v430
        %v734 = vunpack.c.h.b16 %v430
        %v735 = vunpack.c.l.b16 %v431
        %v736 = vunpack.c.h.b16 %v431
        %v737 = vunpack.c.l.b16 %v432
        %v738 = vunpack.c.h.b16 %v432
        %v739 = vunpack.c.l.b16 %v433
        %v740 = vunpack.c.h.b16 %v433
        %v741 = vunpack.c.l.b16 %v434
        %v742 = vunpack.c.h.b16 %v434
        %v743 = vunpack.c.l.b16 %v435
        %v744 = vunpack.c.h.b16 %v435
        %v745 = vunpack.c.l.b16 %v436
        %v746 = vunpack.c.h.b16 %v436
        %v747 = vunpack.c.l.b16 %v437
        %v748 = vunpack.c.h.b16 %v437
        %v749 = vunpack.c.l.b16 %v438
        %v750 = vunpack.c.h.b16 %v438
        %v751 = vunpack.c.l.b16 %v439
        %v752 = vunpack.c.h.b16 %v439
        %v753 = vunpack.c.l.b16 %v440
        %v754 = vunpack.c.h.b16 %v440
        %v755 = vunpack.c.l.b16 %v441
        %v756 = vunpack.c.h.b16 %v441
        %v757 = vunpack.c.l.b16 %v442
        %v758 = vunpack.c.h.b16 %v442
        %v759 = vunpack.c.l.b16 %v443
        %v760 = vunpack.c.h.b16 %v443
        %v761 = vunpack.c.l.b16 %v444
        %v762 = vunpack.c.h.b16 %v444
        %v763 = vunpack.c.l.b16 %v445
        %v764 = vunpack.c.h.b16 %v445
        %v765 = vunpack.c.l.b16 %v446
        %v766 = vunpack.c.h.b16 %v446
        %v767 = vunpack.c.l.b16 %v447
        %v768 = vunpack.c.h.b16 %v447
        %v769 = vunpack.c.l.b16 %v448
        %v770 = vunpack.c.h.b16 %v448
        %v771 = vunpack.c.l.b16 %v449
        %v772 = vunpack.c.h.b16 %v449
        %v773 = vunpack.c.l.b16 %v450
        %v774 = vunpack.c.h.b16 %v450
        %v775 = vunpack.c.l.b16 %v451
        %v776 = vunpack.c.h.b16 %v451
        %v777 = vunpack.c.l.b16 %v452
        %v778 = vunpack.c.h.b16 %v452
        %v779 = vunpack.c.l.b16 %v453
        %v780 = vunpack.c.h.b16 %v453
        %v781 = vunpack.c.l.b16 %v454
        %v782 = vunpack.c.h.b16 %v454
        %v783 = vunpack.c.l.b16 %v455
        %v784 = vunpack.c.h.b16 %v455
        %v785 = vunpack.c.l.b16 %v456
        %v786 = vunpack.c.h.b16 %v456
        %v787 = vunpack.c.l.b16 %v457
        %v788 = vunpack.c.h.b16 %v457
        %v789 = vunpack.c.l.b16 %v458
        %v790 = vunpack.c.h.b16 %v458
        %v791 = vunpack.c.l.b16 %v459
        %v792 = vunpack.c.h.b16 %v459
        %v793 = vunpack.c.l.b16 %v460
        %v794 = vunpack.c.h.b16 %v460
        %v795 = vunpack.c.l.b16 %v461
        %v796 = vunpack.c.h.b16 %v461
        %v797 = vunpack.c.l.b16 %v462
        %v798 = vunpack.c.h.b16 %v462
        %v799 = vunpack.c.l.b16 %v463
        %v800 = vunpack.c.h.b16 %v463
        %v801 = vunpack.c.l.b16 %v464
        %v802 = vunpack.c.h.b16 %v464
        %v803 = vunpack.c.l.b16 %v465
        %v804 = vunpack.c.h.b16 %v465
        %v805 = vunpack.c.l.b16 %v466
        %v806 = vunpack.c.h.b16 %v466
        %v807 = vunpack.c.l.b16 %v467
        %v808 = vunpack.c.h.b16 %v467
        %v809 = vunpack.c.l.b16 %v468
        %v810 = vunpack.c.h.b16 %v468
        %v811 = vunpack.c.l.b16 %v469
        %v812 = vunpack.c.h.b16 %v469
        %v813 = vunpack.c.l.b16 %v470
        %v814 = vunpack.c.h.b16 %v470
        %v815 = vunpack.c.l.b16 %v471
        %v816 = vunpack.c.h.b16 %v471
        %v817 = vunpack.c.l.b16 %v472
        %v818 = vunpack.c.h.b16 %v472
        %v819 = vunpack.c.l.b16 %v473
        %v820 = vunpack.c.h.b16 %v473
        %v821 = vunpack.c.l.b16 %v474
        %v822 = vunpack.c.h.b16 %v474
        %v823 = vunpack.c.l.b16 %v475
        %v824 = vunpack.c.h.b16 %v475
        %v825 = vunpack.c.l.b16 %v476
        %v826 = vunpack.c.h.b16 %v476
        %v827 = vunpack.c.l.b16 %v477
        %v828 = vunpack.c.h.b16 %v477
        %v829 = vunpack.c.l.b16 %v478
        %v830 = vunpack.c.h.b16 %v478
        %v831 = vunpack.c.l.b16 %v479
        %v832 = vunpack.c.h.b16 %v479
        %v833 = vunpack.c.l.b16 %v480
        %v834 = vunpack.c.h.b16 %v480
        %v835 = vunpack.c.l.b16 %v481
        %v836 = vunpack.c.h.b16 %v481
        %v837 = vunpack.c.l.b16 %v482
        %v838 = vunpack.c.h.b16 %v482
        %v839 = vunpack.c.l.b16 %v483
        %v840 = vunpack.c.h.b16 %v483
        %v841 = vunpack.c.l.b16 %v484
        %v842 = vunpack.c.h.b16 %v484
        %v843 = vunpack.c.l.b16 %v485
        %v844 = vunpack.c.h.b16 %v485
        %v845 = vunpack.c.l.b16 %v486
        %v846 = vunpack.c.h.b16 %v486
        %v847 = vunpack.c.l.b16 %v487
        %v848 = vunpack.c.h.b16 %v487
        %v849 = vunpack.c.l.b16 %v488
        %v850 = vunpack.c.h.b16 %v488
        %v851 = vunpack.c.l.b16 %v489
        %v852 = vunpack.c.h.b16 %v489
        %v853 = vunpack.c.l.b16 %v490
        %v854 = vunpack.c.h.b16 %v490
        %v855 = vunpack.c.l.b16 %v491
        %v856 = vunpack.c.h.b16 %v491
        %v857 = vunpack.c.l.b16 %v492
        %v858 = vunpack.c.h.b16 %v492
        %v859 = vunpack.c.l.b16 %v493
        %v860 = vunpack.c.h.b16 %v493
        %v861 = vunpack.c.l.b16 %v494
        %v862 = vunpack.c.h.b16 %v494
        %v863 = vpack.c.b16 %v705, %v703
        %v864 = vpack.c.b16 %v706, %v704
        %v865 = vpack.c.b16 %v709, %v707
        %v866 = vpack.c.b16 %v710, %v708
        %v867 = vpack.c.b16 %v713, %v711
        %v868 = vpack.c.b16 %v714, %v712
        %v869 = vpack.c.b16 %v717, %v715
        %v870 = vpack.c.b16 %v718, %v716
        %v871 = vpack.c.b16 %v721, %v719
        %v872 = vpack.c.b16 %v722, %v720
        %v873 = vpack.c.b16 %v725, %v723
        %v874 = vpack.c.b16 %v726, %v724
        %v875 = vpack.c.b16 %v729, %v727
        %v876 = vpack.c.b16 %v730, %v728
        %v877 = vpack.c.b16 %v733, %v731
        %v878 = vpack.c.b16 %v734, %v732
        %v879 = vpack.c.b16 %v737, %v735
        %v880 = vpack.c.b16 %v738, %v736
        %v881 = vpack.c.b16 %v741, %v739
        %v882 = vpack.c.b16 %v742, %v740
        %v883 = vpack.c.b16 %v745, %v743
        %v884 = vpack.c.b16 %v746, %v744
        %v885 = vpack.c.b16 %v749, %v747
        %v886 = vpack.c.b16 %v750, %v748
        %v887 = vpack.c.b16 %v753, %v751
        %v888 = vpack.c.b16 %v754, %v752
        %v889 = vpack.c.b16 %v757, %v755
        %v890 = vpack.c.b16 %v758, %v756
        %v891 = vpack.c.b16 %v761, %v759
        %v892 = vpack.c.b16 %v762, %v760
        %v893 = vpack.c.b16 %v765, %v763
        %v894 = vpack.c.b16 %v766, %v764
        %v895 = vpack.c.b16 %v769, %v767
        %v896 = vpack.c.b16 %v770, %v768
        %v897 = vpack.c.b16 %v773, %v771
        %v898 = vpack.c.b16 %v774, %v772
        %v899 = vpack.c.b16 %v777, %v775
        %v900 = vpack.c.b16 %v778, %v776
        %v901 = vpack.c.b16 %v781, %v779
        %v902 = vpack.c.b16 %v782, %v780
        %v903 = vpack.c.b16 %v785, %v783
        %v904 = vpack.c.b16 %v786, %v784
        %v905 = vpack.c.b16 %v789, %v787
        %v906 = vpack.c.b16 %v790, %v788
        %v907 = vpack.c.b16 %v793, %v791
        %v908 = vpack.c.b16 %v794, %v792
        %v909 = vpack.c.b16 %v797, %v795
        %v910 = vpack.c.b16 %v798, %v796
        %v911 = vpack.c.b16 %v801, %v799
        %v912 = vpack.c.b16 %v802, %v800
        %v913 = vpack.c.b16 %v805, %v803
        %v914 = vpack.c.b16 %v806, %v804
        %v915 = vpack.c.b16 %v809, %v807
        %v916 = vpack.c.b16 %v810, %v808
        %v917 = vpack.c.b16 %v813, %v811
        %v918 = vpack.c.b16 %v814, %v812
        %v919 = vpack.c.b16 %v817, %v815
        %v920 = vpack.c.b16 %v818, %v816
        %v921 = vpack.c.b16 %v821, %v819
        %v922 = vpack.c.b16 %v822, %v820
        %v923 = vpack.c.b16 %v825, %v823
        %v924 = vpack.c.b16 %v826, %v824
        %v925 = vpack.c.b16 %v829, %v827
        %v926 = vpack.c.b16 %v830, %v828
        %v927 = vpack.c.b16 %v833, %v831
        %v928 = vpack.c.b16 %v834, %v832
        %v929 = vpack.c.b16 %v837, %v835
        %v930 = vpack.c.b16 %v838, %v836
        %v931 = vpack.c.b16 %v841, %v839
        %v932 = vpack.c.b16 %v842, %v840
        %v933 = vpack.c.b16 %v845, %v843
        %v934 = vpack.c.b16 %v846, %v844
        %v935 = vpack.c.b16 %v849, %v847
        %v936 = vpack.c.b16 %v850, %v848
        %v937 = vpack.c.b16 %v853, %v851
        %v938 = vpack.c.b16 %v854, %v852
        %v939 = vpack.c.b16 %v857, %v855
        %v940 = vpack.c.b16 %v858, %v856
        %v941 = vpack.c.b16 %v861, %v859
        %v942 = vpack.c.b16 %v862, %v860
        %1023 = vmatpush.bf16.msra.mxu0 %v877
        %1024 = vmatpush.bf16.msra.mxu0 %v875
        %1025 = vmatpush.bf16.msra.mxu0 %v873
        %1026 = vmatpush.bf16.msra.mxu0 %v871
        %1027 = vmatpush.bf16.msra.mxu0 %v869
        %1028 = vmatpush.bf16.msra.mxu0 %v867
        %1029 = vmatpush.bf16.msra.mxu0 %v865
        %1030 = vmatpush.bf16.msra.mxu0 %v863
        %1031 = vmatmul.bf16.gmra.mxu0 %v549
        %v1032 = vpop.f32.mrf.mxu0
        %v1033 = vadd.f32 0.0, %v1032
        %v1034 = vpop.f32.mrf.mxu0
        %v1035 = vadd.f32 0.0, %v1034
        %1036 = vmatmul.bf16.gmra.mxu0 %v600
        %v1037 = vpop.f32.mrf.mxu0
        %v1038 = vadd.f32 0.0, %v1037
        %v1039 = vpop.f32.mrf.mxu0
        %1040 = vdwg.mxu0
        %1041 = vmatpush.bf16.msra.mxu0 %v893
        %1042 = vmatpush.bf16.msra.mxu0 %v891
        %1043 = vmatpush.bf16.msra.mxu0 %v889
        %1044 = vmatpush.bf16.msra.mxu0 %v887
        %1045 = vmatpush.bf16.msra.mxu0 %v885
        %1046 = vmatpush.bf16.msra.mxu0 %v883
        %1047 = vmatpush.bf16.msra.mxu0 %v881
        %1048 = vmatpush.bf16.msra.mxu0 %v879
        %1049 = vmatmul.bf16.gmra.mxu0 %v561
        %v1050 = vpop.f32.mrf.mxu0
        %v1051 = vadd.f32 %v1033, %v1050
        %v1052 = vpop.f32.mrf.mxu0
        %v1053 = vadd.f32 %v1035, %v1052
        %1054 = vmatmul.bf16.gmra.mxu0 %v603
        %v1055 = vpop.f32.mrf.mxu0
        %v1056 = vadd.f32 %v1038, %v1055
        %v1057 = vpop.f32.mrf.mxu0
        %1058 = vdwg.mxu0
        %1059 = vmatpush.bf16.msra.mxu0 %v909
        %1060 = vmatpush.bf16.msra.mxu0 %v907
        %1061 = vmatpush.bf16.msra.mxu0 %v905
        %1062 = vmatpush.bf16.msra.mxu0 %v903
        %1063 = vmatpush.bf16.msra.mxu0 %v901
        %1064 = vmatpush.bf16.msra.mxu0 %v899
        %1065 = vmatpush.bf16.msra.mxu0 %v897
        %1066 = vmatpush.bf16.msra.mxu0 %v895
        %1067 = vmatmul.bf16.gmra.mxu0 %v573
        %v1068 = vpop.f32.mrf.mxu0
        %v1069 = vadd.f32 %v1051, %v1068
        %v1070 = vpop.f32.mrf.mxu0
        %v1071 = vadd.f32 %v1053, %v1070
        %1072 = vmatmul.bf16.gmra.mxu0 %v606
        %v1073 = vpop.f32.mrf.mxu0
        %v1074 = vadd.f32 %v1056, %v1073
        %v1075 = vpop.f32.mrf.mxu0
        %1076 = vdwg.mxu0
        %1077 = vmatpush.bf16.msra.mxu0 %v925
        %1078 = vmatpush.bf16.msra.mxu0 %v923
        %1079 = vmatpush.bf16.msra.mxu0 %v921
        %1080 = vmatpush.bf16.msra.mxu0 %v919
        %1081 = vmatpush.bf16.msra.mxu0 %v917
        %1082 = vmatpush.bf16.msra.mxu0 %v915
        %1083 = vmatpush.bf16.msra.mxu0 %v913
        %1084 = vmatpush.bf16.msra.mxu0 %v911
        %1085 = vmatmul.bf16.gmra.mxu0 %v585
        %v1086 = vpop.f32.mrf.mxu0
        %v1087 = vadd.f32 %v1069, %v1086
        %v1088 = vpop.f32.mrf.mxu0
        %v1089 = vadd.f32 %v1071, %v1088
        %1090 = vmatmul.bf16.gmra.mxu0 %v609
        %v1091 = vpop.f32.mrf.mxu0
        %v1092 = vadd.f32 %v1074, %v1091
        %v1093 = vpop.f32.mrf.mxu0
        %1094 = vdwg.mxu0
        %1095 = vmatpush.bf16.msra.mxu0 %v941
        %1096 = vmatpush.bf16.msra.mxu0 %v939
        %1097 = vmatpush.bf16.msra.mxu0 %v937
        %1098 = vmatpush.bf16.msra.mxu0 %v935
        %1099 = vmatpush.bf16.msra.mxu0 %v933
        %1100 = vmatpush.bf16.msra.mxu0 %v931
        %1101 = vmatpush.bf16.msra.mxu0 %v929
        %1102 = vmatpush.bf16.msra.mxu0 %v927
        %1103 = vmatmul.bf16.gmra.mxu0 %v597
        %v1104 = vpop.f32.mrf.mxu0
        %v1105 = vadd.f32 %v1087, %v1104
        %v1106 = vpop.f32.mrf.mxu0
        %v1107 = vadd.f32 %v1089, %v1106
        %1108 = vmatmul.bf16.gmra.mxu0 %v612
        %v1109 = vpop.f32.mrf.mxu0
        %v1110 = vadd.f32 %v1092, %v1109
        %v1111 = vpop.f32.mrf.mxu0
        %1112 = vdwg.mxu0
        %1113 = vmatpush.bf16.msra.mxu0 %v878
        %1114 = vmatpush.bf16.msra.mxu0 %v876
        %1115 = vmatpush.bf16.msra.mxu0 %v874
        %1116 = vmatpush.bf16.msra.mxu0 %v872
        %1117 = vmatpush.bf16.msra.mxu0 %v870
        %1118 = vmatpush.bf16.msra.mxu0 %v868
        %1119 = vmatpush.bf16.msra.mxu0 %v866
        %1120 = vmatpush.bf16.msra.mxu0 %v864
        %1121 = vmatmul.bf16.gmra.mxu0 %v549
        %v1122 = vpop.f32.mrf.mxu0
        %v1123 = vadd.f32 0.0, %v1122
        %v1124 = vpop.f32.mrf.mxu0
        %v1125 = vadd.f32 0.0, %v1124
        %1126 = vmatmul.bf16.gmra.mxu0 %v600
        %v1127 = vpop.f32.mrf.mxu0
        %v1128 = vadd.f32 0.0, %v1127
        %v1129 = vpop.f32.mrf.mxu0
        %1130 = vdwg.mxu0
        %1131 = vmatpush.bf16.msra.mxu0 %v894
        %1132 = vmatpush.bf16.msra.mxu0 %v892
        %1133 = vmatpush.bf16.msra.mxu0 %v890
        %1134 = vmatpush.bf16.msra.mxu0 %v888
        %1135 = vmatpush.bf16.msra.mxu0 %v886
        %1136 = vmatpush.bf16.msra.mxu0 %v884
        %1137 = vmatpush.bf16.msra.mxu0 %v882
        %1138 = vmatpush.bf16.msra.mxu0 %v880
        %1139 = vmatmul.bf16.gmra.mxu0 %v561
        %v1140 = vpop.f32.mrf.mxu0
        %v1141 = vadd.f32 %v1123, %v1140
        %v1142 = vpop.f32.mrf.mxu0
        %v1143 = vadd.f32 %v1125, %v1142
        %1144 = vmatmul.bf16.gmra.mxu0 %v603
        %v1145 = vpop.f32.mrf.mxu0
        %v1146 = vadd.f32 %v1128, %v1145
        %v1147 = vpop.f32.mrf.mxu0
        %1148 = vdwg.mxu0
        %1149 = vmatpush.bf16.msra.mxu0 %v910
        %1150 = vmatpush.bf16.msra.mxu0 %v908
        %1151 = vmatpush.bf16.msra.mxu0 %v906
        %1152 = vmatpush.bf16.msra.mxu0 %v904
        %1153 = vmatpush.bf16.msra.mxu0 %v902
        %1154 = vmatpush.bf16.msra.mxu0 %v900
        %1155 = vmatpush.bf16.msra.mxu0 %v898
        %1156 = vmatpush.bf16.msra.mxu0 %v896
        %1157 = vmatmul.bf16.gmra.mxu0 %v573
        %v1158 = vpop.f32.mrf.mxu0
        %v1159 = vadd.f32 %v1141, %v1158
        %v1160 = vpop.f32.mrf.mxu0
        %v1161 = vadd.f32 %v1143, %v1160
        %1162 = vmatmul.bf16.gmra.mxu0 %v606
        %v1163 = vpop.f32.mrf.mxu0
        %v1164 = vadd.f32 %v1146, %v1163
        %v1165 = vpop.f32.mrf.mxu0
        %1166 = vdwg.mxu0
        %1167 = vmatpush.bf16.msra.mxu0 %v926
        %1168 = vmatpush.bf16.msra.mxu0 %v924
        %1169 = vmatpush.bf16.msra.mxu0 %v922
        %1170 = vmatpush.bf16.msra.mxu0 %v920
        %1171 = vmatpush.bf16.msra.mxu0 %v918
        %1172 = vmatpush.bf16.msra.mxu0 %v916
        %1173 = vmatpush.bf16.msra.mxu0 %v914
        %1174 = vmatpush.bf16.msra.mxu0 %v912
        %1175 = vmatmul.bf16.gmra.mxu0 %v585
        %v1176 = vpop.f32.mrf.mxu0
        %v1177 = vadd.f32 %v1159, %v1176
        %v1178 = vpop.f32.mrf.mxu0
        %v1179 = vadd.f32 %v1161, %v1178
        %1180 = vmatmul.bf16.gmra.mxu0 %v609
        %v1181 = vpop.f32.mrf.mxu0
        %v1182 = vadd.f32 %v1164, %v1181
        %v1183 = vpop.f32.mrf.mxu0
        %1184 = vdwg.mxu0
        %1185 = vmatpush.bf16.msra.mxu0 %v942
        %1186 = vmatpush.bf16.msra.mxu0 %v940
        %1187 = vmatpush.bf16.msra.mxu0 %v938
        %1188 = vmatpush.bf16.msra.mxu0 %v936
        %1189 = vmatpush.bf16.msra.mxu0 %v934
        %1190 = vmatpush.bf16.msra.mxu0 %v932
        %1191 = vmatpush.bf16.msra.mxu0 %v930
        %1192 = vmatpush.bf16.msra.mxu0 %v928
        %1193 = vmatmul.bf16.gmra.mxu0 %v597
        %v1194 = vpop.f32.mrf.mxu0
        %v1195 = vadd.f32 %v1177, %v1194
        %v1196 = vpop.f32.mrf.mxu0
        %v1197 = vadd.f32 %v1179, %v1196
        %1198 = vmatmul.bf16.gmra.mxu0 %v612
        %v1199 = vpop.f32.mrf.mxu0
        %v1200 = vadd.f32 %v1182, %v1199
        %v1201 = vpop.f32.mrf.mxu0
        %1202 = vdwg.mxu0
        %v1203 = vpack.c.b16 %v517, %v517
        %v1204 = vpack.c.b16 %v518, %v518
        %v1205 = vpack.c.b16 %v519, %v519
        %v1206 = vpack.c.b16 %v520, %v520
        %v1207 = vpack.c.b16 %v521, %v521
        %v1298 = vunpack.c.l.b16 %v331
        %v1299 = vunpack.c.h.b16 %v331
        %v1300 = vunpack.c.l.b16 %v332
        %v1301 = vunpack.c.h.b16 %v332
        %v1302 = vunpack.c.l.b16 %v333
        %v1303 = vunpack.c.h.b16 %v333
        %v1304 = vunpack.c.l.b16 %v334
        %v1305 = vunpack.c.h.b16 %v334
        %v1306 = vunpack.c.l.b16 %v335
        %v1307 = vunpack.c.h.b16 %v335
        %v1308 = vunpack.c.l.b16 %v336
        %v1309 = vunpack.c.h.b16 %v336
        %v1310 = vunpack.c.l.b16 %v337
        %v1311 = vunpack.c.h.b16 %v337
        %v1312 = vunpack.c.l.b16 %v338
        %v1313 = vunpack.c.h.b16 %v338
        %v1314 = vunpack.c.l.b16 %v339
        %v1315 = vunpack.c.h.b16 %v339
        %v1316 = vunpack.c.l.b16 %v340
        %v1317 = vunpack.c.h.b16 %v340
        %v1318 = vunpack.c.l.b16 %v341
        %v1319 = vunpack.c.h.b16 %v341
        %v1320 = vunpack.c.l.b16 %v342
        %v1321 = vunpack.c.h.b16 %v342
        %v1322 = vunpack.c.l.b16 %v343
        %v1323 = vunpack.c.h.b16 %v343
        %v1324 = vunpack.c.l.b16 %v344
        %v1325 = vunpack.c.h.b16 %v344
        %v1326 = vunpack.c.l.b16 %v345
        %v1327 = vunpack.c.h.b16 %v345
        %v1328 = vunpack.c.l.b16 %v346
        %v1329 = vunpack.c.h.b16 %v346
        %v1330 = vunpack.c.l.b16 %v347
        %v1331 = vunpack.c.h.b16 %v347
        %v1332 = vunpack.c.l.b16 %v348
        %v1333 = vunpack.c.h.b16 %v348
        %v1334 = vunpack.c.l.b16 %v349
        %v1335 = vunpack.c.h.b16 %v349
        %v1336 = vunpack.c.l.b16 %v350
        %v1337 = vunpack.c.h.b16 %v350
        %v1338 = vunpack.c.l.b16 %v351
        %v1339 = vunpack.c.h.b16 %v351
        %v1340 = vunpack.c.l.b16 %v352
        %v1341 = vunpack.c.h.b16 %v352
        %v1342 = vunpack.c.l.b16 %v353
        %v1343 = vunpack.c.h.b16 %v353
        %v1344 = vunpack.c.l.b16 %v354
        %v1345 = vunpack.c.h.b16 %v354
        %v1346 = vunpack.c.l.b16 %v355
        %v1347 = vunpack.c.h.b16 %v355
        %v1348 = vunpack.c.l.b16 %v356
        %v1349 = vunpack.c.h.b16 %v356
        %v1350 = vunpack.c.l.b16 %v357
        %v1351 = vunpack.c.h.b16 %v357
        %v1352 = vunpack.c.l.b16 %v358
        %v1353 = vunpack.c.h.b16 %v358
        %v1354 = vunpack.c.l.b16 %v359
        %v1355 = vunpack.c.h.b16 %v359
        %v1356 = vunpack.c.l.b16 %v360
        %v1357 = vunpack.c.h.b16 %v360
        %v1358 = vunpack.c.l.b16 %v361
        %v1359 = vunpack.c.h.b16 %v361
        %v1360 = vunpack.c.l.b16 %v362
        %v1361 = vunpack.c.h.b16 %v362
        %v1362 = vunpack.c.l.b16 %v363
        %v1363 = vunpack.c.h.b16 %v363
        %v1364 = vunpack.c.l.b16 %v364
        %v1365 = vunpack.c.h.b16 %v364
        %v1366 = vunpack.c.l.b16 %v365
        %v1367 = vunpack.c.h.b16 %v365
        %v1368 = vunpack.c.l.b16 %v366
        %v1369 = vunpack.c.h.b16 %v366
        %v1370 = vunpack.c.l.b16 %v367
        %v1371 = vunpack.c.h.b16 %v367
        %v1372 = vunpack.c.l.b16 %v368
        %v1373 = vunpack.c.h.b16 %v368
        %v1374 = vunpack.c.l.b16 %v369
        %v1375 = vunpack.c.h.b16 %v369
        %v1376 = vunpack.c.l.b16 %v370
        %v1377 = vunpack.c.h.b16 %v370
        %v1378 = vunpack.c.l.b16 %v371
        %v1379 = vunpack.c.h.b16 %v371
        %v1380 = vunpack.c.l.b16 %v372
        %v1381 = vunpack.c.h.b16 %v372
        %v1382 = vunpack.c.l.b16 %v373
        %v1383 = vunpack.c.h.b16 %v373
        %v1384 = vunpack.c.l.b16 %v374
        %v1385 = vunpack.c.h.b16 %v374
        %v1386 = vunpack.c.l.b16 %v375
        %v1387 = vunpack.c.h.b16 %v375
        %v1388 = vunpack.c.l.b16 %v376
        %v1389 = vunpack.c.h.b16 %v376
        %v1390 = vunpack.c.l.b16 %v377
        %v1391 = vunpack.c.h.b16 %v377
        %v1392 = vunpack.c.l.b16 %v378
        %v1393 = vunpack.c.h.b16 %v378
        %v1394 = vunpack.c.l.b16 %v379
        %v1395 = vunpack.c.h.b16 %v379
        %v1396 = vunpack.c.l.b16 %v380
        %v1397 = vunpack.c.h.b16 %v380
        %v1398 = vunpack.c.l.b16 %v381
        %v1399 = vunpack.c.h.b16 %v381
        %v1400 = vunpack.c.l.b16 %v382
        %v1401 = vunpack.c.h.b16 %v382
        %v1402 = vunpack.c.l.b16 %v383
        %v1403 = vunpack.c.h.b16 %v383
        %v1404 = vunpack.c.l.b16 %v384
        %v1405 = vunpack.c.h.b16 %v384
        %v1406 = vunpack.c.l.b16 %v385
        %v1407 = vunpack.c.h.b16 %v385
        %v1408 = vunpack.c.l.b16 %v386
        %v1409 = vunpack.c.h.b16 %v386
        %v1410 = vunpack.c.l.b16 %v387
        %v1411 = vunpack.c.h.b16 %v387
        %v1412 = vunpack.c.l.b16 %v388
        %v1413 = vunpack.c.h.b16 %v388
        %v1414 = vunpack.c.l.b16 %v389
        %v1415 = vunpack.c.h.b16 %v389
        %v1416 = vunpack.c.l.b16 %v390
        %v1417 = vunpack.c.h.b16 %v390
        %v1418 = vunpack.c.l.b16 %v391
        %v1419 = vunpack.c.h.b16 %v391
        %v1420 = vunpack.c.l.b16 %v392
        %v1421 = vunpack.c.h.b16 %v392
        %v1422 = vunpack.c.l.b16 %v393
        %v1423 = vunpack.c.h.b16 %v393
        %v1424 = vunpack.c.l.b16 %v394
        %v1425 = vunpack.c.h.b16 %v394
        %v1426 = vunpack.c.l.b16 %v395
        %v1427 = vunpack.c.h.b16 %v395
        %v1428 = vunpack.c.l.b16 %v396
        %v1429 = vunpack.c.h.b16 %v396
        %v1430 = vunpack.c.l.b16 %v397
        %v1431 = vunpack.c.h.b16 %v397
        %v1432 = vunpack.c.l.b16 %v398
        %v1433 = vunpack.c.h.b16 %v398
        %v1434 = vunpack.c.l.b16 %v399
        %v1435 = vunpack.c.h.b16 %v399
        %v1436 = vunpack.c.l.b16 %v400
        %v1437 = vunpack.c.h.b16 %v400
        %v1438 = vunpack.c.l.b16 %v401
        %v1439 = vunpack.c.h.b16 %v401
        %v1440 = vunpack.c.l.b16 %v402
        %v1441 = vunpack.c.h.b16 %v402
        %v1442 = vunpack.c.l.b16 %v403
        %v1443 = vunpack.c.h.b16 %v403
        %v1444 = vunpack.c.l.b16 %v404
        %v1445 = vunpack.c.h.b16 %v404
        %v1446 = vunpack.c.l.b16 %v405
        %v1447 = vunpack.c.h.b16 %v405
        %v1448 = vunpack.c.l.b16 %v406
        %v1449 = vunpack.c.h.b16 %v406
        %v1450 = vunpack.c.l.b16 %v407
        %v1451 = vunpack.c.h.b16 %v407
        %v1452 = vunpack.c.l.b16 %v408
        %v1453 = vunpack.c.h.b16 %v408
        %v1454 = vunpack.c.l.b16 %v409
        %v1455 = vunpack.c.h.b16 %v409
        %v1456 = vunpack.c.l.b16 %v410
        %v1457 = vunpack.c.h.b16 %v410
        %v1458 = vpack.c.b16 %v1300, %v1298
        %v1459 = vpack.c.b16 %v1301, %v1299
        %v1460 = vpack.c.b16 %v1304, %v1302
        %v1461 = vpack.c.b16 %v1305, %v1303
        %v1462 = vpack.c.b16 %v1308, %v1306
        %v1463 = vpack.c.b16 %v1309, %v1307
        %v1464 = vpack.c.b16 %v1312, %v1310
        %v1465 = vpack.c.b16 %v1313, %v1311
        %v1466 = vpack.c.b16 %v1316, %v1314
        %v1467 = vpack.c.b16 %v1317, %v1315
        %v1468 = vpack.c.b16 %v1320, %v1318
        %v1469 = vpack.c.b16 %v1321, %v1319
        %v1470 = vpack.c.b16 %v1324, %v1322
        %v1471 = vpack.c.b16 %v1325, %v1323
        %v1472 = vpack.c.b16 %v1328, %v1326
        %v1473 = vpack.c.b16 %v1329, %v1327
        %v1474 = vpack.c.b16 %v1332, %v1330
        %v1475 = vpack.c.b16 %v1333, %v1331
        %v1476 = vpack.c.b16 %v1336, %v1334
        %v1477 = vpack.c.b16 %v1337, %v1335
        %v1478 = vpack.c.b16 %v1340, %v1338
        %v1479 = vpack.c.b16 %v1341, %v1339
        %v1480 = vpack.c.b16 %v1344, %v1342
        %v1481 = vpack.c.b16 %v1345, %v1343
        %v1482 = vpack.c.b16 %v1348, %v1346
        %v1483 = vpack.c.b16 %v1349, %v1347
        %v1484 = vpack.c.b16 %v1352, %v1350
        %v1485 = vpack.c.b16 %v1353, %v1351
        %v1486 = vpack.c.b16 %v1356, %v1354
        %v1487 = vpack.c.b16 %v1357, %v1355
        %v1488 = vpack.c.b16 %v1360, %v1358
        %v1489 = vpack.c.b16 %v1361, %v1359
        %v1490 = vpack.c.b16 %v1364, %v1362
        %v1491 = vpack.c.b16 %v1365, %v1363
        %v1492 = vpack.c.b16 %v1368, %v1366
        %v1493 = vpack.c.b16 %v1369, %v1367
        %v1494 = vpack.c.b16 %v1372, %v1370
        %v1495 = vpack.c.b16 %v1373, %v1371
        %v1496 = vpack.c.b16 %v1376, %v1374
        %v1497 = vpack.c.b16 %v1377, %v1375
        %v1498 = vpack.c.b16 %v1380, %v1378
        %v1499 = vpack.c.b16 %v1381, %v1379
        %v1500 = vpack.c.b16 %v1384, %v1382
        %v1501 = vpack.c.b16 %v1385, %v1383
        %v1502 = vpack.c.b16 %v1388, %v1386
        %v1503 = vpack.c.b16 %v1389, %v1387
        %v1504 = vpack.c.b16 %v1392, %v1390
        %v1505 = vpack.c.b16 %v1393, %v1391
        %v1506 = vpack.c.b16 %v1396, %v1394
        %v1507 = vpack.c.b16 %v1397, %v1395
        %v1508 = vpack.c.b16 %v1400, %v1398
        %v1509 = vpack.c.b16 %v1401, %v1399
        %v1510 = vpack.c.b16 %v1404, %v1402
        %v1511 = vpack.c.b16 %v1405, %v1403
        %v1512 = vpack.c.b16 %v1408, %v1406
        %v1513 = vpack.c.b16 %v1409, %v1407
        %v1514 = vpack.c.b16 %v1412, %v1410
        %v1515 = vpack.c.b16 %v1413, %v1411
        %v1516 = vpack.c.b16 %v1416, %v1414
        %v1517 = vpack.c.b16 %v1417, %v1415
        %v1518 = vpack.c.b16 %v1420, %v1418
        %v1519 = vpack.c.b16 %v1421, %v1419
        %v1520 = vpack.c.b16 %v1424, %v1422
        %v1521 = vpack.c.b16 %v1425, %v1423
        %v1522 = vpack.c.b16 %v1428, %v1426
        %v1523 = vpack.c.b16 %v1429, %v1427
        %v1524 = vpack.c.b16 %v1432, %v1430
        %v1525 = vpack.c.b16 %v1433, %v1431
        %v1526 = vpack.c.b16 %v1436, %v1434
        %v1527 = vpack.c.b16 %v1437, %v1435
        %v1528 = vpack.c.b16 %v1440, %v1438
        %v1529 = vpack.c.b16 %v1441, %v1439
        %v1530 = vpack.c.b16 %v1444, %v1442
        %v1531 = vpack.c.b16 %v1445, %v1443
        %v1532 = vpack.c.b16 %v1448, %v1446
        %v1533 = vpack.c.b16 %v1449, %v1447
        %v1534 = vpack.c.b16 %v1452, %v1450
        %v1535 = vpack.c.b16 %v1453, %v1451
        %v1536 = vpack.c.b16 %v1456, %v1454
        %v1537 = vpack.c.b16 %v1457, %v1455
        %1618 = vmatpush.bf16.msra.mxu0 %v1472
        %1619 = vmatpush.bf16.msra.mxu0 %v1470
        %1620 = vmatpush.bf16.msra.mxu0 %v1468
        %1621 = vmatpush.bf16.msra.mxu0 %v1466
        %1622 = vmatpush.bf16.msra.mxu0 %v1464
        %1623 = vmatpush.bf16.msra.mxu0 %v1462
        %1624 = vmatpush.bf16.msra.mxu0 %v1460
        %1625 = vmatpush.bf16.msra.mxu0 %v1458
        %1626 = vmatmul.bf16.gmra.mxu0 %v527
        %v1627 = vpop.f32.mrf.mxu0
        %v1628 = vadd.f32 %v1105, %v1627
        %v1629 = vpop.f32.mrf.mxu0
        %v1630 = vadd.f32 %v1107, %v1629
        %1631 = vmatmul.bf16.gmra.mxu0 %v1203
        %v1632 = vpop.f32.mrf.mxu0
        %v1633 = vadd.f32 %v1110, %v1632
        %v1634 = vpop.f32.mrf.mxu0
        %1635 = vdwg.mxu0
        %1636 = vmatpush.bf16.msra.mxu0 %v1488
        %1637 = vmatpush.bf16.msra.mxu0 %v1486
        %1638 = vmatpush.bf16.msra.mxu0 %v1484
        %1639 = vmatpush.bf16.msra.mxu0 %v1482
        %1640 = vmatpush.bf16.msra.mxu0 %v1480
        %1641 = vmatpush.bf16.msra.mxu0 %v1478
        %1642 = vmatpush.bf16.msra.mxu0 %v1476
        %1643 = vmatpush.bf16.msra.mxu0 %v1474
        %1644 = vmatmul.bf16.gmra.mxu0 %v528
        %v1645 = vpop.f32.mrf.mxu0
        %v1646 = vadd.f32 %v1628, %v1645
        %v1647 = vpop.f32.mrf.mxu0
        %v1648 = vadd.f32 %v1630, %v1647
        %1649 = vmatmul.bf16.gmra.mxu0 %v1204
        %v1650 = vpop.f32.mrf.mxu0
        %v1651 = vadd.f32 %v1633, %v1650
        %v1652 = vpop.f32.mrf.mxu0
        %1653 = vdwg.mxu0
        %1654 = vmatpush.bf16.msra.mxu0 %v1504
        %1655 = vmatpush.bf16.msra.mxu0 %v1502
        %1656 = vmatpush.bf16.msra.mxu0 %v1500
        %1657 = vmatpush.bf16.msra.mxu0 %v1498
        %1658 = vmatpush.bf16.msra.mxu0 %v1496
        %1659 = vmatpush.bf16.msra.mxu0 %v1494
        %1660 = vmatpush.bf16.msra.mxu0 %v1492
        %1661 = vmatpush.bf16.msra.mxu0 %v1490
        %1662 = vmatmul.bf16.gmra.mxu0 %v529
        %v1663 = vpop.f32.mrf.mxu0
        %v1664 = vadd.f32 %v1646, %v1663
        %v1665 = vpop.f32.mrf.mxu0
        %v1666 = vadd.f32 %v1648, %v1665
        %1667 = vmatmul.bf16.gmra.mxu0 %v1205
        %v1668 = vpop.f32.mrf.mxu0
        %v1669 = vadd.f32 %v1651, %v1668
        %v1670 = vpop.f32.mrf.mxu0
        %1671 = vdwg.mxu0
        %1672 = vmatpush.bf16.msra.mxu0 %v1520
        %1673 = vmatpush.bf16.msra.mxu0 %v1518
        %1674 = vmatpush.bf16.msra.mxu0 %v1516
        %1675 = vmatpush.bf16.msra.mxu0 %v1514
        %1676 = vmatpush.bf16.msra.mxu0 %v1512
        %1677 = vmatpush.bf16.msra.mxu0 %v1510
        %1678 = vmatpush.bf16.msra.mxu0 %v1508
        %1679 = vmatpush.bf16.msra.mxu0 %v1506
        %1680 = vmatmul.bf16.gmra.mxu0 %v530
        %v1681 = vpop.f32.mrf.mxu0
        %v1682 = vadd.f32 %v1664, %v1681
        %v1683 = vpop.f32.mrf.mxu0
        %v1684 = vadd.f32 %v1666, %v1683
        %1685 = vmatmul.bf16.gmra.mxu0 %v1206
        %v1686 = vpop.f32.mrf.mxu0
        %v1687 = vadd.f32 %v1669, %v1686
        %v1688 = vpop.f32.mrf.mxu0
        %1689 = vdwg.mxu0
        %1690 = vmatpush.bf16.msra.mxu0 %v1536
        %1691 = vmatpush.bf16.msra.mxu0 %v1534
        %1692 = vmatpush.bf16.msra.mxu0 %v1532
        %1693 = vmatpush.bf16.msra.mxu0 %v1530
        %1694 = vmatpush.bf16.msra.mxu0 %v1528
        %1695 = vmatpush.bf16.msra.mxu0 %v1526
        %1696 = vmatpush.bf16.msra.mxu0 %v1524
        %1697 = vmatpush.bf16.msra.mxu0 %v1522
        %1698 = vmatmul.bf16.gmra.mxu0 %v531
        %v1699 = vpop.f32.mrf.mxu0
        %v1700 = vadd.f32 %v1682, %v1699
        %v1701 = vpop.f32.mrf.mxu0
        %v1702 = vadd.f32 %v1684, %v1701
        %1703 = vmatmul.bf16.gmra.mxu0 %v1207
        %v1704 = vpop.f32.mrf.mxu0
        %v1705 = vadd.f32 %v1687, %v1704
        %v1706 = vpop.f32.mrf.mxu0
        %1707 = vdwg.mxu0
        %1708 = vmatpush.bf16.msra.mxu0 %v1473
        %1709 = vmatpush.bf16.msra.mxu0 %v1471
        %1710 = vmatpush.bf16.msra.mxu0 %v1469
        %1711 = vmatpush.bf16.msra.mxu0 %v1467
        %1712 = vmatpush.bf16.msra.mxu0 %v1465
        %1713 = vmatpush.bf16.msra.mxu0 %v1463
        %1714 = vmatpush.bf16.msra.mxu0 %v1461
        %1715 = vmatpush.bf16.msra.mxu0 %v1459
        %1716 = vmatmul.bf16.gmra.mxu0 %v527
        %v1717 = vpop.f32.mrf.mxu0
        %v1718 = vadd.f32 %v1195, %v1717
        %v1719 = vpop.f32.mrf.mxu0
        %v1720 = vadd.f32 %v1197, %v1719
        %1721 = vmatmul.bf16.gmra.mxu0 %v1203
        %v1722 = vpop.f32.mrf.mxu0
        %v1723 = vadd.f32 %v1200, %v1722
        %v1724 = vpop.f32.mrf.mxu0
        %1725 = vdwg.mxu0
        %1726 = vmatpush.bf16.msra.mxu0 %v1489
        %1727 = vmatpush.bf16.msra.mxu0 %v1487
        %1728 = vmatpush.bf16.msra.mxu0 %v1485
        %1729 = vmatpush.bf16.msra.mxu0 %v1483
        %1730 = vmatpush.bf16.msra.mxu0 %v1481
        %1731 = vmatpush.bf16.msra.mxu0 %v1479
        %1732 = vmatpush.bf16.msra.mxu0 %v1477
        %1733 = vmatpush.bf16.msra.mxu0 %v1475
        %1734 = vmatmul.bf16.gmra.mxu0 %v528
        %v1735 = vpop.f32.mrf.mxu0
        %v1736 = vadd.f32 %v1718, %v1735
        %v1737 = vpop.f32.mrf.mxu0
        %v1738 = vadd.f32 %v1720, %v1737
        %1739 = vmatmul.bf16.gmra.mxu0 %v1204
        %v1740 = vpop.f32.mrf.mxu0
        %v1741 = vadd.f32 %v1723, %v1740
        %v1742 = vpop.f32.mrf.mxu0
        %1743 = vdwg.mxu0
        %1744 = vmatpush.bf16.msra.mxu0 %v1505
        %1745 = vmatpush.bf16.msra.mxu0 %v1503
        %1746 = vmatpush.bf16.msra.mxu0 %v1501
        %1747 = vmatpush.bf16.msra.mxu0 %v1499
        %1748 = vmatpush.bf16.msra.mxu0 %v1497
        %1749 = vmatpush.bf16.msra.mxu0 %v1495
        %1750 = vmatpush.bf16.msra.mxu0 %v1493
        %1751 = vmatpush.bf16.msra.mxu0 %v1491
        %1752 = vmatmul.bf16.gmra.mxu0 %v529
        %v1753 = vpop.f32.mrf.mxu0
        %v1754 = vadd.f32 %v1736, %v1753
        %v1755 = vpop.f32.mrf.mxu0
        %v1756 = vadd.f32 %v1738, %v1755
        %1757 = vmatmul.bf16.gmra.mxu0 %v1205
        %v1758 = vpop.f32.mrf.mxu0
        %v1759 = vadd.f32 %v1741, %v1758
        %v1760 = vpop.f32.mrf.mxu0
        %1761 = vdwg.mxu0
        %1762 = vmatpush.bf16.msra.mxu0 %v1521
        %1763 = vmatpush.bf16.msra.mxu0 %v1519
        %1764 = vmatpush.bf16.msra.mxu0 %v1517
        %1765 = vmatpush.bf16.msra.mxu0 %v1515
        %1766 = vmatpush.bf16.msra.mxu0 %v1513
        %1767 = vmatpush.bf16.msra.mxu0 %v1511
        %1768 = vmatpush.bf16.msra.mxu0 %v1509
        %1769 = vmatpush.bf16.msra.mxu0 %v1507
        %1770 = vmatmul.bf16.gmra.mxu0 %v530
        %v1771 = vpop.f32.mrf.mxu0
        %v1772 = vadd.f32 %v1754, %v1771
        %v1773 = vpop.f32.mrf.mxu0
        %v1774 = vadd.f32 %v1756, %v1773
        %1775 = vmatmul.bf16.gmra.mxu0 %v1206
        %v1776 = vpop.f32.mrf.mxu0
        %v1777 = vadd.f32 %v1759, %v1776
        %v1778 = vpop.f32.mrf.mxu0
        %1779 = vdwg.mxu0
        %1780 = vmatpush.bf16.msra.mxu0 %v1537
        %1781 = vmatpush.bf16.msra.mxu0 %v1535
        %1782 = vmatpush.bf16.msra.mxu0 %v1533
        %1783 = vmatpush.bf16.msra.mxu0 %v1531
        %1784 = vmatpush.bf16.msra.mxu0 %v1529
        %1785 = vmatpush.bf16.msra.mxu0 %v1527
        %1786 = vmatpush.bf16.msra.mxu0 %v1525
        %1787 = vmatpush.bf16.msra.mxu0 %v1523
        %1788 = vmatmul.bf16.gmra.mxu0 %v531
        %v1789 = vpop.f32.mrf.mxu0
        %v1790 = vadd.f32 %v1772, %v1789
        %v1791 = vpop.f32.mrf.mxu0
        %v1792 = vadd.f32 %v1774, %v1791
        %1793 = vmatmul.bf16.gmra.mxu0 %v1207
        %v1794 = vpop.f32.mrf.mxu0
        %v1795 = vadd.f32 %v1777, %v1794
        %v1796 = vpop.f32.mrf.mxu0
        %1797 = vdwg.mxu0
        %v1798 = vld [vmem:[%s290] sm:$0xee]
        %v1799 = vld [vmem:[%s290 + $0x8] sm:$0xee]
        %v1800 = vld [vmem:[%s290 + $0x10] sm:$0xe]
        %s1801 = scalar_lea.vmem %s1, 1280
        %v1802 = vld [vmem:[%s1801] sm:$0xff]
        %v1803 = vld [vmem:[%s1801 + $0x8] sm:$0xff]
        %v1804 = vld [vmem:[%s1801 + $0x10] sm:$0xff]
        %v1805 = vld [vmem:[%s1801 + $0x18] sm:$0xff]
        %v1806 = vld [vmem:[%s1801 + $0x20] sm:$0xff]
        %v1807 = vld [vmem:[%s1801 + $0x28] sm:$0xff]
        %v1808 = vld [vmem:[%s1801 + $0x30] sm:$0xff]
        %v1809 = vld [vmem:[%s1801 + $0x38] sm:$0xff]
        %v1810 = vld [vmem:[%s1801 + $0x40] sm:$0xff]
        %v1811 = vld [vmem:[%s1801 + $0x48] sm:$0xff]
        %v1812 = vld [vmem:[%s1801 + $0x50] sm:$0xff]
        %v1813 = vld [vmem:[%s1801 + $0x58] sm:$0xff]
        %v1814 = vld [vmem:[%s1801 + $0x60] sm:$0xff]
        %v1815 = vld [vmem:[%s1801 + $0x68] sm:$0xff]
        %v1816 = vld [vmem:[%s1801 + $0x70] sm:$0xff]
        %v1817 = vld [vmem:[%s1801 + $0x78] sm:$0xff]
        %v1818 = vld [vmem:[%s1801 + $0x80] sm:$0xff]
        %v1819 = vld [vmem:[%s1801 + $0x88] sm:$0xff]
        %v1820 = vld [vmem:[%s1801 + $0x90] sm:$0xff]
        %v1821 = vld [vmem:[%s1801 + $0x98] sm:$0xff]
        %v1822 = vld [vmem:[%s1801 + $0xa0] sm:$0xff]
        %v1823 = vld [vmem:[%s1801 + $0xa8] sm:$0xff]
        %v1824 = vld [vmem:[%s1801 + $0xb0] sm:$0xff]
        %v1825 = vld [vmem:[%s1801 + $0xb8] sm:$0xff]
        %v1826 = vld [vmem:[%s1801 + $0xc0] sm:$0xff]
        %v1827 = vld [vmem:[%s1801 + $0xc8] sm:$0xff]
        %v1828 = vld [vmem:[%s1801 + $0xd0] sm:$0xff]
        %v1829 = vld [vmem:[%s1801 + $0xd8] sm:$0xff]
        %v1830 = vld [vmem:[%s1801 + $0xe0] sm:$0xff]
        %v1831 = vld [vmem:[%s1801 + $0xe8] sm:$0xff]
        %v1832 = vld [vmem:[%s1801 + $0xf0] sm:$0xff]
        %v1833 = vld [vmem:[%s1801 + $0xf8] sm:$0xff]
        %v1834 = vld [vmem:[%s1801 + $0x100] sm:$0xff]
        %v1835 = vld [vmem:[%s1801 + $0x108] sm:$0xff]
        %v1836 = vld [vmem:[%s1801 + $0x110] sm:$0xff]
        %v1837 = vld [vmem:[%s1801 + $0x118] sm:$0xff]
        %v1838 = vld [vmem:[%s1801 + $0x120] sm:$0xff]
        %v1839 = vld [vmem:[%s1801 + $0x128] sm:$0xff]
        %v1840 = vld [vmem:[%s1801 + $0x130] sm:$0xff]
        %v1841 = vld [vmem:[%s1801 + $0x138] sm:$0xff]
        %v1842 = vld [vmem:[%s1801 + $0x140] sm:$0xff]
        %v1843 = vld [vmem:[%s1801 + $0x148] sm:$0xff]
        %v1844 = vld [vmem:[%s1801 + $0x150] sm:$0xff]
        %v1845 = vld [vmem:[%s1801 + $0x158] sm:$0xff]
        %v1846 = vld [vmem:[%s1801 + $0x160] sm:$0xff]
        %v1847 = vld [vmem:[%s1801 + $0x168] sm:$0xff]
        %v1848 = vld [vmem:[%s1801 + $0x170] sm:$0xff]
        %v1849 = vld [vmem:[%s1801 + $0x178] sm:$0xff]
        %v1850 = vld [vmem:[%s1801 + $0x180] sm:$0xff]
        %v1851 = vld [vmem:[%s1801 + $0x188] sm:$0xff]
        %v1852 = vld [vmem:[%s1801 + $0x190] sm:$0xff]
        %v1853 = vld [vmem:[%s1801 + $0x198] sm:$0xff]
        %v1854 = vld [vmem:[%s1801 + $0x1a0] sm:$0xff]
        %v1855 = vld [vmem:[%s1801 + $0x1a8] sm:$0xff]
        %v1856 = vld [vmem:[%s1801 + $0x1b0] sm:$0xff]
        %v1857 = vld [vmem:[%s1801 + $0x1b8] sm:$0xff]
        %v1858 = vld [vmem:[%s1801 + $0x1c0] sm:$0xff]
        %v1859 = vld [vmem:[%s1801 + $0x1c8] sm:$0xff]
        %v1860 = vld [vmem:[%s1801 + $0x1d0] sm:$0xff]
        %v1861 = vld [vmem:[%s1801 + $0x1d8] sm:$0xff]
        %v1862 = vld [vmem:[%s1801 + $0x1e0] sm:$0xff]
        %v1863 = vld [vmem:[%s1801 + $0x1e8] sm:$0xff]
        %v1864 = vld [vmem:[%s1801 + $0x1f0] sm:$0xff]
        %v1865 = vld [vmem:[%s1801 + $0x1f8] sm:$0xff]
        %v1866 = vld [vmem:[%s1801 + $0x200] sm:$0xff]
        %v1867 = vld [vmem:[%s1801 + $0x208] sm:$0xff]
        %v1868 = vld [vmem:[%s1801 + $0x210] sm:$0xff]
        %v1869 = vld [vmem:[%s1801 + $0x218] sm:$0xff]
        %v1870 = vld [vmem:[%s1801 + $0x220] sm:$0xff]
        %v1871 = vld [vmem:[%s1801 + $0x228] sm:$0xff]
        %v1872 = vld [vmem:[%s1801 + $0x230] sm:$0xff]
        %v1873 = vld [vmem:[%s1801 + $0x238] sm:$0xff]
        %v1874 = vld [vmem:[%s1801 + $0x240] sm:$0xff]
        %v1875 = vld [vmem:[%s1801 + $0x248] sm:$0xff]
        %v1876 = vld [vmem:[%s1801 + $0x250] sm:$0xff]
        %v1877 = vld [vmem:[%s1801 + $0x258] sm:$0xff]
        %v1878 = vld [vmem:[%s1801 + $0x260] sm:$0xff]
        %v1879 = vld [vmem:[%s1801 + $0x268] sm:$0xff]
        %v1880 = vld [vmem:[%s1801 + $0x270] sm:$0xff]
        %v1881 = vld [vmem:[%s1801 + $0x278] sm:$0xff]
        %v1885 = vunpack.c.l.b16 %v1798
        %v1886 = vunpack.c.h.b16 %v1798
        %v1887 = vunpack.c.l.b16 %v1799
        %v1888 = vunpack.c.h.b16 %v1799
        %v1889 = vunpack.c.l.b16 %v1800
        %v1890 = vpack.c.b16 %v512, %v1885
        %v1891 = vpack.c.b16 %v513, %v1886
        %v1892 = vpack.c.b16 %v514, %v1887
        %v1893 = vpack.c.b16 %v515, %v1888
        %v1894 = vpack.c.b16 %v516, %v1889
        %vm1895 = vcmask 1046528
        %v1896 = vrot.slane %v1890, 1
        %v1897 = vrot.slane %v532, 1
        %v1898 = vsel %vm1895, %v1896, %v1897
        %v1899 = vrot.slane %v1891, 1
        %v1900 = vrot.slane %v533, 1
        %v1901 = vsel %vm1895, %v1899, %v1900
        %v1902 = vrot.slane %v1892, 1
        %v1903 = vrot.slane %v534, 1
        %v1904 = vsel %vm1895, %v1902, %v1903
        %v1905 = vrot.slane %v1893, 1
        %v1906 = vrot.slane %v535, 1
        %v1907 = vsel %vm1895, %v1905, %v1906
        %v1908 = vrot.slane %v1894, 1
        %v1909 = vrot.slane %v536, 1
        %v1910 = vsel %vm1895, %v1908, %v1909
        %v2001 = vunpack.c.l.b16 %v1802
        %v2002 = vunpack.c.h.b16 %v1802
        %v2003 = vunpack.c.l.b16 %v1803
        %v2004 = vunpack.c.h.b16 %v1803
        %v2005 = vunpack.c.l.b16 %v1804
        %v2006 = vunpack.c.h.b16 %v1804
        %v2007 = vunpack.c.l.b16 %v1805
        %v2008 = vunpack.c.h.b16 %v1805
        %v2009 = vunpack.c.l.b16 %v1806
        %v2010 = vunpack.c.h.b16 %v1806
        %v2011 = vunpack.c.l.b16 %v1807
        %v2012 = vunpack.c.h.b16 %v1807
        %v2013 = vunpack.c.l.b16 %v1808
        %v2014 = vunpack.c.h.b16 %v1808
        %v2015 = vunpack.c.l.b16 %v1809
        %v2016 = vunpack.c.h.b16 %v1809
        %v2017 = vunpack.c.l.b16 %v1810
        %v2018 = vunpack.c.h.b16 %v1810
        %v2019 = vunpack.c.l.b16 %v1811
        %v2020 = vunpack.c.h.b16 %v1811
        %v2021 = vunpack.c.l.b16 %v1812
        %v2022 = vunpack.c.h.b16 %v1812
        %v2023 = vunpack.c.l.b16 %v1813
        %v2024 = vunpack.c.h.b16 %v1813
        %v2025 = vunpack.c.l.b16 %v1814
        %v2026 = vunpack.c.h.b16 %v1814
        %v2027 = vunpack.c.l.b16 %v1815
        %v2028 = vunpack.c.h.b16 %v1815
        %v2029 = vunpack.c.l.b16 %v1816
        %v2030 = vunpack.c.h.b16 %v1816
        %v2031 = vunpack.c.l.b16 %v1817
        %v2032 = vunpack.c.h.b16 %v1817
        %v2033 = vunpack.c.l.b16 %v1818
        %v2034 = vunpack.c.h.b16 %v1818
        %v2035 = vunpack.c.l.b16 %v1819
        %v2036 = vunpack.c.h.b16 %v1819
        %v2037 = vunpack.c.l.b16 %v1820
        %v2038 = vunpack.c.h.b16 %v1820
        %v2039 = vunpack.c.l.b16 %v1821
        %v2040 = vunpack.c.h.b16 %v1821
        %v2041 = vunpack.c.l.b16 %v1822
        %v2042 = vunpack.c.h.b16 %v1822
        %v2043 = vunpack.c.l.b16 %v1823
        %v2044 = vunpack.c.h.b16 %v1823
        %v2045 = vunpack.c.l.b16 %v1824
        %v2046 = vunpack.c.h.b16 %v1824
        %v2047 = vunpack.c.l.b16 %v1825
        %v2048 = vunpack.c.h.b16 %v1825
        %v2049 = vunpack.c.l.b16 %v1826
        %v2050 = vunpack.c.h.b16 %v1826
        %v2051 = vunpack.c.l.b16 %v1827
        %v2052 = vunpack.c.h.b16 %v1827
        %v2053 = vunpack.c.l.b16 %v1828
        %v2054 = vunpack.c.h.b16 %v1828
        %v2055 = vunpack.c.l.b16 %v1829
        %v2056 = vunpack.c.h.b16 %v1829
        %v2057 = vunpack.c.l.b16 %v1830
        %v2058 = vunpack.c.h.b16 %v1830
        %v2059 = vunpack.c.l.b16 %v1831
        %v2060 = vunpack.c.h.b16 %v1831
        %v2061 = vunpack.c.l.b16 %v1832
        %v2062 = vunpack.c.h.b16 %v1832
        %v2063 = vunpack.c.l.b16 %v1833
        %v2064 = vunpack.c.h.b16 %v1833
        %v2065 = vunpack.c.l.b16 %v1834
        %v2066 = vunpack.c.h.b16 %v1834
        %v2067 = vunpack.c.l.b16 %v1835
        %v2068 = vunpack.c.h.b16 %v1835
        %v2069 = vunpack.c.l.b16 %v1836
        %v2070 = vunpack.c.h.b16 %v1836
        %v2071 = vunpack.c.l.b16 %v1837
        %v2072 = vunpack.c.h.b16 %v1837
        %v2073 = vunpack.c.l.b16 %v1838
        %v2074 = vunpack.c.h.b16 %v1838
        %v2075 = vunpack.c.l.b16 %v1839
        %v2076 = vunpack.c.h.b16 %v1839
        %v2077 = vunpack.c.l.b16 %v1840
        %v2078 = vunpack.c.h.b16 %v1840
        %v2079 = vunpack.c.l.b16 %v1841
        %v2080 = vunpack.c.h.b16 %v1841
        %v2081 = vunpack.c.l.b16 %v1842
        %v2082 = vunpack.c.h.b16 %v1842
        %v2083 = vunpack.c.l.b16 %v1843
        %v2084 = vunpack.c.h.b16 %v1843
        %v2085 = vunpack.c.l.b16 %v1844
        %v2086 = vunpack.c.h.b16 %v1844
        %v2087 = vunpack.c.l.b16 %v1845
        %v2088 = vunpack.c.h.b16 %v1845
        %v2089 = vunpack.c.l.b16 %v1846
        %v2090 = vunpack.c.h.b16 %v1846
        %v2091 = vunpack.c.l.b16 %v1847
        %v2092 = vunpack.c.h.b16 %v1847
        %v2093 = vunpack.c.l.b16 %v1848
        %v2094 = vunpack.c.h.b16 %v1848
        %v2095 = vunpack.c.l.b16 %v1849
        %v2096 = vunpack.c.h.b16 %v1849
        %v2097 = vunpack.c.l.b16 %v1850
        %v2098 = vunpack.c.h.b16 %v1850
        %v2099 = vunpack.c.l.b16 %v1851
        %v2100 = vunpack.c.h.b16 %v1851
        %v2101 = vunpack.c.l.b16 %v1852
        %v2102 = vunpack.c.h.b16 %v1852
        %v2103 = vunpack.c.l.b16 %v1853
        %v2104 = vunpack.c.h.b16 %v1853
        %v2105 = vunpack.c.l.b16 %v1854
        %v2106 = vunpack.c.h.b16 %v1854
        %v2107 = vunpack.c.l.b16 %v1855
        %v2108 = vunpack.c.h.b16 %v1855
        %v2109 = vunpack.c.l.b16 %v1856
        %v2110 = vunpack.c.h.b16 %v1856
        %v2111 = vunpack.c.l.b16 %v1857
        %v2112 = vunpack.c.h.b16 %v1857
        %v2113 = vunpack.c.l.b16 %v1858
        %v2114 = vunpack.c.h.b16 %v1858
        %v2115 = vunpack.c.l.b16 %v1859
        %v2116 = vunpack.c.h.b16 %v1859
        %v2117 = vunpack.c.l.b16 %v1860
        %v2118 = vunpack.c.h.b16 %v1860
        %v2119 = vunpack.c.l.b16 %v1861
        %v2120 = vunpack.c.h.b16 %v1861
        %v2121 = vunpack.c.l.b16 %v1862
        %v2122 = vunpack.c.h.b16 %v1862
        %v2123 = vunpack.c.l.b16 %v1863
        %v2124 = vunpack.c.h.b16 %v1863
        %v2125 = vunpack.c.l.b16 %v1864
        %v2126 = vunpack.c.h.b16 %v1864
        %v2127 = vunpack.c.l.b16 %v1865
        %v2128 = vunpack.c.h.b16 %v1865
        %v2129 = vunpack.c.l.b16 %v1866
        %v2130 = vunpack.c.h.b16 %v1866
        %v2131 = vunpack.c.l.b16 %v1867
        %v2132 = vunpack.c.h.b16 %v1867
        %v2133 = vunpack.c.l.b16 %v1868
        %v2134 = vunpack.c.h.b16 %v1868
        %v2135 = vunpack.c.l.b16 %v1869
        %v2136 = vunpack.c.h.b16 %v1869
        %v2137 = vunpack.c.l.b16 %v1870
        %v2138 = vunpack.c.h.b16 %v1870
        %v2139 = vunpack.c.l.b16 %v1871
        %v2140 = vunpack.c.h.b16 %v1871
        %v2141 = vunpack.c.l.b16 %v1872
        %v2142 = vunpack.c.h.b16 %v1872
        %v2143 = vunpack.c.l.b16 %v1873
        %v2144 = vunpack.c.h.b16 %v1873
        %v2145 = vunpack.c.l.b16 %v1874
        %v2146 = vunpack.c.h.b16 %v1874
        %v2147 = vunpack.c.l.b16 %v1875
        %v2148 = vunpack.c.h.b16 %v1875
        %v2149 = vunpack.c.l.b16 %v1876
        %v2150 = vunpack.c.h.b16 %v1876
        %v2151 = vunpack.c.l.b16 %v1877
        %v2152 = vunpack.c.h.b16 %v1877
        %v2153 = vunpack.c.l.b16 %v1878
        %v2154 = vunpack.c.h.b16 %v1878
        %v2155 = vunpack.c.l.b16 %v1879
        %v2156 = vunpack.c.h.b16 %v1879
        %v2157 = vunpack.c.l.b16 %v1880
        %v2158 = vunpack.c.h.b16 %v1880
        %v2159 = vunpack.c.l.b16 %v1881
        %v2160 = vunpack.c.h.b16 %v1881
        %v2161 = vpack.c.b16 %v2003, %v2001
        %v2162 = vpack.c.b16 %v2004, %v2002
        %v2163 = vpack.c.b16 %v2007, %v2005
        %v2164 = vpack.c.b16 %v2008, %v2006
        %v2165 = vpack.c.b16 %v2011, %v2009
        %v2166 = vpack.c.b16 %v2012, %v2010
        %v2167 = vpack.c.b16 %v2015, %v2013
        %v2168 = vpack.c.b16 %v2016, %v2014
        %v2169 = vpack.c.b16 %v2019, %v2017
        %v2170 = vpack.c.b16 %v2020, %v2018
        %v2171 = vpack.c.b16 %v2023, %v2021
        %v2172 = vpack.c.b16 %v2024, %v2022
        %v2173 = vpack.c.b16 %v2027, %v2025
        %v2174 = vpack.c.b16 %v2028, %v2026
        %v2175 = vpack.c.b16 %v2031, %v2029
        %v2176 = vpack.c.b16 %v2032, %v2030
        %v2177 = vpack.c.b16 %v2035, %v2033
        %v2178 = vpack.c.b16 %v2036, %v2034
        %v2179 = vpack.c.b16 %v2039, %v2037
        %v2180 = vpack.c.b16 %v2040, %v2038
        %v2181 = vpack.c.b16 %v2043, %v2041
        %v2182 = vpack.c.b16 %v2044, %v2042
        %v2183 = vpack.c.b16 %v2047, %v2045
        %v2184 = vpack.c.b16 %v2048, %v2046
        %v2185 = vpack.c.b16 %v2051, %v2049
        %v2186 = vpack.c.b16 %v2052, %v2050
        %v2187 = vpack.c.b16 %v2055, %v2053
        %v2188 = vpack.c.b16 %v2056, %v2054
        %v2189 = vpack.c.b16 %v2059, %v2057
        %v2190 = vpack.c.b16 %v2060, %v2058
        %v2191 = vpack.c.b16 %v2063, %v2061
        %v2192 = vpack.c.b16 %v2064, %v2062
        %v2193 = vpack.c.b16 %v2067, %v2065
        %v2194 = vpack.c.b16 %v2068, %v2066
        %v2195 = vpack.c.b16 %v2071, %v2069
        %v2196 = vpack.c.b16 %v2072, %v2070
        %v2197 = vpack.c.b16 %v2075, %v2073
        %v2198 = vpack.c.b16 %v2076, %v2074
        %v2199 = vpack.c.b16 %v2079, %v2077
        %v2200 = vpack.c.b16 %v2080, %v2078
        %v2201 = vpack.c.b16 %v2083, %v2081
        %v2202 = vpack.c.b16 %v2084, %v2082
        %v2203 = vpack.c.b16 %v2087, %v2085
        %v2204 = vpack.c.b16 %v2088, %v2086
        %v2205 = vpack.c.b16 %v2091, %v2089
        %v2206 = vpack.c.b16 %v2092, %v2090
        %v2207 = vpack.c.b16 %v2095, %v2093
        %v2208 = vpack.c.b16 %v2096, %v2094
        %v2209 = vpack.c.b16 %v2099, %v2097
        %v2210 = vpack.c.b16 %v2100, %v2098
        %v2211 = vpack.c.b16 %v2103, %v2101
        %v2212 = vpack.c.b16 %v2104, %v2102
        %v2213 = vpack.c.b16 %v2107, %v2105
        %v2214 = vpack.c.b16 %v2108, %v2106
        %v2215 = vpack.c.b16 %v2111, %v2109
        %v2216 = vpack.c.b16 %v2112, %v2110
        %v2217 = vpack.c.b16 %v2115, %v2113
        %v2218 = vpack.c.b16 %v2116, %v2114
        %v2219 = vpack.c.b16 %v2119, %v2117
        %v2220 = vpack.c.b16 %v2120, %v2118
        %v2221 = vpack.c.b16 %v2123, %v2121
        %v2222 = vpack.c.b16 %v2124, %v2122
        %v2223 = vpack.c.b16 %v2127, %v2125
        %v2224 = vpack.c.b16 %v2128, %v2126
        %v2225 = vpack.c.b16 %v2131, %v2129
        %v2226 = vpack.c.b16 %v2132, %v2130
        %v2227 = vpack.c.b16 %v2135, %v2133
        %v2228 = vpack.c.b16 %v2136, %v2134
        %v2229 = vpack.c.b16 %v2139, %v2137
        %v2230 = vpack.c.b16 %v2140, %v2138
        %v2231 = vpack.c.b16 %v2143, %v2141
        %v2232 = vpack.c.b16 %v2144, %v2142
        %v2233 = vpack.c.b16 %v2147, %v2145
        %v2234 = vpack.c.b16 %v2148, %v2146
        %v2235 = vpack.c.b16 %v2151, %v2149
        %v2236 = vpack.c.b16 %v2152, %v2150
        %v2237 = vpack.c.b16 %v2155, %v2153
        %v2238 = vpack.c.b16 %v2156, %v2154
        %v2239 = vpack.c.b16 %v2159, %v2157
        %v2240 = vpack.c.b16 %v2160, %v2158
        %2321 = vmatpush.bf16.msra.mxu0 %v2175
        %2322 = vmatpush.bf16.msra.mxu0 %v2173
        %2323 = vmatpush.bf16.msra.mxu0 %v2171
        %2324 = vmatpush.bf16.msra.mxu0 %v2169
        %2325 = vmatpush.bf16.msra.mxu0 %v2167
        %2326 = vmatpush.bf16.msra.mxu0 %v2165
        %2327 = vmatpush.bf16.msra.mxu0 %v2163
        %2328 = vmatpush.bf16.msra.mxu0 %v2161
        %2329 = vmatmul.bf16.gmra.mxu0 %v1898
        %v2330 = vpop.f32.mrf.mxu0
        %v2331 = vadd.f32 0.0, %v2330
        %v2332 = vpop.f32.mrf.mxu0
        %v2333 = vadd.f32 0.0, %v2332
        %2334 = vmatmul.bf16.gmra.mxu0 %v1897
        %v2335 = vpop.f32.mrf.mxu0
        %v2336 = vadd.f32 0.0, %v2335
        %v2337 = vpop.f32.mrf.mxu0
        %2338 = vdwg.mxu0
        %2339 = vmatpush.bf16.msra.mxu0 %v2191
        %2340 = vmatpush.bf16.msra.mxu0 %v2189
        %2341 = vmatpush.bf16.msra.mxu0 %v2187
        %2342 = vmatpush.bf16.msra.mxu0 %v2185
        %2343 = vmatpush.bf16.msra.mxu0 %v2183
        %2344 = vmatpush.bf16.msra.mxu0 %v2181
        %2345 = vmatpush.bf16.msra.mxu0 %v2179
        %2346 = vmatpush.bf16.msra.mxu0 %v2177
        %2347 = vmatmul.bf16.gmra.mxu0 %v1901
        %v2348 = vpop.f32.mrf.mxu0
        %v2349 = vadd.f32 %v2331, %v2348
        %v2350 = vpop.f32.mrf.mxu0
        %v2351 = vadd.f32 %v2333, %v2350
        %2352 = vmatmul.bf16.gmra.mxu0 %v1900
        %v2353 = vpop.f32.mrf.mxu0
        %v2354 = vadd.f32 %v2336, %v2353
        %v2355 = vpop.f32.mrf.mxu0
        %2356 = vdwg.mxu0
        %2357 = vmatpush.bf16.msra.mxu0 %v2207
        %2358 = vmatpush.bf16.msra.mxu0 %v2205
        %2359 = vmatpush.bf16.msra.mxu0 %v2203
        %2360 = vmatpush.bf16.msra.mxu0 %v2201
        %2361 = vmatpush.bf16.msra.mxu0 %v2199
        %2362 = vmatpush.bf16.msra.mxu0 %v2197
        %2363 = vmatpush.bf16.msra.mxu0 %v2195
        %2364 = vmatpush.bf16.msra.mxu0 %v2193
        %2365 = vmatmul.bf16.gmra.mxu0 %v1904
        %v2366 = vpop.f32.mrf.mxu0
        %v2367 = vadd.f32 %v2349, %v2366
        %v2368 = vpop.f32.mrf.mxu0
        %v2369 = vadd.f32 %v2351, %v2368
        %2370 = vmatmul.bf16.gmra.mxu0 %v1903
        %v2371 = vpop.f32.mrf.mxu0
        %v2372 = vadd.f32 %v2354, %v2371
        %v2373 = vpop.f32.mrf.mxu0
        %2374 = vdwg.mxu0
        %2375 = vmatpush.bf16.msra.mxu0 %v2223
        %2376 = vmatpush.bf16.msra.mxu0 %v2221
        %2377 = vmatpush.bf16.msra.mxu0 %v2219
        %2378 = vmatpush.bf16.msra.mxu0 %v2217
        %2379 = vmatpush.bf16.msra.mxu0 %v2215
        %2380 = vmatpush.bf16.msra.mxu0 %v2213
        %2381 = vmatpush.bf16.msra.mxu0 %v2211
        %2382 = vmatpush.bf16.msra.mxu0 %v2209
        %2383 = vmatmul.bf16.gmra.mxu0 %v1907
        %v2384 = vpop.f32.mrf.mxu0
        %v2385 = vadd.f32 %v2367, %v2384
        %v2386 = vpop.f32.mrf.mxu0
        %v2387 = vadd.f32 %v2369, %v2386
        %2388 = vmatmul.bf16.gmra.mxu0 %v1906
        %v2389 = vpop.f32.mrf.mxu0
        %v2390 = vadd.f32 %v2372, %v2389
        %v2391 = vpop.f32.mrf.mxu0
        %2392 = vdwg.mxu0
        %2393 = vmatpush.bf16.msra.mxu0 %v2239
        %2394 = vmatpush.bf16.msra.mxu0 %v2237
        %2395 = vmatpush.bf16.msra.mxu0 %v2235
        %2396 = vmatpush.bf16.msra.mxu0 %v2233
        %2397 = vmatpush.bf16.msra.mxu0 %v2231
        %2398 = vmatpush.bf16.msra.mxu0 %v2229
        %2399 = vmatpush.bf16.msra.mxu0 %v2227
        %2400 = vmatpush.bf16.msra.mxu0 %v2225
        %2401 = vmatmul.bf16.gmra.mxu0 %v1910
        %v2402 = vpop.f32.mrf.mxu0
        %v2403 = vadd.f32 %v2385, %v2402
        %v2404 = vpop.f32.mrf.mxu0
        %v2405 = vadd.f32 %v2387, %v2404
        %2406 = vmatmul.bf16.gmra.mxu0 %v1909
        %v2407 = vpop.f32.mrf.mxu0
        %v2408 = vadd.f32 %v2390, %v2407
        %v2409 = vpop.f32.mrf.mxu0
        %2410 = vdwg.mxu0
        %2411 = vmatpush.bf16.msra.mxu0 %v2176
        %2412 = vmatpush.bf16.msra.mxu0 %v2174
        %2413 = vmatpush.bf16.msra.mxu0 %v2172
        %2414 = vmatpush.bf16.msra.mxu0 %v2170
        %2415 = vmatpush.bf16.msra.mxu0 %v2168
        %2416 = vmatpush.bf16.msra.mxu0 %v2166
        %2417 = vmatpush.bf16.msra.mxu0 %v2164
        %2418 = vmatpush.bf16.msra.mxu0 %v2162
        %2419 = vmatmul.bf16.gmra.mxu0 %v1898
        %v2420 = vpop.f32.mrf.mxu0
        %v2421 = vadd.f32 0.0, %v2420
        %v2422 = vpop.f32.mrf.mxu0
        %v2423 = vadd.f32 0.0, %v2422
        %2424 = vmatmul.bf16.gmra.mxu0 %v1897
        %v2425 = vpop.f32.mrf.mxu0
        %v2426 = vadd.f32 0.0, %v2425
        %v2427 = vpop.f32.mrf.mxu0
        %2428 = vdwg.mxu0
        %2429 = vmatpush.bf16.msra.mxu0 %v2192
        %2430 = vmatpush.bf16.msra.mxu0 %v2190
        %2431 = vmatpush.bf16.msra.mxu0 %v2188
        %2432 = vmatpush.bf16.msra.mxu0 %v2186
        %2433 = vmatpush.bf16.msra.mxu0 %v2184
        %2434 = vmatpush.bf16.msra.mxu0 %v2182
        %2435 = vmatpush.bf16.msra.mxu0 %v2180
        %2436 = vmatpush.bf16.msra.mxu0 %v2178
        %2437 = vmatmul.bf16.gmra.mxu0 %v1901
        %v2438 = vpop.f32.mrf.mxu0
        %v2439 = vadd.f32 %v2421, %v2438
        %v2440 = vpop.f32.mrf.mxu0
        %v2441 = vadd.f32 %v2423, %v2440
        %2442 = vmatmul.bf16.gmra.mxu0 %v1900
        %v2443 = vpop.f32.mrf.mxu0
        %v2444 = vadd.f32 %v2426, %v2443
        %v2445 = vpop.f32.mrf.mxu0
        %2446 = vdwg.mxu0
        %2447 = vmatpush.bf16.msra.mxu0 %v2208
        %2448 = vmatpush.bf16.msra.mxu0 %v2206
        %2449 = vmatpush.bf16.msra.mxu0 %v2204
        %2450 = vmatpush.bf16.msra.mxu0 %v2202
        %2451 = vmatpush.bf16.msra.mxu0 %v2200
        %2452 = vmatpush.bf16.msra.mxu0 %v2198
        %2453 = vmatpush.bf16.msra.mxu0 %v2196
        %2454 = vmatpush.bf16.msra.mxu0 %v2194
        %2455 = vmatmul.bf16.gmra.mxu0 %v1904
        %v2456 = vpop.f32.mrf.mxu0
        %v2457 = vadd.f32 %v2439, %v2456
        %v2458 = vpop.f32.mrf.mxu0
        %v2459 = vadd.f32 %v2441, %v2458
        %2460 = vmatmul.bf16.gmra.mxu0 %v1903
        %v2461 = vpop.f32.mrf.mxu0
        %v2462 = vadd.f32 %v2444, %v2461
        %v2463 = vpop.f32.mrf.mxu0
        %2464 = vdwg.mxu0
        %2465 = vmatpush.bf16.msra.mxu0 %v2224
        %2466 = vmatpush.bf16.msra.mxu0 %v2222
        %2467 = vmatpush.bf16.msra.mxu0 %v2220
        %2468 = vmatpush.bf16.msra.mxu0 %v2218
        %2469 = vmatpush.bf16.msra.mxu0 %v2216
        %2470 = vmatpush.bf16.msra.mxu0 %v2214
        %2471 = vmatpush.bf16.msra.mxu0 %v2212
        %2472 = vmatpush.bf16.msra.mxu0 %v2210
        %2473 = vmatmul.bf16.gmra.mxu0 %v1907
        %v2474 = vpop.f32.mrf.mxu0
        %v2475 = vadd.f32 %v2457, %v2474
        %v2476 = vpop.f32.mrf.mxu0
        %v2477 = vadd.f32 %v2459, %v2476
        %2478 = vmatmul.bf16.gmra.mxu0 %v1906
        %v2479 = vpop.f32.mrf.mxu0
        %v2480 = vadd.f32 %v2462, %v2479
        %v2481 = vpop.f32.mrf.mxu0
        %2482 = vdwg.mxu0
        %2483 = vmatpush.bf16.msra.mxu0 %v2240
        %2484 = vmatpush.bf16.msra.mxu0 %v2238
        %2485 = vmatpush.bf16.msra.mxu0 %v2236
        %2486 = vmatpush.bf16.msra.mxu0 %v2234
        %2487 = vmatpush.bf16.msra.mxu0 %v2232
        %2488 = vmatpush.bf16.msra.mxu0 %v2230
        %2489 = vmatpush.bf16.msra.mxu0 %v2228
        %2490 = vmatpush.bf16.msra.mxu0 %v2226
        %2491 = vmatmul.bf16.gmra.mxu0 %v1910
        %v2492 = vpop.f32.mrf.mxu0
        %v2493 = vadd.f32 %v2475, %v2492
        %v2494 = vpop.f32.mrf.mxu0
        %v2495 = vadd.f32 %v2477, %v2494
        %2496 = vmatmul.bf16.gmra.mxu0 %v1909
        %v2497 = vpop.f32.mrf.mxu0
        %v2498 = vadd.f32 %v2480, %v2497
        %v2499 = vpop.f32.mrf.mxu0
        %2500 = vdwg.mxu0
        %v2501 = vadd.f32 %v1700, %v2403
        %v2502 = vadd.f32 %v1790, %v2493
        %v2503 = vadd.f32 %v1702, %v2405
        %v2504 = vadd.f32 %v1792, %v2495
        %v2505 = vadd.f32 %v1705, %v2408
        %v2506 = vadd.f32 %v1795, %v2498
        %v2507 = vld [vmem:[%s290 + $0x3c] sm:$0x33]
        %v2508 = vld [vmem:[%s290 + $0x44] sm:$0x33]
        %v2509 = vld [vmem:[%s290 + $0x4c] sm:$0x3]
        %s2510 = scalar_lea.vmem %s1, 1920
        %v2511 = vld [vmem:[%s2510] sm:$0xff]
        %v2512 = vld [vmem:[%s2510 + $0x8] sm:$0xff]
        %v2513 = vld [vmem:[%s2510 + $0x10] sm:$0xff]
        %v2514 = vld [vmem:[%s2510 + $0x18] sm:$0xff]
        %v2515 = vld [vmem:[%s2510 + $0x20] sm:$0xff]
        %v2516 = vld [vmem:[%s2510 + $0x28] sm:$0xff]
        %v2517 = vld [vmem:[%s2510 + $0x30] sm:$0xff]
        %v2518 = vld [vmem:[%s2510 + $0x38] sm:$0xff]
        %v2519 = vld [vmem:[%s2510 + $0x40] sm:$0xff]
        %v2520 = vld [vmem:[%s2510 + $0x48] sm:$0xff]
        %v2521 = vld [vmem:[%s2510 + $0x50] sm:$0xff]
        %v2522 = vld [vmem:[%s2510 + $0x58] sm:$0xff]
        %v2523 = vld [vmem:[%s2510 + $0x60] sm:$0xff]
        %v2524 = vld [vmem:[%s2510 + $0x68] sm:$0xff]
        %v2525 = vld [vmem:[%s2510 + $0x70] sm:$0xff]
        %v2526 = vld [vmem:[%s2510 + $0x78] sm:$0xff]
        %v2527 = vld [vmem:[%s2510 + $0x80] sm:$0xff]
        %v2528 = vld [vmem:[%s2510 + $0x88] sm:$0xff]
        %v2529 = vld [vmem:[%s2510 + $0x90] sm:$0xff]
        %v2530 = vld [vmem:[%s2510 + $0x98] sm:$0xff]
        %v2531 = vld [vmem:[%s2510 + $0xa0] sm:$0xff]
        %v2532 = vld [vmem:[%s2510 + $0xa8] sm:$0xff]
        %v2533 = vld [vmem:[%s2510 + $0xb0] sm:$0xff]
        %v2534 = vld [vmem:[%s2510 + $0xb8] sm:$0xff]
        %v2535 = vld [vmem:[%s2510 + $0xc0] sm:$0xff]
        %v2536 = vld [vmem:[%s2510 + $0xc8] sm:$0xff]
        %v2537 = vld [vmem:[%s2510 + $0xd0] sm:$0xff]
        %v2538 = vld [vmem:[%s2510 + $0xd8] sm:$0xff]
        %v2539 = vld [vmem:[%s2510 + $0xe0] sm:$0xff]
        %v2540 = vld [vmem:[%s2510 + $0xe8] sm:$0xff]
        %v2541 = vld [vmem:[%s2510 + $0xf0] sm:$0xff]
        %v2542 = vld [vmem:[%s2510 + $0xf8] sm:$0xff]
        %v2543 = vld [vmem:[%s2510 + $0x100] sm:$0xff]
        %v2544 = vld [vmem:[%s2510 + $0x108] sm:$0xff]
        %v2545 = vld [vmem:[%s2510 + $0x110] sm:$0xff]
        %v2546 = vld [vmem:[%s2510 + $0x118] sm:$0xff]
        %v2547 = vld [vmem:[%s2510 + $0x120] sm:$0xff]
        %v2548 = vld [vmem:[%s2510 + $0x128] sm:$0xff]
        %v2549 = vld [vmem:[%s2510 + $0x130] sm:$0xff]
        %v2550 = vld [vmem:[%s2510 + $0x138] sm:$0xff]
        %v2551 = vld [vmem:[%s2510 + $0x140] sm:$0xff]
        %v2552 = vld [vmem:[%s2510 + $0x148] sm:$0xff]
        %v2553 = vld [vmem:[%s2510 + $0x150] sm:$0xff]
        %v2554 = vld [vmem:[%s2510 + $0x158] sm:$0xff]
        %v2555 = vld [vmem:[%s2510 + $0x160] sm:$0xff]
        %v2556 = vld [vmem:[%s2510 + $0x168] sm:$0xff]
        %v2557 = vld [vmem:[%s2510 + $0x170] sm:$0xff]
        %v2558 = vld [vmem:[%s2510 + $0x178] sm:$0xff]
        %v2559 = vld [vmem:[%s2510 + $0x180] sm:$0xff]
        %v2560 = vld [vmem:[%s2510 + $0x188] sm:$0xff]
        %v2561 = vld [vmem:[%s2510 + $0x190] sm:$0xff]
        %v2562 = vld [vmem:[%s2510 + $0x198] sm:$0xff]
        %v2563 = vld [vmem:[%s2510 + $0x1a0] sm:$0xff]
        %v2564 = vld [vmem:[%s2510 + $0x1a8] sm:$0xff]
        %v2565 = vld [vmem:[%s2510 + $0x1b0] sm:$0xff]
        %v2566 = vld [vmem:[%s2510 + $0x1b8] sm:$0xff]
        %v2567 = vld [vmem:[%s2510 + $0x1c0] sm:$0xff]
        %v2568 = vld [vmem:[%s2510 + $0x1c8] sm:$0xff]
        %v2569 = vld [vmem:[%s2510 + $0x1d0] sm:$0xff]
        %v2570 = vld [vmem:[%s2510 + $0x1d8] sm:$0xff]
        %v2571 = vld [vmem:[%s2510 + $0x1e0] sm:$0xff]
        %v2572 = vld [vmem:[%s2510 + $0x1e8] sm:$0xff]
        %v2573 = vld [vmem:[%s2510 + $0x1f0] sm:$0xff]
        %v2574 = vld [vmem:[%s2510 + $0x1f8] sm:$0xff]
        %v2575 = vld [vmem:[%s2510 + $0x200] sm:$0xff]
        %v2576 = vld [vmem:[%s2510 + $0x208] sm:$0xff]
        %v2577 = vld [vmem:[%s2510 + $0x210] sm:$0xff]
        %v2578 = vld [vmem:[%s2510 + $0x218] sm:$0xff]
        %v2579 = vld [vmem:[%s2510 + $0x220] sm:$0xff]
        %v2580 = vld [vmem:[%s2510 + $0x228] sm:$0xff]
        %v2581 = vld [vmem:[%s2510 + $0x230] sm:$0xff]
        %v2582 = vld [vmem:[%s2510 + $0x238] sm:$0xff]
        %v2583 = vld [vmem:[%s2510 + $0x240] sm:$0xff]
        %v2584 = vld [vmem:[%s2510 + $0x248] sm:$0xff]
        %v2585 = vld [vmem:[%s2510 + $0x250] sm:$0xff]
        %v2586 = vld [vmem:[%s2510 + $0x258] sm:$0xff]
        %v2587 = vld [vmem:[%s2510 + $0x260] sm:$0xff]
        %v2588 = vld [vmem:[%s2510 + $0x268] sm:$0xff]
        %v2589 = vld [vmem:[%s2510 + $0x270] sm:$0xff]
        %v2590 = vld [vmem:[%s2510 + $0x278] sm:$0xff]
        %v2594 = vunpack.c.l.b16 %v2507
        %v2595 = vunpack.c.h.b16 %v2507
        %v2596 = vunpack.c.l.b16 %v2508
        %v2597 = vunpack.c.h.b16 %v2508
        %v2598 = vunpack.c.l.b16 %v2509
        %v2599 = vpack.c.b16 %v2594, %v517
        %v2600 = vpack.c.b16 %v2595, %v518
        %v2601 = vpack.c.b16 %v2596, %v519
        %v2602 = vpack.c.b16 %v2597, %v520
        %v2603 = vpack.c.b16 %v2598, %v521
        %vm2604 = vsmask.f32 6400
        %v2606 = vshrl.u32 %v1890, 16
        %v2608 = vrot.slane %v2606, 1
        %v2609 = vshll.u32 %v1890, 16
        %v2611 = vrot.slane %v2609, 2
        %v2612 = vor.u32 %v2608, %v2611
        %v2614 = vshrl.u32 %v2599, 16
        %v2616 = vrot.slane %v2614, 1
        %v2617 = vshll.u32 %v2599, 16
        %v2619 = vrot.slane %v2617, 2
        %v2620 = vor.u32 %v2616, %v2619
        %v2621 = vsel %vm2604, %v2612, %v2620
        %v2623 = vshrl.u32 %v1891, 16
        %v2625 = vrot.slane %v2623, 1
        %v2626 = vshll.u32 %v1891, 16
        %v2628 = vrot.slane %v2626, 2
        %v2629 = vor.u32 %v2625, %v2628
        %v2631 = vshrl.u32 %v2600, 16
        %v2633 = vrot.slane %v2631, 1
        %v2634 = vshll.u32 %v2600, 16
        %v2636 = vrot.slane %v2634, 2
        %v2637 = vor.u32 %v2633, %v2636
        %v2638 = vsel %vm2604, %v2629, %v2637
        %v2640 = vshrl.u32 %v1892, 16
        %v2642 = vrot.slane %v2640, 1
        %v2643 = vshll.u32 %v1892, 16
        %v2645 = vrot.slane %v2643, 2
        %v2646 = vor.u32 %v2642, %v2645
        %v2648 = vshrl.u32 %v2601, 16
        %v2650 = vrot.slane %v2648, 1
        %v2651 = vshll.u32 %v2601, 16
        %v2653 = vrot.slane %v2651, 2
        %v2654 = vor.u32 %v2650, %v2653
        %v2655 = vsel %vm2604, %v2646, %v2654
        %v2657 = vshrl.u32 %v1893, 16
        %v2659 = vrot.slane %v2657, 1
        %v2660 = vshll.u32 %v1893, 16
        %v2662 = vrot.slane %v2660, 2
        %v2663 = vor.u32 %v2659, %v2662
        %v2665 = vshrl.u32 %v2602, 16
        %v2667 = vrot.slane %v2665, 1
        %v2668 = vshll.u32 %v2602, 16
        %v2670 = vrot.slane %v2668, 2
        %v2671 = vor.u32 %v2667, %v2670
        %v2672 = vsel %vm2604, %v2663, %v2671
        %v2674 = vshrl.u32 %v1894, 16
        %v2676 = vrot.slane %v2674, 1
        %v2677 = vshll.u32 %v1894, 16
        %v2679 = vrot.slane %v2677, 2
        %v2680 = vor.u32 %v2676, %v2679
        %v2682 = vshrl.u32 %v2603, 16
        %v2684 = vrot.slane %v2682, 1
        %v2685 = vshll.u32 %v2603, 16
        %v2687 = vrot.slane %v2685, 2
        %v2688 = vor.u32 %v2684, %v2687
        %v2689 = vsel %vm2604, %v2680, %v2688
        %v2780 = vunpack.c.l.b16 %v2511
        %v2781 = vunpack.c.h.b16 %v2511
        %v2782 = vunpack.c.l.b16 %v2512
        %v2783 = vunpack.c.h.b16 %v2512
        %v2784 = vunpack.c.l.b16 %v2513
        %v2785 = vunpack.c.h.b16 %v2513
        %v2786 = vunpack.c.l.b16 %v2514
        %v2787 = vunpack.c.h.b16 %v2514
        %v2788 = vunpack.c.l.b16 %v2515
        %v2789 = vunpack.c.h.b16 %v2515
        %v2790 = vunpack.c.l.b16 %v2516
        %v2791 = vunpack.c.h.b16 %v2516
        %v2792 = vunpack.c.l.b16 %v2517
        %v2793 = vunpack.c.h.b16 %v2517
        %v2794 = vunpack.c.l.b16 %v2518
        %v2795 = vunpack.c.h.b16 %v2518
        %v2796 = vunpack.c.l.b16 %v2519
        %v2797 = vunpack.c.h.b16 %v2519
        %v2798 = vunpack.c.l.b16 %v2520
        %v2799 = vunpack.c.h.b16 %v2520
        %v2800 = vunpack.c.l.b16 %v2521
        %v2801 = vunpack.c.h.b16 %v2521
        %v2802 = vunpack.c.l.b16 %v2522
        %v2803 = vunpack.c.h.b16 %v2522
        %v2804 = vunpack.c.l.b16 %v2523
        %v2805 = vunpack.c.h.b16 %v2523
        %v2806 = vunpack.c.l.b16 %v2524
        %v2807 = vunpack.c.h.b16 %v2524
        %v2808 = vunpack.c.l.b16 %v2525
        %v2809 = vunpack.c.h.b16 %v2525
        %v2810 = vunpack.c.l.b16 %v2526
        %v2811 = vunpack.c.h.b16 %v2526
        %v2812 = vunpack.c.l.b16 %v2527
        %v2813 = vunpack.c.h.b16 %v2527
        %v2814 = vunpack.c.l.b16 %v2528
        %v2815 = vunpack.c.h.b16 %v2528
        %v2816 = vunpack.c.l.b16 %v2529
        %v2817 = vunpack.c.h.b16 %v2529
        %v2818 = vunpack.c.l.b16 %v2530
        %v2819 = vunpack.c.h.b16 %v2530
        %v2820 = vunpack.c.l.b16 %v2531
        %v2821 = vunpack.c.h.b16 %v2531
        %v2822 = vunpack.c.l.b16 %v2532
        %v2823 = vunpack.c.h.b16 %v2532
        %v2824 = vunpack.c.l.b16 %v2533
        %v2825 = vunpack.c.h.b16 %v2533
        %v2826 = vunpack.c.l.b16 %v2534
        %v2827 = vunpack.c.h.b16 %v2534
        %v2828 = vunpack.c.l.b16 %v2535
        %v2829 = vunpack.c.h.b16 %v2535
        %v2830 = vunpack.c.l.b16 %v2536
        %v2831 = vunpack.c.h.b16 %v2536
        %v2832 = vunpack.c.l.b16 %v2537
        %v2833 = vunpack.c.h.b16 %v2537
        %v2834 = vunpack.c.l.b16 %v2538
        %v2835 = vunpack.c.h.b16 %v2538
        %v2836 = vunpack.c.l.b16 %v2539
        %v2837 = vunpack.c.h.b16 %v2539
        %v2838 = vunpack.c.l.b16 %v2540
        %v2839 = vunpack.c.h.b16 %v2540
        %v2840 = vunpack.c.l.b16 %v2541
        %v2841 = vunpack.c.h.b16 %v2541
        %v2842 = vunpack.c.l.b16 %v2542
        %v2843 = vunpack.c.h.b16 %v2542
        %v2844 = vunpack.c.l.b16 %v2543
        %v2845 = vunpack.c.h.b16 %v2543
        %v2846 = vunpack.c.l.b16 %v2544
        %v2847 = vunpack.c.h.b16 %v2544
        %v2848 = vunpack.c.l.b16 %v2545
        %v2849 = vunpack.c.h.b16 %v2545
        %v2850 = vunpack.c.l.b16 %v2546
        %v2851 = vunpack.c.h.b16 %v2546
        %v2852 = vunpack.c.l.b16 %v2547
        %v2853 = vunpack.c.h.b16 %v2547
        %v2854 = vunpack.c.l.b16 %v2548
        %v2855 = vunpack.c.h.b16 %v2548
        %v2856 = vunpack.c.l.b16 %v2549
        %v2857 = vunpack.c.h.b16 %v2549
        %v2858 = vunpack.c.l.b16 %v2550
        %v2859 = vunpack.c.h.b16 %v2550
        %v2860 = vunpack.c.l.b16 %v2551
        %v2861 = vunpack.c.h.b16 %v2551
        %v2862 = vunpack.c.l.b16 %v2552
        %v2863 = vunpack.c.h.b16 %v2552
        %v2864 = vunpack.c.l.b16 %v2553
        %v2865 = vunpack.c.h.b16 %v2553
        %v2866 = vunpack.c.l.b16 %v2554
        %v2867 = vunpack.c.h.b16 %v2554
        %v2868 = vunpack.c.l.b16 %v2555
        %v2869 = vunpack.c.h.b16 %v2555
        %v2870 = vunpack.c.l.b16 %v2556
        %v2871 = vunpack.c.h.b16 %v2556
        %v2872 = vunpack.c.l.b16 %v2557
        %v2873 = vunpack.c.h.b16 %v2557
        %v2874 = vunpack.c.l.b16 %v2558
        %v2875 = vunpack.c.h.b16 %v2558
        %v2876 = vunpack.c.l.b16 %v2559
        %v2877 = vunpack.c.h.b16 %v2559
        %v2878 = vunpack.c.l.b16 %v2560
        %v2879 = vunpack.c.h.b16 %v2560
        %v2880 = vunpack.c.l.b16 %v2561
        %v2881 = vunpack.c.h.b16 %v2561
        %v2882 = vunpack.c.l.b16 %v2562
        %v2883 = vunpack.c.h.b16 %v2562
        %v2884 = vunpack.c.l.b16 %v2563
        %v2885 = vunpack.c.h.b16 %v2563
        %v2886 = vunpack.c.l.b16 %v2564
        %v2887 = vunpack.c.h.b16 %v2564
        %v2888 = vunpack.c.l.b16 %v2565
        %v2889 = vunpack.c.h.b16 %v2565
        %v2890 = vunpack.c.l.b16 %v2566
        %v2891 = vunpack.c.h.b16 %v2566
        %v2892 = vunpack.c.l.b16 %v2567
        %v2893 = vunpack.c.h.b16 %v2567
        %v2894 = vunpack.c.l.b16 %v2568
        %v2895 = vunpack.c.h.b16 %v2568
        %v2896 = vunpack.c.l.b16 %v2569
        %v2897 = vunpack.c.h.b16 %v2569
        %v2898 = vunpack.c.l.b16 %v2570
        %v2899 = vunpack.c.h.b16 %v2570
        %v2900 = vunpack.c.l.b16 %v2571
        %v2901 = vunpack.c.h.b16 %v2571
        %v2902 = vunpack.c.l.b16 %v2572
        %v2903 = vunpack.c.h.b16 %v2572
        %v2904 = vunpack.c.l.b16 %v2573
        %v2905 = vunpack.c.h.b16 %v2573
        %v2906 = vunpack.c.l.b16 %v2574
        %v2907 = vunpack.c.h.b16 %v2574
        %v2908 = vunpack.c.l.b16 %v2575
        %v2909 = vunpack.c.h.b16 %v2575
        %v2910 = vunpack.c.l.b16 %v2576
        %v2911 = vunpack.c.h.b16 %v2576
        %v2912 = vunpack.c.l.b16 %v2577
        %v2913 = vunpack.c.h.b16 %v2577
        %v2914 = vunpack.c.l.b16 %v2578
        %v2915 = vunpack.c.h.b16 %v2578
        %v2916 = vunpack.c.l.b16 %v2579
        %v2917 = vunpack.c.h.b16 %v2579
        %v2918 = vunpack.c.l.b16 %v2580
        %v2919 = vunpack.c.h.b16 %v2580
        %v2920 = vunpack.c.l.b16 %v2581
        %v2921 = vunpack.c.h.b16 %v2581
        %v2922 = vunpack.c.l.b16 %v2582
        %v2923 = vunpack.c.h.b16 %v2582
        %v2924 = vunpack.c.l.b16 %v2583
        %v2925 = vunpack.c.h.b16 %v2583
        %v2926 = vunpack.c.l.b16 %v2584
        %v2927 = vunpack.c.h.b16 %v2584
        %v2928 = vunpack.c.l.b16 %v2585
        %v2929 = vunpack.c.h.b16 %v2585
        %v2930 = vunpack.c.l.b16 %v2586
        %v2931 = vunpack.c.h.b16 %v2586
        %v2932 = vunpack.c.l.b16 %v2587
        %v2933 = vunpack.c.h.b16 %v2587
        %v2934 = vunpack.c.l.b16 %v2588
        %v2935 = vunpack.c.h.b16 %v2588
        %v2936 = vunpack.c.l.b16 %v2589
        %v2937 = vunpack.c.h.b16 %v2589
        %v2938 = vunpack.c.l.b16 %v2590
        %v2939 = vunpack.c.h.b16 %v2590
        %v2940 = vpack.c.b16 %v2782, %v2780
        %v2941 = vpack.c.b16 %v2783, %v2781
        %v2942 = vpack.c.b16 %v2786, %v2784
        %v2943 = vpack.c.b16 %v2787, %v2785
        %v2944 = vpack.c.b16 %v2790, %v2788
        %v2945 = vpack.c.b16 %v2791, %v2789
        %v2946 = vpack.c.b16 %v2794, %v2792
        %v2947 = vpack.c.b16 %v2795, %v2793
        %v2948 = vpack.c.b16 %v2798, %v2796
        %v2949 = vpack.c.b16 %v2799, %v2797
        %v2950 = vpack.c.b16 %v2802, %v2800
        %v2951 = vpack.c.b16 %v2803, %v2801
        %v2952 = vpack.c.b16 %v2806, %v2804
        %v2953 = vpack.c.b16 %v2807, %v2805
        %v2954 = vpack.c.b16 %v2810, %v2808
        %v2955 = vpack.c.b16 %v2811, %v2809
        %v2956 = vpack.c.b16 %v2814, %v2812
        %v2957 = vpack.c.b16 %v2815, %v2813
        %v2958 = vpack.c.b16 %v2818, %v2816
        %v2959 = vpack.c.b16 %v2819, %v2817
        %v2960 = vpack.c.b16 %v2822, %v2820
        %v2961 = vpack.c.b16 %v2823, %v2821
        %v2962 = vpack.c.b16 %v2826, %v2824
        %v2963 = vpack.c.b16 %v2827, %v2825
        %v2964 = vpack.c.b16 %v2830, %v2828
        %v2965 = vpack.c.b16 %v2831, %v2829
        %v2966 = vpack.c.b16 %v2834, %v2832
        %v2967 = vpack.c.b16 %v2835, %v2833
        %v2968 = vpack.c.b16 %v2838, %v2836
        %v2969 = vpack.c.b16 %v2839, %v2837
        %v2970 = vpack.c.b16 %v2842, %v2840
        %v2971 = vpack.c.b16 %v2843, %v2841
        %v2972 = vpack.c.b16 %v2846, %v2844
        %v2973 = vpack.c.b16 %v2847, %v2845
        %v2974 = vpack.c.b16 %v2850, %v2848
        %v2975 = vpack.c.b16 %v2851, %v2849
        %v2976 = vpack.c.b16 %v2854, %v2852
        %v2977 = vpack.c.b16 %v2855, %v2853
        %v2978 = vpack.c.b16 %v2858, %v2856
        %v2979 = vpack.c.b16 %v2859, %v2857
        %v2980 = vpack.c.b16 %v2862, %v2860
        %v2981 = vpack.c.b16 %v2863, %v2861
        %v2982 = vpack.c.b16 %v2866, %v2864
        %v2983 = vpack.c.b16 %v2867, %v2865
        %v2984 = vpack.c.b16 %v2870, %v2868
        %v2985 = vpack.c.b16 %v2871, %v2869
        %v2986 = vpack.c.b16 %v2874, %v2872
        %v2987 = vpack.c.b16 %v2875, %v2873
        %v2988 = vpack.c.b16 %v2878, %v2876
        %v2989 = vpack.c.b16 %v2879, %v2877
        %v2990 = vpack.c.b16 %v2882, %v2880
        %v2991 = vpack.c.b16 %v2883, %v2881
        %v2992 = vpack.c.b16 %v2886, %v2884
        %v2993 = vpack.c.b16 %v2887, %v2885
        %v2994 = vpack.c.b16 %v2890, %v2888
        %v2995 = vpack.c.b16 %v2891, %v2889
        %v2996 = vpack.c.b16 %v2894, %v2892
        %v2997 = vpack.c.b16 %v2895, %v2893
        %v2998 = vpack.c.b16 %v2898, %v2896
        %v2999 = vpack.c.b16 %v2899, %v2897
        %v3000 = vpack.c.b16 %v2902, %v2900
        %v3001 = vpack.c.b16 %v2903, %v2901
        %v3002 = vpack.c.b16 %v2906, %v2904
        %v3003 = vpack.c.b16 %v2907, %v2905
        %v3004 = vpack.c.b16 %v2910, %v2908
        %v3005 = vpack.c.b16 %v2911, %v2909
        %v3006 = vpack.c.b16 %v2914, %v2912
        %v3007 = vpack.c.b16 %v2915, %v2913
        %v3008 = vpack.c.b16 %v2918, %v2916
        %v3009 = vpack.c.b16 %v2919, %v2917
        %v3010 = vpack.c.b16 %v2922, %v2920
        %v3011 = vpack.c.b16 %v2923, %v2921
        %v3012 = vpack.c.b16 %v2926, %v2924
        %v3013 = vpack.c.b16 %v2927, %v2925
        %v3014 = vpack.c.b16 %v2930, %v2928
        %v3015 = vpack.c.b16 %v2931, %v2929
        %v3016 = vpack.c.b16 %v2934, %v2932
        %v3017 = vpack.c.b16 %v2935, %v2933
        %v3018 = vpack.c.b16 %v2938, %v2936
        %v3019 = vpack.c.b16 %v2939, %v2937
        %3100 = vmatpush.bf16.msra.mxu0 %v2954
        %3101 = vmatpush.bf16.msra.mxu0 %v2952
        %3102 = vmatpush.bf16.msra.mxu0 %v2950
        %3103 = vmatpush.bf16.msra.mxu0 %v2948
        %3104 = vmatpush.bf16.msra.mxu0 %v2946
        %3105 = vmatpush.bf16.msra.mxu0 %v2944
        %3106 = vmatpush.bf16.msra.mxu0 %v2942
        %3107 = vmatpush.bf16.msra.mxu0 %v2940
        %3108 = vmatmul.bf16.gmra.mxu0 %v2621
        %v3109 = vpop.f32.mrf.mxu0
        %v3110 = vadd.f32 0.0, %v3109
        %v3111 = vpop.f32.mrf.mxu0
        %v3112 = vadd.f32 0.0, %v3111
        %3113 = vmatmul.bf16.gmra.mxu0 %v2620
        %v3114 = vpop.f32.mrf.mxu0
        %v3115 = vadd.f32 0.0, %v3114
        %v3116 = vpop.f32.mrf.mxu0
        %3117 = vdwg.mxu0
        %3118 = vmatpush.bf16.msra.mxu0 %v2970
        %3119 = vmatpush.bf16.msra.mxu0 %v2968
        %3120 = vmatpush.bf16.msra.mxu0 %v2966
        %3121 = vmatpush.bf16.msra.mxu0 %v2964
        %3122 = vmatpush.bf16.msra.mxu0 %v2962
        %3123 = vmatpush.bf16.msra.mxu0 %v2960
        %3124 = vmatpush.bf16.msra.mxu0 %v2958
        %3125 = vmatpush.bf16.msra.mxu0 %v2956
        %3126 = vmatmul.bf16.gmra.mxu0 %v2638
        %v3127 = vpop.f32.mrf.mxu0
        %v3128 = vadd.f32 %v3110, %v3127
        %v3129 = vpop.f32.mrf.mxu0
        %v3130 = vadd.f32 %v3112, %v3129
        %3131 = vmatmul.bf16.gmra.mxu0 %v2637
        %v3132 = vpop.f32.mrf.mxu0
        %v3133 = vadd.f32 %v3115, %v3132
        %v3134 = vpop.f32.mrf.mxu0
        %3135 = vdwg.mxu0
        %3136 = vmatpush.bf16.msra.mxu0 %v2986
        %3137 = vmatpush.bf16.msra.mxu0 %v2984
        %3138 = vmatpush.bf16.msra.mxu0 %v2982
        %3139 = vmatpush.bf16.msra.mxu0 %v2980
        %3140 = vmatpush.bf16.msra.mxu0 %v2978
        %3141 = vmatpush.bf16.msra.mxu0 %v2976
        %3142 = vmatpush.bf16.msra.mxu0 %v2974
        %3143 = vmatpush.bf16.msra.mxu0 %v2972
        %3144 = vmatmul.bf16.gmra.mxu0 %v2655
        %v3145 = vpop.f32.mrf.mxu0
        %v3146 = vadd.f32 %v3128, %v3145
        %v3147 = vpop.f32.mrf.mxu0
        %v3148 = vadd.f32 %v3130, %v3147
        %3149 = vmatmul.bf16.gmra.mxu0 %v2654
        %v3150 = vpop.f32.mrf.mxu0
        %v3151 = vadd.f32 %v3133, %v3150
        %v3152 = vpop.f32.mrf.mxu0
        %3153 = vdwg.mxu0
        %3154 = vmatpush.bf16.msra.mxu0 %v3002
        %3155 = vmatpush.bf16.msra.mxu0 %v3000
        %3156 = vmatpush.bf16.msra.mxu0 %v2998
        %3157 = vmatpush.bf16.msra.mxu0 %v2996
        %3158 = vmatpush.bf16.msra.mxu0 %v2994
        %3159 = vmatpush.bf16.msra.mxu0 %v2992
        %3160 = vmatpush.bf16.msra.mxu0 %v2990
        %3161 = vmatpush.bf16.msra.mxu0 %v2988
        %3162 = vmatmul.bf16.gmra.mxu0 %v2672
        %v3163 = vpop.f32.mrf.mxu0
        %v3164 = vadd.f32 %v3146, %v3163
        %v3165 = vpop.f32.mrf.mxu0
        %v3166 = vadd.f32 %v3148, %v3165
        %3167 = vmatmul.bf16.gmra.mxu0 %v2671
        %v3168 = vpop.f32.mrf.mxu0
        %v3169 = vadd.f32 %v3151, %v3168
        %v3170 = vpop.f32.mrf.mxu0
        %3171 = vdwg.mxu0
        %3172 = vmatpush.bf16.msra.mxu0 %v3018
        %3173 = vmatpush.bf16.msra.mxu0 %v3016
        %3174 = vmatpush.bf16.msra.mxu0 %v3014
        %3175 = vmatpush.bf16.msra.mxu0 %v3012
        %3176 = vmatpush.bf16.msra.mxu0 %v3010
        %3177 = vmatpush.bf16.msra.mxu0 %v3008
        %3178 = vmatpush.bf16.msra.mxu0 %v3006
        %3179 = vmatpush.bf16.msra.mxu0 %v3004
        %3180 = vmatmul.bf16.gmra.mxu0 %v2689
        %v3181 = vpop.f32.mrf.mxu0
        %v3182 = vadd.f32 %v3164, %v3181
        %v3183 = vpop.f32.mrf.mxu0
        %v3184 = vadd.f32 %v3166, %v3183
        %3185 = vmatmul.bf16.gmra.mxu0 %v2688
        %v3186 = vpop.f32.mrf.mxu0
        %v3187 = vadd.f32 %v3169, %v3186
        %v3188 = vpop.f32.mrf.mxu0
        %3189 = vdwg.mxu0
        %3190 = vmatpush.bf16.msra.mxu0 %v2955
        %3191 = vmatpush.bf16.msra.mxu0 %v2953
        %3192 = vmatpush.bf16.msra.mxu0 %v2951
        %3193 = vmatpush.bf16.msra.mxu0 %v2949
        %3194 = vmatpush.bf16.msra.mxu0 %v2947
        %3195 = vmatpush.bf16.msra.mxu0 %v2945
        %3196 = vmatpush.bf16.msra.mxu0 %v2943
        %3197 = vmatpush.bf16.msra.mxu0 %v2941
        %3198 = vmatmul.bf16.gmra.mxu0 %v2621
        %v3199 = vpop.f32.mrf.mxu0
        %v3200 = vadd.f32 0.0, %v3199
        %v3201 = vpop.f32.mrf.mxu0
        %v3202 = vadd.f32 0.0, %v3201
        %3203 = vmatmul.bf16.gmra.mxu0 %v2620
        %v3204 = vpop.f32.mrf.mxu0
        %v3205 = vadd.f32 0.0, %v3204
        %v3206 = vpop.f32.mrf.mxu0
        %3207 = vdwg.mxu0
        %3208 = vmatpush.bf16.msra.mxu0 %v2971
        %3209 = vmatpush.bf16.msra.mxu0 %v2969
        %3210 = vmatpush.bf16.msra.mxu0 %v2967
        %3211 = vmatpush.bf16.msra.mxu0 %v2965
        %3212 = vmatpush.bf16.msra.mxu0 %v2963
        %3213 = vmatpush.bf16.msra.mxu0 %v2961
        %3214 = vmatpush.bf16.msra.mxu0 %v2959
        %3215 = vmatpush.bf16.msra.mxu0 %v2957
        %3216 = vmatmul.bf16.gmra.mxu0 %v2638
        %v3217 = vpop.f32.mrf.mxu0
        %v3218 = vadd.f32 %v3200, %v3217
        %v3219 = vpop.f32.mrf.mxu0
        %v3220 = vadd.f32 %v3202, %v3219
        %3221 = vmatmul.bf16.gmra.mxu0 %v2637
        %v3222 = vpop.f32.mrf.mxu0
        %v3223 = vadd.f32 %v3205, %v3222
        %v3224 = vpop.f32.mrf.mxu0
        %3225 = vdwg.mxu0
        %3226 = vmatpush.bf16.msra.mxu0 %v2987
        %3227 = vmatpush.bf16.msra.mxu0 %v2985
        %3228 = vmatpush.bf16.msra.mxu0 %v2983
        %3229 = vmatpush.bf16.msra.mxu0 %v2981
        %3230 = vmatpush.bf16.msra.mxu0 %v2979
        %3231 = vmatpush.bf16.msra.mxu0 %v2977
        %3232 = vmatpush.bf16.msra.mxu0 %v2975
        %3233 = vmatpush.bf16.msra.mxu0 %v2973
        %3234 = vmatmul.bf16.gmra.mxu0 %v2655
        %v3235 = vpop.f32.mrf.mxu0
        %v3236 = vadd.f32 %v3218, %v3235
        %v3237 = vpop.f32.mrf.mxu0
        %v3238 = vadd.f32 %v3220, %v3237
        %3239 = vmatmul.bf16.gmra.mxu0 %v2654
        %v3240 = vpop.f32.mrf.mxu0
        %v3241 = vadd.f32 %v3223, %v3240
        %v3242 = vpop.f32.mrf.mxu0
        %3243 = vdwg.mxu0
        %3244 = vmatpush.bf16.msra.mxu0 %v3003
        %3245 = vmatpush.bf16.msra.mxu0 %v3001
        %3246 = vmatpush.bf16.msra.mxu0 %v2999
        %3247 = vmatpush.bf16.msra.mxu0 %v2997
        %3248 = vmatpush.bf16.msra.mxu0 %v2995
        %3249 = vmatpush.bf16.msra.mxu0 %v2993
        %3250 = vmatpush.bf16.msra.mxu0 %v2991
        %3251 = vmatpush.bf16.msra.mxu0 %v2989
        %3252 = vmatmul.bf16.gmra.mxu0 %v2672
        %v3253 = vpop.f32.mrf.mxu0
        %v3254 = vadd.f32 %v3236, %v3253
        %v3255 = vpop.f32.mrf.mxu0
        %v3256 = vadd.f32 %v3238, %v3255
        %3257 = vmatmul.bf16.gmra.mxu0 %v2671
        %v3258 = vpop.f32.mrf.mxu0
        %v3259 = vadd.f32 %v3241, %v3258
        %v3260 = vpop.f32.mrf.mxu0
        %3261 = vdwg.mxu0
        %3262 = vmatpush.bf16.msra.mxu0 %v3019
        %3263 = vmatpush.bf16.msra.mxu0 %v3017
        %3264 = vmatpush.bf16.msra.mxu0 %v3015
        %3265 = vmatpush.bf16.msra.mxu0 %v3013
        %3266 = vmatpush.bf16.msra.mxu0 %v3011
        %3267 = vmatpush.bf16.msra.mxu0 %v3009
        %3268 = vmatpush.bf16.msra.mxu0 %v3007
        %3269 = vmatpush.bf16.msra.mxu0 %v3005
        %3270 = vmatmul.bf16.gmra.mxu0 %v2689
        %v3271 = vpop.f32.mrf.mxu0
        %v3272 = vadd.f32 %v3254, %v3271
        %v3273 = vpop.f32.mrf.mxu0
        %v3274 = vadd.f32 %v3256, %v3273
        %3275 = vmatmul.bf16.gmra.mxu0 %v2688
        %v3276 = vpop.f32.mrf.mxu0
        %v3277 = vadd.f32 %v3259, %v3276
        %v3278 = vpop.f32.mrf.mxu0
        %3279 = vdwg.mxu0
        %v3280 = vadd.f32 %v2501, %v3182
        %v3281 = vadd.f32 %v2502, %v3272
        %v3282 = vadd.f32 %v2503, %v3184
        %v3283 = vadd.f32 %v2504, %v3274
        %v3284 = vadd.f32 %v2505, %v3187
        %v3285 = vadd.f32 %v2506, %v3277
        %v3286 = vld [vmem:[%s290] sm:$0xcc]
        %v3287 = vld [vmem:[%s290 + $0x8] sm:$0xcc]
        %v3288 = vld [vmem:[%s290 + $0x10] sm:$0xc]
        %s3289 = scalar_lea.vmem %s1, 2560
        %v3290 = vld [vmem:[%s3289] sm:$0xff]
        %v3291 = vld [vmem:[%s3289 + $0x8] sm:$0xff]
        %v3292 = vld [vmem:[%s3289 + $0x10] sm:$0xff]
        %v3293 = vld [vmem:[%s3289 + $0x18] sm:$0xff]
        %v3294 = vld [vmem:[%s3289 + $0x20] sm:$0xff]
        %v3295 = vld [vmem:[%s3289 + $0x28] sm:$0xff]
        %v3296 = vld [vmem:[%s3289 + $0x30] sm:$0xff]
        %v3297 = vld [vmem:[%s3289 + $0x38] sm:$0xff]
        %v3298 = vld [vmem:[%s3289 + $0x40] sm:$0xff]
        %v3299 = vld [vmem:[%s3289 + $0x48] sm:$0xff]
        %v3300 = vld [vmem:[%s3289 + $0x50] sm:$0xff]
        %v3301 = vld [vmem:[%s3289 + $0x58] sm:$0xff]
        %v3302 = vld [vmem:[%s3289 + $0x60] sm:$0xff]
        %v3303 = vld [vmem:[%s3289 + $0x68] sm:$0xff]
        %v3304 = vld [vmem:[%s3289 + $0x70] sm:$0xff]
        %v3305 = vld [vmem:[%s3289 + $0x78] sm:$0xff]
        %v3306 = vld [vmem:[%s3289 + $0x80] sm:$0xff]
        %v3307 = vld [vmem:[%s3289 + $0x88] sm:$0xff]
        %v3308 = vld [vmem:[%s3289 + $0x90] sm:$0xff]
        %v3309 = vld [vmem:[%s3289 + $0x98] sm:$0xff]
        %v3310 = vld [vmem:[%s3289 + $0xa0] sm:$0xff]
        %v3311 = vld [vmem:[%s3289 + $0xa8] sm:$0xff]
        %v3312 = vld [vmem:[%s3289 + $0xb0] sm:$0xff]
        %v3313 = vld [vmem:[%s3289 + $0xb8] sm:$0xff]
        %v3314 = vld [vmem:[%s3289 + $0xc0] sm:$0xff]
        %v3315 = vld [vmem:[%s3289 + $0xc8] sm:$0xff]
        %v3316 = vld [vmem:[%s3289 + $0xd0] sm:$0xff]
        %v3317 = vld [vmem:[%s3289 + $0xd8] sm:$0xff]
        %v3318 = vld [vmem:[%s3289 + $0xe0] sm:$0xff]
        %v3319 = vld [vmem:[%s3289 + $0xe8] sm:$0xff]
        %v3320 = vld [vmem:[%s3289 + $0xf0] sm:$0xff]
        %v3321 = vld [vmem:[%s3289 + $0xf8] sm:$0xff]
        %v3322 = vld [vmem:[%s3289 + $0x100] sm:$0xff]
        %v3323 = vld [vmem:[%s3289 + $0x108] sm:$0xff]
        %v3324 = vld [vmem:[%s3289 + $0x110] sm:$0xff]
        %v3325 = vld [vmem:[%s3289 + $0x118] sm:$0xff]
        %v3326 = vld [vmem:[%s3289 + $0x120] sm:$0xff]
        %v3327 = vld [vmem:[%s3289 + $0x128] sm:$0xff]
        %v3328 = vld [vmem:[%s3289 + $0x130] sm:$0xff]
        %v3329 = vld [vmem:[%s3289 + $0x138] sm:$0xff]
        %v3330 = vld [vmem:[%s3289 + $0x140] sm:$0xff]
        %v3331 = vld [vmem:[%s3289 + $0x148] sm:$0xff]
        %v3332 = vld [vmem:[%s3289 + $0x150] sm:$0xff]
        %v3333 = vld [vmem:[%s3289 + $0x158] sm:$0xff]
        %v3334 = vld [vmem:[%s3289 + $0x160] sm:$0xff]
        %v3335 = vld [vmem:[%s3289 + $0x168] sm:$0xff]
        %v3336 = vld [vmem:[%s3289 + $0x170] sm:$0xff]
        %v3337 = vld [vmem:[%s3289 + $0x178] sm:$0xff]
        %v3338 = vld [vmem:[%s3289 + $0x180] sm:$0xff]
        %v3339 = vld [vmem:[%s3289 + $0x188] sm:$0xff]
        %v3340 = vld [vmem:[%s3289 + $0x190] sm:$0xff]
        %v3341 = vld [vmem:[%s3289 + $0x198] sm:$0xff]
        %v3342 = vld [vmem:[%s3289 + $0x1a0] sm:$0xff]
        %v3343 = vld [vmem:[%s3289 + $0x1a8] sm:$0xff]
        %v3344 = vld [vmem:[%s3289 + $0x1b0] sm:$0xff]
        %v3345 = vld [vmem:[%s3289 + $0x1b8] sm:$0xff]
        %v3346 = vld [vmem:[%s3289 + $0x1c0] sm:$0xff]
        %v3347 = vld [vmem:[%s3289 + $0x1c8] sm:$0xff]
        %v3348 = vld [vmem:[%s3289 + $0x1d0] sm:$0xff]
        %v3349 = vld [vmem:[%s3289 + $0x1d8] sm:$0xff]
        %v3350 = vld [vmem:[%s3289 + $0x1e0] sm:$0xff]
        %v3351 = vld [vmem:[%s3289 + $0x1e8] sm:$0xff]
        %v3352 = vld [vmem:[%s3289 + $0x1f0] sm:$0xff]
        %v3353 = vld [vmem:[%s3289 + $0x1f8] sm:$0xff]
        %v3354 = vld [vmem:[%s3289 + $0x200] sm:$0xff]
        %v3355 = vld [vmem:[%s3289 + $0x208] sm:$0xff]
        %v3356 = vld [vmem:[%s3289 + $0x210] sm:$0xff]
        %v3357 = vld [vmem:[%s3289 + $0x218] sm:$0xff]
        %v3358 = vld [vmem:[%s3289 + $0x220] sm:$0xff]
        %v3359 = vld [vmem:[%s3289 + $0x228] sm:$0xff]
        %v3360 = vld [vmem:[%s3289 + $0x230] sm:$0xff]
        %v3361 = vld [vmem:[%s3289 + $0x238] sm:$0xff]
        %v3362 = vld [vmem:[%s3289 + $0x240] sm:$0xff]
        %v3363 = vld [vmem:[%s3289 + $0x248] sm:$0xff]
        %v3364 = vld [vmem:[%s3289 + $0x250] sm:$0xff]
        %v3365 = vld [vmem:[%s3289 + $0x258] sm:$0xff]
        %v3366 = vld [vmem:[%s3289 + $0x260] sm:$0xff]
        %v3367 = vld [vmem:[%s3289 + $0x268] sm:$0xff]
        %v3368 = vld [vmem:[%s3289 + $0x270] sm:$0xff]
        %v3369 = vld [vmem:[%s3289 + $0x278] sm:$0xff]
        %v3373 = vunpack.c.l.b16 %v3286
        %v3374 = vunpack.c.h.b16 %v3286
        %v3375 = vunpack.c.l.b16 %v3287
        %v3376 = vunpack.c.h.b16 %v3287
        %v3377 = vunpack.c.l.b16 %v3288
        %v3378 = vpack.c.b16 %v512, %v3373
        %v3379 = vpack.c.b16 %v513, %v3374
        %v3380 = vpack.c.b16 %v514, %v3375
        %v3381 = vpack.c.b16 %v515, %v3376
        %v3382 = vpack.c.b16 %v516, %v3377
        %vm3383 = vcmask 1045504
        %v3384 = vrot.slane %v3378, 2
        %v3385 = vrot.slane %v2599, 2
        %v3386 = vsel %vm3383, %v3384, %v3385
        %v3387 = vrot.slane %v3379, 2
        %v3388 = vrot.slane %v2600, 2
        %v3389 = vsel %vm3383, %v3387, %v3388
        %v3390 = vrot.slane %v3380, 2
        %v3391 = vrot.slane %v2601, 2
        %v3392 = vsel %vm3383, %v3390, %v3391
        %v3393 = vrot.slane %v3381, 2
        %v3394 = vrot.slane %v2602, 2
        %v3395 = vsel %vm3383, %v3393, %v3394
        %v3396 = vrot.slane %v3382, 2
        %v3397 = vrot.slane %v2603, 2
        %v3398 = vsel %vm3383, %v3396, %v3397
        %v3489 = vunpack.c.l.b16 %v3290
        %v3490 = vunpack.c.h.b16 %v3290
        %v3491 = vunpack.c.l.b16 %v3291
        %v3492 = vunpack.c.h.b16 %v3291
        %v3493 = vunpack.c.l.b16 %v3292
        %v3494 = vunpack.c.h.b16 %v3292
        %v3495 = vunpack.c.l.b16 %v3293
        %v3496 = vunpack.c.h.b16 %v3293
        %v3497 = vunpack.c.l.b16 %v3294
        %v3498 = vunpack.c.h.b16 %v3294
        %v3499 = vunpack.c.l.b16 %v3295
        %v3500 = vunpack.c.h.b16 %v3295
        %v3501 = vunpack.c.l.b16 %v3296
        %v3502 = vunpack.c.h.b16 %v3296
        %v3503 = vunpack.c.l.b16 %v3297
        %v3504 = vunpack.c.h.b16 %v3297
        %v3505 = vunpack.c.l.b16 %v3298
        %v3506 = vunpack.c.h.b16 %v3298
        %v3507 = vunpack.c.l.b16 %v3299
        %v3508 = vunpack.c.h.b16 %v3299
        %v3509 = vunpack.c.l.b16 %v3300
        %v3510 = vunpack.c.h.b16 %v3300
        %v3511 = vunpack.c.l.b16 %v3301
        %v3512 = vunpack.c.h.b16 %v3301
        %v3513 = vunpack.c.l.b16 %v3302
        %v3514 = vunpack.c.h.b16 %v3302
        %v3515 = vunpack.c.l.b16 %v3303
        %v3516 = vunpack.c.h.b16 %v3303
        %v3517 = vunpack.c.l.b16 %v3304
        %v3518 = vunpack.c.h.b16 %v3304
        %v3519 = vunpack.c.l.b16 %v3305
        %v3520 = vunpack.c.h.b16 %v3305
        %v3521 = vunpack.c.l.b16 %v3306
        %v3522 = vunpack.c.h.b16 %v3306
        %v3523 = vunpack.c.l.b16 %v3307
        %v3524 = vunpack.c.h.b16 %v3307
        %v3525 = vunpack.c.l.b16 %v3308
        %v3526 = vunpack.c.h.b16 %v3308
        %v3527 = vunpack.c.l.b16 %v3309
        %v3528 = vunpack.c.h.b16 %v3309
        %v3529 = vunpack.c.l.b16 %v3310
        %v3530 = vunpack.c.h.b16 %v3310
        %v3531 = vunpack.c.l.b16 %v3311
        %v3532 = vunpack.c.h.b16 %v3311
        %v3533 = vunpack.c.l.b16 %v3312
        %v3534 = vunpack.c.h.b16 %v3312
        %v3535 = vunpack.c.l.b16 %v3313
        %v3536 = vunpack.c.h.b16 %v3313
        %v3537 = vunpack.c.l.b16 %v3314
        %v3538 = vunpack.c.h.b16 %v3314
        %v3539 = vunpack.c.l.b16 %v3315
        %v3540 = vunpack.c.h.b16 %v3315
        %v3541 = vunpack.c.l.b16 %v3316
        %v3542 = vunpack.c.h.b16 %v3316
        %v3543 = vunpack.c.l.b16 %v3317
        %v3544 = vunpack.c.h.b16 %v3317
        %v3545 = vunpack.c.l.b16 %v3318
        %v3546 = vunpack.c.h.b16 %v3318
        %v3547 = vunpack.c.l.b16 %v3319
        %v3548 = vunpack.c.h.b16 %v3319
        %v3549 = vunpack.c.l.b16 %v3320
        %v3550 = vunpack.c.h.b16 %v3320
        %v3551 = vunpack.c.l.b16 %v3321
        %v3552 = vunpack.c.h.b16 %v3321
        %v3553 = vunpack.c.l.b16 %v3322
        %v3554 = vunpack.c.h.b16 %v3322
        %v3555 = vunpack.c.l.b16 %v3323
        %v3556 = vunpack.c.h.b16 %v3323
        %v3557 = vunpack.c.l.b16 %v3324
        %v3558 = vunpack.c.h.b16 %v3324
        %v3559 = vunpack.c.l.b16 %v3325
        %v3560 = vunpack.c.h.b16 %v3325
        %v3561 = vunpack.c.l.b16 %v3326
        %v3562 = vunpack.c.h.b16 %v3326
        %v3563 = vunpack.c.l.b16 %v3327
        %v3564 = vunpack.c.h.b16 %v3327
        %v3565 = vunpack.c.l.b16 %v3328
        %v3566 = vunpack.c.h.b16 %v3328
        %v3567 = vunpack.c.l.b16 %v3329
        %v3568 = vunpack.c.h.b16 %v3329
        %v3569 = vunpack.c.l.b16 %v3330
        %v3570 = vunpack.c.h.b16 %v3330
        %v3571 = vunpack.c.l.b16 %v3331
        %v3572 = vunpack.c.h.b16 %v3331
        %v3573 = vunpack.c.l.b16 %v3332
        %v3574 = vunpack.c.h.b16 %v3332
        %v3575 = vunpack.c.l.b16 %v3333
        %v3576 = vunpack.c.h.b16 %v3333
        %v3577 = vunpack.c.l.b16 %v3334
        %v3578 = vunpack.c.h.b16 %v3334
        %v3579 = vunpack.c.l.b16 %v3335
        %v3580 = vunpack.c.h.b16 %v3335
        %v3581 = vunpack.c.l.b16 %v3336
        %v3582 = vunpack.c.h.b16 %v3336
        %v3583 = vunpack.c.l.b16 %v3337
        %v3584 = vunpack.c.h.b16 %v3337
        %v3585 = vunpack.c.l.b16 %v3338
        %v3586 = vunpack.c.h.b16 %v3338
        %v3587 = vunpack.c.l.b16 %v3339
        %v3588 = vunpack.c.h.b16 %v3339
        %v3589 = vunpack.c.l.b16 %v3340
        %v3590 = vunpack.c.h.b16 %v3340
        %v3591 = vunpack.c.l.b16 %v3341
        %v3592 = vunpack.c.h.b16 %v3341
        %v3593 = vunpack.c.l.b16 %v3342
        %v3594 = vunpack.c.h.b16 %v3342
        %v3595 = vunpack.c.l.b16 %v3343
        %v3596 = vunpack.c.h.b16 %v3343
        %v3597 = vunpack.c.l.b16 %v3344
        %v3598 = vunpack.c.h.b16 %v3344
        %v3599 = vunpack.c.l.b16 %v3345
        %v3600 = vunpack.c.h.b16 %v3345
        %v3601 = vunpack.c.l.b16 %v3346
        %v3602 = vunpack.c.h.b16 %v3346
        %v3603 = vunpack.c.l.b16 %v3347
        %v3604 = vunpack.c.h.b16 %v3347
        %v3605 = vunpack.c.l.b16 %v3348
        %v3606 = vunpack.c.h.b16 %v3348
        %v3607 = vunpack.c.l.b16 %v3349
        %v3608 = vunpack.c.h.b16 %v3349
        %v3609 = vunpack.c.l.b16 %v3350
        %v3610 = vunpack.c.h.b16 %v3350
        %v3611 = vunpack.c.l.b16 %v3351
        %v3612 = vunpack.c.h.b16 %v3351
        %v3613 = vunpack.c.l.b16 %v3352
        %v3614 = vunpack.c.h.b16 %v3352
        %v3615 = vunpack.c.l.b16 %v3353
        %v3616 = vunpack.c.h.b16 %v3353
        %v3617 = vunpack.c.l.b16 %v3354
        %v3618 = vunpack.c.h.b16 %v3354
        %v3619 = vunpack.c.l.b16 %v3355
        %v3620 = vunpack.c.h.b16 %v3355
        %v3621 = vunpack.c.l.b16 %v3356
        %v3622 = vunpack.c.h.b16 %v3356
        %v3623 = vunpack.c.l.b16 %v3357
        %v3624 = vunpack.c.h.b16 %v3357
        %v3625 = vunpack.c.l.b16 %v3358
        %v3626 = vunpack.c.h.b16 %v3358
        %v3627 = vunpack.c.l.b16 %v3359
        %v3628 = vunpack.c.h.b16 %v3359
        %v3629 = vunpack.c.l.b16 %v3360
        %v3630 = vunpack.c.h.b16 %v3360
        %v3631 = vunpack.c.l.b16 %v3361
        %v3632 = vunpack.c.h.b16 %v3361
        %v3633 = vunpack.c.l.b16 %v3362
        %v3634 = vunpack.c.h.b16 %v3362
        %v3635 = vunpack.c.l.b16 %v3363
        %v3636 = vunpack.c.h.b16 %v3363
        %v3637 = vunpack.c.l.b16 %v3364
        %v3638 = vunpack.c.h.b16 %v3364
        %v3639 = vunpack.c.l.b16 %v3365
        %v3640 = vunpack.c.h.b16 %v3365
        %v3641 = vunpack.c.l.b16 %v3366
        %v3642 = vunpack.c.h.b16 %v3366
        %v3643 = vunpack.c.l.b16 %v3367
        %v3644 = vunpack.c.h.b16 %v3367
        %v3645 = vunpack.c.l.b16 %v3368
        %v3646 = vunpack.c.h.b16 %v3368
        %v3647 = vunpack.c.l.b16 %v3369
        %v3648 = vunpack.c.h.b16 %v3369
        %v3649 = vpack.c.b16 %v3491, %v3489
        %v3650 = vpack.c.b16 %v3492, %v3490
        %v3651 = vpack.c.b16 %v3495, %v3493
        %v3652 = vpack.c.b16 %v3496, %v3494
        %v3653 = vpack.c.b16 %v3499, %v3497
        %v3654 = vpack.c.b16 %v3500, %v3498
        %v3655 = vpack.c.b16 %v3503, %v3501
        %v3656 = vpack.c.b16 %v3504, %v3502
        %v3657 = vpack.c.b16 %v3507, %v3505
        %v3658 = vpack.c.b16 %v3508, %v3506
        %v3659 = vpack.c.b16 %v3511, %v3509
        %v3660 = vpack.c.b16 %v3512, %v3510
        %v3661 = vpack.c.b16 %v3515, %v3513
        %v3662 = vpack.c.b16 %v3516, %v3514
        %v3663 = vpack.c.b16 %v3519, %v3517
        %v3664 = vpack.c.b16 %v3520, %v3518
        %v3665 = vpack.c.b16 %v3523, %v3521
        %v3666 = vpack.c.b16 %v3524, %v3522
        %v3667 = vpack.c.b16 %v3527, %v3525
        %v3668 = vpack.c.b16 %v3528, %v3526
        %v3669 = vpack.c.b16 %v3531, %v3529
        %v3670 = vpack.c.b16 %v3532, %v3530
        %v3671 = vpack.c.b16 %v3535, %v3533
        %v3672 = vpack.c.b16 %v3536, %v3534
        %v3673 = vpack.c.b16 %v3539, %v3537
        %v3674 = vpack.c.b16 %v3540, %v3538
        %v3675 = vpack.c.b16 %v3543, %v3541
        %v3676 = vpack.c.b16 %v3544, %v3542
        %v3677 = vpack.c.b16 %v3547, %v3545
        %v3678 = vpack.c.b16 %v3548, %v3546
        %v3679 = vpack.c.b16 %v3551, %v3549
        %v3680 = vpack.c.b16 %v3552, %v3550
        %v3681 = vpack.c.b16 %v3555, %v3553
        %v3682 = vpack.c.b16 %v3556, %v3554
        %v3683 = vpack.c.b16 %v3559, %v3557
        %v3684 = vpack.c.b16 %v3560, %v3558
        %v3685 = vpack.c.b16 %v3563, %v3561
        %v3686 = vpack.c.b16 %v3564, %v3562
        %v3687 = vpack.c.b16 %v3567, %v3565
        %v3688 = vpack.c.b16 %v3568, %v3566
        %v3689 = vpack.c.b16 %v3571, %v3569
        %v3690 = vpack.c.b16 %v3572, %v3570
        %v3691 = vpack.c.b16 %v3575, %v3573
        %v3692 = vpack.c.b16 %v3576, %v3574
        %v3693 = vpack.c.b16 %v3579, %v3577
        %v3694 = vpack.c.b16 %v3580, %v3578
        %v3695 = vpack.c.b16 %v3583, %v3581
        %v3696 = vpack.c.b16 %v3584, %v3582
        %v3697 = vpack.c.b16 %v3587, %v3585
        %v3698 = vpack.c.b16 %v3588, %v3586
        %v3699 = vpack.c.b16 %v3591, %v3589
        %v3700 = vpack.c.b16 %v3592, %v3590
        %v3701 = vpack.c.b16 %v3595, %v3593
        %v3702 = vpack.c.b16 %v3596, %v3594
        %v3703 = vpack.c.b16 %v3599, %v3597
        %v3704 = vpack.c.b16 %v3600, %v3598
        %v3705 = vpack.c.b16 %v3603, %v3601
        %v3706 = vpack.c.b16 %v3604, %v3602
        %v3707 = vpack.c.b16 %v3607, %v3605
        %v3708 = vpack.c.b16 %v3608, %v3606
        %v3709 = vpack.c.b16 %v3611, %v3609
        %v3710 = vpack.c.b16 %v3612, %v3610
        %v3711 = vpack.c.b16 %v3615, %v3613
        %v3712 = vpack.c.b16 %v3616, %v3614
        %v3713 = vpack.c.b16 %v3619, %v3617
        %v3714 = vpack.c.b16 %v3620, %v3618
        %v3715 = vpack.c.b16 %v3623, %v3621
        %v3716 = vpack.c.b16 %v3624, %v3622
        %v3717 = vpack.c.b16 %v3627, %v3625
        %v3718 = vpack.c.b16 %v3628, %v3626
        %v3719 = vpack.c.b16 %v3631, %v3629
        %v3720 = vpack.c.b16 %v3632, %v3630
        %v3721 = vpack.c.b16 %v3635, %v3633
        %v3722 = vpack.c.b16 %v3636, %v3634
        %v3723 = vpack.c.b16 %v3639, %v3637
        %v3724 = vpack.c.b16 %v3640, %v3638
        %v3725 = vpack.c.b16 %v3643, %v3641
        %v3726 = vpack.c.b16 %v3644, %v3642
        %v3727 = vpack.c.b16 %v3647, %v3645
        %v3728 = vpack.c.b16 %v3648, %v3646
        %3809 = vmatpush.bf16.msra.mxu0 %v3663
        %3810 = vmatpush.bf16.msra.mxu0 %v3661
        %3811 = vmatpush.bf16.msra.mxu0 %v3659
        %3812 = vmatpush.bf16.msra.mxu0 %v3657
        %3813 = vmatpush.bf16.msra.mxu0 %v3655
        %3814 = vmatpush.bf16.msra.mxu0 %v3653
        %3815 = vmatpush.bf16.msra.mxu0 %v3651
        %3816 = vmatpush.bf16.msra.mxu0 %v3649
        %3817 = vmatmul.bf16.gmra.mxu0 %v3386
        %v3818 = vpop.f32.mrf.mxu0
        %v3819 = vadd.f32 0.0, %v3818
        %v3820 = vpop.f32.mrf.mxu0
        %v3821 = vadd.f32 0.0, %v3820
        %3822 = vmatmul.bf16.gmra.mxu0 %v3385
        %v3823 = vpop.f32.mrf.mxu0
        %v3824 = vadd.f32 0.0, %v3823
        %v3825 = vpop.f32.mrf.mxu0
        %3826 = vdwg.mxu0
        %3827 = vmatpush.bf16.msra.mxu0 %v3679
        %3828 = vmatpush.bf16.msra.mxu0 %v3677
        %3829 = vmatpush.bf16.msra.mxu0 %v3675
        %3830 = vmatpush.bf16.msra.mxu0 %v3673
        %3831 = vmatpush.bf16.msra.mxu0 %v3671
        %3832 = vmatpush.bf16.msra.mxu0 %v3669
        %3833 = vmatpush.bf16.msra.mxu0 %v3667
        %3834 = vmatpush.bf16.msra.mxu0 %v3665
        %3835 = vmatmul.bf16.gmra.mxu0 %v3389
        %v3836 = vpop.f32.mrf.mxu0
        %v3837 = vadd.f32 %v3819, %v3836
        %v3838 = vpop.f32.mrf.mxu0
        %v3839 = vadd.f32 %v3821, %v3838
        %3840 = vmatmul.bf16.gmra.mxu0 %v3388
        %v3841 = vpop.f32.mrf.mxu0
        %v3842 = vadd.f32 %v3824, %v3841
        %v3843 = vpop.f32.mrf.mxu0
        %3844 = vdwg.mxu0
        %3845 = vmatpush.bf16.msra.mxu0 %v3695
        %3846 = vmatpush.bf16.msra.mxu0 %v3693
        %3847 = vmatpush.bf16.msra.mxu0 %v3691
        %3848 = vmatpush.bf16.msra.mxu0 %v3689
        %3849 = vmatpush.bf16.msra.mxu0 %v3687
        %3850 = vmatpush.bf16.msra.mxu0 %v3685
        %3851 = vmatpush.bf16.msra.mxu0 %v3683
        %3852 = vmatpush.bf16.msra.mxu0 %v3681
        %3853 = vmatmul.bf16.gmra.mxu0 %v3392
        %v3854 = vpop.f32.mrf.mxu0
        %v3855 = vadd.f32 %v3837, %v3854
        %v3856 = vpop.f32.mrf.mxu0
        %v3857 = vadd.f32 %v3839, %v3856
        %3858 = vmatmul.bf16.gmra.mxu0 %v3391
        %v3859 = vpop.f32.mrf.mxu0
        %v3860 = vadd.f32 %v3842, %v3859
        %v3861 = vpop.f32.mrf.mxu0
        %3862 = vdwg.mxu0
        %3863 = vmatpush.bf16.msra.mxu0 %v3711
        %3864 = vmatpush.bf16.msra.mxu0 %v3709
        %3865 = vmatpush.bf16.msra.mxu0 %v3707
        %3866 = vmatpush.bf16.msra.mxu0 %v3705
        %3867 = vmatpush.bf16.msra.mxu0 %v3703
        %3868 = vmatpush.bf16.msra.mxu0 %v3701
        %3869 = vmatpush.bf16.msra.mxu0 %v3699
        %3870 = vmatpush.bf16.msra.mxu0 %v3697
        %3871 = vmatmul.bf16.gmra.mxu0 %v3395
        %v3872 = vpop.f32.mrf.mxu0
        %v3873 = vadd.f32 %v3855, %v3872
        %v3874 = vpop.f32.mrf.mxu0
        %v3875 = vadd.f32 %v3857, %v3874
        %3876 = vmatmul.bf16.gmra.mxu0 %v3394
        %v3877 = vpop.f32.mrf.mxu0
        %v3878 = vadd.f32 %v3860, %v3877
        %v3879 = vpop.f32.mrf.mxu0
        %3880 = vdwg.mxu0
        %3881 = vmatpush.bf16.msra.mxu0 %v3727
        %3882 = vmatpush.bf16.msra.mxu0 %v3725
        %3883 = vmatpush.bf16.msra.mxu0 %v3723
        %3884 = vmatpush.bf16.msra.mxu0 %v3721
        %3885 = vmatpush.bf16.msra.mxu0 %v3719
        %3886 = vmatpush.bf16.msra.mxu0 %v3717
        %3887 = vmatpush.bf16.msra.mxu0 %v3715
        %3888 = vmatpush.bf16.msra.mxu0 %v3713
        %3889 = vmatmul.bf16.gmra.mxu0 %v3398
        %v3890 = vpop.f32.mrf.mxu0
        %v3891 = vadd.f32 %v3873, %v3890
        %v3892 = vpop.f32.mrf.mxu0
        %v3893 = vadd.f32 %v3875, %v3892
        %3894 = vmatmul.bf16.gmra.mxu0 %v3397
        %v3895 = vpop.f32.mrf.mxu0
        %v3896 = vadd.f32 %v3878, %v3895
        %v3897 = vpop.f32.mrf.mxu0
        %3898 = vdwg.mxu0
        %3899 = vmatpush.bf16.msra.mxu0 %v3664
        %3900 = vmatpush.bf16.msra.mxu0 %v3662
        %3901 = vmatpush.bf16.msra.mxu0 %v3660
        %3902 = vmatpush.bf16.msra.mxu0 %v3658
        %3903 = vmatpush.bf16.msra.mxu0 %v3656
        %3904 = vmatpush.bf16.msra.mxu0 %v3654
        %3905 = vmatpush.bf16.msra.mxu0 %v3652
        %3906 = vmatpush.bf16.msra.mxu0 %v3650
        %3907 = vmatmul.bf16.gmra.mxu0 %v3386
        %v3908 = vpop.f32.mrf.mxu0
        %v3909 = vadd.f32 0.0, %v3908
        %v3910 = vpop.f32.mrf.mxu0
        %v3911 = vadd.f32 0.0, %v3910
        %3912 = vmatmul.bf16.gmra.mxu0 %v3385
        %v3913 = vpop.f32.mrf.mxu0
        %v3914 = vadd.f32 0.0, %v3913
        %v3915 = vpop.f32.mrf.mxu0
        %3916 = vdwg.mxu0
        %3917 = vmatpush.bf16.msra.mxu0 %v3680
        %3918 = vmatpush.bf16.msra.mxu0 %v3678
        %3919 = vmatpush.bf16.msra.mxu0 %v3676
        %3920 = vmatpush.bf16.msra.mxu0 %v3674
        %3921 = vmatpush.bf16.msra.mxu0 %v3672
        %3922 = vmatpush.bf16.msra.mxu0 %v3670
        %3923 = vmatpush.bf16.msra.mxu0 %v3668
        %3924 = vmatpush.bf16.msra.mxu0 %v3666
        %3925 = vmatmul.bf16.gmra.mxu0 %v3389
        %v3926 = vpop.f32.mrf.mxu0
        %v3927 = vadd.f32 %v3909, %v3926
        %v3928 = vpop.f32.mrf.mxu0
        %v3929 = vadd.f32 %v3911, %v3928
        %3930 = vmatmul.bf16.gmra.mxu0 %v3388
        %v3931 = vpop.f32.mrf.mxu0
        %v3932 = vadd.f32 %v3914, %v3931
        %v3933 = vpop.f32.mrf.mxu0
        %3934 = vdwg.mxu0
        %3935 = vmatpush.bf16.msra.mxu0 %v3696
        %3936 = vmatpush.bf16.msra.mxu0 %v3694
        %3937 = vmatpush.bf16.msra.mxu0 %v3692
        %3938 = vmatpush.bf16.msra.mxu0 %v3690
        %3939 = vmatpush.bf16.msra.mxu0 %v3688
        %3940 = vmatpush.bf16.msra.mxu0 %v3686
        %3941 = vmatpush.bf16.msra.mxu0 %v3684
        %3942 = vmatpush.bf16.msra.mxu0 %v3682
        %3943 = vmatmul.bf16.gmra.mxu0 %v3392
        %v3944 = vpop.f32.mrf.mxu0
        %v3945 = vadd.f32 %v3927, %v3944
        %v3946 = vpop.f32.mrf.mxu0
        %v3947 = vadd.f32 %v3929, %v3946
        %3948 = vmatmul.bf16.gmra.mxu0 %v3391
        %v3949 = vpop.f32.mrf.mxu0
        %v3950 = vadd.f32 %v3932, %v3949
        %v3951 = vpop.f32.mrf.mxu0
        %3952 = vdwg.mxu0
        %3953 = vmatpush.bf16.msra.mxu0 %v3712
        %3954 = vmatpush.bf16.msra.mxu0 %v3710
        %3955 = vmatpush.bf16.msra.mxu0 %v3708
        %3956 = vmatpush.bf16.msra.mxu0 %v3706
        %3957 = vmatpush.bf16.msra.mxu0 %v3704
        %3958 = vmatpush.bf16.msra.mxu0 %v3702
        %3959 = vmatpush.bf16.msra.mxu0 %v3700
        %3960 = vmatpush.bf16.msra.mxu0 %v3698
        %3961 = vmatmul.bf16.gmra.mxu0 %v3395
        %v3962 = vpop.f32.mrf.mxu0
        %v3963 = vadd.f32 %v3945, %v3962
        %v3964 = vpop.f32.mrf.mxu0
        %v3965 = vadd.f32 %v3947, %v3964
        %3966 = vmatmul.bf16.gmra.mxu0 %v3394
        %v3967 = vpop.f32.mrf.mxu0
        %v3968 = vadd.f32 %v3950, %v3967
        %v3969 = vpop.f32.mrf.mxu0
        %3970 = vdwg.mxu0
        %3971 = vmatpush.bf16.msra.mxu0 %v3728
        %3972 = vmatpush.bf16.msra.mxu0 %v3726
        %3973 = vmatpush.bf16.msra.mxu0 %v3724
        %3974 = vmatpush.bf16.msra.mxu0 %v3722
        %3975 = vmatpush.bf16.msra.mxu0 %v3720
        %3976 = vmatpush.bf16.msra.mxu0 %v3718
        %3977 = vmatpush.bf16.msra.mxu0 %v3716
        %3978 = vmatpush.bf16.msra.mxu0 %v3714
        %3979 = vmatmul.bf16.gmra.mxu0 %v3398
        %v3980 = vpop.f32.mrf.mxu0
        %v3981 = vadd.f32 %v3963, %v3980
        %v3982 = vpop.f32.mrf.mxu0
        %v3983 = vadd.f32 %v3965, %v3982
        %3984 = vmatmul.bf16.gmra.mxu0 %v3397
        %v3985 = vpop.f32.mrf.mxu0
        %v3986 = vadd.f32 %v3968, %v3985
        %v3987 = vpop.f32.mrf.mxu0
        %3988 = vdwg.mxu0
        %v3989 = vadd.f32 %v3280, %v3891
        %v3990 = vadd.f32 %v3281, %v3981
        %v3991 = vadd.f32 %v3282, %v3893
        %v3992 = vadd.f32 %v3283, %v3983
        %v3993 = vadd.f32 %v3284, %v3896
        %v3994 = vadd.f32 %v3285, %v3986
        %v3995 = vmax.f32 %v3989, %v3990
        %v3996 = vmax.f32 %v3991, %v3992
        %v3997 = vmax.f32 %v3993, %v3994
        %v3999 = vperm.slane %v317, 0
        %v4001 = vadd.f32 %v3995, %v3999
        %v4002 = vadd.f32 %v3996, %v3999
        %v4003 = vadd.f32 %v3997, %v3999
        %v4004 = vmax.f32 %v4001, 0.0
        %v4005 = vmax.f32 %v4002, 0.0
        %v4006 = vmax.f32 %v4003, 0.0
        %v4007 = vpack.c.bf16 %v4005, %v4004
        %v4008 = vpack.c.bf16 %v4006, %v4006
        %v4011 = vunpack.c.l.b16 %v318
        %v4012 = vunpack.c.l.b16 %v319
        %v4013 = vpack.c.b16 %v4012, %v4011
        %vm4014 = vcmask 195584
        %v4016 = vsel %vm4014, %v4013, 0
        %vm4018 = vcmask 1043456
        %v4020 = vsel %vm4018, %v4008, 0
        %4022 = vmatpush.bf16.msra.mxu0 0
        %4023 = vmatpush.bf16.msra.mxu0 0
        %4024 = vmatpush.bf16.msra.mxu0 0
        %4025 = vmatpush.bf16.msra.mxu0 0
        %4026 = vmatpush.bf16.msra.mxu0 0
        %4027 = vmatpush.bf16.msra.mxu0 0
        %4028 = vmatpush.bf16.msra.mxu0 %v4020
        %4029 = vmatpush.bf16.msra.mxu0 %v4007
        %4030 = vmatmul.bf16.gmra.mxu0 %v4016
        %v4031 = vpop.f32.mrf.mxu0
        %v4032 = vadd.f32 0.0, %v4031
        %v4033 = vpop.f32.mrf.mxu0
        %v4034 = vadd.f32 0.0, %v4033
        %4035 = vdwg.mxu0
        %v4038 = vunpack.c.l.b16 %v320
        %v4039 = vunpack.c.l.b16 %v321
        %v4040 = vpack.c.b16 %v4039, %v4038
        %v4042 = vsel %vm4014, %v4040, 0
        %4044 = vmatpush.bf16.msra.mxu0 0
        %4045 = vmatpush.bf16.msra.mxu0 0
        %4046 = vmatpush.bf16.msra.mxu0 0
        %4047 = vmatpush.bf16.msra.mxu0 0
        %4048 = vmatpush.bf16.msra.mxu0 0
        %4049 = vmatpush.bf16.msra.mxu0 0
        %4050 = vmatpush.bf16.msra.mxu0 %v4020
        %4051 = vmatpush.bf16.msra.mxu0 %v4007
        %4052 = vmatmul.bf16.gmra.mxu0 %v4042
        %v4053 = vpop.f32.mrf.mxu0
        %v4054 = vadd.f32 0.0, %v4053
        %v4055 = vpop.f32.mrf.mxu0
        %v4056 = vadd.f32 0.0, %v4055
        %4057 = vdwg.mxu0
        %v4058 = vmax.f32 %v4032, %v4054
        %v4059 = vmax.f32 %v4034, %v4056
        %v4060 = vpack.c.bf16 %v4058, %v4058
        %v4061 = vpack.c.bf16 %v4059, %v4059
        %4062 = vst [vmem:[%s313] sm:$0xf] %v4060
        %4063 = vst [vmem:[%s313 + $0x4] sm:$0x3] %v4061
        %s4064 = scalar_lea.vmem %s290, 80 [#allocation2]
        %v4065 = vld [vmem:[%s4064] sm:$0xff]
        %v4066 = vld [vmem:[%s4064 + $0x8] sm:$0xff]
        %v4067 = vld [vmem:[%s4064 + $0x10] sm:$0xf]
        %v4068 = vld [vmem:[%s4064 + $0x14] sm:$0xff]
        %v4069 = vld [vmem:[%s4064 + $0x1c] sm:$0xff]
        %v4070 = vld [vmem:[%s4064 + $0x24] sm:$0xf]
        %v4071 = vld [vmem:[%s4064 + $0x28] sm:$0xff]
        %v4072 = vld [vmem:[%s4064 + $0x30] sm:$0xff]
        %v4073 = vld [vmem:[%s4064 + $0x38] sm:$0xf]
        %v4074 = vld [vmem:[%s1] sm:$0xff]
        %v4075 = vld [vmem:[%s1 + $0x8] sm:$0xff]
        %v4076 = vld [vmem:[%s1 + $0x10] sm:$0xff]
        %v4077 = vld [vmem:[%s1 + $0x18] sm:$0xff]
        %v4078 = vld [vmem:[%s1 + $0x20] sm:$0xff]
        %v4079 = vld [vmem:[%s1 + $0x28] sm:$0xff]
        %v4080 = vld [vmem:[%s1 + $0x30] sm:$0xff]
        %v4081 = vld [vmem:[%s1 + $0x38] sm:$0xff]
        %v4082 = vld [vmem:[%s1 + $0x40] sm:$0xff]
        %v4083 = vld [vmem:[%s1 + $0x48] sm:$0xff]
        %v4084 = vld [vmem:[%s1 + $0x50] sm:$0xff]
        %v4085 = vld [vmem:[%s1 + $0x58] sm:$0xff]
        %v4086 = vld [vmem:[%s1 + $0x60] sm:$0xff]
        %v4087 = vld [vmem:[%s1 + $0x68] sm:$0xff]
        %v4088 = vld [vmem:[%s1 + $0x70] sm:$0xff]
        %v4089 = vld [vmem:[%s1 + $0x78] sm:$0xff]
        %v4090 = vld [vmem:[%s1 + $0x80] sm:$0xff]
        %v4091 = vld [vmem:[%s1 + $0x88] sm:$0xff]
        %v4092 = vld [vmem:[%s1 + $0x90] sm:$0xff]
        %v4093 = vld [vmem:[%s1 + $0x98] sm:$0xff]
        %v4094 = vld [vmem:[%s1 + $0xa0] sm:$0xff]
        %v4095 = vld [vmem:[%s1 + $0xa8] sm:$0xff]
        %v4096 = vld [vmem:[%s1 + $0xb0] sm:$0xff]
        %v4097 = vld [vmem:[%s1 + $0xb8] sm:$0xff]
        %v4098 = vld [vmem:[%s1 + $0xc0] sm:$0xff]
        %v4099 = vld [vmem:[%s1 + $0xc8] sm:$0xff]
        %v4100 = vld [vmem:[%s1 + $0xd0] sm:$0xff]
        %v4101 = vld [vmem:[%s1 + $0xd8] sm:$0xff]
        %v4102 = vld [vmem:[%s1 + $0xe0] sm:$0xff]
        %v4103 = vld [vmem:[%s1 + $0xe8] sm:$0xff]
        %v4104 = vld [vmem:[%s1 + $0xf0] sm:$0xff]
        %v4105 = vld [vmem:[%s1 + $0xf8] sm:$0xff]
        %v4106 = vld [vmem:[%s1 + $0x100] sm:$0xff]
        %v4107 = vld [vmem:[%s1 + $0x108] sm:$0xff]
        %v4108 = vld [vmem:[%s1 + $0x110] sm:$0xff]
        %v4109 = vld [vmem:[%s1 + $0x118] sm:$0xff]
        %v4110 = vld [vmem:[%s1 + $0x120] sm:$0xff]
        %v4111 = vld [vmem:[%s1 + $0x128] sm:$0xff]
        %v4112 = vld [vmem:[%s1 + $0x130] sm:$0xff]
        %v4113 = vld [vmem:[%s1 + $0x138] sm:$0xff]
        %v4114 = vld [vmem:[%s1 + $0x140] sm:$0xff]
        %v4115 = vld [vmem:[%s1 + $0x148] sm:$0xff]
        %v4116 = vld [vmem:[%s1 + $0x150] sm:$0xff]
        %v4117 = vld [vmem:[%s1 + $0x158] sm:$0xff]
        %v4118 = vld [vmem:[%s1 + $0x160] sm:$0xff]
        %v4119 = vld [vmem:[%s1 + $0x168] sm:$0xff]
        %v4120 = vld [vmem:[%s1 + $0x170] sm:$0xff]
        %v4121 = vld [vmem:[%s1 + $0x178] sm:$0xff]
        %v4122 = vld [vmem:[%s1 + $0x180] sm:$0xff]
        %v4123 = vld [vmem:[%s1 + $0x188] sm:$0xff]
        %v4124 = vld [vmem:[%s1 + $0x190] sm:$0xff]
        %v4125 = vld [vmem:[%s1 + $0x198] sm:$0xff]
        %v4126 = vld [vmem:[%s1 + $0x1a0] sm:$0xff]
        %v4127 = vld [vmem:[%s1 + $0x1a8] sm:$0xff]
        %v4128 = vld [vmem:[%s1 + $0x1b0] sm:$0xff]
        %v4129 = vld [vmem:[%s1 + $0x1b8] sm:$0xff]
        %v4130 = vld [vmem:[%s1 + $0x1c0] sm:$0xff]
        %v4131 = vld [vmem:[%s1 + $0x1c8] sm:$0xff]
        %v4132 = vld [vmem:[%s1 + $0x1d0] sm:$0xff]
        %v4133 = vld [vmem:[%s1 + $0x1d8] sm:$0xff]
        %v4134 = vld [vmem:[%s1 + $0x1e0] sm:$0xff]
        %v4135 = vld [vmem:[%s1 + $0x1e8] sm:$0xff]
        %v4136 = vld [vmem:[%s1 + $0x1f0] sm:$0xff]
        %v4137 = vld [vmem:[%s1 + $0x1f8] sm:$0xff]
        %v4138 = vld [vmem:[%s1 + $0x200] sm:$0xff]
        %v4139 = vld [vmem:[%s1 + $0x208] sm:$0xff]
        %v4140 = vld [vmem:[%s1 + $0x210] sm:$0xff]
        %v4141 = vld [vmem:[%s1 + $0x218] sm:$0xff]
        %v4142 = vld [vmem:[%s1 + $0x220] sm:$0xff]
        %v4143 = vld [vmem:[%s1 + $0x228] sm:$0xff]
        %v4144 = vld [vmem:[%s1 + $0x230] sm:$0xff]
        %v4145 = vld [vmem:[%s1 + $0x238] sm:$0xff]
        %v4146 = vld [vmem:[%s1 + $0x240] sm:$0xff]
        %v4147 = vld [vmem:[%s1 + $0x248] sm:$0xff]
        %v4148 = vld [vmem:[%s1 + $0x250] sm:$0xff]
        %v4149 = vld [vmem:[%s1 + $0x258] sm:$0xff]
        %v4150 = vld [vmem:[%s1 + $0x260] sm:$0xff]
        %v4151 = vld [vmem:[%s1 + $0x268] sm:$0xff]
        %v4152 = vld [vmem:[%s1 + $0x270] sm:$0xff]
        %v4153 = vld [vmem:[%s1 + $0x278] sm:$0xff]
        %v4154 = vld [vmem:[%s4064 + $0x3c] sm:$0x11]
        %v4155 = vld [vmem:[%s4064 + $0x44] sm:$0x11]
        %v4156 = vld [vmem:[%s4064 + $0x4c] sm:$0x1]
        %v4157 = vld [vmem:[%s414] sm:$0xff]
        %v4158 = vld [vmem:[%s414 + $0x8] sm:$0xff]
        %v4159 = vld [vmem:[%s414 + $0x10] sm:$0xff]
        %v4160 = vld [vmem:[%s414 + $0x18] sm:$0xff]
        %v4161 = vld [vmem:[%s414 + $0x20] sm:$0xff]
        %v4162 = vld [vmem:[%s414 + $0x28] sm:$0xff]
        %v4163 = vld [vmem:[%s414 + $0x30] sm:$0xff]
        %v4164 = vld [vmem:[%s414 + $0x38] sm:$0xff]
        %v4165 = vld [vmem:[%s414 + $0x40] sm:$0xff]
        %v4166 = vld [vmem:[%s414 + $0x48] sm:$0xff]
        %v4167 = vld [vmem:[%s414 + $0x50] sm:$0xff]
        %v4168 = vld [vmem:[%s414 + $0x58] sm:$0xff]
        %v4169 = vld [vmem:[%s414 + $0x60] sm:$0xff]
        %v4170 = vld [vmem:[%s414 + $0x68] sm:$0xff]
        %v4171 = vld [vmem:[%s414 + $0x70] sm:$0xff]
        %v4172 = vld [vmem:[%s414 + $0x78] sm:$0xff]
        %v4173 = vld [vmem:[%s414 + $0x80] sm:$0xff]
        %v4174 = vld [vmem:[%s414 + $0x88] sm:$0xff]
        %v4175 = vld [vmem:[%s414 + $0x90] sm:$0xff]
        %v4176 = vld [vmem:[%s414 + $0x98] sm:$0xff]
        %v4177 = vld [vmem:[%s414 + $0xa0] sm:$0xff]
        %v4178 = vld [vmem:[%s414 + $0xa8] sm:$0xff]
        %v4179 = vld [vmem:[%s414 + $0xb0] sm:$0xff]
        %v4180 = vld [vmem:[%s414 + $0xb8] sm:$0xff]
        %v4181 = vld [vmem:[%s414 + $0xc0] sm:$0xff]
        %v4182 = vld [vmem:[%s414 + $0xc8] sm:$0xff]
        %v4183 = vld [vmem:[%s414 + $0xd0] sm:$0xff]
        %v4184 = vld [vmem:[%s414 + $0xd8] sm:$0xff]
        %v4185 = vld [vmem:[%s414 + $0xe0] sm:$0xff]
        %v4186 = vld [vmem:[%s414 + $0xe8] sm:$0xff]
        %v4187 = vld [vmem:[%s414 + $0xf0] sm:$0xff]
        %v4188 = vld [vmem:[%s414 + $0xf8] sm:$0xff]
        %v4189 = vld [vmem:[%s414 + $0x100] sm:$0xff]
        %v4190 = vld [vmem:[%s414 + $0x108] sm:$0xff]
        %v4191 = vld [vmem:[%s414 + $0x110] sm:$0xff]
        %v4192 = vld [vmem:[%s414 + $0x118] sm:$0xff]
        %v4193 = vld [vmem:[%s414 + $0x120] sm:$0xff]
        %v4194 = vld [vmem:[%s414 + $0x128] sm:$0xff]
        %v4195 = vld [vmem:[%s414 + $0x130] sm:$0xff]
        %v4196 = vld [vmem:[%s414 + $0x138] sm:$0xff]
        %v4197 = vld [vmem:[%s414 + $0x140] sm:$0xff]
        %v4198 = vld [vmem:[%s414 + $0x148] sm:$0xff]
        %v4199 = vld [vmem:[%s414 + $0x150] sm:$0xff]
        %v4200 = vld [vmem:[%s414 + $0x158] sm:$0xff]
        %v4201 = vld [vmem:[%s414 + $0x160] sm:$0xff]
        %v4202 = vld [vmem:[%s414 + $0x168] sm:$0xff]
        %v4203 = vld [vmem:[%s414 + $0x170] sm:$0xff]
        %v4204 = vld [vmem:[%s414 + $0x178] sm:$0xff]
        %v4205 = vld [vmem:[%s414 + $0x180] sm:$0xff]
        %v4206 = vld [vmem:[%s414 + $0x188] sm:$0xff]
        %v4207 = vld [vmem:[%s414 + $0x190] sm:$0xff]
        %v4208 = vld [vmem:[%s414 + $0x198] sm:$0xff]
        %v4209 = vld [vmem:[%s414 + $0x1a0] sm:$0xff]
        %v4210 = vld [vmem:[%s414 + $0x1a8] sm:$0xff]
        %v4211 = vld [vmem:[%s414 + $0x1b0] sm:$0xff]
        %v4212 = vld [vmem:[%s414 + $0x1b8] sm:$0xff]
        %v4213 = vld [vmem:[%s414 + $0x1c0] sm:$0xff]
        %v4214 = vld [vmem:[%s414 + $0x1c8] sm:$0xff]
        %v4215 = vld [vmem:[%s414 + $0x1d0] sm:$0xff]
        %v4216 = vld [vmem:[%s414 + $0x1d8] sm:$0xff]
        %v4217 = vld [vmem:[%s414 + $0x1e0] sm:$0xff]
        %v4218 = vld [vmem:[%s414 + $0x1e8] sm:$0xff]
        %v4219 = vld [vmem:[%s414 + $0x1f0] sm:$0xff]
        %v4220 = vld [vmem:[%s414 + $0x1f8] sm:$0xff]
        %v4221 = vld [vmem:[%s414 + $0x200] sm:$0xff]
        %v4222 = vld [vmem:[%s414 + $0x208] sm:$0xff]
        %v4223 = vld [vmem:[%s414 + $0x210] sm:$0xff]
        %v4224 = vld [vmem:[%s414 + $0x218] sm:$0xff]
        %v4225 = vld [vmem:[%s414 + $0x220] sm:$0xff]
        %v4226 = vld [vmem:[%s414 + $0x228] sm:$0xff]
        %v4227 = vld [vmem:[%s414 + $0x230] sm:$0xff]
        %v4228 = vld [vmem:[%s414 + $0x238] sm:$0xff]
        %v4229 = vld [vmem:[%s414 + $0x240] sm:$0xff]
        %v4230 = vld [vmem:[%s414 + $0x248] sm:$0xff]
        %v4231 = vld [vmem:[%s414 + $0x250] sm:$0xff]
        %v4232 = vld [vmem:[%s414 + $0x258] sm:$0xff]
        %v4233 = vld [vmem:[%s414 + $0x260] sm:$0xff]
        %v4234 = vld [vmem:[%s414 + $0x268] sm:$0xff]
        %v4235 = vld [vmem:[%s414 + $0x270] sm:$0xff]
        %v4236 = vld [vmem:[%s414 + $0x278] sm:$0xff]
        %v4249 = vunpack.c.l.b16 %v4065
        %v4250 = vunpack.c.h.b16 %v4065
        %v4251 = vunpack.c.l.b16 %v4066
        %v4252 = vunpack.c.h.b16 %v4066
        %v4253 = vunpack.c.l.b16 %v4067
        %v4254 = vunpack.c.l.b16 %v4068
        %v4255 = vunpack.c.h.b16 %v4068
        %v4256 = vunpack.c.l.b16 %v4069
        %v4257 = vunpack.c.h.b16 %v4069
        %v4258 = vunpack.c.l.b16 %v4070
        %v4259 = vunpack.c.l.b16 %v4071
        %v4260 = vunpack.c.h.b16 %v4071
        %v4261 = vunpack.c.l.b16 %v4072
        %v4262 = vunpack.c.h.b16 %v4072
        %v4263 = vunpack.c.l.b16 %v4073
        %v4264 = vunpack.c.l.b16 %v4154
        %v4265 = vunpack.c.h.b16 %v4154
        %v4266 = vunpack.c.l.b16 %v4155
        %v4267 = vunpack.c.h.b16 %v4155
        %v4268 = vunpack.c.l.b16 %v4156
        %v4269 = vpack.c.b16 %v4254, %v4249
        %v4270 = vpack.c.b16 %v4255, %v4250
        %v4271 = vpack.c.b16 %v4256, %v4251
        %v4272 = vpack.c.b16 %v4257, %v4252
        %v4273 = vpack.c.b16 %v4258, %v4253
        %v4274 = vpack.c.b16 %v4264, %v4259
        %v4275 = vpack.c.b16 %v4265, %v4260
        %v4276 = vpack.c.b16 %v4266, %v4261
        %v4277 = vpack.c.b16 %v4267, %v4262
        %v4278 = vpack.c.b16 %v4268, %v4263
        %v4280 = vshrl.u32 %v4269, 16
        %v4282 = vshll.u32 %v4269, 16
        %v4284 = vrot.slane %v4282, 1
        %v4285 = vor.u32 %v4280, %v4284
        %v4287 = vshll.u32 %v4274, 16
        %v4289 = vrot.slane %v4287, 1
        %v4290 = vsel %vm537, %v4285, %v4289
        %v4292 = vshrl.u32 %v4270, 16
        %v4294 = vshll.u32 %v4270, 16
        %v4296 = vrot.slane %v4294, 1
        %v4297 = vor.u32 %v4292, %v4296
        %v4299 = vshll.u32 %v4275, 16
        %v4301 = vrot.slane %v4299, 1
        %v4302 = vsel %vm537, %v4297, %v4301
        %v4304 = vshrl.u32 %v4271, 16
        %v4306 = vshll.u32 %v4271, 16
        %v4308 = vrot.slane %v4306, 1
        %v4309 = vor.u32 %v4304, %v4308
        %v4311 = vshll.u32 %v4276, 16
        %v4313 = vrot.slane %v4311, 1
        %v4314 = vsel %vm537, %v4309, %v4313
        %v4316 = vshrl.u32 %v4272, 16
        %v4318 = vshll.u32 %v4272, 16
        %v4320 = vrot.slane %v4318, 1
        %v4321 = vor.u32 %v4316, %v4320
        %v4323 = vshll.u32 %v4277, 16
        %v4325 = vrot.slane %v4323, 1
        %v4326 = vsel %vm537, %v4321, %v4325
        %v4328 = vshrl.u32 %v4273, 16
        %v4330 = vshll.u32 %v4273, 16
        %v4332 = vrot.slane %v4330, 1
        %v4333 = vor.u32 %v4328, %v4332
        %v4335 = vshll.u32 %v4278, 16
        %v4337 = vrot.slane %v4335, 1
        %v4338 = vsel %vm537, %v4333, %v4337
        %v4339 = vshrl.u32 %v4274, 16
        %v4341 = vor.u32 %v4339, %v4289
        %v4342 = vshrl.u32 %v4275, 16
        %v4344 = vor.u32 %v4342, %v4301
        %v4345 = vshrl.u32 %v4276, 16
        %v4347 = vor.u32 %v4345, %v4313
        %v4348 = vshrl.u32 %v4277, 16
        %v4350 = vor.u32 %v4348, %v4325
        %v4351 = vshrl.u32 %v4278, 16
        %v4353 = vor.u32 %v4351, %v4337
        %v4444 = vunpack.c.l.b16 %v4157
        %v4445 = vunpack.c.h.b16 %v4157
        %v4446 = vunpack.c.l.b16 %v4158
        %v4447 = vunpack.c.h.b16 %v4158
        %v4448 = vunpack.c.l.b16 %v4159
        %v4449 = vunpack.c.h.b16 %v4159
        %v4450 = vunpack.c.l.b16 %v4160
        %v4451 = vunpack.c.h.b16 %v4160
        %v4452 = vunpack.c.l.b16 %v4161
        %v4453 = vunpack.c.h.b16 %v4161
        %v4454 = vunpack.c.l.b16 %v4162
        %v4455 = vunpack.c.h.b16 %v4162
        %v4456 = vunpack.c.l.b16 %v4163
        %v4457 = vunpack.c.h.b16 %v4163
        %v4458 = vunpack.c.l.b16 %v4164
        %v4459 = vunpack.c.h.b16 %v4164
        %v4460 = vunpack.c.l.b16 %v4165
        %v4461 = vunpack.c.h.b16 %v4165
        %v4462 = vunpack.c.l.b16 %v4166
        %v4463 = vunpack.c.h.b16 %v4166
        %v4464 = vunpack.c.l.b16 %v4167
        %v4465 = vunpack.c.h.b16 %v4167
        %v4466 = vunpack.c.l.b16 %v4168
        %v4467 = vunpack.c.h.b16 %v4168
        %v4468 = vunpack.c.l.b16 %v4169
        %v4469 = vunpack.c.h.b16 %v4169
        %v4470 = vunpack.c.l.b16 %v4170
        %v4471 = vunpack.c.h.b16 %v4170
        %v4472 = vunpack.c.l.b16 %v4171
        %v4473 = vunpack.c.h.b16 %v4171
        %v4474 = vunpack.c.l.b16 %v4172
        %v4475 = vunpack.c.h.b16 %v4172
        %v4476 = vunpack.c.l.b16 %v4173
        %v4477 = vunpack.c.h.b16 %v4173
        %v4478 = vunpack.c.l.b16 %v4174
        %v4479 = vunpack.c.h.b16 %v4174
        %v4480 = vunpack.c.l.b16 %v4175
        %v4481 = vunpack.c.h.b16 %v4175
        %v4482 = vunpack.c.l.b16 %v4176
        %v4483 = vunpack.c.h.b16 %v4176
        %v4484 = vunpack.c.l.b16 %v4177
        %v4485 = vunpack.c.h.b16 %v4177
        %v4486 = vunpack.c.l.b16 %v4178
        %v4487 = vunpack.c.h.b16 %v4178
        %v4488 = vunpack.c.l.b16 %v4179
        %v4489 = vunpack.c.h.b16 %v4179
        %v4490 = vunpack.c.l.b16 %v4180
        %v4491 = vunpack.c.h.b16 %v4180
        %v4492 = vunpack.c.l.b16 %v4181
        %v4493 = vunpack.c.h.b16 %v4181
        %v4494 = vunpack.c.l.b16 %v4182
        %v4495 = vunpack.c.h.b16 %v4182
        %v4496 = vunpack.c.l.b16 %v4183
        %v4497 = vunpack.c.h.b16 %v4183
        %v4498 = vunpack.c.l.b16 %v4184
        %v4499 = vunpack.c.h.b16 %v4184
        %v4500 = vunpack.c.l.b16 %v4185
        %v4501 = vunpack.c.h.b16 %v4185
        %v4502 = vunpack.c.l.b16 %v4186
        %v4503 = vunpack.c.h.b16 %v4186
        %v4504 = vunpack.c.l.b16 %v4187
        %v4505 = vunpack.c.h.b16 %v4187
        %v4506 = vunpack.c.l.b16 %v4188
        %v4507 = vunpack.c.h.b16 %v4188
        %v4508 = vunpack.c.l.b16 %v4189
        %v4509 = vunpack.c.h.b16 %v4189
        %v4510 = vunpack.c.l.b16 %v4190
        %v4511 = vunpack.c.h.b16 %v4190
        %v4512 = vunpack.c.l.b16 %v4191
        %v4513 = vunpack.c.h.b16 %v4191
        %v4514 = vunpack.c.l.b16 %v4192
        %v4515 = vunpack.c.h.b16 %v4192
        %v4516 = vunpack.c.l.b16 %v4193
        %v4517 = vunpack.c.h.b16 %v4193
        %v4518 = vunpack.c.l.b16 %v4194
        %v4519 = vunpack.c.h.b16 %v4194
        %v4520 = vunpack.c.l.b16 %v4195
        %v4521 = vunpack.c.h.b16 %v4195
        %v4522 = vunpack.c.l.b16 %v4196
        %v4523 = vunpack.c.h.b16 %v4196
        %v4524 = vunpack.c.l.b16 %v4197
        %v4525 = vunpack.c.h.b16 %v4197
        %v4526 = vunpack.c.l.b16 %v4198
        %v4527 = vunpack.c.h.b16 %v4198
        %v4528 = vunpack.c.l.b16 %v4199
        %v4529 = vunpack.c.h.b16 %v4199
        %v4530 = vunpack.c.l.b16 %v4200
        %v4531 = vunpack.c.h.b16 %v4200
        %v4532 = vunpack.c.l.b16 %v4201
        %v4533 = vunpack.c.h.b16 %v4201
        %v4534 = vunpack.c.l.b16 %v4202
        %v4535 = vunpack.c.h.b16 %v4202
        %v4536 = vunpack.c.l.b16 %v4203
        %v4537 = vunpack.c.h.b16 %v4203
        %v4538 = vunpack.c.l.b16 %v4204
        %v4539 = vunpack.c.h.b16 %v4204
        %v4540 = vunpack.c.l.b16 %v4205
        %v4541 = vunpack.c.h.b16 %v4205
        %v4542 = vunpack.c.l.b16 %v4206
        %v4543 = vunpack.c.h.b16 %v4206
        %v4544 = vunpack.c.l.b16 %v4207
        %v4545 = vunpack.c.h.b16 %v4207
        %v4546 = vunpack.c.l.b16 %v4208
        %v4547 = vunpack.c.h.b16 %v4208
        %v4548 = vunpack.c.l.b16 %v4209
        %v4549 = vunpack.c.h.b16 %v4209
        %v4550 = vunpack.c.l.b16 %v4210
        %v4551 = vunpack.c.h.b16 %v4210
        %v4552 = vunpack.c.l.b16 %v4211
        %v4553 = vunpack.c.h.b16 %v4211
        %v4554 = vunpack.c.l.b16 %v4212
        %v4555 = vunpack.c.h.b16 %v4212
        %v4556 = vunpack.c.l.b16 %v4213
        %v4557 = vunpack.c.h.b16 %v4213
        %v4558 = vunpack.c.l.b16 %v4214
        %v4559 = vunpack.c.h.b16 %v4214
        %v4560 = vunpack.c.l.b16 %v4215
        %v4561 = vunpack.c.h.b16 %v4215
        %v4562 = vunpack.c.l.b16 %v4216
        %v4563 = vunpack.c.h.b16 %v4216
        %v4564 = vunpack.c.l.b16 %v4217
        %v4565 = vunpack.c.h.b16 %v4217
        %v4566 = vunpack.c.l.b16 %v4218
        %v4567 = vunpack.c.h.b16 %v4218
        %v4568 = vunpack.c.l.b16 %v4219
        %v4569 = vunpack.c.h.b16 %v4219
        %v4570 = vunpack.c.l.b16 %v4220
        %v4571 = vunpack.c.h.b16 %v4220
        %v4572 = vunpack.c.l.b16 %v4221
        %v4573 = vunpack.c.h.b16 %v4221
        %v4574 = vunpack.c.l.b16 %v4222
        %v4575 = vunpack.c.h.b16 %v4222
        %v4576 = vunpack.c.l.b16 %v4223
        %v4577 = vunpack.c.h.b16 %v4223
        %v4578 = vunpack.c.l.b16 %v4224
        %v4579 = vunpack.c.h.b16 %v4224
        %v4580 = vunpack.c.l.b16 %v4225
        %v4581 = vunpack.c.h.b16 %v4225
        %v4582 = vunpack.c.l.b16 %v4226
        %v4583 = vunpack.c.h.b16 %v4226
        %v4584 = vunpack.c.l.b16 %v4227
        %v4585 = vunpack.c.h.b16 %v4227
        %v4586 = vunpack.c.l.b16 %v4228
        %v4587 = vunpack.c.h.b16 %v4228
        %v4588 = vunpack.c.l.b16 %v4229
        %v4589 = vunpack.c.h.b16 %v4229
        %v4590 = vunpack.c.l.b16 %v4230
        %v4591 = vunpack.c.h.b16 %v4230
        %v4592 = vunpack.c.l.b16 %v4231
        %v4593 = vunpack.c.h.b16 %v4231
        %v4594 = vunpack.c.l.b16 %v4232
        %v4595 = vunpack.c.h.b16 %v4232
        %v4596 = vunpack.c.l.b16 %v4233
        %v4597 = vunpack.c.h.b16 %v4233
        %v4598 = vunpack.c.l.b16 %v4234
        %v4599 = vunpack.c.h.b16 %v4234
        %v4600 = vunpack.c.l.b16 %v4235
        %v4601 = vunpack.c.h.b16 %v4235
        %v4602 = vunpack.c.l.b16 %v4236
        %v4603 = vunpack.c.h.b16 %v4236
        %v4604 = vpack.c.b16 %v4446, %v4444
        %v4605 = vpack.c.b16 %v4447, %v4445
        %v4606 = vpack.c.b16 %v4450, %v4448
        %v4607 = vpack.c.b16 %v4451, %v4449
        %v4608 = vpack.c.b16 %v4454, %v4452
        %v4609 = vpack.c.b16 %v4455, %v4453
        %v4610 = vpack.c.b16 %v4458, %v4456
        %v4611 = vpack.c.b16 %v4459, %v4457
        %v4612 = vpack.c.b16 %v4462, %v4460
        %v4613 = vpack.c.b16 %v4463, %v4461
        %v4614 = vpack.c.b16 %v4466, %v4464
        %v4615 = vpack.c.b16 %v4467, %v4465
        %v4616 = vpack.c.b16 %v4470, %v4468
        %v4617 = vpack.c.b16 %v4471, %v4469
        %v4618 = vpack.c.b16 %v4474, %v4472
        %v4619 = vpack.c.b16 %v4475, %v4473
        %v4620 = vpack.c.b16 %v4478, %v4476
        %v4621 = vpack.c.b16 %v4479, %v4477
        %v4622 = vpack.c.b16 %v4482, %v4480
        %v4623 = vpack.c.b16 %v4483, %v4481
        %v4624 = vpack.c.b16 %v4486, %v4484
        %v4625 = vpack.c.b16 %v4487, %v4485
        %v4626 = vpack.c.b16 %v4490, %v4488
        %v4627 = vpack.c.b16 %v4491, %v4489
        %v4628 = vpack.c.b16 %v4494, %v4492
        %v4629 = vpack.c.b16 %v4495, %v4493
        %v4630 = vpack.c.b16 %v4498, %v4496
        %v4631 = vpack.c.b16 %v4499, %v4497
        %v4632 = vpack.c.b16 %v4502, %v4500
        %v4633 = vpack.c.b16 %v4503, %v4501
        %v4634 = vpack.c.b16 %v4506, %v4504
        %v4635 = vpack.c.b16 %v4507, %v4505
        %v4636 = vpack.c.b16 %v4510, %v4508
        %v4637 = vpack.c.b16 %v4511, %v4509
        %v4638 = vpack.c.b16 %v4514, %v4512
        %v4639 = vpack.c.b16 %v4515, %v4513
        %v4640 = vpack.c.b16 %v4518, %v4516
        %v4641 = vpack.c.b16 %v4519, %v4517
        %v4642 = vpack.c.b16 %v4522, %v4520
        %v4643 = vpack.c.b16 %v4523, %v4521
        %v4644 = vpack.c.b16 %v4526, %v4524
        %v4645 = vpack.c.b16 %v4527, %v4525
        %v4646 = vpack.c.b16 %v4530, %v4528
        %v4647 = vpack.c.b16 %v4531, %v4529
        %v4648 = vpack.c.b16 %v4534, %v4532
        %v4649 = vpack.c.b16 %v4535, %v4533
        %v4650 = vpack.c.b16 %v4538, %v4536
        %v4651 = vpack.c.b16 %v4539, %v4537
        %v4652 = vpack.c.b16 %v4542, %v4540
        %v4653 = vpack.c.b16 %v4543, %v4541
        %v4654 = vpack.c.b16 %v4546, %v4544
        %v4655 = vpack.c.b16 %v4547, %v4545
        %v4656 = vpack.c.b16 %v4550, %v4548
        %v4657 = vpack.c.b16 %v4551, %v4549
        %v4658 = vpack.c.b16 %v4554, %v4552
        %v4659 = vpack.c.b16 %v4555, %v4553
        %v4660 = vpack.c.b16 %v4558, %v4556
        %v4661 = vpack.c.b16 %v4559, %v4557
        %v4662 = vpack.c.b16 %v4562, %v4560
        %v4663 = vpack.c.b16 %v4563, %v4561
        %v4664 = vpack.c.b16 %v4566, %v4564
        %v4665 = vpack.c.b16 %v4567, %v4565
        %v4666 = vpack.c.b16 %v4570, %v4568
        %v4667 = vpack.c.b16 %v4571, %v4569
        %v4668 = vpack.c.b16 %v4574, %v4572
        %v4669 = vpack.c.b16 %v4575, %v4573
        %v4670 = vpack.c.b16 %v4578, %v4576
        %v4671 = vpack.c.b16 %v4579, %v4577
        %v4672 = vpack.c.b16 %v4582, %v4580
        %v4673 = vpack.c.b16 %v4583, %v4581
        %v4674 = vpack.c.b16 %v4586, %v4584
        %v4675 = vpack.c.b16 %v4587, %v4585
        %v4676 = vpack.c.b16 %v4590, %v4588
        %v4677 = vpack.c.b16 %v4591, %v4589
        %v4678 = vpack.c.b16 %v4594, %v4592
        %v4679 = vpack.c.b16 %v4595, %v4593
        %v4680 = vpack.c.b16 %v4598, %v4596
        %v4681 = vpack.c.b16 %v4599, %v4597
        %v4682 = vpack.c.b16 %v4602, %v4600
        %v4683 = vpack.c.b16 %v4603, %v4601
        %4764 = vmatpush.bf16.msra.mxu0 %v4618
        %4765 = vmatpush.bf16.msra.mxu0 %v4616
        %4766 = vmatpush.bf16.msra.mxu0 %v4614
        %4767 = vmatpush.bf16.msra.mxu0 %v4612
        %4768 = vmatpush.bf16.msra.mxu0 %v4610
        %4769 = vmatpush.bf16.msra.mxu0 %v4608
        %4770 = vmatpush.bf16.msra.mxu0 %v4606
        %4771 = vmatpush.bf16.msra.mxu0 %v4604
        %4772 = vmatmul.bf16.gmra.mxu0 %v4290
        %v4773 = vpop.f32.mrf.mxu0
        %v4774 = vadd.f32 0.0, %v4773
        %v4775 = vpop.f32.mrf.mxu0
        %v4776 = vadd.f32 0.0, %v4775
        %4777 = vmatmul.bf16.gmra.mxu0 %v4341
        %v4778 = vpop.f32.mrf.mxu0
        %v4779 = vadd.f32 0.0, %v4778
        %v4780 = vpop.f32.mrf.mxu0
        %4781 = vdwg.mxu0
        %4782 = vmatpush.bf16.msra.mxu0 %v4634
        %4783 = vmatpush.bf16.msra.mxu0 %v4632
        %4784 = vmatpush.bf16.msra.mxu0 %v4630
        %4785 = vmatpush.bf16.msra.mxu0 %v4628
        %4786 = vmatpush.bf16.msra.mxu0 %v4626
        %4787 = vmatpush.bf16.msra.mxu0 %v4624
        %4788 = vmatpush.bf16.msra.mxu0 %v4622
        %4789 = vmatpush.bf16.msra.mxu0 %v4620
        %4790 = vmatmul.bf16.gmra.mxu0 %v4302
        %v4791 = vpop.f32.mrf.mxu0
        %v4792 = vadd.f32 %v4774, %v4791
        %v4793 = vpop.f32.mrf.mxu0
        %v4794 = vadd.f32 %v4776, %v4793
        %4795 = vmatmul.bf16.gmra.mxu0 %v4344
        %v4796 = vpop.f32.mrf.mxu0
        %v4797 = vadd.f32 %v4779, %v4796
        %v4798 = vpop.f32.mrf.mxu0
        %4799 = vdwg.mxu0
        %4800 = vmatpush.bf16.msra.mxu0 %v4650
        %4801 = vmatpush.bf16.msra.mxu0 %v4648
        %4802 = vmatpush.bf16.msra.mxu0 %v4646
        %4803 = vmatpush.bf16.msra.mxu0 %v4644
        %4804 = vmatpush.bf16.msra.mxu0 %v4642
        %4805 = vmatpush.bf16.msra.mxu0 %v4640
        %4806 = vmatpush.bf16.msra.mxu0 %v4638
        %4807 = vmatpush.bf16.msra.mxu0 %v4636
        %4808 = vmatmul.bf16.gmra.mxu0 %v4314
        %v4809 = vpop.f32.mrf.mxu0
        %v4810 = vadd.f32 %v4792, %v4809
        %v4811 = vpop.f32.mrf.mxu0
        %v4812 = vadd.f32 %v4794, %v4811
        %4813 = vmatmul.bf16.gmra.mxu0 %v4347
        %v4814 = vpop.f32.mrf.mxu0
        %v4815 = vadd.f32 %v4797, %v4814
        %v4816 = vpop.f32.mrf.mxu0
        %4817 = vdwg.mxu0
        %4818 = vmatpush.bf16.msra.mxu0 %v4666
        %4819 = vmatpush.bf16.msra.mxu0 %v4664
        %4820 = vmatpush.bf16.msra.mxu0 %v4662
        %4821 = vmatpush.bf16.msra.mxu0 %v4660
        %4822 = vmatpush.bf16.msra.mxu0 %v4658
        %4823 = vmatpush.bf16.msra.mxu0 %v4656
        %4824 = vmatpush.bf16.msra.mxu0 %v4654
        %4825 = vmatpush.bf16.msra.mxu0 %v4652
        %4826 = vmatmul.bf16.gmra.mxu0 %v4326
        %v4827 = vpop.f32.mrf.mxu0
        %v4828 = vadd.f32 %v4810, %v4827
        %v4829 = vpop.f32.mrf.mxu0
        %v4830 = vadd.f32 %v4812, %v4829
        %4831 = vmatmul.bf16.gmra.mxu0 %v4350
        %v4832 = vpop.f32.mrf.mxu0
        %v4833 = vadd.f32 %v4815, %v4832
        %v4834 = vpop.f32.mrf.mxu0
        %4835 = vdwg.mxu0
        %4836 = vmatpush.bf16.msra.mxu0 %v4682
        %4837 = vmatpush.bf16.msra.mxu0 %v4680
        %4838 = vmatpush.bf16.msra.mxu0 %v4678
        %4839 = vmatpush.bf16.msra.mxu0 %v4676
        %4840 = vmatpush.bf16.msra.mxu0 %v4674
        %4841 = vmatpush.bf16.msra.mxu0 %v4672
        %4842 = vmatpush.bf16.msra.mxu0 %v4670
        %4843 = vmatpush.bf16.msra.mxu0 %v4668
        %4844 = vmatmul.bf16.gmra.mxu0 %v4338
        %v4845 = vpop.f32.mrf.mxu0
        %v4846 = vadd.f32 %v4828, %v4845
        %v4847 = vpop.f32.mrf.mxu0
        %v4848 = vadd.f32 %v4830, %v4847
        %4849 = vmatmul.bf16.gmra.mxu0 %v4353
        %v4850 = vpop.f32.mrf.mxu0
        %v4851 = vadd.f32 %v4833, %v4850
        %v4852 = vpop.f32.mrf.mxu0
        %4853 = vdwg.mxu0
        %4854 = vmatpush.bf16.msra.mxu0 %v4619
        %4855 = vmatpush.bf16.msra.mxu0 %v4617
        %4856 = vmatpush.bf16.msra.mxu0 %v4615
        %4857 = vmatpush.bf16.msra.mxu0 %v4613
        %4858 = vmatpush.bf16.msra.mxu0 %v4611
        %4859 = vmatpush.bf16.msra.mxu0 %v4609
        %4860 = vmatpush.bf16.msra.mxu0 %v4607
        %4861 = vmatpush.bf16.msra.mxu0 %v4605
        %4862 = vmatmul.bf16.gmra.mxu0 %v4290
        %v4863 = vpop.f32.mrf.mxu0
        %v4864 = vadd.f32 0.0, %v4863
        %v4865 = vpop.f32.mrf.mxu0
        %v4866 = vadd.f32 0.0, %v4865
        %4867 = vmatmul.bf16.gmra.mxu0 %v4341
        %v4868 = vpop.f32.mrf.mxu0
        %v4869 = vadd.f32 0.0, %v4868
        %v4870 = vpop.f32.mrf.mxu0
        %4871 = vdwg.mxu0
        %4872 = vmatpush.bf16.msra.mxu0 %v4635
        %4873 = vmatpush.bf16.msra.mxu0 %v4633
        %4874 = vmatpush.bf16.msra.mxu0 %v4631
        %4875 = vmatpush.bf16.msra.mxu0 %v4629
        %4876 = vmatpush.bf16.msra.mxu0 %v4627
        %4877 = vmatpush.bf16.msra.mxu0 %v4625
        %4878 = vmatpush.bf16.msra.mxu0 %v4623
        %4879 = vmatpush.bf16.msra.mxu0 %v4621
        %4880 = vmatmul.bf16.gmra.mxu0 %v4302
        %v4881 = vpop.f32.mrf.mxu0
        %v4882 = vadd.f32 %v4864, %v4881
        %v4883 = vpop.f32.mrf.mxu0
        %v4884 = vadd.f32 %v4866, %v4883
        %4885 = vmatmul.bf16.gmra.mxu0 %v4344
        %v4886 = vpop.f32.mrf.mxu0
        %v4887 = vadd.f32 %v4869, %v4886
        %v4888 = vpop.f32.mrf.mxu0
        %4889 = vdwg.mxu0
        %4890 = vmatpush.bf16.msra.mxu0 %v4651
        %4891 = vmatpush.bf16.msra.mxu0 %v4649
        %4892 = vmatpush.bf16.msra.mxu0 %v4647
        %4893 = vmatpush.bf16.msra.mxu0 %v4645
        %4894 = vmatpush.bf16.msra.mxu0 %v4643
        %4895 = vmatpush.bf16.msra.mxu0 %v4641
        %4896 = vmatpush.bf16.msra.mxu0 %v4639
        %4897 = vmatpush.bf16.msra.mxu0 %v4637
        %4898 = vmatmul.bf16.gmra.mxu0 %v4314
        %v4899 = vpop.f32.mrf.mxu0
        %v4900 = vadd.f32 %v4882, %v4899
        %v4901 = vpop.f32.mrf.mxu0
        %v4902 = vadd.f32 %v4884, %v4901
        %4903 = vmatmul.bf16.gmra.mxu0 %v4347
        %v4904 = vpop.f32.mrf.mxu0
        %v4905 = vadd.f32 %v4887, %v4904
        %v4906 = vpop.f32.mrf.mxu0
        %4907 = vdwg.mxu0
        %4908 = vmatpush.bf16.msra.mxu0 %v4667
        %4909 = vmatpush.bf16.msra.mxu0 %v4665
        %4910 = vmatpush.bf16.msra.mxu0 %v4663
        %4911 = vmatpush.bf16.msra.mxu0 %v4661
        %4912 = vmatpush.bf16.msra.mxu0 %v4659
        %4913 = vmatpush.bf16.msra.mxu0 %v4657
        %4914 = vmatpush.bf16.msra.mxu0 %v4655
        %4915 = vmatpush.bf16.msra.mxu0 %v4653
        %4916 = vmatmul.bf16.gmra.mxu0 %v4326
        %v4917 = vpop.f32.mrf.mxu0
        %v4918 = vadd.f32 %v4900, %v4917
        %v4919 = vpop.f32.mrf.mxu0
        %v4920 = vadd.f32 %v4902, %v4919
        %4921 = vmatmul.bf16.gmra.mxu0 %v4350
        %v4922 = vpop.f32.mrf.mxu0
        %v4923 = vadd.f32 %v4905, %v4922
        %v4924 = vpop.f32.mrf.mxu0
        %4925 = vdwg.mxu0
        %4926 = vmatpush.bf16.msra.mxu0 %v4683
        %4927 = vmatpush.bf16.msra.mxu0 %v4681
        %4928 = vmatpush.bf16.msra.mxu0 %v4679
        %4929 = vmatpush.bf16.msra.mxu0 %v4677
        %4930 = vmatpush.bf16.msra.mxu0 %v4675
        %4931 = vmatpush.bf16.msra.mxu0 %v4673
        %4932 = vmatpush.bf16.msra.mxu0 %v4671
        %4933 = vmatpush.bf16.msra.mxu0 %v4669
        %4934 = vmatmul.bf16.gmra.mxu0 %v4338
        %v4935 = vpop.f32.mrf.mxu0
        %v4936 = vadd.f32 %v4918, %v4935
        %v4937 = vpop.f32.mrf.mxu0
        %v4938 = vadd.f32 %v4920, %v4937
        %4939 = vmatmul.bf16.gmra.mxu0 %v4353
        %v4940 = vpop.f32.mrf.mxu0
        %v4941 = vadd.f32 %v4923, %v4940
        %v4942 = vpop.f32.mrf.mxu0
        %4943 = vdwg.mxu0
        %v4944 = vpack.c.b16 %v4259, %v4259
        %v4945 = vpack.c.b16 %v4260, %v4260
        %v4946 = vpack.c.b16 %v4261, %v4261
        %v4947 = vpack.c.b16 %v4262, %v4262
        %v4948 = vpack.c.b16 %v4263, %v4263
        %v5039 = vunpack.c.l.b16 %v4074
        %v5040 = vunpack.c.h.b16 %v4074
        %v5041 = vunpack.c.l.b16 %v4075
        %v5042 = vunpack.c.h.b16 %v4075
        %v5043 = vunpack.c.l.b16 %v4076
        %v5044 = vunpack.c.h.b16 %v4076
        %v5045 = vunpack.c.l.b16 %v4077
        %v5046 = vunpack.c.h.b16 %v4077
        %v5047 = vunpack.c.l.b16 %v4078
        %v5048 = vunpack.c.h.b16 %v4078
        %v5049 = vunpack.c.l.b16 %v4079
        %v5050 = vunpack.c.h.b16 %v4079
        %v5051 = vunpack.c.l.b16 %v4080
        %v5052 = vunpack.c.h.b16 %v4080
        %v5053 = vunpack.c.l.b16 %v4081
        %v5054 = vunpack.c.h.b16 %v4081
        %v5055 = vunpack.c.l.b16 %v4082
        %v5056 = vunpack.c.h.b16 %v4082
        %v5057 = vunpack.c.l.b16 %v4083
        %v5058 = vunpack.c.h.b16 %v4083
        %v5059 = vunpack.c.l.b16 %v4084
        %v5060 = vunpack.c.h.b16 %v4084
        %v5061 = vunpack.c.l.b16 %v4085
        %v5062 = vunpack.c.h.b16 %v4085
        %v5063 = vunpack.c.l.b16 %v4086
        %v5064 = vunpack.c.h.b16 %v4086
        %v5065 = vunpack.c.l.b16 %v4087
        %v5066 = vunpack.c.h.b16 %v4087
        %v5067 = vunpack.c.l.b16 %v4088
        %v5068 = vunpack.c.h.b16 %v4088
        %v5069 = vunpack.c.l.b16 %v4089
        %v5070 = vunpack.c.h.b16 %v4089
        %v5071 = vunpack.c.l.b16 %v4090
        %v5072 = vunpack.c.h.b16 %v4090
        %v5073 = vunpack.c.l.b16 %v4091
        %v5074 = vunpack.c.h.b16 %v4091
        %v5075 = vunpack.c.l.b16 %v4092
        %v5076 = vunpack.c.h.b16 %v4092
        %v5077 = vunpack.c.l.b16 %v4093
        %v5078 = vunpack.c.h.b16 %v4093
        %v5079 = vunpack.c.l.b16 %v4094
        %v5080 = vunpack.c.h.b16 %v4094
        %v5081 = vunpack.c.l.b16 %v4095
        %v5082 = vunpack.c.h.b16 %v4095
        %v5083 = vunpack.c.l.b16 %v4096
        %v5084 = vunpack.c.h.b16 %v4096
        %v5085 = vunpack.c.l.b16 %v4097
        %v5086 = vunpack.c.h.b16 %v4097
        %v5087 = vunpack.c.l.b16 %v4098
        %v5088 = vunpack.c.h.b16 %v4098
        %v5089 = vunpack.c.l.b16 %v4099
        %v5090 = vunpack.c.h.b16 %v4099
        %v5091 = vunpack.c.l.b16 %v4100
        %v5092 = vunpack.c.h.b16 %v4100
        %v5093 = vunpack.c.l.b16 %v4101
        %v5094 = vunpack.c.h.b16 %v4101
        %v5095 = vunpack.c.l.b16 %v4102
        %v5096 = vunpack.c.h.b16 %v4102
        %v5097 = vunpack.c.l.b16 %v4103
        %v5098 = vunpack.c.h.b16 %v4103
        %v5099 = vunpack.c.l.b16 %v4104
        %v5100 = vunpack.c.h.b16 %v4104
        %v5101 = vunpack.c.l.b16 %v4105
        %v5102 = vunpack.c.h.b16 %v4105
        %v5103 = vunpack.c.l.b16 %v4106
        %v5104 = vunpack.c.h.b16 %v4106
        %v5105 = vunpack.c.l.b16 %v4107
        %v5106 = vunpack.c.h.b16 %v4107
        %v5107 = vunpack.c.l.b16 %v4108
        %v5108 = vunpack.c.h.b16 %v4108
        %v5109 = vunpack.c.l.b16 %v4109
        %v5110 = vunpack.c.h.b16 %v4109
        %v5111 = vunpack.c.l.b16 %v4110
        %v5112 = vunpack.c.h.b16 %v4110
        %v5113 = vunpack.c.l.b16 %v4111
        %v5114 = vunpack.c.h.b16 %v4111
        %v5115 = vunpack.c.l.b16 %v4112
        %v5116 = vunpack.c.h.b16 %v4112
        %v5117 = vunpack.c.l.b16 %v4113
        %v5118 = vunpack.c.h.b16 %v4113
        %v5119 = vunpack.c.l.b16 %v4114
        %v5120 = vunpack.c.h.b16 %v4114
        %v5121 = vunpack.c.l.b16 %v4115
        %v5122 = vunpack.c.h.b16 %v4115
        %v5123 = vunpack.c.l.b16 %v4116
        %v5124 = vunpack.c.h.b16 %v4116
        %v5125 = vunpack.c.l.b16 %v4117
        %v5126 = vunpack.c.h.b16 %v4117
        %v5127 = vunpack.c.l.b16 %v4118
        %v5128 = vunpack.c.h.b16 %v4118
        %v5129 = vunpack.c.l.b16 %v4119
        %v5130 = vunpack.c.h.b16 %v4119
        %v5131 = vunpack.c.l.b16 %v4120
        %v5132 = vunpack.c.h.b16 %v4120
        %v5133 = vunpack.c.l.b16 %v4121
        %v5134 = vunpack.c.h.b16 %v4121
        %v5135 = vunpack.c.l.b16 %v4122
        %v5136 = vunpack.c.h.b16 %v4122
        %v5137 = vunpack.c.l.b16 %v4123
        %v5138 = vunpack.c.h.b16 %v4123
        %v5139 = vunpack.c.l.b16 %v4124
        %v5140 = vunpack.c.h.b16 %v4124
        %v5141 = vunpack.c.l.b16 %v4125
        %v5142 = vunpack.c.h.b16 %v4125
        %v5143 = vunpack.c.l.b16 %v4126
        %v5144 = vunpack.c.h.b16 %v4126
        %v5145 = vunpack.c.l.b16 %v4127
        %v5146 = vunpack.c.h.b16 %v4127
        %v5147 = vunpack.c.l.b16 %v4128
        %v5148 = vunpack.c.h.b16 %v4128
        %v5149 = vunpack.c.l.b16 %v4129
        %v5150 = vunpack.c.h.b16 %v4129
        %v5151 = vunpack.c.l.b16 %v4130
        %v5152 = vunpack.c.h.b16 %v4130
        %v5153 = vunpack.c.l.b16 %v4131
        %v5154 = vunpack.c.h.b16 %v4131
        %v5155 = vunpack.c.l.b16 %v4132
        %v5156 = vunpack.c.h.b16 %v4132
        %v5157 = vunpack.c.l.b16 %v4133
        %v5158 = vunpack.c.h.b16 %v4133
        %v5159 = vunpack.c.l.b16 %v4134
        %v5160 = vunpack.c.h.b16 %v4134
        %v5161 = vunpack.c.l.b16 %v4135
        %v5162 = vunpack.c.h.b16 %v4135
        %v5163 = vunpack.c.l.b16 %v4136
        %v5164 = vunpack.c.h.b16 %v4136
        %v5165 = vunpack.c.l.b16 %v4137
        %v5166 = vunpack.c.h.b16 %v4137
        %v5167 = vunpack.c.l.b16 %v4138
        %v5168 = vunpack.c.h.b16 %v4138
        %v5169 = vunpack.c.l.b16 %v4139
        %v5170 = vunpack.c.h.b16 %v4139
        %v5171 = vunpack.c.l.b16 %v4140
        %v5172 = vunpack.c.h.b16 %v4140
        %v5173 = vunpack.c.l.b16 %v4141
        %v5174 = vunpack.c.h.b16 %v4141
        %v5175 = vunpack.c.l.b16 %v4142
        %v5176 = vunpack.c.h.b16 %v4142
        %v5177 = vunpack.c.l.b16 %v4143
        %v5178 = vunpack.c.h.b16 %v4143
        %v5179 = vunpack.c.l.b16 %v4144
        %v5180 = vunpack.c.h.b16 %v4144
        %v5181 = vunpack.c.l.b16 %v4145
        %v5182 = vunpack.c.h.b16 %v4145
        %v5183 = vunpack.c.l.b16 %v4146
        %v5184 = vunpack.c.h.b16 %v4146
        %v5185 = vunpack.c.l.b16 %v4147
        %v5186 = vunpack.c.h.b16 %v4147
        %v5187 = vunpack.c.l.b16 %v4148
        %v5188 = vunpack.c.h.b16 %v4148
        %v5189 = vunpack.c.l.b16 %v4149
        %v5190 = vunpack.c.h.b16 %v4149
        %v5191 = vunpack.c.l.b16 %v4150
        %v5192 = vunpack.c.h.b16 %v4150
        %v5193 = vunpack.c.l.b16 %v4151
        %v5194 = vunpack.c.h.b16 %v4151
        %v5195 = vunpack.c.l.b16 %v4152
        %v5196 = vunpack.c.h.b16 %v4152
        %v5197 = vunpack.c.l.b16 %v4153
        %v5198 = vunpack.c.h.b16 %v4153
        %v5199 = vpack.c.b16 %v5041, %v5039
        %v5200 = vpack.c.b16 %v5042, %v5040
        %v5201 = vpack.c.b16 %v5045, %v5043
        %v5202 = vpack.c.b16 %v5046, %v5044
        %v5203 = vpack.c.b16 %v5049, %v5047
        %v5204 = vpack.c.b16 %v5050, %v5048
        %v5205 = vpack.c.b16 %v5053, %v5051
        %v5206 = vpack.c.b16 %v5054, %v5052
        %v5207 = vpack.c.b16 %v5057, %v5055
        %v5208 = vpack.c.b16 %v5058, %v5056
        %v5209 = vpack.c.b16 %v5061, %v5059
        %v5210 = vpack.c.b16 %v5062, %v5060
        %v5211 = vpack.c.b16 %v5065, %v5063
        %v5212 = vpack.c.b16 %v5066, %v5064
        %v5213 = vpack.c.b16 %v5069, %v5067
        %v5214 = vpack.c.b16 %v5070, %v5068
        %v5215 = vpack.c.b16 %v5073, %v5071
        %v5216 = vpack.c.b16 %v5074, %v5072
        %v5217 = vpack.c.b16 %v5077, %v5075
        %v5218 = vpack.c.b16 %v5078, %v5076
        %v5219 = vpack.c.b16 %v5081, %v5079
        %v5220 = vpack.c.b16 %v5082, %v5080
        %v5221 = vpack.c.b16 %v5085, %v5083
        %v5222 = vpack.c.b16 %v5086, %v5084
        %v5223 = vpack.c.b16 %v5089, %v5087
        %v5224 = vpack.c.b16 %v5090, %v5088
        %v5225 = vpack.c.b16 %v5093, %v5091
        %v5226 = vpack.c.b16 %v5094, %v5092
        %v5227 = vpack.c.b16 %v5097, %v5095
        %v5228 = vpack.c.b16 %v5098, %v5096
        %v5229 = vpack.c.b16 %v5101, %v5099
        %v5230 = vpack.c.b16 %v5102, %v5100
        %v5231 = vpack.c.b16 %v5105, %v5103
        %v5232 = vpack.c.b16 %v5106, %v5104
        %v5233 = vpack.c.b16 %v5109, %v5107
        %v5234 = vpack.c.b16 %v5110, %v5108
        %v5235 = vpack.c.b16 %v5113, %v5111
        %v5236 = vpack.c.b16 %v5114, %v5112
        %v5237 = vpack.c.b16 %v5117, %v5115
        %v5238 = vpack.c.b16 %v5118, %v5116
        %v5239 = vpack.c.b16 %v5121, %v5119
        %v5240 = vpack.c.b16 %v5122, %v5120
        %v5241 = vpack.c.b16 %v5125, %v5123
        %v5242 = vpack.c.b16 %v5126, %v5124
        %v5243 = vpack.c.b16 %v5129, %v5127
        %v5244 = vpack.c.b16 %v5130, %v5128
        %v5245 = vpack.c.b16 %v5133, %v5131
        %v5246 = vpack.c.b16 %v5134, %v5132
        %v5247 = vpack.c.b16 %v5137, %v5135
        %v5248 = vpack.c.b16 %v5138, %v5136
        %v5249 = vpack.c.b16 %v5141, %v5139
        %v5250 = vpack.c.b16 %v5142, %v5140
        %v5251 = vpack.c.b16 %v5145, %v5143
        %v5252 = vpack.c.b16 %v5146, %v5144
        %v5253 = vpack.c.b16 %v5149, %v5147
        %v5254 = vpack.c.b16 %v5150, %v5148
        %v5255 = vpack.c.b16 %v5153, %v5151
        %v5256 = vpack.c.b16 %v5154, %v5152
        %v5257 = vpack.c.b16 %v5157, %v5155
        %v5258 = vpack.c.b16 %v5158, %v5156
        %v5259 = vpack.c.b16 %v5161, %v5159
        %v5260 = vpack.c.b16 %v5162, %v5160
        %v5261 = vpack.c.b16 %v5165, %v5163
        %v5262 = vpack.c.b16 %v5166, %v5164
        %v5263 = vpack.c.b16 %v5169, %v5167
        %v5264 = vpack.c.b16 %v5170, %v5168
        %v5265 = vpack.c.b16 %v5173, %v5171
        %v5266 = vpack.c.b16 %v5174, %v5172
        %v5267 = vpack.c.b16 %v5177, %v5175
        %v5268 = vpack.c.b16 %v5178, %v5176
        %v5269 = vpack.c.b16 %v5181, %v5179
        %v5270 = vpack.c.b16 %v5182, %v5180
        %v5271 = vpack.c.b16 %v5185, %v5183
        %v5272 = vpack.c.b16 %v5186, %v5184
        %v5273 = vpack.c.b16 %v5189, %v5187
        %v5274 = vpack.c.b16 %v5190, %v5188
        %v5275 = vpack.c.b16 %v5193, %v5191
        %v5276 = vpack.c.b16 %v5194, %v5192
        %v5277 = vpack.c.b16 %v5197, %v5195
        %v5278 = vpack.c.b16 %v5198, %v5196
        %5359 = vmatpush.bf16.msra.mxu0 %v5213
        %5360 = vmatpush.bf16.msra.mxu0 %v5211
        %5361 = vmatpush.bf16.msra.mxu0 %v5209
        %5362 = vmatpush.bf16.msra.mxu0 %v5207
        %5363 = vmatpush.bf16.msra.mxu0 %v5205
        %5364 = vmatpush.bf16.msra.mxu0 %v5203
        %5365 = vmatpush.bf16.msra.mxu0 %v5201
        %5366 = vmatpush.bf16.msra.mxu0 %v5199
        %5367 = vmatmul.bf16.gmra.mxu0 %v4269
        %v5368 = vpop.f32.mrf.mxu0
        %v5369 = vadd.f32 %v4846, %v5368
        %v5370 = vpop.f32.mrf.mxu0
        %v5371 = vadd.f32 %v4848, %v5370
        %5372 = vmatmul.bf16.gmra.mxu0 %v4944
        %v5373 = vpop.f32.mrf.mxu0
        %v5374 = vadd.f32 %v4851, %v5373
        %v5375 = vpop.f32.mrf.mxu0
        %5376 = vdwg.mxu0
        %5377 = vmatpush.bf16.msra.mxu0 %v5229
        %5378 = vmatpush.bf16.msra.mxu0 %v5227
        %5379 = vmatpush.bf16.msra.mxu0 %v5225
        %5380 = vmatpush.bf16.msra.mxu0 %v5223
        %5381 = vmatpush.bf16.msra.mxu0 %v5221
        %5382 = vmatpush.bf16.msra.mxu0 %v5219
        %5383 = vmatpush.bf16.msra.mxu0 %v5217
        %5384 = vmatpush.bf16.msra.mxu0 %v5215
        %5385 = vmatmul.bf16.gmra.mxu0 %v4270
        %v5386 = vpop.f32.mrf.mxu0
        %v5387 = vadd.f32 %v5369, %v5386
        %v5388 = vpop.f32.mrf.mxu0
        %v5389 = vadd.f32 %v5371, %v5388
        %5390 = vmatmul.bf16.gmra.mxu0 %v4945
        %v5391 = vpop.f32.mrf.mxu0
        %v5392 = vadd.f32 %v5374, %v5391
        %v5393 = vpop.f32.mrf.mxu0
        %5394 = vdwg.mxu0
        %5395 = vmatpush.bf16.msra.mxu0 %v5245
        %5396 = vmatpush.bf16.msra.mxu0 %v5243
        %5397 = vmatpush.bf16.msra.mxu0 %v5241
        %5398 = vmatpush.bf16.msra.mxu0 %v5239
        %5399 = vmatpush.bf16.msra.mxu0 %v5237
        %5400 = vmatpush.bf16.msra.mxu0 %v5235
        %5401 = vmatpush.bf16.msra.mxu0 %v5233
        %5402 = vmatpush.bf16.msra.mxu0 %v5231
        %5403 = vmatmul.bf16.gmra.mxu0 %v4271
        %v5404 = vpop.f32.mrf.mxu0
        %v5405 = vadd.f32 %v5387, %v5404
        %v5406 = vpop.f32.mrf.mxu0
        %v5407 = vadd.f32 %v5389, %v5406
        %5408 = vmatmul.bf16.gmra.mxu0 %v4946
        %v5409 = vpop.f32.mrf.mxu0
        %v5410 = vadd.f32 %v5392, %v5409
        %v5411 = vpop.f32.mrf.mxu0
        %5412 = vdwg.mxu0
        %5413 = vmatpush.bf16.msra.mxu0 %v5261
        %5414 = vmatpush.bf16.msra.mxu0 %v5259
        %5415 = vmatpush.bf16.msra.mxu0 %v5257
        %5416 = vmatpush.bf16.msra.mxu0 %v5255
        %5417 = vmatpush.bf16.msra.mxu0 %v5253
        %5418 = vmatpush.bf16.msra.mxu0 %v5251
        %5419 = vmatpush.bf16.msra.mxu0 %v5249
        %5420 = vmatpush.bf16.msra.mxu0 %v5247
        %5421 = vmatmul.bf16.gmra.mxu0 %v4272
        %v5422 = vpop.f32.mrf.mxu0
        %v5423 = vadd.f32 %v5405, %v5422
        %v5424 = vpop.f32.mrf.mxu0
        %v5425 = vadd.f32 %v5407, %v5424
        %5426 = vmatmul.bf16.gmra.mxu0 %v4947
        %v5427 = vpop.f32.mrf.mxu0
        %v5428 = vadd.f32 %v5410, %v5427
        %v5429 = vpop.f32.mrf.mxu0
        %5430 = vdwg.mxu0
        %5431 = vmatpush.bf16.msra.mxu0 %v5277
        %5432 = vmatpush.bf16.msra.mxu0 %v5275
        %5433 = vmatpush.bf16.msra.mxu0 %v5273
        %5434 = vmatpush.bf16.msra.mxu0 %v5271
        %5435 = vmatpush.bf16.msra.mxu0 %v5269
        %5436 = vmatpush.bf16.msra.mxu0 %v5267
        %5437 = vmatpush.bf16.msra.mxu0 %v5265
        %5438 = vmatpush.bf16.msra.mxu0 %v5263
        %5439 = vmatmul.bf16.gmra.mxu0 %v4273
        %v5440 = vpop.f32.mrf.mxu0
        %v5441 = vadd.f32 %v5423, %v5440
        %v5442 = vpop.f32.mrf.mxu0
        %v5443 = vadd.f32 %v5425, %v5442
        %5444 = vmatmul.bf16.gmra.mxu0 %v4948
        %v5445 = vpop.f32.mrf.mxu0
        %v5446 = vadd.f32 %v5428, %v5445
        %v5447 = vpop.f32.mrf.mxu0
        %5448 = vdwg.mxu0
        %5449 = vmatpush.bf16.msra.mxu0 %v5214
        %5450 = vmatpush.bf16.msra.mxu0 %v5212
        %5451 = vmatpush.bf16.msra.mxu0 %v5210
        %5452 = vmatpush.bf16.msra.mxu0 %v5208
        %5453 = vmatpush.bf16.msra.mxu0 %v5206
        %5454 = vmatpush.bf16.msra.mxu0 %v5204
        %5455 = vmatpush.bf16.msra.mxu0 %v5202
        %5456 = vmatpush.bf16.msra.mxu0 %v5200
        %5457 = vmatmul.bf16.gmra.mxu0 %v4269
        %v5458 = vpop.f32.mrf.mxu0
        %v5459 = vadd.f32 %v4936, %v5458
        %v5460 = vpop.f32.mrf.mxu0
        %v5461 = vadd.f32 %v4938, %v5460
        %5462 = vmatmul.bf16.gmra.mxu0 %v4944
        %v5463 = vpop.f32.mrf.mxu0
        %v5464 = vadd.f32 %v4941, %v5463
        %v5465 = vpop.f32.mrf.mxu0
        %5466 = vdwg.mxu0
        %5467 = vmatpush.bf16.msra.mxu0 %v5230
        %5468 = vmatpush.bf16.msra.mxu0 %v5228
        %5469 = vmatpush.bf16.msra.mxu0 %v5226
        %5470 = vmatpush.bf16.msra.mxu0 %v5224
        %5471 = vmatpush.bf16.msra.mxu0 %v5222
        %5472 = vmatpush.bf16.msra.mxu0 %v5220
        %5473 = vmatpush.bf16.msra.mxu0 %v5218
        %5474 = vmatpush.bf16.msra.mxu0 %v5216
        %5475 = vmatmul.bf16.gmra.mxu0 %v4270
        %v5476 = vpop.f32.mrf.mxu0
        %v5477 = vadd.f32 %v5459, %v5476
        %v5478 = vpop.f32.mrf.mxu0
        %v5479 = vadd.f32 %v5461, %v5478
        %5480 = vmatmul.bf16.gmra.mxu0 %v4945
        %v5481 = vpop.f32.mrf.mxu0
        %v5482 = vadd.f32 %v5464, %v5481
        %v5483 = vpop.f32.mrf.mxu0
        %5484 = vdwg.mxu0
        %5485 = vmatpush.bf16.msra.mxu0 %v5246
        %5486 = vmatpush.bf16.msra.mxu0 %v5244
        %5487 = vmatpush.bf16.msra.mxu0 %v5242
        %5488 = vmatpush.bf16.msra.mxu0 %v5240
        %5489 = vmatpush.bf16.msra.mxu0 %v5238
        %5490 = vmatpush.bf16.msra.mxu0 %v5236
        %5491 = vmatpush.bf16.msra.mxu0 %v5234
        %5492 = vmatpush.bf16.msra.mxu0 %v5232
        %5493 = vmatmul.bf16.gmra.mxu0 %v4271
        %v5494 = vpop.f32.mrf.mxu0
        %v5495 = vadd.f32 %v5477, %v5494
        %v5496 = vpop.f32.mrf.mxu0
        %v5497 = vadd.f32 %v5479, %v5496
        %5498 = vmatmul.bf16.gmra.mxu0 %v4946
        %v5499 = vpop.f32.mrf.mxu0
        %v5500 = vadd.f32 %v5482, %v5499
        %v5501 = vpop.f32.mrf.mxu0
        %5502 = vdwg.mxu0
        %5503 = vmatpush.bf16.msra.mxu0 %v5262
        %5504 = vmatpush.bf16.msra.mxu0 %v5260
        %5505 = vmatpush.bf16.msra.mxu0 %v5258
        %5506 = vmatpush.bf16.msra.mxu0 %v5256
        %5507 = vmatpush.bf16.msra.mxu0 %v5254
        %5508 = vmatpush.bf16.msra.mxu0 %v5252
        %5509 = vmatpush.bf16.msra.mxu0 %v5250
        %5510 = vmatpush.bf16.msra.mxu0 %v5248
        %5511 = vmatmul.bf16.gmra.mxu0 %v4272
        %v5512 = vpop.f32.mrf.mxu0
        %v5513 = vadd.f32 %v5495, %v5512
        %v5514 = vpop.f32.mrf.mxu0
        %v5515 = vadd.f32 %v5497, %v5514
        %5516 = vmatmul.bf16.gmra.mxu0 %v4947
        %v5517 = vpop.f32.mrf.mxu0
        %v5518 = vadd.f32 %v5500, %v5517
        %v5519 = vpop.f32.mrf.mxu0
        %5520 = vdwg.mxu0
        %5521 = vmatpush.bf16.msra.mxu0 %v5278
        %5522 = vmatpush.bf16.msra.mxu0 %v5276
        %5523 = vmatpush.bf16.msra.mxu0 %v5274
        %5524 = vmatpush.bf16.msra.mxu0 %v5272
        %5525 = vmatpush.bf16.msra.mxu0 %v5270
        %5526 = vmatpush.bf16.msra.mxu0 %v5268
        %5527 = vmatpush.bf16.msra.mxu0 %v5266
        %5528 = vmatpush.bf16.msra.mxu0 %v5264
        %5529 = vmatmul.bf16.gmra.mxu0 %v4273
        %v5530 = vpop.f32.mrf.mxu0
        %v5531 = vadd.f32 %v5513, %v5530
        %v5532 = vpop.f32.mrf.mxu0
        %v5533 = vadd.f32 %v5515, %v5532
        %5534 = vmatmul.bf16.gmra.mxu0 %v4948
        %v5535 = vpop.f32.mrf.mxu0
        %v5536 = vadd.f32 %v5518, %v5535
        %v5537 = vpop.f32.mrf.mxu0
        %5538 = vdwg.mxu0
        %v5539 = vld [vmem:[%s4064] sm:$0xee]
        %v5540 = vld [vmem:[%s4064 + $0x8] sm:$0xee]
        %v5541 = vld [vmem:[%s4064 + $0x10] sm:$0xe]
        %v5542 = vld [vmem:[%s1801] sm:$0xff]
        %v5543 = vld [vmem:[%s1801 + $0x8] sm:$0xff]
        %v5544 = vld [vmem:[%s1801 + $0x10] sm:$0xff]
        %v5545 = vld [vmem:[%s1801 + $0x18] sm:$0xff]
        %v5546 = vld [vmem:[%s1801 + $0x20] sm:$0xff]
        %v5547 = vld [vmem:[%s1801 + $0x28] sm:$0xff]
        %v5548 = vld [vmem:[%s1801 + $0x30] sm:$0xff]
        %v5549 = vld [vmem:[%s1801 + $0x38] sm:$0xff]
        %v5550 = vld [vmem:[%s1801 + $0x40] sm:$0xff]
        %v5551 = vld [vmem:[%s1801 + $0x48] sm:$0xff]
        %v5552 = vld [vmem:[%s1801 + $0x50] sm:$0xff]
        %v5553 = vld [vmem:[%s1801 + $0x58] sm:$0xff]
        %v5554 = vld [vmem:[%s1801 + $0x60] sm:$0xff]
        %v5555 = vld [vmem:[%s1801 + $0x68] sm:$0xff]
        %v5556 = vld [vmem:[%s1801 + $0x70] sm:$0xff]
        %v5557 = vld [vmem:[%s1801 + $0x78] sm:$0xff]
        %v5558 = vld [vmem:[%s1801 + $0x80] sm:$0xff]
        %v5559 = vld [vmem:[%s1801 + $0x88] sm:$0xff]
        %v5560 = vld [vmem:[%s1801 + $0x90] sm:$0xff]
        %v5561 = vld [vmem:[%s1801 + $0x98] sm:$0xff]
        %v5562 = vld [vmem:[%s1801 + $0xa0] sm:$0xff]
        %v5563 = vld [vmem:[%s1801 + $0xa8] sm:$0xff]
        %v5564 = vld [vmem:[%s1801 + $0xb0] sm:$0xff]
        %v5565 = vld [vmem:[%s1801 + $0xb8] sm:$0xff]
        %v5566 = vld [vmem:[%s1801 + $0xc0] sm:$0xff]
        %v5567 = vld [vmem:[%s1801 + $0xc8] sm:$0xff]
        %v5568 = vld [vmem:[%s1801 + $0xd0] sm:$0xff]
        %v5569 = vld [vmem:[%s1801 + $0xd8] sm:$0xff]
        %v5570 = vld [vmem:[%s1801 + $0xe0] sm:$0xff]
        %v5571 = vld [vmem:[%s1801 + $0xe8] sm:$0xff]
        %v5572 = vld [vmem:[%s1801 + $0xf0] sm:$0xff]
        %v5573 = vld [vmem:[%s1801 + $0xf8] sm:$0xff]
        %v5574 = vld [vmem:[%s1801 + $0x100] sm:$0xff]
        %v5575 = vld [vmem:[%s1801 + $0x108] sm:$0xff]
        %v5576 = vld [vmem:[%s1801 + $0x110] sm:$0xff]
        %v5577 = vld [vmem:[%s1801 + $0x118] sm:$0xff]
        %v5578 = vld [vmem:[%s1801 + $0x120] sm:$0xff]
        %v5579 = vld [vmem:[%s1801 + $0x128] sm:$0xff]
        %v5580 = vld [vmem:[%s1801 + $0x130] sm:$0xff]
        %v5581 = vld [vmem:[%s1801 + $0x138] sm:$0xff]
        %v5582 = vld [vmem:[%s1801 + $0x140] sm:$0xff]
        %v5583 = vld [vmem:[%s1801 + $0x148] sm:$0xff]
        %v5584 = vld [vmem:[%s1801 + $0x150] sm:$0xff]
        %v5585 = vld [vmem:[%s1801 + $0x158] sm:$0xff]
        %v5586 = vld [vmem:[%s1801 + $0x160] sm:$0xff]
        %v5587 = vld [vmem:[%s1801 + $0x168] sm:$0xff]
        %v5588 = vld [vmem:[%s1801 + $0x170] sm:$0xff]
        %v5589 = vld [vmem:[%s1801 + $0x178] sm:$0xff]
        %v5590 = vld [vmem:[%s1801 + $0x180] sm:$0xff]
        %v5591 = vld [vmem:[%s1801 + $0x188] sm:$0xff]
        %v5592 = vld [vmem:[%s1801 + $0x190] sm:$0xff]
        %v5593 = vld [vmem:[%s1801 + $0x198] sm:$0xff]
        %v5594 = vld [vmem:[%s1801 + $0x1a0] sm:$0xff]
        %v5595 = vld [vmem:[%s1801 + $0x1a8] sm:$0xff]
        %v5596 = vld [vmem:[%s1801 + $0x1b0] sm:$0xff]
        %v5597 = vld [vmem:[%s1801 + $0x1b8] sm:$0xff]
        %v5598 = vld [vmem:[%s1801 + $0x1c0] sm:$0xff]
        %v5599 = vld [vmem:[%s1801 + $0x1c8] sm:$0xff]
        %v5600 = vld [vmem:[%s1801 + $0x1d0] sm:$0xff]
        %v5601 = vld [vmem:[%s1801 + $0x1d8] sm:$0xff]
        %v5602 = vld [vmem:[%s1801 + $0x1e0] sm:$0xff]
        %v5603 = vld [vmem:[%s1801 + $0x1e8] sm:$0xff]
        %v5604 = vld [vmem:[%s1801 + $0x1f0] sm:$0xff]
        %v5605 = vld [vmem:[%s1801 + $0x1f8] sm:$0xff]
        %v5606 = vld [vmem:[%s1801 + $0x200] sm:$0xff]
        %v5607 = vld [vmem:[%s1801 + $0x208] sm:$0xff]
        %v5608 = vld [vmem:[%s1801 + $0x210] sm:$0xff]
        %v5609 = vld [vmem:[%s1801 + $0x218] sm:$0xff]
        %v5610 = vld [vmem:[%s1801 + $0x220] sm:$0xff]
        %v5611 = vld [vmem:[%s1801 + $0x228] sm:$0xff]
        %v5612 = vld [vmem:[%s1801 + $0x230] sm:$0xff]
        %v5613 = vld [vmem:[%s1801 + $0x238] sm:$0xff]
        %v5614 = vld [vmem:[%s1801 + $0x240] sm:$0xff]
        %v5615 = vld [vmem:[%s1801 + $0x248] sm:$0xff]
        %v5616 = vld [vmem:[%s1801 + $0x250] sm:$0xff]
        %v5617 = vld [vmem:[%s1801 + $0x258] sm:$0xff]
        %v5618 = vld [vmem:[%s1801 + $0x260] sm:$0xff]
        %v5619 = vld [vmem:[%s1801 + $0x268] sm:$0xff]
        %v5620 = vld [vmem:[%s1801 + $0x270] sm:$0xff]
        %v5621 = vld [vmem:[%s1801 + $0x278] sm:$0xff]
        %v5625 = vunpack.c.l.b16 %v5539
        %v5626 = vunpack.c.h.b16 %v5539
        %v5627 = vunpack.c.l.b16 %v5540
        %v5628 = vunpack.c.h.b16 %v5540
        %v5629 = vunpack.c.l.b16 %v5541
        %v5630 = vpack.c.b16 %v4254, %v5625
        %v5631 = vpack.c.b16 %v4255, %v5626
        %v5632 = vpack.c.b16 %v4256, %v5627
        %v5633 = vpack.c.b16 %v4257, %v5628
        %v5634 = vpack.c.b16 %v4258, %v5629
        %v5635 = vrot.slane %v5630, 1
        %v5636 = vrot.slane %v4274, 1
        %v5637 = vsel %vm1895, %v5635, %v5636
        %v5638 = vrot.slane %v5631, 1
        %v5639 = vrot.slane %v4275, 1
        %v5640 = vsel %vm1895, %v5638, %v5639
        %v5641 = vrot.slane %v5632, 1
        %v5642 = vrot.slane %v4276, 1
        %v5643 = vsel %vm1895, %v5641, %v5642
        %v5644 = vrot.slane %v5633, 1
        %v5645 = vrot.slane %v4277, 1
        %v5646 = vsel %vm1895, %v5644, %v5645
        %v5647 = vrot.slane %v5634, 1
        %v5648 = vrot.slane %v4278, 1
        %v5649 = vsel %vm1895, %v5647, %v5648
        %v5740 = vunpack.c.l.b16 %v5542
        %v5741 = vunpack.c.h.b16 %v5542
        %v5742 = vunpack.c.l.b16 %v5543
        %v5743 = vunpack.c.h.b16 %v5543
        %v5744 = vunpack.c.l.b16 %v5544
        %v5745 = vunpack.c.h.b16 %v5544
        %v5746 = vunpack.c.l.b16 %v5545
        %v5747 = vunpack.c.h.b16 %v5545
        %v5748 = vunpack.c.l.b16 %v5546
        %v5749 = vunpack.c.h.b16 %v5546
        %v5750 = vunpack.c.l.b16 %v5547
        %v5751 = vunpack.c.h.b16 %v5547
        %v5752 = vunpack.c.l.b16 %v5548
        %v5753 = vunpack.c.h.b16 %v5548
        %v5754 = vunpack.c.l.b16 %v5549
        %v5755 = vunpack.c.h.b16 %v5549
        %v5756 = vunpack.c.l.b16 %v5550
        %v5757 = vunpack.c.h.b16 %v5550
        %v5758 = vunpack.c.l.b16 %v5551
        %v5759 = vunpack.c.h.b16 %v5551
        %v5760 = vunpack.c.l.b16 %v5552
        %v5761 = vunpack.c.h.b16 %v5552
        %v5762 = vunpack.c.l.b16 %v5553
        %v5763 = vunpack.c.h.b16 %v5553
        %v5764 = vunpack.c.l.b16 %v5554
        %v5765 = vunpack.c.h.b16 %v5554
        %v5766 = vunpack.c.l.b16 %v5555
        %v5767 = vunpack.c.h.b16 %v5555
        %v5768 = vunpack.c.l.b16 %v5556
        %v5769 = vunpack.c.h.b16 %v5556
        %v5770 = vunpack.c.l.b16 %v5557
        %v5771 = vunpack.c.h.b16 %v5557
        %v5772 = vunpack.c.l.b16 %v5558
        %v5773 = vunpack.c.h.b16 %v5558
        %v5774 = vunpack.c.l.b16 %v5559
        %v5775 = vunpack.c.h.b16 %v5559
        %v5776 = vunpack.c.l.b16 %v5560
        %v5777 = vunpack.c.h.b16 %v5560
        %v5778 = vunpack.c.l.b16 %v5561
        %v5779 = vunpack.c.h.b16 %v5561
        %v5780 = vunpack.c.l.b16 %v5562
        %v5781 = vunpack.c.h.b16 %v5562
        %v5782 = vunpack.c.l.b16 %v5563
        %v5783 = vunpack.c.h.b16 %v5563
        %v5784 = vunpack.c.l.b16 %v5564
        %v5785 = vunpack.c.h.b16 %v5564
        %v5786 = vunpack.c.l.b16 %v5565
        %v5787 = vunpack.c.h.b16 %v5565
        %v5788 = vunpack.c.l.b16 %v5566
        %v5789 = vunpack.c.h.b16 %v5566
        %v5790 = vunpack.c.l.b16 %v5567
        %v5791 = vunpack.c.h.b16 %v5567
        %v5792 = vunpack.c.l.b16 %v5568
        %v5793 = vunpack.c.h.b16 %v5568
        %v5794 = vunpack.c.l.b16 %v5569
        %v5795 = vunpack.c.h.b16 %v5569
        %v5796 = vunpack.c.l.b16 %v5570
        %v5797 = vunpack.c.h.b16 %v5570
        %v5798 = vunpack.c.l.b16 %v5571
        %v5799 = vunpack.c.h.b16 %v5571
        %v5800 = vunpack.c.l.b16 %v5572
        %v5801 = vunpack.c.h.b16 %v5572
        %v5802 = vunpack.c.l.b16 %v5573
        %v5803 = vunpack.c.h.b16 %v5573
        %v5804 = vunpack.c.l.b16 %v5574
        %v5805 = vunpack.c.h.b16 %v5574
        %v5806 = vunpack.c.l.b16 %v5575
        %v5807 = vunpack.c.h.b16 %v5575
        %v5808 = vunpack.c.l.b16 %v5576
        %v5809 = vunpack.c.h.b16 %v5576
        %v5810 = vunpack.c.l.b16 %v5577
        %v5811 = vunpack.c.h.b16 %v5577
        %v5812 = vunpack.c.l.b16 %v5578
        %v5813 = vunpack.c.h.b16 %v5578
        %v5814 = vunpack.c.l.b16 %v5579
        %v5815 = vunpack.c.h.b16 %v5579
        %v5816 = vunpack.c.l.b16 %v5580
        %v5817 = vunpack.c.h.b16 %v5580
        %v5818 = vunpack.c.l.b16 %v5581
        %v5819 = vunpack.c.h.b16 %v5581
        %v5820 = vunpack.c.l.b16 %v5582
        %v5821 = vunpack.c.h.b16 %v5582
        %v5822 = vunpack.c.l.b16 %v5583
        %v5823 = vunpack.c.h.b16 %v5583
        %v5824 = vunpack.c.l.b16 %v5584
        %v5825 = vunpack.c.h.b16 %v5584
        %v5826 = vunpack.c.l.b16 %v5585
        %v5827 = vunpack.c.h.b16 %v5585
        %v5828 = vunpack.c.l.b16 %v5586
        %v5829 = vunpack.c.h.b16 %v5586
        %v5830 = vunpack.c.l.b16 %v5587
        %v5831 = vunpack.c.h.b16 %v5587
        %v5832 = vunpack.c.l.b16 %v5588
        %v5833 = vunpack.c.h.b16 %v5588
        %v5834 = vunpack.c.l.b16 %v5589
        %v5835 = vunpack.c.h.b16 %v5589
        %v5836 = vunpack.c.l.b16 %v5590
        %v5837 = vunpack.c.h.b16 %v5590
        %v5838 = vunpack.c.l.b16 %v5591
        %v5839 = vunpack.c.h.b16 %v5591
        %v5840 = vunpack.c.l.b16 %v5592
        %v5841 = vunpack.c.h.b16 %v5592
        %v5842 = vunpack.c.l.b16 %v5593
        %v5843 = vunpack.c.h.b16 %v5593
        %v5844 = vunpack.c.l.b16 %v5594
        %v5845 = vunpack.c.h.b16 %v5594
        %v5846 = vunpack.c.l.b16 %v5595
        %v5847 = vunpack.c.h.b16 %v5595
        %v5848 = vunpack.c.l.b16 %v5596
        %v5849 = vunpack.c.h.b16 %v5596
        %v5850 = vunpack.c.l.b16 %v5597
        %v5851 = vunpack.c.h.b16 %v5597
        %v5852 = vunpack.c.l.b16 %v5598
        %v5853 = vunpack.c.h.b16 %v5598
        %v5854 = vunpack.c.l.b16 %v5599
        %v5855 = vunpack.c.h.b16 %v5599
        %v5856 = vunpack.c.l.b16 %v5600
        %v5857 = vunpack.c.h.b16 %v5600
        %v5858 = vunpack.c.l.b16 %v5601
        %v5859 = vunpack.c.h.b16 %v5601
        %v5860 = vunpack.c.l.b16 %v5602
        %v5861 = vunpack.c.h.b16 %v5602
        %v5862 = vunpack.c.l.b16 %v5603
        %v5863 = vunpack.c.h.b16 %v5603
        %v5864 = vunpack.c.l.b16 %v5604
        %v5865 = vunpack.c.h.b16 %v5604
        %v5866 = vunpack.c.l.b16 %v5605
        %v5867 = vunpack.c.h.b16 %v5605
        %v5868 = vunpack.c.l.b16 %v5606
        %v5869 = vunpack.c.h.b16 %v5606
        %v5870 = vunpack.c.l.b16 %v5607
        %v5871 = vunpack.c.h.b16 %v5607
        %v5872 = vunpack.c.l.b16 %v5608
        %v5873 = vunpack.c.h.b16 %v5608
        %v5874 = vunpack.c.l.b16 %v5609
        %v5875 = vunpack.c.h.b16 %v5609
        %v5876 = vunpack.c.l.b16 %v5610
        %v5877 = vunpack.c.h.b16 %v5610
        %v5878 = vunpack.c.l.b16 %v5611
        %v5879 = vunpack.c.h.b16 %v5611
        %v5880 = vunpack.c.l.b16 %v5612
        %v5881 = vunpack.c.h.b16 %v5612
        %v5882 = vunpack.c.l.b16 %v5613
        %v5883 = vunpack.c.h.b16 %v5613
        %v5884 = vunpack.c.l.b16 %v5614
        %v5885 = vunpack.c.h.b16 %v5614
        %v5886 = vunpack.c.l.b16 %v5615
        %v5887 = vunpack.c.h.b16 %v5615
        %v5888 = vunpack.c.l.b16 %v5616
        %v5889 = vunpack.c.h.b16 %v5616
        %v5890 = vunpack.c.l.b16 %v5617
        %v5891 = vunpack.c.h.b16 %v5617
        %v5892 = vunpack.c.l.b16 %v5618
        %v5893 = vunpack.c.h.b16 %v5618
        %v5894 = vunpack.c.l.b16 %v5619
        %v5895 = vunpack.c.h.b16 %v5619
        %v5896 = vunpack.c.l.b16 %v5620
        %v5897 = vunpack.c.h.b16 %v5620
        %v5898 = vunpack.c.l.b16 %v5621
        %v5899 = vunpack.c.h.b16 %v5621
        %v5900 = vpack.c.b16 %v5742, %v5740
        %v5901 = vpack.c.b16 %v5743, %v5741
        %v5902 = vpack.c.b16 %v5746, %v5744
        %v5903 = vpack.c.b16 %v5747, %v5745
        %v5904 = vpack.c.b16 %v5750, %v5748
        %v5905 = vpack.c.b16 %v5751, %v5749
        %v5906 = vpack.c.b16 %v5754, %v5752
        %v5907 = vpack.c.b16 %v5755, %v5753
        %v5908 = vpack.c.b16 %v5758, %v5756
        %v5909 = vpack.c.b16 %v5759, %v5757
        %v5910 = vpack.c.b16 %v5762, %v5760
        %v5911 = vpack.c.b16 %v5763, %v5761
        %v5912 = vpack.c.b16 %v5766, %v5764
        %v5913 = vpack.c.b16 %v5767, %v5765
        %v5914 = vpack.c.b16 %v5770, %v5768
        %v5915 = vpack.c.b16 %v5771, %v5769
        %v5916 = vpack.c.b16 %v5774, %v5772
        %v5917 = vpack.c.b16 %v5775, %v5773
        %v5918 = vpack.c.b16 %v5778, %v5776
        %v5919 = vpack.c.b16 %v5779, %v5777
        %v5920 = vpack.c.b16 %v5782, %v5780
        %v5921 = vpack.c.b16 %v5783, %v5781
        %v5922 = vpack.c.b16 %v5786, %v5784
        %v5923 = vpack.c.b16 %v5787, %v5785
        %v5924 = vpack.c.b16 %v5790, %v5788
        %v5925 = vpack.c.b16 %v5791, %v5789
        %v5926 = vpack.c.b16 %v5794, %v5792
        %v5927 = vpack.c.b16 %v5795, %v5793
        %v5928 = vpack.c.b16 %v5798, %v5796
        %v5929 = vpack.c.b16 %v5799, %v5797
        %v5930 = vpack.c.b16 %v5802, %v5800
        %v5931 = vpack.c.b16 %v5803, %v5801
        %v5932 = vpack.c.b16 %v5806, %v5804
        %v5933 = vpack.c.b16 %v5807, %v5805
        %v5934 = vpack.c.b16 %v5810, %v5808
        %v5935 = vpack.c.b16 %v5811, %v5809
        %v5936 = vpack.c.b16 %v5814, %v5812
        %v5937 = vpack.c.b16 %v5815, %v5813
        %v5938 = vpack.c.b16 %v5818, %v5816
        %v5939 = vpack.c.b16 %v5819, %v5817
        %v5940 = vpack.c.b16 %v5822, %v5820
        %v5941 = vpack.c.b16 %v5823, %v5821
        %v5942 = vpack.c.b16 %v5826, %v5824
        %v5943 = vpack.c.b16 %v5827, %v5825
        %v5944 = vpack.c.b16 %v5830, %v5828
        %v5945 = vpack.c.b16 %v5831, %v5829
        %v5946 = vpack.c.b16 %v5834, %v5832
        %v5947 = vpack.c.b16 %v5835, %v5833
        %v5948 = vpack.c.b16 %v5838, %v5836
        %v5949 = vpack.c.b16 %v5839, %v5837
        %v5950 = vpack.c.b16 %v5842, %v5840
        %v5951 = vpack.c.b16 %v5843, %v5841
        %v5952 = vpack.c.b16 %v5846, %v5844
        %v5953 = vpack.c.b16 %v5847, %v5845
        %v5954 = vpack.c.b16 %v5850, %v5848
        %v5955 = vpack.c.b16 %v5851, %v5849
        %v5956 = vpack.c.b16 %v5854, %v5852
        %v5957 = vpack.c.b16 %v5855, %v5853
        %v5958 = vpack.c.b16 %v5858, %v5856
        %v5959 = vpack.c.b16 %v5859, %v5857
        %v5960 = vpack.c.b16 %v5862, %v5860
        %v5961 = vpack.c.b16 %v5863, %v5861
        %v5962 = vpack.c.b16 %v5866, %v5864
        %v5963 = vpack.c.b16 %v5867, %v5865
        %v5964 = vpack.c.b16 %v5870, %v5868
        %v5965 = vpack.c.b16 %v5871, %v5869
        %v5966 = vpack.c.b16 %v5874, %v5872
        %v5967 = vpack.c.b16 %v5875, %v5873
        %v5968 = vpack.c.b16 %v5878, %v5876
        %v5969 = vpack.c.b16 %v5879, %v5877
        %v5970 = vpack.c.b16 %v5882, %v5880
        %v5971 = vpack.c.b16 %v5883, %v5881
        %v5972 = vpack.c.b16 %v5886, %v5884
        %v5973 = vpack.c.b16 %v5887, %v5885
        %v5974 = vpack.c.b16 %v5890, %v5888
        %v5975 = vpack.c.b16 %v5891, %v5889
        %v5976 = vpack.c.b16 %v5894, %v5892
        %v5977 = vpack.c.b16 %v5895, %v5893
        %v5978 = vpack.c.b16 %v5898, %v5896
        %v5979 = vpack.c.b16 %v5899, %v5897
        %6060 = vmatpush.bf16.msra.mxu0 %v5914
        %6061 = vmatpush.bf16.msra.mxu0 %v5912
        %6062 = vmatpush.bf16.msra.mxu0 %v5910
        %6063 = vmatpush.bf16.msra.mxu0 %v5908
        %6064 = vmatpush.bf16.msra.mxu0 %v5906
        %6065 = vmatpush.bf16.msra.mxu0 %v5904
        %6066 = vmatpush.bf16.msra.mxu0 %v5902
        %6067 = vmatpush.bf16.msra.mxu0 %v5900
        %6068 = vmatmul.bf16.gmra.mxu0 %v5637
        %v6069 = vpop.f32.mrf.mxu0
        %v6070 = vadd.f32 0.0, %v6069
        %v6071 = vpop.f32.mrf.mxu0
        %v6072 = vadd.f32 0.0, %v6071
        %6073 = vmatmul.bf16.gmra.mxu0 %v5636
        %v6074 = vpop.f32.mrf.mxu0
        %v6075 = vadd.f32 0.0, %v6074
        %v6076 = vpop.f32.mrf.mxu0
        %6077 = vdwg.mxu0
        %6078 = vmatpush.bf16.msra.mxu0 %v5930
        %6079 = vmatpush.bf16.msra.mxu0 %v5928
        %6080 = vmatpush.bf16.msra.mxu0 %v5926
        %6081 = vmatpush.bf16.msra.mxu0 %v5924
        %6082 = vmatpush.bf16.msra.mxu0 %v5922
        %6083 = vmatpush.bf16.msra.mxu0 %v5920
        %6084 = vmatpush.bf16.msra.mxu0 %v5918
        %6085 = vmatpush.bf16.msra.mxu0 %v5916
        %6086 = vmatmul.bf16.gmra.mxu0 %v5640
        %v6087 = vpop.f32.mrf.mxu0
        %v6088 = vadd.f32 %v6070, %v6087
        %v6089 = vpop.f32.mrf.mxu0
        %v6090 = vadd.f32 %v6072, %v6089
        %6091 = vmatmul.bf16.gmra.mxu0 %v5639
        %v6092 = vpop.f32.mrf.mxu0
        %v6093 = vadd.f32 %v6075, %v6092
        %v6094 = vpop.f32.mrf.mxu0
        %6095 = vdwg.mxu0
        %6096 = vmatpush.bf16.msra.mxu0 %v5946
        %6097 = vmatpush.bf16.msra.mxu0 %v5944
        %6098 = vmatpush.bf16.msra.mxu0 %v5942
        %6099 = vmatpush.bf16.msra.mxu0 %v5940
        %6100 = vmatpush.bf16.msra.mxu0 %v5938
        %6101 = vmatpush.bf16.msra.mxu0 %v5936
        %6102 = vmatpush.bf16.msra.mxu0 %v5934
        %6103 = vmatpush.bf16.msra.mxu0 %v5932
        %6104 = vmatmul.bf16.gmra.mxu0 %v5643
        %v6105 = vpop.f32.mrf.mxu0
        %v6106 = vadd.f32 %v6088, %v6105
        %v6107 = vpop.f32.mrf.mxu0
        %v6108 = vadd.f32 %v6090, %v6107
        %6109 = vmatmul.bf16.gmra.mxu0 %v5642
        %v6110 = vpop.f32.mrf.mxu0
        %v6111 = vadd.f32 %v6093, %v6110
        %v6112 = vpop.f32.mrf.mxu0
        %6113 = vdwg.mxu0
        %6114 = vmatpush.bf16.msra.mxu0 %v5962
        %6115 = vmatpush.bf16.msra.mxu0 %v5960
        %6116 = vmatpush.bf16.msra.mxu0 %v5958
        %6117 = vmatpush.bf16.msra.mxu0 %v5956
        %6118 = vmatpush.bf16.msra.mxu0 %v5954
        %6119 = vmatpush.bf16.msra.mxu0 %v5952
        %6120 = vmatpush.bf16.msra.mxu0 %v5950
        %6121 = vmatpush.bf16.msra.mxu0 %v5948
        %6122 = vmatmul.bf16.gmra.mxu0 %v5646
        %v6123 = vpop.f32.mrf.mxu0
        %v6124 = vadd.f32 %v6106, %v6123
        %v6125 = vpop.f32.mrf.mxu0
        %v6126 = vadd.f32 %v6108, %v6125
        %6127 = vmatmul.bf16.gmra.mxu0 %v5645
        %v6128 = vpop.f32.mrf.mxu0
        %v6129 = vadd.f32 %v6111, %v6128
        %v6130 = vpop.f32.mrf.mxu0
        %6131 = vdwg.mxu0
        %6132 = vmatpush.bf16.msra.mxu0 %v5978
        %6133 = vmatpush.bf16.msra.mxu0 %v5976
        %6134 = vmatpush.bf16.msra.mxu0 %v5974
        %6135 = vmatpush.bf16.msra.mxu0 %v5972
        %6136 = vmatpush.bf16.msra.mxu0 %v5970
        %6137 = vmatpush.bf16.msra.mxu0 %v5968
        %6138 = vmatpush.bf16.msra.mxu0 %v5966
        %6139 = vmatpush.bf16.msra.mxu0 %v5964
        %6140 = vmatmul.bf16.gmra.mxu0 %v5649
        %v6141 = vpop.f32.mrf.mxu0
        %v6142 = vadd.f32 %v6124, %v6141
        %v6143 = vpop.f32.mrf.mxu0
        %v6144 = vadd.f32 %v6126, %v6143
        %6145 = vmatmul.bf16.gmra.mxu0 %v5648
        %v6146 = vpop.f32.mrf.mxu0
        %v6147 = vadd.f32 %v6129, %v6146
        %v6148 = vpop.f32.mrf.mxu0
        %6149 = vdwg.mxu0
        %6150 = vmatpush.bf16.msra.mxu0 %v5915
        %6151 = vmatpush.bf16.msra.mxu0 %v5913
        %6152 = vmatpush.bf16.msra.mxu0 %v5911
        %6153 = vmatpush.bf16.msra.mxu0 %v5909
        %6154 = vmatpush.bf16.msra.mxu0 %v5907
        %6155 = vmatpush.bf16.msra.mxu0 %v5905
        %6156 = vmatpush.bf16.msra.mxu0 %v5903
        %6157 = vmatpush.bf16.msra.mxu0 %v5901
        %6158 = vmatmul.bf16.gmra.mxu0 %v5637
        %v6159 = vpop.f32.mrf.mxu0
        %v6160 = vadd.f32 0.0, %v6159
        %v6161 = vpop.f32.mrf.mxu0
        %v6162 = vadd.f32 0.0, %v6161
        %6163 = vmatmul.bf16.gmra.mxu0 %v5636
        %v6164 = vpop.f32.mrf.mxu0
        %v6165 = vadd.f32 0.0, %v6164
        %v6166 = vpop.f32.mrf.mxu0
        %6167 = vdwg.mxu0
        %6168 = vmatpush.bf16.msra.mxu0 %v5931
        %6169 = vmatpush.bf16.msra.mxu0 %v5929
        %6170 = vmatpush.bf16.msra.mxu0 %v5927
        %6171 = vmatpush.bf16.msra.mxu0 %v5925
        %6172 = vmatpush.bf16.msra.mxu0 %v5923
        %6173 = vmatpush.bf16.msra.mxu0 %v5921
        %6174 = vmatpush.bf16.msra.mxu0 %v5919
        %6175 = vmatpush.bf16.msra.mxu0 %v5917
        %6176 = vmatmul.bf16.gmra.mxu0 %v5640
        %v6177 = vpop.f32.mrf.mxu0
        %v6178 = vadd.f32 %v6160, %v6177
        %v6179 = vpop.f32.mrf.mxu0
        %v6180 = vadd.f32 %v6162, %v6179
        %6181 = vmatmul.bf16.gmra.mxu0 %v5639
        %v6182 = vpop.f32.mrf.mxu0
        %v6183 = vadd.f32 %v6165, %v6182
        %v6184 = vpop.f32.mrf.mxu0
        %6185 = vdwg.mxu0
        %6186 = vmatpush.bf16.msra.mxu0 %v5947
        %6187 = vmatpush.bf16.msra.mxu0 %v5945
        %6188 = vmatpush.bf16.msra.mxu0 %v5943
        %6189 = vmatpush.bf16.msra.mxu0 %v5941
        %6190 = vmatpush.bf16.msra.mxu0 %v5939
        %6191 = vmatpush.bf16.msra.mxu0 %v5937
        %6192 = vmatpush.bf16.msra.mxu0 %v5935
        %6193 = vmatpush.bf16.msra.mxu0 %v5933
        %6194 = vmatmul.bf16.gmra.mxu0 %v5643
        %v6195 = vpop.f32.mrf.mxu0
        %v6196 = vadd.f32 %v6178, %v6195
        %v6197 = vpop.f32.mrf.mxu0
        %v6198 = vadd.f32 %v6180, %v6197
        %6199 = vmatmul.bf16.gmra.mxu0 %v5642
        %v6200 = vpop.f32.mrf.mxu0
        %v6201 = vadd.f32 %v6183, %v6200
        %v6202 = vpop.f32.mrf.mxu0
        %6203 = vdwg.mxu0
        %6204 = vmatpush.bf16.msra.mxu0 %v5963
        %6205 = vmatpush.bf16.msra.mxu0 %v5961
        %6206 = vmatpush.bf16.msra.mxu0 %v5959
        %6207 = vmatpush.bf16.msra.mxu0 %v5957
        %6208 = vmatpush.bf16.msra.mxu0 %v5955
        %6209 = vmatpush.bf16.msra.mxu0 %v5953
        %6210 = vmatpush.bf16.msra.mxu0 %v5951
        %6211 = vmatpush.bf16.msra.mxu0 %v5949
        %6212 = vmatmul.bf16.gmra.mxu0 %v5646
        %v6213 = vpop.f32.mrf.mxu0
        %v6214 = vadd.f32 %v6196, %v6213
        %v6215 = vpop.f32.mrf.mxu0
        %v6216 = vadd.f32 %v6198, %v6215
        %6217 = vmatmul.bf16.gmra.mxu0 %v5645
        %v6218 = vpop.f32.mrf.mxu0
        %v6219 = vadd.f32 %v6201, %v6218
        %v6220 = vpop.f32.mrf.mxu0
        %6221 = vdwg.mxu0
        %6222 = vmatpush.bf16.msra.mxu0 %v5979
        %6223 = vmatpush.bf16.msra.mxu0 %v5977
        %6224 = vmatpush.bf16.msra.mxu0 %v5975
        %6225 = vmatpush.bf16.msra.mxu0 %v5973
        %6226 = vmatpush.bf16.msra.mxu0 %v5971
        %6227 = vmatpush.bf16.msra.mxu0 %v5969
        %6228 = vmatpush.bf16.msra.mxu0 %v5967
        %6229 = vmatpush.bf16.msra.mxu0 %v5965
        %6230 = vmatmul.bf16.gmra.mxu0 %v5649
        %v6231 = vpop.f32.mrf.mxu0
        %v6232 = vadd.f32 %v6214, %v6231
        %v6233 = vpop.f32.mrf.mxu0
        %v6234 = vadd.f32 %v6216, %v6233
        %6235 = vmatmul.bf16.gmra.mxu0 %v5648
        %v6236 = vpop.f32.mrf.mxu0
        %v6237 = vadd.f32 %v6219, %v6236
        %v6238 = vpop.f32.mrf.mxu0
        %6239 = vdwg.mxu0
        %v6240 = vadd.f32 %v5441, %v6142
        %v6241 = vadd.f32 %v5531, %v6232
        %v6242 = vadd.f32 %v5443, %v6144
        %v6243 = vadd.f32 %v5533, %v6234
        %v6244 = vadd.f32 %v5446, %v6147
        %v6245 = vadd.f32 %v5536, %v6237
        %v6246 = vld [vmem:[%s4064 + $0x3c] sm:$0x33]
        %v6247 = vld [vmem:[%s4064 + $0x44] sm:$0x33]
        %v6248 = vld [vmem:[%s4064 + $0x4c] sm:$0x3]
        %v6249 = vld [vmem:[%s2510] sm:$0xff]
        %v6250 = vld [vmem:[%s2510 + $0x8] sm:$0xff]
        %v6251 = vld [vmem:[%s2510 + $0x10] sm:$0xff]
        %v6252 = vld [vmem:[%s2510 + $0x18] sm:$0xff]
        %v6253 = vld [vmem:[%s2510 + $0x20] sm:$0xff]
        %v6254 = vld [vmem:[%s2510 + $0x28] sm:$0xff]
        %v6255 = vld [vmem:[%s2510 + $0x30] sm:$0xff]
        %v6256 = vld [vmem:[%s2510 + $0x38] sm:$0xff]
        %v6257 = vld [vmem:[%s2510 + $0x40] sm:$0xff]
        %v6258 = vld [vmem:[%s2510 + $0x48] sm:$0xff]
        %v6259 = vld [vmem:[%s2510 + $0x50] sm:$0xff]
        %v6260 = vld [vmem:[%s2510 + $0x58] sm:$0xff]
        %v6261 = vld [vmem:[%s2510 + $0x60] sm:$0xff]
        %v6262 = vld [vmem:[%s2510 + $0x68] sm:$0xff]
        %v6263 = vld [vmem:[%s2510 + $0x70] sm:$0xff]
        %v6264 = vld [vmem:[%s2510 + $0x78] sm:$0xff]
        %v6265 = vld [vmem:[%s2510 + $0x80] sm:$0xff]
        %v6266 = vld [vmem:[%s2510 + $0x88] sm:$0xff]
        %v6267 = vld [vmem:[%s2510 + $0x90] sm:$0xff]
        %v6268 = vld [vmem:[%s2510 + $0x98] sm:$0xff]
        %v6269 = vld [vmem:[%s2510 + $0xa0] sm:$0xff]
        %v6270 = vld [vmem:[%s2510 + $0xa8] sm:$0xff]
        %v6271 = vld [vmem:[%s2510 + $0xb0] sm:$0xff]
        %v6272 = vld [vmem:[%s2510 + $0xb8] sm:$0xff]
        %v6273 = vld [vmem:[%s2510 + $0xc0] sm:$0xff]
        %v6274 = vld [vmem:[%s2510 + $0xc8] sm:$0xff]
        %v6275 = vld [vmem:[%s2510 + $0xd0] sm:$0xff]
        %v6276 = vld [vmem:[%s2510 + $0xd8] sm:$0xff]
        %v6277 = vld [vmem:[%s2510 + $0xe0] sm:$0xff]
        %v6278 = vld [vmem:[%s2510 + $0xe8] sm:$0xff]
        %v6279 = vld [vmem:[%s2510 + $0xf0] sm:$0xff]
        %v6280 = vld [vmem:[%s2510 + $0xf8] sm:$0xff]
        %v6281 = vld [vmem:[%s2510 + $0x100] sm:$0xff]
        %v6282 = vld [vmem:[%s2510 + $0x108] sm:$0xff]
        %v6283 = vld [vmem:[%s2510 + $0x110] sm:$0xff]
        %v6284 = vld [vmem:[%s2510 + $0x118] sm:$0xff]
        %v6285 = vld [vmem:[%s2510 + $0x120] sm:$0xff]
        %v6286 = vld [vmem:[%s2510 + $0x128] sm:$0xff]
        %v6287 = vld [vmem:[%s2510 + $0x130] sm:$0xff]
        %v6288 = vld [vmem:[%s2510 + $0x138] sm:$0xff]
        %v6289 = vld [vmem:[%s2510 + $0x140] sm:$0xff]
        %v6290 = vld [vmem:[%s2510 + $0x148] sm:$0xff]
        %v6291 = vld [vmem:[%s2510 + $0x150] sm:$0xff]
        %v6292 = vld [vmem:[%s2510 + $0x158] sm:$0xff]
        %v6293 = vld [vmem:[%s2510 + $0x160] sm:$0xff]
        %v6294 = vld [vmem:[%s2510 + $0x168] sm:$0xff]
        %v6295 = vld [vmem:[%s2510 + $0x170] sm:$0xff]
        %v6296 = vld [vmem:[%s2510 + $0x178] sm:$0xff]
        %v6297 = vld [vmem:[%s2510 + $0x180] sm:$0xff]
        %v6298 = vld [vmem:[%s2510 + $0x188] sm:$0xff]
        %v6299 = vld [vmem:[%s2510 + $0x190] sm:$0xff]
        %v6300 = vld [vmem:[%s2510 + $0x198] sm:$0xff]
        %v6301 = vld [vmem:[%s2510 + $0x1a0] sm:$0xff]
        %v6302 = vld [vmem:[%s2510 + $0x1a8] sm:$0xff]
        %v6303 = vld [vmem:[%s2510 + $0x1b0] sm:$0xff]
        %v6304 = vld [vmem:[%s2510 + $0x1b8] sm:$0xff]
        %v6305 = vld [vmem:[%s2510 + $0x1c0] sm:$0xff]
        %v6306 = vld [vmem:[%s2510 + $0x1c8] sm:$0xff]
        %v6307 = vld [vmem:[%s2510 + $0x1d0] sm:$0xff]
        %v6308 = vld [vmem:[%s2510 + $0x1d8] sm:$0xff]
        %v6309 = vld [vmem:[%s2510 + $0x1e0] sm:$0xff]
        %v6310 = vld [vmem:[%s2510 + $0x1e8] sm:$0xff]
        %v6311 = vld [vmem:[%s2510 + $0x1f0] sm:$0xff]
        %v6312 = vld [vmem:[%s2510 + $0x1f8] sm:$0xff]
        %v6313 = vld [vmem:[%s2510 + $0x200] sm:$0xff]
        %v6314 = vld [vmem:[%s2510 + $0x208] sm:$0xff]
        %v6315 = vld [vmem:[%s2510 + $0x210] sm:$0xff]
        %v6316 = vld [vmem:[%s2510 + $0x218] sm:$0xff]
        %v6317 = vld [vmem:[%s2510 + $0x220] sm:$0xff]
        %v6318 = vld [vmem:[%s2510 + $0x228] sm:$0xff]
        %v6319 = vld [vmem:[%s2510 + $0x230] sm:$0xff]
        %v6320 = vld [vmem:[%s2510 + $0x238] sm:$0xff]
        %v6321 = vld [vmem:[%s2510 + $0x240] sm:$0xff]
        %v6322 = vld [vmem:[%s2510 + $0x248] sm:$0xff]
        %v6323 = vld [vmem:[%s2510 + $0x250] sm:$0xff]
        %v6324 = vld [vmem:[%s2510 + $0x258] sm:$0xff]
        %v6325 = vld [vmem:[%s2510 + $0x260] sm:$0xff]
        %v6326 = vld [vmem:[%s2510 + $0x268] sm:$0xff]
        %v6327 = vld [vmem:[%s2510 + $0x270] sm:$0xff]
        %v6328 = vld [vmem:[%s2510 + $0x278] sm:$0xff]
        %v6332 = vunpack.c.l.b16 %v6246
        %v6333 = vunpack.c.h.b16 %v6246
        %v6334 = vunpack.c.l.b16 %v6247
        %v6335 = vunpack.c.h.b16 %v6247
        %v6336 = vunpack.c.l.b16 %v6248
        %v6337 = vpack.c.b16 %v6332, %v4259
        %v6338 = vpack.c.b16 %v6333, %v4260
        %v6339 = vpack.c.b16 %v6334, %v4261
        %v6340 = vpack.c.b16 %v6335, %v4262
        %v6341 = vpack.c.b16 %v6336, %v4263
        %v6343 = vshrl.u32 %v5630, 16
        %v6345 = vrot.slane %v6343, 1
        %v6346 = vshll.u32 %v5630, 16
        %v6348 = vrot.slane %v6346, 2
        %v6349 = vor.u32 %v6345, %v6348
        %v6351 = vshrl.u32 %v6337, 16
        %v6353 = vrot.slane %v6351, 1
        %v6354 = vshll.u32 %v6337, 16
        %v6356 = vrot.slane %v6354, 2
        %v6357 = vor.u32 %v6353, %v6356
        %v6358 = vsel %vm2604, %v6349, %v6357
        %v6360 = vshrl.u32 %v5631, 16
        %v6362 = vrot.slane %v6360, 1
        %v6363 = vshll.u32 %v5631, 16
        %v6365 = vrot.slane %v6363, 2
        %v6366 = vor.u32 %v6362, %v6365
        %v6368 = vshrl.u32 %v6338, 16
        %v6370 = vrot.slane %v6368, 1
        %v6371 = vshll.u32 %v6338, 16
        %v6373 = vrot.slane %v6371, 2
        %v6374 = vor.u32 %v6370, %v6373
        %v6375 = vsel %vm2604, %v6366, %v6374
        %v6377 = vshrl.u32 %v5632, 16
        %v6379 = vrot.slane %v6377, 1
        %v6380 = vshll.u32 %v5632, 16
        %v6382 = vrot.slane %v6380, 2
        %v6383 = vor.u32 %v6379, %v6382
        %v6385 = vshrl.u32 %v6339, 16
        %v6387 = vrot.slane %v6385, 1
        %v6388 = vshll.u32 %v6339, 16
        %v6390 = vrot.slane %v6388, 2
        %v6391 = vor.u32 %v6387, %v6390
        %v6392 = vsel %vm2604, %v6383, %v6391
        %v6394 = vshrl.u32 %v5633, 16
        %v6396 = vrot.slane %v6394, 1
        %v6397 = vshll.u32 %v5633, 16
        %v6399 = vrot.slane %v6397, 2
        %v6400 = vor.u32 %v6396, %v6399
        %v6402 = vshrl.u32 %v6340, 16
        %v6404 = vrot.slane %v6402, 1
        %v6405 = vshll.u32 %v6340, 16
        %v6407 = vrot.slane %v6405, 2
        %v6408 = vor.u32 %v6404, %v6407
        %v6409 = vsel %vm2604, %v6400, %v6408
        %v6411 = vshrl.u32 %v5634, 16
        %v6413 = vrot.slane %v6411, 1
        %v6414 = vshll.u32 %v5634, 16
        %v6416 = vrot.slane %v6414, 2
        %v6417 = vor.u32 %v6413, %v6416
        %v6419 = vshrl.u32 %v6341, 16
        %v6421 = vrot.slane %v6419, 1
        %v6422 = vshll.u32 %v6341, 16
        %v6424 = vrot.slane %v6422, 2
        %v6425 = vor.u32 %v6421, %v6424
        %v6426 = vsel %vm2604, %v6417, %v6425
        %v6517 = vunpack.c.l.b16 %v6249
        %v6518 = vunpack.c.h.b16 %v6249
        %v6519 = vunpack.c.l.b16 %v6250
        %v6520 = vunpack.c.h.b16 %v6250
        %v6521 = vunpack.c.l.b16 %v6251
        %v6522 = vunpack.c.h.b16 %v6251
        %v6523 = vunpack.c.l.b16 %v6252
        %v6524 = vunpack.c.h.b16 %v6252
        %v6525 = vunpack.c.l.b16 %v6253
        %v6526 = vunpack.c.h.b16 %v6253
        %v6527 = vunpack.c.l.b16 %v6254
        %v6528 = vunpack.c.h.b16 %v6254
        %v6529 = vunpack.c.l.b16 %v6255
        %v6530 = vunpack.c.h.b16 %v6255
        %v6531 = vunpack.c.l.b16 %v6256
        %v6532 = vunpack.c.h.b16 %v6256
        %v6533 = vunpack.c.l.b16 %v6257
        %v6534 = vunpack.c.h.b16 %v6257
        %v6535 = vunpack.c.l.b16 %v6258
        %v6536 = vunpack.c.h.b16 %v6258
        %v6537 = vunpack.c.l.b16 %v6259
        %v6538 = vunpack.c.h.b16 %v6259
        %v6539 = vunpack.c.l.b16 %v6260
        %v6540 = vunpack.c.h.b16 %v6260
        %v6541 = vunpack.c.l.b16 %v6261
        %v6542 = vunpack.c.h.b16 %v6261
        %v6543 = vunpack.c.l.b16 %v6262
        %v6544 = vunpack.c.h.b16 %v6262
        %v6545 = vunpack.c.l.b16 %v6263
        %v6546 = vunpack.c.h.b16 %v6263
        %v6547 = vunpack.c.l.b16 %v6264
        %v6548 = vunpack.c.h.b16 %v6264
        %v6549 = vunpack.c.l.b16 %v6265
        %v6550 = vunpack.c.h.b16 %v6265
        %v6551 = vunpack.c.l.b16 %v6266
        %v6552 = vunpack.c.h.b16 %v6266
        %v6553 = vunpack.c.l.b16 %v6267
        %v6554 = vunpack.c.h.b16 %v6267
        %v6555 = vunpack.c.l.b16 %v6268
        %v6556 = vunpack.c.h.b16 %v6268
        %v6557 = vunpack.c.l.b16 %v6269
        %v6558 = vunpack.c.h.b16 %v6269
        %v6559 = vunpack.c.l.b16 %v6270
        %v6560 = vunpack.c.h.b16 %v6270
        %v6561 = vunpack.c.l.b16 %v6271
        %v6562 = vunpack.c.h.b16 %v6271
        %v6563 = vunpack.c.l.b16 %v6272
        %v6564 = vunpack.c.h.b16 %v6272
        %v6565 = vunpack.c.l.b16 %v6273
        %v6566 = vunpack.c.h.b16 %v6273
        %v6567 = vunpack.c.l.b16 %v6274
        %v6568 = vunpack.c.h.b16 %v6274
        %v6569 = vunpack.c.l.b16 %v6275
        %v6570 = vunpack.c.h.b16 %v6275
        %v6571 = vunpack.c.l.b16 %v6276
        %v6572 = vunpack.c.h.b16 %v6276
        %v6573 = vunpack.c.l.b16 %v6277
        %v6574 = vunpack.c.h.b16 %v6277
        %v6575 = vunpack.c.l.b16 %v6278
        %v6576 = vunpack.c.h.b16 %v6278
        %v6577 = vunpack.c.l.b16 %v6279
        %v6578 = vunpack.c.h.b16 %v6279
        %v6579 = vunpack.c.l.b16 %v6280
        %v6580 = vunpack.c.h.b16 %v6280
        %v6581 = vunpack.c.l.b16 %v6281
        %v6582 = vunpack.c.h.b16 %v6281
        %v6583 = vunpack.c.l.b16 %v6282
        %v6584 = vunpack.c.h.b16 %v6282
        %v6585 = vunpack.c.l.b16 %v6283
        %v6586 = vunpack.c.h.b16 %v6283
        %v6587 = vunpack.c.l.b16 %v6284
        %v6588 = vunpack.c.h.b16 %v6284
        %v6589 = vunpack.c.l.b16 %v6285
        %v6590 = vunpack.c.h.b16 %v6285
        %v6591 = vunpack.c.l.b16 %v6286
        %v6592 = vunpack.c.h.b16 %v6286
        %v6593 = vunpack.c.l.b16 %v6287
        %v6594 = vunpack.c.h.b16 %v6287
        %v6595 = vunpack.c.l.b16 %v6288
        %v6596 = vunpack.c.h.b16 %v6288
        %v6597 = vunpack.c.l.b16 %v6289
        %v6598 = vunpack.c.h.b16 %v6289
        %v6599 = vunpack.c.l.b16 %v6290
        %v6600 = vunpack.c.h.b16 %v6290
        %v6601 = vunpack.c.l.b16 %v6291
        %v6602 = vunpack.c.h.b16 %v6291
        %v6603 = vunpack.c.l.b16 %v6292
        %v6604 = vunpack.c.h.b16 %v6292
        %v6605 = vunpack.c.l.b16 %v6293
        %v6606 = vunpack.c.h.b16 %v6293
        %v6607 = vunpack.c.l.b16 %v6294
        %v6608 = vunpack.c.h.b16 %v6294
        %v6609 = vunpack.c.l.b16 %v6295
        %v6610 = vunpack.c.h.b16 %v6295
        %v6611 = vunpack.c.l.b16 %v6296
        %v6612 = vunpack.c.h.b16 %v6296
        %v6613 = vunpack.c.l.b16 %v6297
        %v6614 = vunpack.c.h.b16 %v6297
        %v6615 = vunpack.c.l.b16 %v6298
        %v6616 = vunpack.c.h.b16 %v6298
        %v6617 = vunpack.c.l.b16 %v6299
        %v6618 = vunpack.c.h.b16 %v6299
        %v6619 = vunpack.c.l.b16 %v6300
        %v6620 = vunpack.c.h.b16 %v6300
        %v6621 = vunpack.c.l.b16 %v6301
        %v6622 = vunpack.c.h.b16 %v6301
        %v6623 = vunpack.c.l.b16 %v6302
        %v6624 = vunpack.c.h.b16 %v6302
        %v6625 = vunpack.c.l.b16 %v6303
        %v6626 = vunpack.c.h.b16 %v6303
        %v6627 = vunpack.c.l.b16 %v6304
        %v6628 = vunpack.c.h.b16 %v6304
        %v6629 = vunpack.c.l.b16 %v6305
        %v6630 = vunpack.c.h.b16 %v6305
        %v6631 = vunpack.c.l.b16 %v6306
        %v6632 = vunpack.c.h.b16 %v6306
        %v6633 = vunpack.c.l.b16 %v6307
        %v6634 = vunpack.c.h.b16 %v6307
        %v6635 = vunpack.c.l.b16 %v6308
        %v6636 = vunpack.c.h.b16 %v6308
        %v6637 = vunpack.c.l.b16 %v6309
        %v6638 = vunpack.c.h.b16 %v6309
        %v6639 = vunpack.c.l.b16 %v6310
        %v6640 = vunpack.c.h.b16 %v6310
        %v6641 = vunpack.c.l.b16 %v6311
        %v6642 = vunpack.c.h.b16 %v6311
        %v6643 = vunpack.c.l.b16 %v6312
        %v6644 = vunpack.c.h.b16 %v6312
        %v6645 = vunpack.c.l.b16 %v6313
        %v6646 = vunpack.c.h.b16 %v6313
        %v6647 = vunpack.c.l.b16 %v6314
        %v6648 = vunpack.c.h.b16 %v6314
        %v6649 = vunpack.c.l.b16 %v6315
        %v6650 = vunpack.c.h.b16 %v6315
        %v6651 = vunpack.c.l.b16 %v6316
        %v6652 = vunpack.c.h.b16 %v6316
        %v6653 = vunpack.c.l.b16 %v6317
        %v6654 = vunpack.c.h.b16 %v6317
        %v6655 = vunpack.c.l.b16 %v6318
        %v6656 = vunpack.c.h.b16 %v6318
        %v6657 = vunpack.c.l.b16 %v6319
        %v6658 = vunpack.c.h.b16 %v6319
        %v6659 = vunpack.c.l.b16 %v6320
        %v6660 = vunpack.c.h.b16 %v6320
        %v6661 = vunpack.c.l.b16 %v6321
        %v6662 = vunpack.c.h.b16 %v6321
        %v6663 = vunpack.c.l.b16 %v6322
        %v6664 = vunpack.c.h.b16 %v6322
        %v6665 = vunpack.c.l.b16 %v6323
        %v6666 = vunpack.c.h.b16 %v6323
        %v6667 = vunpack.c.l.b16 %v6324
        %v6668 = vunpack.c.h.b16 %v6324
        %v6669 = vunpack.c.l.b16 %v6325
        %v6670 = vunpack.c.h.b16 %v6325
        %v6671 = vunpack.c.l.b16 %v6326
        %v6672 = vunpack.c.h.b16 %v6326
        %v6673 = vunpack.c.l.b16 %v6327
        %v6674 = vunpack.c.h.b16 %v6327
        %v6675 = vunpack.c.l.b16 %v6328
        %v6676 = vunpack.c.h.b16 %v6328
        %v6677 = vpack.c.b16 %v6519, %v6517
        %v6678 = vpack.c.b16 %v6520, %v6518
        %v6679 = vpack.c.b16 %v6523, %v6521
        %v6680 = vpack.c.b16 %v6524, %v6522
        %v6681 = vpack.c.b16 %v6527, %v6525
        %v6682 = vpack.c.b16 %v6528, %v6526
        %v6683 = vpack.c.b16 %v6531, %v6529
        %v6684 = vpack.c.b16 %v6532, %v6530
        %v6685 = vpack.c.b16 %v6535, %v6533
        %v6686 = vpack.c.b16 %v6536, %v6534
        %v6687 = vpack.c.b16 %v6539, %v6537
        %v6688 = vpack.c.b16 %v6540, %v6538
        %v6689 = vpack.c.b16 %v6543, %v6541
        %v6690 = vpack.c.b16 %v6544, %v6542
        %v6691 = vpack.c.b16 %v6547, %v6545
        %v6692 = vpack.c.b16 %v6548, %v6546
        %v6693 = vpack.c.b16 %v6551, %v6549
        %v6694 = vpack.c.b16 %v6552, %v6550
        %v6695 = vpack.c.b16 %v6555, %v6553
        %v6696 = vpack.c.b16 %v6556, %v6554
        %v6697 = vpack.c.b16 %v6559, %v6557
        %v6698 = vpack.c.b16 %v6560, %v6558
        %v6699 = vpack.c.b16 %v6563, %v6561
        %v6700 = vpack.c.b16 %v6564, %v6562
        %v6701 = vpack.c.b16 %v6567, %v6565
        %v6702 = vpack.c.b16 %v6568, %v6566
        %v6703 = vpack.c.b16 %v6571, %v6569
        %v6704 = vpack.c.b16 %v6572, %v6570
        %v6705 = vpack.c.b16 %v6575, %v6573
        %v6706 = vpack.c.b16 %v6576, %v6574
        %v6707 = vpack.c.b16 %v6579, %v6577
        %v6708 = vpack.c.b16 %v6580, %v6578
        %v6709 = vpack.c.b16 %v6583, %v6581
        %v6710 = vpack.c.b16 %v6584, %v6582
        %v6711 = vpack.c.b16 %v6587, %v6585
        %v6712 = vpack.c.b16 %v6588, %v6586
        %v6713 = vpack.c.b16 %v6591, %v6589
        %v6714 = vpack.c.b16 %v6592, %v6590
        %v6715 = vpack.c.b16 %v6595, %v6593
        %v6716 = vpack.c.b16 %v6596, %v6594
        %v6717 = vpack.c.b16 %v6599, %v6597
        %v6718 = vpack.c.b16 %v6600, %v6598
        %v6719 = vpack.c.b16 %v6603, %v6601
        %v6720 = vpack.c.b16 %v6604, %v6602
        %v6721 = vpack.c.b16 %v6607, %v6605
        %v6722 = vpack.c.b16 %v6608, %v6606
        %v6723 = vpack.c.b16 %v6611, %v6609
        %v6724 = vpack.c.b16 %v6612, %v6610
        %v6725 = vpack.c.b16 %v6615, %v6613
        %v6726 = vpack.c.b16 %v6616, %v6614
        %v6727 = vpack.c.b16 %v6619, %v6617
        %v6728 = vpack.c.b16 %v6620, %v6618
        %v6729 = vpack.c.b16 %v6623, %v6621
        %v6730 = vpack.c.b16 %v6624, %v6622
        %v6731 = vpack.c.b16 %v6627, %v6625
        %v6732 = vpack.c.b16 %v6628, %v6626
        %v6733 = vpack.c.b16 %v6631, %v6629
        %v6734 = vpack.c.b16 %v6632, %v6630
        %v6735 = vpack.c.b16 %v6635, %v6633
        %v6736 = vpack.c.b16 %v6636, %v6634
        %v6737 = vpack.c.b16 %v6639, %v6637
        %v6738 = vpack.c.b16 %v6640, %v6638
        %v6739 = vpack.c.b16 %v6643, %v6641
        %v6740 = vpack.c.b16 %v6644, %v6642
        %v6741 = vpack.c.b16 %v6647, %v6645
        %v6742 = vpack.c.b16 %v6648, %v6646
        %v6743 = vpack.c.b16 %v6651, %v6649
        %v6744 = vpack.c.b16 %v6652, %v6650
        %v6745 = vpack.c.b16 %v6655, %v6653
        %v6746 = vpack.c.b16 %v6656, %v6654
        %v6747 = vpack.c.b16 %v6659, %v6657
        %v6748 = vpack.c.b16 %v6660, %v6658
        %v6749 = vpack.c.b16 %v6663, %v6661
        %v6750 = vpack.c.b16 %v6664, %v6662
        %v6751 = vpack.c.b16 %v6667, %v6665
        %v6752 = vpack.c.b16 %v6668, %v6666
        %v6753 = vpack.c.b16 %v6671, %v6669
        %v6754 = vpack.c.b16 %v6672, %v6670
        %v6755 = vpack.c.b16 %v6675, %v6673
        %v6756 = vpack.c.b16 %v6676, %v6674
        %6837 = vmatpush.bf16.msra.mxu0 %v6691
        %6838 = vmatpush.bf16.msra.mxu0 %v6689
        %6839 = vmatpush.bf16.msra.mxu0 %v6687
        %6840 = vmatpush.bf16.msra.mxu0 %v6685
        %6841 = vmatpush.bf16.msra.mxu0 %v6683
        %6842 = vmatpush.bf16.msra.mxu0 %v6681
        %6843 = vmatpush.bf16.msra.mxu0 %v6679
        %6844 = vmatpush.bf16.msra.mxu0 %v6677
        %6845 = vmatmul.bf16.gmra.mxu0 %v6358
        %v6846 = vpop.f32.mrf.mxu0
        %v6847 = vadd.f32 0.0, %v6846
        %v6848 = vpop.f32.mrf.mxu0
        %v6849 = vadd.f32 0.0, %v6848
        %6850 = vmatmul.bf16.gmra.mxu0 %v6357
        %v6851 = vpop.f32.mrf.mxu0
        %v6852 = vadd.f32 0.0, %v6851
        %v6853 = vpop.f32.mrf.mxu0
        %6854 = vdwg.mxu0
        %6855 = vmatpush.bf16.msra.mxu0 %v6707
        %6856 = vmatpush.bf16.msra.mxu0 %v6705
        %6857 = vmatpush.bf16.msra.mxu0 %v6703
        %6858 = vmatpush.bf16.msra.mxu0 %v6701
        %6859 = vmatpush.bf16.msra.mxu0 %v6699
        %6860 = vmatpush.bf16.msra.mxu0 %v6697
        %6861 = vmatpush.bf16.msra.mxu0 %v6695
        %6862 = vmatpush.bf16.msra.mxu0 %v6693
        %6863 = vmatmul.bf16.gmra.mxu0 %v6375
        %v6864 = vpop.f32.mrf.mxu0
        %v6865 = vadd.f32 %v6847, %v6864
        %v6866 = vpop.f32.mrf.mxu0
        %v6867 = vadd.f32 %v6849, %v6866
        %6868 = vmatmul.bf16.gmra.mxu0 %v6374
        %v6869 = vpop.f32.mrf.mxu0
        %v6870 = vadd.f32 %v6852, %v6869
        %v6871 = vpop.f32.mrf.mxu0
        %6872 = vdwg.mxu0
        %6873 = vmatpush.bf16.msra.mxu0 %v6723
        %6874 = vmatpush.bf16.msra.mxu0 %v6721
        %6875 = vmatpush.bf16.msra.mxu0 %v6719
        %6876 = vmatpush.bf16.msra.mxu0 %v6717
        %6877 = vmatpush.bf16.msra.mxu0 %v6715
        %6878 = vmatpush.bf16.msra.mxu0 %v6713
        %6879 = vmatpush.bf16.msra.mxu0 %v6711
        %6880 = vmatpush.bf16.msra.mxu0 %v6709
        %6881 = vmatmul.bf16.gmra.mxu0 %v6392
        %v6882 = vpop.f32.mrf.mxu0
        %v6883 = vadd.f32 %v6865, %v6882
        %v6884 = vpop.f32.mrf.mxu0
        %v6885 = vadd.f32 %v6867, %v6884
        %6886 = vmatmul.bf16.gmra.mxu0 %v6391
        %v6887 = vpop.f32.mrf.mxu0
        %v6888 = vadd.f32 %v6870, %v6887
        %v6889 = vpop.f32.mrf.mxu0
        %6890 = vdwg.mxu0
        %6891 = vmatpush.bf16.msra.mxu0 %v6739
        %6892 = vmatpush.bf16.msra.mxu0 %v6737
        %6893 = vmatpush.bf16.msra.mxu0 %v6735
        %6894 = vmatpush.bf16.msra.mxu0 %v6733
        %6895 = vmatpush.bf16.msra.mxu0 %v6731
        %6896 = vmatpush.bf16.msra.mxu0 %v6729
        %6897 = vmatpush.bf16.msra.mxu0 %v6727
        %6898 = vmatpush.bf16.msra.mxu0 %v6725
        %6899 = vmatmul.bf16.gmra.mxu0 %v6409
        %v6900 = vpop.f32.mrf.mxu0
        %v6901 = vadd.f32 %v6883, %v6900
        %v6902 = vpop.f32.mrf.mxu0
        %v6903 = vadd.f32 %v6885, %v6902
        %6904 = vmatmul.bf16.gmra.mxu0 %v6408
        %v6905 = vpop.f32.mrf.mxu0
        %v6906 = vadd.f32 %v6888, %v6905
        %v6907 = vpop.f32.mrf.mxu0
        %6908 = vdwg.mxu0
        %6909 = vmatpush.bf16.msra.mxu0 %v6755
        %6910 = vmatpush.bf16.msra.mxu0 %v6753
        %6911 = vmatpush.bf16.msra.mxu0 %v6751
        %6912 = vmatpush.bf16.msra.mxu0 %v6749
        %6913 = vmatpush.bf16.msra.mxu0 %v6747
        %6914 = vmatpush.bf16.msra.mxu0 %v6745
        %6915 = vmatpush.bf16.msra.mxu0 %v6743
        %6916 = vmatpush.bf16.msra.mxu0 %v6741
        %6917 = vmatmul.bf16.gmra.mxu0 %v6426
        %v6918 = vpop.f32.mrf.mxu0
        %v6919 = vadd.f32 %v6901, %v6918
        %v6920 = vpop.f32.mrf.mxu0
        %v6921 = vadd.f32 %v6903, %v6920
        %6922 = vmatmul.bf16.gmra.mxu0 %v6425
        %v6923 = vpop.f32.mrf.mxu0
        %v6924 = vadd.f32 %v6906, %v6923
        %v6925 = vpop.f32.mrf.mxu0
        %6926 = vdwg.mxu0
        %6927 = vmatpush.bf16.msra.mxu0 %v6692
        %6928 = vmatpush.bf16.msra.mxu0 %v6690
        %6929 = vmatpush.bf16.msra.mxu0 %v6688
        %6930 = vmatpush.bf16.msra.mxu0 %v6686
        %6931 = vmatpush.bf16.msra.mxu0 %v6684
        %6932 = vmatpush.bf16.msra.mxu0 %v6682
        %6933 = vmatpush.bf16.msra.mxu0 %v6680
        %6934 = vmatpush.bf16.msra.mxu0 %v6678
        %6935 = vmatmul.bf16.gmra.mxu0 %v6358
        %v6936 = vpop.f32.mrf.mxu0
        %v6937 = vadd.f32 0.0, %v6936
        %v6938 = vpop.f32.mrf.mxu0
        %v6939 = vadd.f32 0.0, %v6938
        %6940 = vmatmul.bf16.gmra.mxu0 %v6357
        %v6941 = vpop.f32.mrf.mxu0
        %v6942 = vadd.f32 0.0, %v6941
        %v6943 = vpop.f32.mrf.mxu0
        %6944 = vdwg.mxu0
        %6945 = vmatpush.bf16.msra.mxu0 %v6708
        %6946 = vmatpush.bf16.msra.mxu0 %v6706
        %6947 = vmatpush.bf16.msra.mxu0 %v6704
        %6948 = vmatpush.bf16.msra.mxu0 %v6702
        %6949 = vmatpush.bf16.msra.mxu0 %v6700
        %6950 = vmatpush.bf16.msra.mxu0 %v6698
        %6951 = vmatpush.bf16.msra.mxu0 %v6696
        %6952 = vmatpush.bf16.msra.mxu0 %v6694
        %6953 = vmatmul.bf16.gmra.mxu0 %v6375
        %v6954 = vpop.f32.mrf.mxu0
        %v6955 = vadd.f32 %v6937, %v6954
        %v6956 = vpop.f32.mrf.mxu0
        %v6957 = vadd.f32 %v6939, %v6956
        %6958 = vmatmul.bf16.gmra.mxu0 %v6374
        %v6959 = vpop.f32.mrf.mxu0
        %v6960 = vadd.f32 %v6942, %v6959
        %v6961 = vpop.f32.mrf.mxu0
        %6962 = vdwg.mxu0
        %6963 = vmatpush.bf16.msra.mxu0 %v6724
        %6964 = vmatpush.bf16.msra.mxu0 %v6722
        %6965 = vmatpush.bf16.msra.mxu0 %v6720
        %6966 = vmatpush.bf16.msra.mxu0 %v6718
        %6967 = vmatpush.bf16.msra.mxu0 %v6716
        %6968 = vmatpush.bf16.msra.mxu0 %v6714
        %6969 = vmatpush.bf16.msra.mxu0 %v6712
        %6970 = vmatpush.bf16.msra.mxu0 %v6710
        %6971 = vmatmul.bf16.gmra.mxu0 %v6392
        %v6972 = vpop.f32.mrf.mxu0
        %v6973 = vadd.f32 %v6955, %v6972
        %v6974 = vpop.f32.mrf.mxu0
        %v6975 = vadd.f32 %v6957, %v6974
        %6976 = vmatmul.bf16.gmra.mxu0 %v6391
        %v6977 = vpop.f32.mrf.mxu0
        %v6978 = vadd.f32 %v6960, %v6977
        %v6979 = vpop.f32.mrf.mxu0
        %6980 = vdwg.mxu0
        %6981 = vmatpush.bf16.msra.mxu0 %v6740
        %6982 = vmatpush.bf16.msra.mxu0 %v6738
        %6983 = vmatpush.bf16.msra.mxu0 %v6736
        %6984 = vmatpush.bf16.msra.mxu0 %v6734
        %6985 = vmatpush.bf16.msra.mxu0 %v6732
        %6986 = vmatpush.bf16.msra.mxu0 %v6730
        %6987 = vmatpush.bf16.msra.mxu0 %v6728
        %6988 = vmatpush.bf16.msra.mxu0 %v6726
        %6989 = vmatmul.bf16.gmra.mxu0 %v6409
        %v6990 = vpop.f32.mrf.mxu0
        %v6991 = vadd.f32 %v6973, %v6990
        %v6992 = vpop.f32.mrf.mxu0
        %v6993 = vadd.f32 %v6975, %v6992
        %6994 = vmatmul.bf16.gmra.mxu0 %v6408
        %v6995 = vpop.f32.mrf.mxu0
        %v6996 = vadd.f32 %v6978, %v6995
        %v6997 = vpop.f32.mrf.mxu0
        %6998 = vdwg.mxu0
        %6999 = vmatpush.bf16.msra.mxu0 %v6756
        %7000 = vmatpush.bf16.msra.mxu0 %v6754
        %7001 = vmatpush.bf16.msra.mxu0 %v6752
        %7002 = vmatpush.bf16.msra.mxu0 %v6750
        %7003 = vmatpush.bf16.msra.mxu0 %v6748
        %7004 = vmatpush.bf16.msra.mxu0 %v6746
        %7005 = vmatpush.bf16.msra.mxu0 %v6744
        %7006 = vmatpush.bf16.msra.mxu0 %v6742
        %7007 = vmatmul.bf16.gmra.mxu0 %v6426
        %v7008 = vpop.f32.mrf.mxu0
        %v7009 = vadd.f32 %v6991, %v7008
        %v7010 = vpop.f32.mrf.mxu0
        %v7011 = vadd.f32 %v6993, %v7010
        %7012 = vmatmul.bf16.gmra.mxu0 %v6425
        %v7013 = vpop.f32.mrf.mxu0
        %v7014 = vadd.f32 %v6996, %v7013
        %v7015 = vpop.f32.mrf.mxu0
        %7016 = vdwg.mxu0
        %v7017 = vadd.f32 %v6240, %v6919
        %v7018 = vadd.f32 %v6241, %v7009
        %v7019 = vadd.f32 %v6242, %v6921
        %v7020 = vadd.f32 %v6243, %v7011
        %v7021 = vadd.f32 %v6244, %v6924
        %v7022 = vadd.f32 %v6245, %v7014
        %v7023 = vld [vmem:[%s4064] sm:$0xcc]
        %v7024 = vld [vmem:[%s4064 + $0x8] sm:$0xcc]
        %v7025 = vld [vmem:[%s4064 + $0x10] sm:$0xc]
        %v7026 = vld [vmem:[%s3289] sm:$0xff]
        %v7027 = vld [vmem:[%s3289 + $0x8] sm:$0xff]
        %v7028 = vld [vmem:[%s3289 + $0x10] sm:$0xff]
        %v7029 = vld [vmem:[%s3289 + $0x18] sm:$0xff]
        %v7030 = vld [vmem:[%s3289 + $0x20] sm:$0xff]
        %v7031 = vld [vmem:[%s3289 + $0x28] sm:$0xff]
        %v7032 = vld [vmem:[%s3289 + $0x30] sm:$0xff]
        %v7033 = vld [vmem:[%s3289 + $0x38] sm:$0xff]
        %v7034 = vld [vmem:[%s3289 + $0x40] sm:$0xff]
        %v7035 = vld [vmem:[%s3289 + $0x48] sm:$0xff]
        %v7036 = vld [vmem:[%s3289 + $0x50] sm:$0xff]
        %v7037 = vld [vmem:[%s3289 + $0x58] sm:$0xff]
        %v7038 = vld [vmem:[%s3289 + $0x60] sm:$0xff]
        %v7039 = vld [vmem:[%s3289 + $0x68] sm:$0xff]
        %v7040 = vld [vmem:[%s3289 + $0x70] sm:$0xff]
        %v7041 = vld [vmem:[%s3289 + $0x78] sm:$0xff]
        %v7042 = vld [vmem:[%s3289 + $0x80] sm:$0xff]
        %v7043 = vld [vmem:[%s3289 + $0x88] sm:$0xff]
        %v7044 = vld [vmem:[%s3289 + $0x90] sm:$0xff]
        %v7045 = vld [vmem:[%s3289 + $0x98] sm:$0xff]
        %v7046 = vld [vmem:[%s3289 + $0xa0] sm:$0xff]
        %v7047 = vld [vmem:[%s3289 + $0xa8] sm:$0xff]
        %v7048 = vld [vmem:[%s3289 + $0xb0] sm:$0xff]
        %v7049 = vld [vmem:[%s3289 + $0xb8] sm:$0xff]
        %v7050 = vld [vmem:[%s3289 + $0xc0] sm:$0xff]
        %v7051 = vld [vmem:[%s3289 + $0xc8] sm:$0xff]
        %v7052 = vld [vmem:[%s3289 + $0xd0] sm:$0xff]
        %v7053 = vld [vmem:[%s3289 + $0xd8] sm:$0xff]
        %v7054 = vld [vmem:[%s3289 + $0xe0] sm:$0xff]
        %v7055 = vld [vmem:[%s3289 + $0xe8] sm:$0xff]
        %v7056 = vld [vmem:[%s3289 + $0xf0] sm:$0xff]
        %v7057 = vld [vmem:[%s3289 + $0xf8] sm:$0xff]
        %v7058 = vld [vmem:[%s3289 + $0x100] sm:$0xff]
        %v7059 = vld [vmem:[%s3289 + $0x108] sm:$0xff]
        %v7060 = vld [vmem:[%s3289 + $0x110] sm:$0xff]
        %v7061 = vld [vmem:[%s3289 + $0x118] sm:$0xff]
        %v7062 = vld [vmem:[%s3289 + $0x120] sm:$0xff]
        %v7063 = vld [vmem:[%s3289 + $0x128] sm:$0xff]
        %v7064 = vld [vmem:[%s3289 + $0x130] sm:$0xff]
        %v7065 = vld [vmem:[%s3289 + $0x138] sm:$0xff]
        %v7066 = vld [vmem:[%s3289 + $0x140] sm:$0xff]
        %v7067 = vld [vmem:[%s3289 + $0x148] sm:$0xff]
        %v7068 = vld [vmem:[%s3289 + $0x150] sm:$0xff]
        %v7069 = vld [vmem:[%s3289 + $0x158] sm:$0xff]
        %v7070 = vld [vmem:[%s3289 + $0x160] sm:$0xff]
        %v7071 = vld [vmem:[%s3289 + $0x168] sm:$0xff]
        %v7072 = vld [vmem:[%s3289 + $0x170] sm:$0xff]
        %v7073 = vld [vmem:[%s3289 + $0x178] sm:$0xff]
        %v7074 = vld [vmem:[%s3289 + $0x180] sm:$0xff]
        %v7075 = vld [vmem:[%s3289 + $0x188] sm:$0xff]
        %v7076 = vld [vmem:[%s3289 + $0x190] sm:$0xff]
        %v7077 = vld [vmem:[%s3289 + $0x198] sm:$0xff]
        %v7078 = vld [vmem:[%s3289 + $0x1a0] sm:$0xff]
        %v7079 = vld [vmem:[%s3289 + $0x1a8] sm:$0xff]
        %v7080 = vld [vmem:[%s3289 + $0x1b0] sm:$0xff]
        %v7081 = vld [vmem:[%s3289 + $0x1b8] sm:$0xff]
        %v7082 = vld [vmem:[%s3289 + $0x1c0] sm:$0xff]
        %v7083 = vld [vmem:[%s3289 + $0x1c8] sm:$0xff]
        %v7084 = vld [vmem:[%s3289 + $0x1d0] sm:$0xff]
        %v7085 = vld [vmem:[%s3289 + $0x1d8] sm:$0xff]
        %v7086 = vld [vmem:[%s3289 + $0x1e0] sm:$0xff]
        %v7087 = vld [vmem:[%s3289 + $0x1e8] sm:$0xff]
        %v7088 = vld [vmem:[%s3289 + $0x1f0] sm:$0xff]
        %v7089 = vld [vmem:[%s3289 + $0x1f8] sm:$0xff]
        %v7090 = vld [vmem:[%s3289 + $0x200] sm:$0xff]
        %v7091 = vld [vmem:[%s3289 + $0x208] sm:$0xff]
        %v7092 = vld [vmem:[%s3289 + $0x210] sm:$0xff]
        %v7093 = vld [vmem:[%s3289 + $0x218] sm:$0xff]
        %v7094 = vld [vmem:[%s3289 + $0x220] sm:$0xff]
        %v7095 = vld [vmem:[%s3289 + $0x228] sm:$0xff]
        %v7096 = vld [vmem:[%s3289 + $0x230] sm:$0xff]
        %v7097 = vld [vmem:[%s3289 + $0x238] sm:$0xff]
        %v7098 = vld [vmem:[%s3289 + $0x240] sm:$0xff]
        %v7099 = vld [vmem:[%s3289 + $0x248] sm:$0xff]
        %v7100 = vld [vmem:[%s3289 + $0x250] sm:$0xff]
        %v7101 = vld [vmem:[%s3289 + $0x258] sm:$0xff]
        %v7102 = vld [vmem:[%s3289 + $0x260] sm:$0xff]
        %v7103 = vld [vmem:[%s3289 + $0x268] sm:$0xff]
        %v7104 = vld [vmem:[%s3289 + $0x270] sm:$0xff]
        %v7105 = vld [vmem:[%s3289 + $0x278] sm:$0xff]
        %v7109 = vunpack.c.l.b16 %v7023
        %v7110 = vunpack.c.h.b16 %v7023
        %v7111 = vunpack.c.l.b16 %v7024
        %v7112 = vunpack.c.h.b16 %v7024
        %v7113 = vunpack.c.l.b16 %v7025
        %v7114 = vpack.c.b16 %v4254, %v7109
        %v7115 = vpack.c.b16 %v4255, %v7110
        %v7116 = vpack.c.b16 %v4256, %v7111
        %v7117 = vpack.c.b16 %v4257, %v7112
        %v7118 = vpack.c.b16 %v4258, %v7113
        %v7119 = vrot.slane %v7114, 2
        %v7120 = vrot.slane %v6337, 2
        %v7121 = vsel %vm3383, %v7119, %v7120
        %v7122 = vrot.slane %v7115, 2
        %v7123 = vrot.slane %v6338, 2
        %v7124 = vsel %vm3383, %v7122, %v7123
        %v7125 = vrot.slane %v7116, 2
        %v7126 = vrot.slane %v6339, 2
        %v7127 = vsel %vm3383, %v7125, %v7126
        %v7128 = vrot.slane %v7117, 2
        %v7129 = vrot.slane %v6340, 2
        %v7130 = vsel %vm3383, %v7128, %v7129
        %v7131 = vrot.slane %v7118, 2
        %v7132 = vrot.slane %v6341, 2
        %v7133 = vsel %vm3383, %v7131, %v7132
        %v7224 = vunpack.c.l.b16 %v7026
        %v7225 = vunpack.c.h.b16 %v7026
        %v7226 = vunpack.c.l.b16 %v7027
        %v7227 = vunpack.c.h.b16 %v7027
        %v7228 = vunpack.c.l.b16 %v7028
        %v7229 = vunpack.c.h.b16 %v7028
        %v7230 = vunpack.c.l.b16 %v7029
        %v7231 = vunpack.c.h.b16 %v7029
        %v7232 = vunpack.c.l.b16 %v7030
        %v7233 = vunpack.c.h.b16 %v7030
        %v7234 = vunpack.c.l.b16 %v7031
        %v7235 = vunpack.c.h.b16 %v7031
        %v7236 = vunpack.c.l.b16 %v7032
        %v7237 = vunpack.c.h.b16 %v7032
        %v7238 = vunpack.c.l.b16 %v7033
        %v7239 = vunpack.c.h.b16 %v7033
        %v7240 = vunpack.c.l.b16 %v7034
        %v7241 = vunpack.c.h.b16 %v7034
        %v7242 = vunpack.c.l.b16 %v7035
        %v7243 = vunpack.c.h.b16 %v7035
        %v7244 = vunpack.c.l.b16 %v7036
        %v7245 = vunpack.c.h.b16 %v7036
        %v7246 = vunpack.c.l.b16 %v7037
        %v7247 = vunpack.c.h.b16 %v7037
        %v7248 = vunpack.c.l.b16 %v7038
        %v7249 = vunpack.c.h.b16 %v7038
        %v7250 = vunpack.c.l.b16 %v7039
        %v7251 = vunpack.c.h.b16 %v7039
        %v7252 = vunpack.c.l.b16 %v7040
        %v7253 = vunpack.c.h.b16 %v7040
        %v7254 = vunpack.c.l.b16 %v7041
        %v7255 = vunpack.c.h.b16 %v7041
        %v7256 = vunpack.c.l.b16 %v7042
        %v7257 = vunpack.c.h.b16 %v7042
        %v7258 = vunpack.c.l.b16 %v7043
        %v7259 = vunpack.c.h.b16 %v7043
        %v7260 = vunpack.c.l.b16 %v7044
        %v7261 = vunpack.c.h.b16 %v7044
        %v7262 = vunpack.c.l.b16 %v7045
        %v7263 = vunpack.c.h.b16 %v7045
        %v7264 = vunpack.c.l.b16 %v7046
        %v7265 = vunpack.c.h.b16 %v7046
        %v7266 = vunpack.c.l.b16 %v7047
        %v7267 = vunpack.c.h.b16 %v7047
        %v7268 = vunpack.c.l.b16 %v7048
        %v7269 = vunpack.c.h.b16 %v7048
        %v7270 = vunpack.c.l.b16 %v7049
        %v7271 = vunpack.c.h.b16 %v7049
        %v7272 = vunpack.c.l.b16 %v7050
        %v7273 = vunpack.c.h.b16 %v7050
        %v7274 = vunpack.c.l.b16 %v7051
        %v7275 = vunpack.c.h.b16 %v7051
        %v7276 = vunpack.c.l.b16 %v7052
        %v7277 = vunpack.c.h.b16 %v7052
        %v7278 = vunpack.c.l.b16 %v7053
        %v7279 = vunpack.c.h.b16 %v7053
        %v7280 = vunpack.c.l.b16 %v7054
        %v7281 = vunpack.c.h.b16 %v7054
        %v7282 = vunpack.c.l.b16 %v7055
        %v7283 = vunpack.c.h.b16 %v7055
        %v7284 = vunpack.c.l.b16 %v7056
        %v7285 = vunpack.c.h.b16 %v7056
        %v7286 = vunpack.c.l.b16 %v7057
        %v7287 = vunpack.c.h.b16 %v7057
        %v7288 = vunpack.c.l.b16 %v7058
        %v7289 = vunpack.c.h.b16 %v7058
        %v7290 = vunpack.c.l.b16 %v7059
        %v7291 = vunpack.c.h.b16 %v7059
        %v7292 = vunpack.c.l.b16 %v7060
        %v7293 = vunpack.c.h.b16 %v7060
        %v7294 = vunpack.c.l.b16 %v7061
        %v7295 = vunpack.c.h.b16 %v7061
        %v7296 = vunpack.c.l.b16 %v7062
        %v7297 = vunpack.c.h.b16 %v7062
        %v7298 = vunpack.c.l.b16 %v7063
        %v7299 = vunpack.c.h.b16 %v7063
        %v7300 = vunpack.c.l.b16 %v7064
        %v7301 = vunpack.c.h.b16 %v7064
        %v7302 = vunpack.c.l.b16 %v7065
        %v7303 = vunpack.c.h.b16 %v7065
        %v7304 = vunpack.c.l.b16 %v7066
        %v7305 = vunpack.c.h.b16 %v7066
        %v7306 = vunpack.c.l.b16 %v7067
        %v7307 = vunpack.c.h.b16 %v7067
        %v7308 = vunpack.c.l.b16 %v7068
        %v7309 = vunpack.c.h.b16 %v7068
        %v7310 = vunpack.c.l.b16 %v7069
        %v7311 = vunpack.c.h.b16 %v7069
        %v7312 = vunpack.c.l.b16 %v7070
        %v7313 = vunpack.c.h.b16 %v7070
        %v7314 = vunpack.c.l.b16 %v7071
        %v7315 = vunpack.c.h.b16 %v7071
        %v7316 = vunpack.c.l.b16 %v7072
        %v7317 = vunpack.c.h.b16 %v7072
        %v7318 = vunpack.c.l.b16 %v7073
        %v7319 = vunpack.c.h.b16 %v7073
        %v7320 = vunpack.c.l.b16 %v7074
        %v7321 = vunpack.c.h.b16 %v7074
        %v7322 = vunpack.c.l.b16 %v7075
        %v7323 = vunpack.c.h.b16 %v7075
        %v7324 = vunpack.c.l.b16 %v7076
        %v7325 = vunpack.c.h.b16 %v7076
        %v7326 = vunpack.c.l.b16 %v7077
        %v7327 = vunpack.c.h.b16 %v7077
        %v7328 = vunpack.c.l.b16 %v7078
        %v7329 = vunpack.c.h.b16 %v7078
        %v7330 = vunpack.c.l.b16 %v7079
        %v7331 = vunpack.c.h.b16 %v7079
        %v7332 = vunpack.c.l.b16 %v7080
        %v7333 = vunpack.c.h.b16 %v7080
        %v7334 = vunpack.c.l.b16 %v7081
        %v7335 = vunpack.c.h.b16 %v7081
        %v7336 = vunpack.c.l.b16 %v7082
        %v7337 = vunpack.c.h.b16 %v7082
        %v7338 = vunpack.c.l.b16 %v7083
        %v7339 = vunpack.c.h.b16 %v7083
        %v7340 = vunpack.c.l.b16 %v7084
        %v7341 = vunpack.c.h.b16 %v7084
        %v7342 = vunpack.c.l.b16 %v7085
        %v7343 = vunpack.c.h.b16 %v7085
        %v7344 = vunpack.c.l.b16 %v7086
        %v7345 = vunpack.c.h.b16 %v7086
        %v7346 = vunpack.c.l.b16 %v7087
        %v7347 = vunpack.c.h.b16 %v7087
        %v7348 = vunpack.c.l.b16 %v7088
        %v7349 = vunpack.c.h.b16 %v7088
        %v7350 = vunpack.c.l.b16 %v7089
        %v7351 = vunpack.c.h.b16 %v7089
        %v7352 = vunpack.c.l.b16 %v7090
        %v7353 = vunpack.c.h.b16 %v7090
        %v7354 = vunpack.c.l.b16 %v7091
        %v7355 = vunpack.c.h.b16 %v7091
        %v7356 = vunpack.c.l.b16 %v7092
        %v7357 = vunpack.c.h.b16 %v7092
        %v7358 = vunpack.c.l.b16 %v7093
        %v7359 = vunpack.c.h.b16 %v7093
        %v7360 = vunpack.c.l.b16 %v7094
        %v7361 = vunpack.c.h.b16 %v7094
        %v7362 = vunpack.c.l.b16 %v7095
        %v7363 = vunpack.c.h.b16 %v7095
        %v7364 = vunpack.c.l.b16 %v7096
        %v7365 = vunpack.c.h.b16 %v7096
        %v7366 = vunpack.c.l.b16 %v7097
        %v7367 = vunpack.c.h.b16 %v7097
        %v7368 = vunpack.c.l.b16 %v7098
        %v7369 = vunpack.c.h.b16 %v7098
        %v7370 = vunpack.c.l.b16 %v7099
        %v7371 = vunpack.c.h.b16 %v7099
        %v7372 = vunpack.c.l.b16 %v7100
        %v7373 = vunpack.c.h.b16 %v7100
        %v7374 = vunpack.c.l.b16 %v7101
        %v7375 = vunpack.c.h.b16 %v7101
        %v7376 = vunpack.c.l.b16 %v7102
        %v7377 = vunpack.c.h.b16 %v7102
        %v7378 = vunpack.c.l.b16 %v7103
        %v7379 = vunpack.c.h.b16 %v7103
        %v7380 = vunpack.c.l.b16 %v7104
        %v7381 = vunpack.c.h.b16 %v7104
        %v7382 = vunpack.c.l.b16 %v7105
        %v7383 = vunpack.c.h.b16 %v7105
        %v7384 = vpack.c.b16 %v7226, %v7224
        %v7385 = vpack.c.b16 %v7227, %v7225
        %v7386 = vpack.c.b16 %v7230, %v7228
        %v7387 = vpack.c.b16 %v7231, %v7229
        %v7388 = vpack.c.b16 %v7234, %v7232
        %v7389 = vpack.c.b16 %v7235, %v7233
        %v7390 = vpack.c.b16 %v7238, %v7236
        %v7391 = vpack.c.b16 %v7239, %v7237
        %v7392 = vpack.c.b16 %v7242, %v7240
        %v7393 = vpack.c.b16 %v7243, %v7241
        %v7394 = vpack.c.b16 %v7246, %v7244
        %v7395 = vpack.c.b16 %v7247, %v7245
        %v7396 = vpack.c.b16 %v7250, %v7248
        %v7397 = vpack.c.b16 %v7251, %v7249
        %v7398 = vpack.c.b16 %v7254, %v7252
        %v7399 = vpack.c.b16 %v7255, %v7253
        %v7400 = vpack.c.b16 %v7258, %v7256
        %v7401 = vpack.c.b16 %v7259, %v7257
        %v7402 = vpack.c.b16 %v7262, %v7260
        %v7403 = vpack.c.b16 %v7263, %v7261
        %v7404 = vpack.c.b16 %v7266, %v7264
        %v7405 = vpack.c.b16 %v7267, %v7265
        %v7406 = vpack.c.b16 %v7270, %v7268
        %v7407 = vpack.c.b16 %v7271, %v7269
        %v7408 = vpack.c.b16 %v7274, %v7272
        %v7409 = vpack.c.b16 %v7275, %v7273
        %v7410 = vpack.c.b16 %v7278, %v7276
        %v7411 = vpack.c.b16 %v7279, %v7277
        %v7412 = vpack.c.b16 %v7282, %v7280
        %v7413 = vpack.c.b16 %v7283, %v7281
        %v7414 = vpack.c.b16 %v7286, %v7284
        %v7415 = vpack.c.b16 %v7287, %v7285
        %v7416 = vpack.c.b16 %v7290, %v7288
        %v7417 = vpack.c.b16 %v7291, %v7289
        %v7418 = vpack.c.b16 %v7294, %v7292
        %v7419 = vpack.c.b16 %v7295, %v7293
        %v7420 = vpack.c.b16 %v7298, %v7296
        %v7421 = vpack.c.b16 %v7299, %v7297
        %v7422 = vpack.c.b16 %v7302, %v7300
        %v7423 = vpack.c.b16 %v7303, %v7301
        %v7424 = vpack.c.b16 %v7306, %v7304
        %v7425 = vpack.c.b16 %v7307, %v7305
        %v7426 = vpack.c.b16 %v7310, %v7308
        %v7427 = vpack.c.b16 %v7311, %v7309
        %v7428 = vpack.c.b16 %v7314, %v7312
        %v7429 = vpack.c.b16 %v7315, %v7313
        %v7430 = vpack.c.b16 %v7318, %v7316
        %v7431 = vpack.c.b16 %v7319, %v7317
        %v7432 = vpack.c.b16 %v7322, %v7320
        %v7433 = vpack.c.b16 %v7323, %v7321
        %v7434 = vpack.c.b16 %v7326, %v7324
        %v7435 = vpack.c.b16 %v7327, %v7325
        %v7436 = vpack.c.b16 %v7330, %v7328
        %v7437 = vpack.c.b16 %v7331, %v7329
        %v7438 = vpack.c.b16 %v7334, %v7332
        %v7439 = vpack.c.b16 %v7335, %v7333
        %v7440 = vpack.c.b16 %v7338, %v7336
        %v7441 = vpack.c.b16 %v7339, %v7337
        %v7442 = vpack.c.b16 %v7342, %v7340
        %v7443 = vpack.c.b16 %v7343, %v7341
        %v7444 = vpack.c.b16 %v7346, %v7344
        %v7445 = vpack.c.b16 %v7347, %v7345
        %v7446 = vpack.c.b16 %v7350, %v7348
        %v7447 = vpack.c.b16 %v7351, %v7349
        %v7448 = vpack.c.b16 %v7354, %v7352
        %v7449 = vpack.c.b16 %v7355, %v7353
        %v7450 = vpack.c.b16 %v7358, %v7356
        %v7451 = vpack.c.b16 %v7359, %v7357
        %v7452 = vpack.c.b16 %v7362, %v7360
        %v7453 = vpack.c.b16 %v7363, %v7361
        %v7454 = vpack.c.b16 %v7366, %v7364
        %v7455 = vpack.c.b16 %v7367, %v7365
        %v7456 = vpack.c.b16 %v7370, %v7368
        %v7457 = vpack.c.b16 %v7371, %v7369
        %v7458 = vpack.c.b16 %v7374, %v7372
        %v7459 = vpack.c.b16 %v7375, %v7373
        %v7460 = vpack.c.b16 %v7378, %v7376
        %v7461 = vpack.c.b16 %v7379, %v7377
        %v7462 = vpack.c.b16 %v7382, %v7380
        %v7463 = vpack.c.b16 %v7383, %v7381
        %7544 = vmatpush.bf16.msra.mxu0 %v7398
        %7545 = vmatpush.bf16.msra.mxu0 %v7396
        %7546 = vmatpush.bf16.msra.mxu0 %v7394
        %7547 = vmatpush.bf16.msra.mxu0 %v7392
        %7548 = vmatpush.bf16.msra.mxu0 %v7390
        %7549 = vmatpush.bf16.msra.mxu0 %v7388
        %7550 = vmatpush.bf16.msra.mxu0 %v7386
        %7551 = vmatpush.bf16.msra.mxu0 %v7384
        %7552 = vmatmul.bf16.gmra.mxu0 %v7121
        %v7553 = vpop.f32.mrf.mxu0
        %v7554 = vadd.f32 0.0, %v7553
        %v7555 = vpop.f32.mrf.mxu0
        %v7556 = vadd.f32 0.0, %v7555
        %7557 = vmatmul.bf16.gmra.mxu0 %v7120
        %v7558 = vpop.f32.mrf.mxu0
        %v7559 = vadd.f32 0.0, %v7558
        %v7560 = vpop.f32.mrf.mxu0
        %7561 = vdwg.mxu0
        %7562 = vmatpush.bf16.msra.mxu0 %v7414
        %7563 = vmatpush.bf16.msra.mxu0 %v7412
        %7564 = vmatpush.bf16.msra.mxu0 %v7410
        %7565 = vmatpush.bf16.msra.mxu0 %v7408
        %7566 = vmatpush.bf16.msra.mxu0 %v7406
        %7567 = vmatpush.bf16.msra.mxu0 %v7404
        %7568 = vmatpush.bf16.msra.mxu0 %v7402
        %7569 = vmatpush.bf16.msra.mxu0 %v7400
        %7570 = vmatmul.bf16.gmra.mxu0 %v7124
        %v7571 = vpop.f32.mrf.mxu0
        %v7572 = vadd.f32 %v7554, %v7571
        %v7573 = vpop.f32.mrf.mxu0
        %v7574 = vadd.f32 %v7556, %v7573
        %7575 = vmatmul.bf16.gmra.mxu0 %v7123
        %v7576 = vpop.f32.mrf.mxu0
        %v7577 = vadd.f32 %v7559, %v7576
        %v7578 = vpop.f32.mrf.mxu0
        %7579 = vdwg.mxu0
        %7580 = vmatpush.bf16.msra.mxu0 %v7430
        %7581 = vmatpush.bf16.msra.mxu0 %v7428
        %7582 = vmatpush.bf16.msra.mxu0 %v7426
        %7583 = vmatpush.bf16.msra.mxu0 %v7424
        %7584 = vmatpush.bf16.msra.mxu0 %v7422
        %7585 = vmatpush.bf16.msra.mxu0 %v7420
        %7586 = vmatpush.bf16.msra.mxu0 %v7418
        %7587 = vmatpush.bf16.msra.mxu0 %v7416
        %7588 = vmatmul.bf16.gmra.mxu0 %v7127
        %v7589 = vpop.f32.mrf.mxu0
        %v7590 = vadd.f32 %v7572, %v7589
        %v7591 = vpop.f32.mrf.mxu0
        %v7592 = vadd.f32 %v7574, %v7591
        %7593 = vmatmul.bf16.gmra.mxu0 %v7126
        %v7594 = vpop.f32.mrf.mxu0
        %v7595 = vadd.f32 %v7577, %v7594
        %v7596 = vpop.f32.mrf.mxu0
        %7597 = vdwg.mxu0
        %7598 = vmatpush.bf16.msra.mxu0 %v7446
        %7599 = vmatpush.bf16.msra.mxu0 %v7444
        %7600 = vmatpush.bf16.msra.mxu0 %v7442
        %7601 = vmatpush.bf16.msra.mxu0 %v7440
        %7602 = vmatpush.bf16.msra.mxu0 %v7438
        %7603 = vmatpush.bf16.msra.mxu0 %v7436
        %7604 = vmatpush.bf16.msra.mxu0 %v7434
        %7605 = vmatpush.bf16.msra.mxu0 %v7432
        %7606 = vmatmul.bf16.gmra.mxu0 %v7130
        %v7607 = vpop.f32.mrf.mxu0
        %v7608 = vadd.f32 %v7590, %v7607
        %v7609 = vpop.f32.mrf.mxu0
        %v7610 = vadd.f32 %v7592, %v7609
        %7611 = vmatmul.bf16.gmra.mxu0 %v7129
        %v7612 = vpop.f32.mrf.mxu0
        %v7613 = vadd.f32 %v7595, %v7612
        %v7614 = vpop.f32.mrf.mxu0
        %7615 = vdwg.mxu0
        %7616 = vmatpush.bf16.msra.mxu0 %v7462
        %7617 = vmatpush.bf16.msra.mxu0 %v7460
        %7618 = vmatpush.bf16.msra.mxu0 %v7458
        %7619 = vmatpush.bf16.msra.mxu0 %v7456
        %7620 = vmatpush.bf16.msra.mxu0 %v7454
        %7621 = vmatpush.bf16.msra.mxu0 %v7452
        %7622 = vmatpush.bf16.msra.mxu0 %v7450
        %7623 = vmatpush.bf16.msra.mxu0 %v7448
        %7624 = vmatmul.bf16.gmra.mxu0 %v7133
        %v7625 = vpop.f32.mrf.mxu0
        %v7626 = vadd.f32 %v7608, %v7625
        %v7627 = vpop.f32.mrf.mxu0
        %v7628 = vadd.f32 %v7610, %v7627
        %7629 = vmatmul.bf16.gmra.mxu0 %v7132
        %v7630 = vpop.f32.mrf.mxu0
        %v7631 = vadd.f32 %v7613, %v7630
        %v7632 = vpop.f32.mrf.mxu0
        %7633 = vdwg.mxu0
        %7634 = vmatpush.bf16.msra.mxu0 %v7399
        %7635 = vmatpush.bf16.msra.mxu0 %v7397
        %7636 = vmatpush.bf16.msra.mxu0 %v7395
        %7637 = vmatpush.bf16.msra.mxu0 %v7393
        %7638 = vmatpush.bf16.msra.mxu0 %v7391
        %7639 = vmatpush.bf16.msra.mxu0 %v7389
        %7640 = vmatpush.bf16.msra.mxu0 %v7387
        %7641 = vmatpush.bf16.msra.mxu0 %v7385
        %7642 = vmatmul.bf16.gmra.mxu0 %v7121
        %v7643 = vpop.f32.mrf.mxu0
        %v7644 = vadd.f32 0.0, %v7643
        %v7645 = vpop.f32.mrf.mxu0
        %v7646 = vadd.f32 0.0, %v7645
        %7647 = vmatmul.bf16.gmra.mxu0 %v7120
        %v7648 = vpop.f32.mrf.mxu0
        %v7649 = vadd.f32 0.0, %v7648
        %v7650 = vpop.f32.mrf.mxu0
        %7651 = vdwg.mxu0
        %7652 = vmatpush.bf16.msra.mxu0 %v7415
        %7653 = vmatpush.bf16.msra.mxu0 %v7413
        %7654 = vmatpush.bf16.msra.mxu0 %v7411
        %7655 = vmatpush.bf16.msra.mxu0 %v7409
        %7656 = vmatpush.bf16.msra.mxu0 %v7407
        %7657 = vmatpush.bf16.msra.mxu0 %v7405
        %7658 = vmatpush.bf16.msra.mxu0 %v7403
        %7659 = vmatpush.bf16.msra.mxu0 %v7401
        %7660 = vmatmul.bf16.gmra.mxu0 %v7124
        %v7661 = vpop.f32.mrf.mxu0
        %v7662 = vadd.f32 %v7644, %v7661
        %v7663 = vpop.f32.mrf.mxu0
        %v7664 = vadd.f32 %v7646, %v7663
        %7665 = vmatmul.bf16.gmra.mxu0 %v7123
        %v7666 = vpop.f32.mrf.mxu0
        %v7667 = vadd.f32 %v7649, %v7666
        %v7668 = vpop.f32.mrf.mxu0
        %7669 = vdwg.mxu0
        %7670 = vmatpush.bf16.msra.mxu0 %v7431
        %7671 = vmatpush.bf16.msra.mxu0 %v7429
        %7672 = vmatpush.bf16.msra.mxu0 %v7427
        %7673 = vmatpush.bf16.msra.mxu0 %v7425
        %7674 = vmatpush.bf16.msra.mxu0 %v7423
        %7675 = vmatpush.bf16.msra.mxu0 %v7421
        %7676 = vmatpush.bf16.msra.mxu0 %v7419
        %7677 = vmatpush.bf16.msra.mxu0 %v7417
        %7678 = vmatmul.bf16.gmra.mxu0 %v7127
        %v7679 = vpop.f32.mrf.mxu0
        %v7680 = vadd.f32 %v7662, %v7679
        %v7681 = vpop.f32.mrf.mxu0
        %v7682 = vadd.f32 %v7664, %v7681
        %7683 = vmatmul.bf16.gmra.mxu0 %v7126
        %v7684 = vpop.f32.mrf.mxu0
        %v7685 = vadd.f32 %v7667, %v7684
        %v7686 = vpop.f32.mrf.mxu0
        %7687 = vdwg.mxu0
        %7688 = vmatpush.bf16.msra.mxu0 %v7447
        %7689 = vmatpush.bf16.msra.mxu0 %v7445
        %7690 = vmatpush.bf16.msra.mxu0 %v7443
        %7691 = vmatpush.bf16.msra.mxu0 %v7441
        %7692 = vmatpush.bf16.msra.mxu0 %v7439
        %7693 = vmatpush.bf16.msra.mxu0 %v7437
        %7694 = vmatpush.bf16.msra.mxu0 %v7435
        %7695 = vmatpush.bf16.msra.mxu0 %v7433
        %7696 = vmatmul.bf16.gmra.mxu0 %v7130
        %v7697 = vpop.f32.mrf.mxu0
        %v7698 = vadd.f32 %v7680, %v7697
        %v7699 = vpop.f32.mrf.mxu0
        %v7700 = vadd.f32 %v7682, %v7699
        %7701 = vmatmul.bf16.gmra.mxu0 %v7129
        %v7702 = vpop.f32.mrf.mxu0
        %v7703 = vadd.f32 %v7685, %v7702
        %v7704 = vpop.f32.mrf.mxu0
        %7705 = vdwg.mxu0
        %7706 = vmatpush.bf16.msra.mxu0 %v7463
        %7707 = vmatpush.bf16.msra.mxu0 %v7461
        %7708 = vmatpush.bf16.msra.mxu0 %v7459
        %7709 = vmatpush.bf16.msra.mxu0 %v7457
        %7710 = vmatpush.bf16.msra.mxu0 %v7455
        %7711 = vmatpush.bf16.msra.mxu0 %v7453
        %7712 = vmatpush.bf16.msra.mxu0 %v7451
        %7713 = vmatpush.bf16.msra.mxu0 %v7449
        %7714 = vmatmul.bf16.gmra.mxu0 %v7133
        %v7715 = vpop.f32.mrf.mxu0
        %v7716 = vadd.f32 %v7698, %v7715
        %v7717 = vpop.f32.mrf.mxu0
        %v7718 = vadd.f32 %v7700, %v7717
        %7719 = vmatmul.bf16.gmra.mxu0 %v7132
        %v7720 = vpop.f32.mrf.mxu0
        %v7721 = vadd.f32 %v7703, %v7720
        %v7722 = vpop.f32.mrf.mxu0
        %7723 = vdwg.mxu0
        %v7724 = vadd.f32 %v7017, %v7626
        %v7725 = vadd.f32 %v7018, %v7716
        %v7726 = vadd.f32 %v7019, %v7628
        %v7727 = vadd.f32 %v7020, %v7718
        %v7728 = vadd.f32 %v7021, %v7631
        %v7729 = vadd.f32 %v7022, %v7721
        %v7730 = vmax.f32 %v7724, %v7725
        %v7731 = vmax.f32 %v7726, %v7727
        %v7732 = vmax.f32 %v7728, %v7729
        %v7733 = vadd.f32 %v7730, %v3999
        %v7734 = vadd.f32 %v7731, %v3999
        %v7735 = vadd.f32 %v7732, %v3999
        %v7736 = vmax.f32 %v7733, 0.0
        %v7737 = vmax.f32 %v7734, 0.0
        %v7738 = vmax.f32 %v7735, 0.0
        %v7739 = vpack.c.bf16 %v7737, %v7736
        %v7740 = vpack.c.bf16 %v7738, %v7738
        %v7742 = vsel %vm4018, %v7740, 0
        %7744 = vmatpush.bf16.msra.mxu0 0
        %7745 = vmatpush.bf16.msra.mxu0 0
        %7746 = vmatpush.bf16.msra.mxu0 0
        %7747 = vmatpush.bf16.msra.mxu0 0
        %7748 = vmatpush.bf16.msra.mxu0 0
        %7749 = vmatpush.bf16.msra.mxu0 0
        %7750 = vmatpush.bf16.msra.mxu0 %v7742
        %7751 = vmatpush.bf16.msra.mxu0 %v7739
        %7752 = vmatmul.bf16.gmra.mxu0 %v4016
        %v7753 = vpop.f32.mrf.mxu0
        %v7754 = vadd.f32 0.0, %v7753
        %v7755 = vpop.f32.mrf.mxu0
        %v7756 = vadd.f32 0.0, %v7755
        %7757 = vdwg.mxu0
        %7758 = vmatpush.bf16.msra.mxu0 0
        %7759 = vmatpush.bf16.msra.mxu0 0
        %7760 = vmatpush.bf16.msra.mxu0 0
        %7761 = vmatpush.bf16.msra.mxu0 0
        %7762 = vmatpush.bf16.msra.mxu0 0
        %7763 = vmatpush.bf16.msra.mxu0 0
        %7764 = vmatpush.bf16.msra.mxu0 %v7742
        %7765 = vmatpush.bf16.msra.mxu0 %v7739
        %7766 = vmatmul.bf16.gmra.mxu0 %v4042
        %v7767 = vpop.f32.mrf.mxu0
        %v7768 = vadd.f32 0.0, %v7767
        %v7769 = vpop.f32.mrf.mxu0
        %v7770 = vadd.f32 0.0, %v7769
        %7771 = vdwg.mxu0
        %v7772 = vmax.f32 %v7754, %v7768
        %v7773 = vmax.f32 %v7756, %v7770
        %v7774 = vpack.c.bf16 %v7772, %v7772
        %v7775 = vpack.c.bf16 %v7773, %v7773
        %s7776 = scalar_lea.vmem %s313, 8 [#allocation3]
        %7777 = vst [vmem:[%s7776] sm:$0xf] %v7774
        %7778 = vst [vmem:[%s7776 + $0x4] sm:$0x3] %v7775
        %s7779 = sand.u32 %s150, 1
        %s7780 = sand.u32 %s150, 1
        %s7781 = smul.addr %s7780, 16
        %s7782 = scalar_lea.vmem [#allocation3], %s7781
        // Predicated region
        $region67: #{cnn_forward.4} parent=61 // pred_check
          %p7783 = pneg %p160
        $region68: #{cnn_forward.4} parent=61 // pred_check_branch
          %7785 = sbr.rel (%p7783) target = $region70
        $region69: #{cnn_forward.4} parent=61 // pred_region
          %s7786 = smul.u32 2, %s21
          %s7787 = smul.addr %s7786, 6
          %s7788 = sadd.s32 %s20, %s7787
          %s7789 = smul.addr %s7788, 4
          %s7790 = scalar_lea.vmem %s5, %s7789
          // Predicated region
          $region71: #{cnn_forward.4} parent=69 // pred_check
            _
          $region72: #{cnn_forward.4} parent=69 // pred_check_branch
            %7792 = sbr.rel (0) target = $region74
          $region73: #{cnn_forward.4} parent=69 // pred_region
            // Predicated region
            $region75: #{cnn_forward.4} parent=73 // pred_check
              _
            $region76: #{cnn_forward.4} parent=73 // pred_check_branch
              %7794 = sbr.rel target = $region78
            $region77: #{cnn_forward.4} parent=73 // pred_region
              // Predicated region
              $region90: #{cnn_forward.4} parent=77 // pred_check
                _
              $region91: #{cnn_forward.4} parent=77 // pred_check_branch
                %7816 = sbr.rel (0) target = $region93
              $region92: #{cnn_forward.4} parent=77 // pred_region
                loop: start=0, step=1, limit=1
                $region94: #{cnn_forward.4} parent=92 // loop_pre_header
                  _
                $region95: #{cnn_forward.4} parent=92 // loop_header
                  %s7818 = sphi 0, %s7822
                  %p7819 = scmp.ge.s32.totalorder %s7818, 1
                  %s7823 = sphi %s7782, %s7782
                  %s7824 = sphi %s7790, %s7790
                $region96: #{cnn_forward.4} parent=92 // loop_header_branch
                  %7821 = sbr.rel (%p7819) target = $region100
                $region97: #{cnn_forward.4} parent=92 // loop_body
                  _
                $region98: #{cnn_forward.4} parent=92 // loop_footer
                  %s7822 = sadd.s32 1, %s7818
                $region99: #{cnn_forward.4} parent=92 // loop_footer_branch
                  %7817 = sbr.rel target = $region95
                $region100: #{cnn_forward.4} parent=92 // loop_exit
                  _
                %s7826 = ssub.s32 16, 1
                loop: start=0, step=1, limit=1
                $region101: #{cnn_forward.4} parent=92 // loop_pre_header
                  _
                $region102: #{cnn_forward.4} parent=92 // loop_header
                  %s7828 = sphi 0, %s7832
                  %p7829 = scmp.ge.s32.totalorder %s7828, 1
                  %s7833 = sphi %s7782, %s7782
                  %s7834 = sphi %s7790, %s7790
                $region103: #{cnn_forward.4} parent=92 // loop_header_branch
                  %7831 = sbr.rel (%p7829) target = $region107
                $region104: #{cnn_forward.4} parent=92 // loop_body
                  %v7835 = vld [vmem:[%s7833] sm:%s7826]
                  %7836 = vst [vmem:[%s7834] sm:%s7826] %v7835
                  %v7837 = vld [vmem:[%s7833 + $0x4] sm:%s7826]
                  %7838 = vst [vmem:[%s7834 + $0xc] sm:%s7826] %v7837
                  %v7839 = vld [vmem:[%s7833 + $0x8] sm:%s7826]
                  %7840 = vst [vmem:[%s7834 + $0x18] sm:%s7826] %v7839
                  %v7841 = vld [vmem:[%s7833 + $0xc] sm:%s7826]
                  %7842 = vst [vmem:[%s7834 + $0x24] sm:%s7826] %v7841
                $region105: #{cnn_forward.4} parent=92 // loop_footer
                  %s7832 = sadd.s32 1, %s7828
                $region106: #{cnn_forward.4} parent=92 // loop_footer_branch
                  %7827 = sbr.rel target = $region102
                $region107: #{cnn_forward.4} parent=92 // loop_exit
                  _
              $region93: #{cnn_forward.4} parent=77 // pred_fallthru
                _
            $region78: #{cnn_forward.4} parent=73 // pred_fallthru
              _
            // Predicated region
            $region79: #{cnn_forward.4} parent=73 // pred_check
              _
            $region80: #{cnn_forward.4} parent=73 // pred_check_branch
              %7796 = sbr.rel (0) target = $region82
            $region81: #{cnn_forward.4} parent=73 // pred_region
              %s7798 = ssub.s32 16, 1
              loop: start=0, step=1, limit=1
              $region83: #{cnn_forward.4} parent=81 // loop_pre_header
                _
              $region84: #{cnn_forward.4} parent=81 // loop_header
                %s7800 = sphi 0, %s7804
                %p7801 = scmp.ge.s32.totalorder %s7800, 1
                %s7805 = sphi %s7782, %s7782
                %s7806 = sphi %s7790, %s7790
              $region85: #{cnn_forward.4} parent=81 // loop_header_branch
                %7803 = sbr.rel (%p7801) target = $region89
              $region86: #{cnn_forward.4} parent=81 // loop_body
                %v7807 = vld [vmem:[%s7805] sm:%s7798]
                %7808 = vst [vmem:[%s7806] sm:%s7798] %v7807
                %v7809 = vld [vmem:[%s7805 + $0x4] sm:%s7798]
                %7810 = vst [vmem:[%s7806 + $0xc] sm:%s7798] %v7809
                %v7811 = vld [vmem:[%s7805 + $0x8] sm:%s7798]
                %7812 = vst [vmem:[%s7806 + $0x18] sm:%s7798] %v7811
                %v7813 = vld [vmem:[%s7805 + $0xc] sm:%s7798]
                %7814 = vst [vmem:[%s7806 + $0x24] sm:%s7798] %v7813
              $region87: #{cnn_forward.4} parent=81 // loop_footer
                %s7804 = sadd.s32 1, %s7800
              $region88: #{cnn_forward.4} parent=81 // loop_footer_branch
                %7799 = sbr.rel target = $region84
              $region89: #{cnn_forward.4} parent=81 // loop_exit
                _
            $region82: #{cnn_forward.4} parent=73 // pred_fallthru
              _
          $region74: #{cnn_forward.4} parent=69 // pred_fallthru
            _
          %7843 = vnop
        $region70: #{cnn_forward.4} parent=61 // pred_fallthru
          _
      $region62: #{cnn_forward.4} parent=5 // pred_fallthru
        _
      %p7844 = scmp.le.s32.totalorder 2, %s11
      // Predicated region
      $region108: #{cnn_forward.4} parent=5 // pred_check
        %p7845 = pneg %p7844
      $region109: #{cnn_forward.4} parent=5 // pred_check_branch
        %7847 = sbr.rel (%p7845) target = $region111
      $region110: #{cnn_forward.4} parent=5 // pred_region
        %s7848 = ssub.s32 %s11, 2
        // Predicated region
        $region112: #{cnn_forward.4} parent=110 // pred_check
          %p7849 = pneg %p166
        $region113: #{cnn_forward.4} parent=110 // pred_check_branch
          %7851 = sbr.rel (%p7849) target = $region115
        $region114: #{cnn_forward.4} parent=110 // pred_region
          %s7852 = sand.u32 %s151, 1
          %s7853 = sand.u32 %s151, 1
          %s7854 = smul.addr %s7853, 16
          %s7855 = scalar_lea.vmem [#allocation3], %s7854
        $region115: #{cnn_forward.4} parent=110 // pred_fallthru
          _
      $region111: #{cnn_forward.4} parent=5 // pred_fallthru
        _
    $region6: #{cnn_forward.4} parent=1 // loop_footer
      %s15 = sadd.s32 1, %s11
    $region7: #{cnn_forward.4} parent=1 // loop_footer_branch
      %10 = sbr.rel target = $region3
    $region8: #{cnn_forward.4} parent=1 // loop_exit
      _

</llo_original>
